<compile_context>
chip_gen: v7x
topology: tpu7x:2x2x1
jax: 0.10.0
libtpu: 0.0.40
codegen_flags: <defaults>
</compile_context>

<pallas_src>
import math

import jax
import jax.numpy as jnp
from jax.experimental import pallas as pl
from jax.experimental.pallas import tpu as pltpu


def _dot(a, b):
    # Default matmul precision: single bf16 MXU pass with f32 accumulation.
    return jnp.dot(a, b, preferred_element_type=jnp.float32)


def _sigmoid(x):
    # Explicit formula (plain exp lowers cleanly in Mosaic; numerically safe).
    return 1.0 / (1.0 + jnp.exp(-x))


# -----------------------------------------------------------------------------
# Fused bidirectional RITS kernel (both directions in a single invocation).
# -----------------------------------------------------------------------------
def brits_kernel(X_ref, M_ref, D_ref,
                 WdhT_ref, bdh_ref, wdx_ref, bdx_ref,
                 WhistT_ref, bhist_ref, WfeatT_ref, bfeat_ref,
                 WcgT_ref, WcmT_ref, bcomb_ref,
                 WixT_ref, WimT_ref, WhhT_ref, blstm_ref,
                 imputed_ref, recon_ref, hout_ref, loss_ref):
    NDIR, B, T, F_ = X_ref.shape
    H = WhhT_ref.shape[1]
    G = 4 * H
    f32 = jnp.float32

    # ---- load inputs once; everything below is sliced as values -------------
    Xv = X_ref[...]                                   # (2, B, T, F)
    Mv = M_ref[...]
    Dv = D_ref[...]

    # ---- per-direction hoisted precompute (batched over all B*T steps) ------
    xs, ms, gh, al, mg, mw = [], [], [], [], [], []
    Whist, Wfeat, Wix, Whh, bhist_b, bfeat_b = [], [], [], [], [], []
    for d in range(NDIR):
        Xd, Md, Dd = Xv[d], Mv[d], Dv[d]              # (B, T, F)
        Df = Dd.reshape(B * T, F_)
        Mf = Md.reshape(B * T, F_)
        xs.append(Xd)
        ms.append(Md)

        # temporal decay of the hidden state (input-only)
        gh.append(jnp.exp(-jax.nn.relu(
            _dot(Df, WdhT_ref[d]) + bdh_ref[d])).reshape(B, T, H))

        # temporal decay in feature space: diagonal weight -> VPU elementwise
        gx = jnp.exp(-jax.nn.relu(Df * wdx_ref[d] + bdx_ref[d]))

        # combining weight alpha = sigmoid(Linear(concat([gamma_x, m])))
        al.append(_sigmoid(
            _dot(gx, WcgT_ref[d]) + _dot(Mf, WcmT_ref[d])
            + bcomb_ref[d]).reshape(B, T, F_))

        # mask half of the LSTM gate pre-activation, LSTM biases folded in
        mg.append((_dot(Mf, WimT_ref[d]) + blstm_ref[d]).reshape(B, T, G))

        # per-step masked-MAE weights  m / (sum_{b,f} m[:, t, :] + 1e-12)
        msum = jnp.sum(jnp.sum(Md, axis=2, keepdims=True), axis=0, keepdims=True)
        mw.append(Md * (1.0 / (msum + 1e-12)))

        # hoisted weight / bias reads (broadcasts emitted once, not per step)
        Whist.append(WhistT_ref[d])
        Wfeat.append(WfeatT_ref[d])
        Wix.append(WixT_ref[d])
        Whh.append(WhhT_ref[d])
        bhist_b.append(jnp.broadcast_to(bhist_ref[d], (B, F_)))
        bfeat_b.append(jnp.broadcast_to(bfeat_ref[d], (B, F_)))

    h = [jnp.zeros((B, H), f32) for _ in range(NDIR)]
    c = [jnp.zeros((B, H), f32) for _ in range(NDIR)]
    loss_acc = [jnp.zeros((B, F_), f32) for _ in range(NDIR)]
    recon_steps = [[] for _ in range(NDIR)]
    imp_steps = [[] for _ in range(NDIR)]

    # ---- truly recurrent part: fully unrolled static time loop --------------
    # The fwd / bwd chains are independent; emitting them interleaved lets the
    # scheduler overlap their MXU / EUP latencies on a single TensorCore.
    for t in range(T):
        for d in range(NDIR):
            x = xs[d][:, t, :]
            m = ms[d][:, t, :]
            gamma_h = gh[d][:, t, :]
            alpha = al[d][:, t, :]
            m_gate = mg[d][:, t, :]
            m_w = mw[d][:, t, :]

            hd = h[d] * gamma_h                           # decayed hidden state
            x_h = _dot(hd, Whist[d]) + bhist_b[d]         # history regression
            x_c = m * x + (1.0 - m) * x_h
            z_h = _dot(x_c, Wfeat[d]) + bfeat_b[d]        # feature regression
            c_h = alpha * z_h + (1.0 - alpha) * x_h
            c_c = m * x + (1.0 - m) * c_h

            # fused masked-MAE terms (single reduction after the loop)
            loss_acc[d] = loss_acc[d] + (jnp.abs(x_h - x) + jnp.abs(z_h - x)
                                         + jnp.abs(c_h - x)) * m_w

            recon_steps[d].append(c_h)
            imp_steps[d].append(c_c)   # == m*x + (1-m)*reconstruction at step t

            # LSTM cell on concat([c_c, m]); m-term and biases precomputed.
            gates = _dot(c_c, Wix[d]) + _dot(hd, Whh[d]) + m_gate   # (B, 4H)
            sig = _sigmoid(gates)      # one pass over the full 4H = 128 lanes
            tnh = jnp.tanh(gates)      # one pass over the full 4H = 128 lanes
            i_g = sig[:, 0:H]
            f_g = sig[:, H:2 * H]
            g_g = tnh[:, 2 * H:3 * H]
            o_g = sig[:, 3 * H:4 * H]
            c[d] = f_g * c[d] + i_g * g_g
            h[d] = o_g * jnp.tanh(c[d])

    # ---- single full-block, time-major store per direction ------------------
    for d in range(NDIR):
        recon_ref[d] = jnp.stack(recon_steps[d], axis=0)      # (T, B, F)
        imputed_ref[d] = jnp.stack(imp_steps[d], axis=0)      # (T, B, F)
        hout_ref[d] = h[d]
        loss_ref[d] = jnp.sum(loss_acc[d]) / (T * 3.0)        # scalar via SMEM


# -----------------------------------------------------------------------------
# Parameter init (deterministic, mimics the PyTorch module's uniform init ranges)
# -----------------------------------------------------------------------------
def init_rits_params(key, n_features, rnn_hidden_size):
    F_, H = n_features, rnn_hidden_size
    ks = jax.random.split(key, 14)
    u = lambda k, shape, s: jax.random.uniform(k, shape, jnp.float32, -s, s)

    s_lstm = 1.0 / math.sqrt(H)
    s_h = 1.0 / math.sqrt(H)
    s_f = 1.0 / math.sqrt(F_)
    s_c = 1.0 / math.sqrt(2 * F_)

    return dict(
        Wih=u(ks[0], (4 * H, 2 * F_), s_lstm),
        Whh=u(ks[1], (4 * H, H), s_lstm),
        bih=u(ks[2], (4 * H,), s_lstm),
        bhh=u(ks[3], (4 * H,), s_lstm),
        Wdh=u(ks[4], (H, F_), s_h),
        bdh=u(ks[5], (H,), s_h),
        Wdx=u(ks[6], (F_, F_), s_f) * jnp.eye(F_, dtype=jnp.float32),            # diag=True
        bdx=u(ks[7], (F_,), s_f),
        Whist=u(ks[8], (F_, H), s_h),
        bhist=u(ks[9], (F_,), s_h),
        Wfeat=u(ks[10], (F_, F_), s_f) * (1.0 - jnp.eye(F_, dtype=jnp.float32)),  # zero diag
        bfeat=u(ks[11], (F_,), s_f),
        Wcomb=u(ks[12], (F_, 2 * F_), s_c),
        bcomb=u(ks[13], (F_,), s_c),
    )


def _prep_dir_params(p, n_features):
    F_ = n_features
    return [
        p["Wdh"].T, p["bdh"].reshape(1, -1),
        jnp.diag(p["Wdx"]).reshape(1, -1), p["bdx"].reshape(1, -1),   # diag only
        p["Whist"].T, p["bhist"].reshape(1, -1),
        p["Wfeat"].T, p["bfeat"].reshape(1, -1),
        p["Wcomb"][:, :F_].T, p["Wcomb"][:, F_:].T, p["bcomb"].reshape(1, -1),
        p["Wih"][:, :F_].T, p["Wih"][:, F_:].T, p["Whh"].T,
        (p["bih"] + p["bhh"]).reshape(1, -1),
    ]


# -----------------------------------------------------------------------------
# Wrapper: one fused pallas_call for both directions + trivial jnp combine.
# -----------------------------------------------------------------------------
def backbone_brits_forward(X_f, M_f, D_f, X_b, M_b, D_b, p_f, p_b):
    """Inputs in PyTorch (B, T, F) layout. Returns (imputed_data,
    f_reconstruction, b_reconstruction, f_hidden_states, b_hidden_states,
    consistency_loss, reconstruction_loss), matching BackboneBRITS.forward."""
    B, T, F_ = X_f.shape
    H = p_f["Whh"].shape[1]
    f32 = jnp.float32

    stack2 = lambda a, b: jnp.stack([jnp.asarray(a, f32), jnp.asarray(b, f32)], axis=0)

    args = ([stack2(X_f, X_b), stack2(M_f, M_b), stack2(D_f, D_b)]
            + [stack2(a, b) for a, b in zip(_prep_dir_params(p_f, F_),
                                            _prep_dir_params(p_b, F_))])

    vmem = pl.BlockSpec(memory_space=pltpu.MemorySpace.VMEM)
    smem = pl.BlockSpec(memory_space=pltpu.MemorySpace.SMEM)

    out_shape = (
        jax.ShapeDtypeStruct((2, T, B, F_), f32),   # per-direction imputation (time-major)
        jax.ShapeDtypeStruct((2, T, B, F_), f32),   # per-direction reconstruction (time-major)
        jax.ShapeDtypeStruct((2, B, H), f32),       # final hidden states
        jax.ShapeDtypeStruct((2,), f32),            # per-direction recon loss (SMEM)
    )

    fn = pl.pallas_call(
        brits_kernel,
        out_shape=out_shape,
        in_specs=[vmem] * len(args),
        out_specs=(vmem, vmem, vmem, smem),
        compiler_params=pltpu.CompilerParams(vmem_limit_bytes=32 * 1024 * 1024),
    )
    imp_s, rec_s, h_s, loss_s = fn(*args)

    # cheap XLA layout glue: (dir, T, B, F) -> (dir, B, T, F)
    imp_s = jnp.transpose(imp_s, (0, 2, 1, 3))
    rec_s = jnp.transpose(rec_s, (0, 2, 1, 3))

    # _reverse(): flip time (dim 1) of the 3-D backward outputs; the PyTorch
    # helper also flips dim 1 of the 2-D hidden state, reproduced here exactly.
    b_imp_rev = jnp.flip(imp_s[1], axis=1)
    b_rec_rev = jnp.flip(rec_s[1], axis=1)
    b_h_rev = jnp.flip(h_s[1], axis=1)

    # final bidirectional combine: trivial elementwise + one mean, plain XLA.
    imputed_data = 0.5 * (imp_s[0] + b_imp_rev)
    consistency_loss = jnp.mean(jnp.abs(imp_s[0] - b_imp_rev)) * 0.1
    reconstruction_loss = loss_s[0] + loss_s[1]

    return (imputed_data, rec_s[0], b_rec_rev, h_s[0], b_h_rev,
            consistency_loss, reconstruction_loss)


# -----------------------------------------------------------------------------
# Pure-JAX reference (mirrors the PyTorch module op-for-op) for validation.
# -----------------------------------------------------------------------------
def _rits_reference(X, M, D, p):
    B, T, F_ = X.shape
    H = p["Whh"].shape[1]
    h = jnp.zeros((B, H), jnp.float32)
    c = jnp.zeros((B, H), jnp.float32)
    loss = jnp.float32(0.0)
    estimates = []
    for t in range(T):
        x, m, d = X[:, t, :], M[:, t, :], D[:, t, :]
        gamma_h = jnp.exp(-jax.nn.relu(d @ p["Wdh"].T + p["bdh"]))
        gamma_x = jnp.exp(-jax.nn.relu(d @ p["Wdx"].T + p["bdx"]))
        h = h * gamma_h
        x_h = h @ p["Whist"].T + p["bhist"]
        loss = loss + jnp.sum(jnp.abs(x_h - x) * m) / (jnp.sum(m) + 1e-12)
        x_c = m * x + (1 - m) * x_h
        z_h = x_c @ p["Wfeat"].T + p["bfeat"]
        loss = loss + jnp.sum(jnp.abs(z_h - x) * m) / (jnp.sum(m) + 1e-12)
        alpha = jax.nn.sigmoid(
            jnp.concatenate([gamma_x, m], axis=1) @ p["Wcomb"].T + p["bcomb"])
        c_h = alpha * z_h + (1 - alpha) * x_h
        loss = loss + jnp.sum(jnp.abs(c_h - x) * m) / (jnp.sum(m) + 1e-12)
        c_c = m * x + (1 - m) * c_h
        estimates.append(c_h[:, None, :])
        gates = (jnp.concatenate([c_c, m], axis=1) @ p["Wih"].T + p["bih"]
                 + h @ p["Whh"].T + p["bhh"])
        i_g = jax.nn.sigmoid(gates[:, :H])
        f_g = jax.nn.sigmoid(gates[:, H:2 * H])
        g_g = jnp.tanh(gates[:, 2 * H:3 * H])
        o_g = jax.nn.sigmoid(gates[:, 3 * H:])
        c = f_g * c + i_g * g_g
        h = o_g * jnp.tanh(c)
    recon = jnp.concatenate(estimates, axis=1)
    imputed = M * X + (1 - M) * recon
    return imputed, recon, h, loss / (T * 3.0)


def _brits_reference(X_f, M_f, D_f, X_b, M_b, D_b, p_f, p_b):
    f_imp, f_rec, f_h, f_loss = _rits_reference(X_f, M_f, D_f, p_f)
    b_imp, b_rec, b_h, b_loss = _rits_reference(X_b, M_b, D_b, p_b)
    b_imp = jnp.flip(b_imp, axis=1)
    b_rec = jnp.flip(b_rec, axis=1)
    b_h = jnp.flip(b_h, axis=1)
    imputed = 0.5 * (f_imp + b_imp)
    consistency = jnp.mean(jnp.abs(f_imp - b_imp)) * 0.1
    return (imputed, f_rec, b_rec, f_h, b_h, consistency, f_loss + b_loss)


# -----------------------------------------------------------------------------
# Main
# -----------------------------------------------------------------------------
if __name__ == "__main__":
    B, T, F_, H = 2, 8, 4, 32

    key = jax.random.PRNGKey(0)
    k1, k2, k3, k4, k5 = jax.random.split(key, 5)

    # forward-direction inputs
    mask_f = (jax.random.uniform(k2, (B, T, F_)) > 0.2).astype(jnp.float32)
    X_f = jax.random.normal(k1, (B, T, F_), jnp.float32) * mask_f
    deltas_f = jax.random.uniform(k3, (B, T, F_), jnp.float32, 0.0, 2.0)

    # backward-direction inputs (time-reversed, standard BRITS preprocessing)
    X_b = jnp.flip(X_f, axis=1)
    mask_b = jnp.flip(mask_f, axis=1)
    deltas_b = jnp.flip(deltas_f, axis=1)

    params_f = init_rits_params(k4, F_, H)
    params_b = init_rits_params(k5, F_, H)

    fwd = jax.jit(backbone_brits_forward)
    outs = jax.block_until_ready(
        fwd(X_f, mask_f, deltas_f, X_b, mask_b, deltas_b, params_f, params_b))

    (imputed_data, f_recon, b_recon, f_hidden, b_hidden,
     consistency_loss, reconstruction_loss) = outs
    assert imputed_data.shape == (B, T, F_)
    assert f_recon.shape == (B, T, F_) and b_recon.shape == (B, T, F_)
    assert f_hidden.shape == (B, H) and b_hidden.shape == (B, H)
    for o in outs:
        assert not bool(jnp.isnan(jnp.asarray(o)).any())

    # validate against the pure-JAX reference of the PyTorch module
    refs = jax.jit(_brits_reference)(
        X_f, mask_f, deltas_f, X_b, mask_b, deltas_b, params_f, params_b)
    names = ["imputed_data", "f_reconstruction", "b_reconstruction",
             "f_hidden_states", "b_hidden_states", "consistency_loss",
             "reconstruction_loss"]
    for name, got, want in zip(names, outs, refs):
        assert bool(jnp.allclose(got, want, rtol=1e-2, atol=1e-3)), (
            f"{name} mismatch: max|diff|="
            f"{float(jnp.max(jnp.abs(jnp.asarray(got) - jnp.asarray(want))))}")

    print("KERNEL_OK")
</pallas_src>

<mosaic_0001>
module attributes {stable_mosaic.version = 11 : i64} {
  func.func @brits_kernel(%arg0: memref<2x2x8x4xf32, #tpu.memory_space<vmem>>, %arg1: memref<2x2x8x4xf32, #tpu.memory_space<vmem>>, %arg2: memref<2x2x8x4xf32, #tpu.memory_space<vmem>>, %arg3: memref<2x4x32xf32, #tpu.memory_space<vmem>>, %arg4: memref<2x1x32xf32, #tpu.memory_space<vmem>>, %arg5: memref<2x1x4xf32, #tpu.memory_space<vmem>>, %arg6: memref<2x1x4xf32, #tpu.memory_space<vmem>>, %arg7: memref<2x32x4xf32, #tpu.memory_space<vmem>>, %arg8: memref<2x1x4xf32, #tpu.memory_space<vmem>>, %arg9: memref<2x4x4xf32, #tpu.memory_space<vmem>>, %arg10: memref<2x1x4xf32, #tpu.memory_space<vmem>>, %arg11: memref<2x4x4xf32, #tpu.memory_space<vmem>>, %arg12: memref<2x4x4xf32, #tpu.memory_space<vmem>>, %arg13: memref<2x1x4xf32, #tpu.memory_space<vmem>>, %arg14: memref<2x4x128xf32, #tpu.memory_space<vmem>>, %arg15: memref<2x4x128xf32, #tpu.memory_space<vmem>>, %arg16: memref<2x32x128xf32, #tpu.memory_space<vmem>>, %arg17: memref<2x1x128xf32, #tpu.memory_space<vmem>>, %arg18: memref<2x8x2x4xf32, #tpu.memory_space<vmem>>, %arg19: memref<2x8x2x4xf32, #tpu.memory_space<vmem>>, %arg20: memref<2x2x32xf32, #tpu.memory_space<vmem>>, %arg21: memref<2xf32, #tpu.memory_space<smem>>) attributes {dimension_semantics = [], scalar_prefetch = 0 : i64, scratch_operands = 0 : i64, tpu.core_type = #tpu.core_type<tc>} {
    %c0 = arith.constant 0 : index
    %c0_0 = arith.constant 0 : index
    %c0_1 = arith.constant 0 : index
    %c0_2 = arith.constant 0 : index
    %0 = vector.load %arg0[%c0, %c0_0, %c0_1, %c0_2] : memref<2x2x8x4xf32, #tpu.memory_space<vmem>>, vector<2x2x8x4xf32>
    %c0_3 = arith.constant 0 : index
    %c0_4 = arith.constant 0 : index
    %c0_5 = arith.constant 0 : index
    %c0_6 = arith.constant 0 : index
    %1 = vector.load %arg1[%c0_3, %c0_4, %c0_5, %c0_6] : memref<2x2x8x4xf32, #tpu.memory_space<vmem>>, vector<2x2x8x4xf32>
    %c0_7 = arith.constant 0 : index
    %c0_8 = arith.constant 0 : index
    %c0_9 = arith.constant 0 : index
    %c0_10 = arith.constant 0 : index
    %2 = vector.load %arg2[%c0_7, %c0_8, %c0_9, %c0_10] : memref<2x2x8x4xf32, #tpu.memory_space<vmem>>, vector<2x2x8x4xf32>
    %3 = vector.extract_strided_slice %0 {offsets = [0, 0, 0, 0], sizes = [1, 2, 8, 4], strides = [1, 1, 1, 1]} : vector<2x2x8x4xf32> to vector<1x2x8x4xf32>
    %4 = vector.shape_cast %3 : vector<1x2x8x4xf32> to vector<2x8x4xf32>
    %5 = vector.extract_strided_slice %1 {offsets = [0, 0, 0, 0], sizes = [1, 2, 8, 4], strides = [1, 1, 1, 1]} : vector<2x2x8x4xf32> to vector<1x2x8x4xf32>
    %6 = vector.shape_cast %5 : vector<1x2x8x4xf32> to vector<2x8x4xf32>
    %7 = vector.extract_strided_slice %2 {offsets = [0, 0, 0, 0], sizes = [1, 2, 8, 4], strides = [1, 1, 1, 1]} : vector<2x2x8x4xf32> to vector<1x2x8x4xf32>
    %8 = vector.shape_cast %7 : vector<1x2x8x4xf32> to vector<2x8x4xf32>
    %9 = vector.shape_cast %8 : vector<2x8x4xf32> to vector<16x4xf32>
    %10 = vector.shape_cast %6 : vector<2x8x4xf32> to vector<16x4xf32>
    %c0_11 = arith.constant 0 : index
    %c0_12 = arith.constant 0 : index
    %c0_13 = arith.constant 0 : index
    %11 = vector.load %arg3[%c0_11, %c0_12, %c0_13] : memref<2x4x32xf32, #tpu.memory_space<vmem>>, vector<1x4x32xf32>
    %12 = vector.shape_cast %11 : vector<1x4x32xf32> to vector<4x32xf32>
    %cst = arith.constant dense<0.000000e+00> : vector<16x32xf32>
    %13 = tpu.matmul %9, %12, %cst {dimension_numbers = #tpu.dot_dimension_numbers<[1], [0], [0], [1], [0, 0, 1, 1], [], []>} : vector<16x4xf32>, vector<4x32xf32>, vector<16x32xf32> -> vector<16x32xf32>
    %c0_14 = arith.constant 0 : index
    %c0_15 = arith.constant 0 : index
    %c0_16 = arith.constant 0 : index
    %14 = vector.load %arg4[%c0_14, %c0_15, %c0_16] : memref<2x1x32xf32, #tpu.memory_space<vmem>>, vector<1x1x32xf32>
    %15 = vector.shape_cast %14 : vector<1x1x32xf32> to vector<1x32xf32>
    %16 = vector.broadcast %15 : vector<1x32xf32> to vector<16x32xf32>
    %17 = arith.addf %13, %16 : vector<16x32xf32>
    %cst_17 = arith.constant 0.000000e+00 : f32
    %18 = vector.broadcast %cst_17 : f32 to vector<16x32xf32>
    %19 = arith.maximumf %17, %18 : vector<16x32xf32>
    %cst_18 = arith.constant 0.000000e+00 : f32
    %20 = vector.broadcast %cst_18 : f32 to vector<16x32xf32>
    %21 = arith.subf %20, %19 : vector<16x32xf32>
    %22 = math.exp %21 : vector<16x32xf32>
    %23 = vector.shape_cast %22 : vector<16x32xf32> to vector<2x8x32xf32>
    %c0_19 = arith.constant 0 : index
    %c0_20 = arith.constant 0 : index
    %c0_21 = arith.constant 0 : index
    %24 = vector.load %arg5[%c0_19, %c0_20, %c0_21] : memref<2x1x4xf32, #tpu.memory_space<vmem>>, vector<1x1x4xf32>
    %25 = vector.shape_cast %24 : vector<1x1x4xf32> to vector<1x4xf32>
    %26 = vector.broadcast %25 : vector<1x4xf32> to vector<16x4xf32>
    %27 = arith.mulf %9, %26 : vector<16x4xf32>
    %c0_22 = arith.constant 0 : index
    %c0_23 = arith.constant 0 : index
    %c0_24 = arith.constant 0 : index
    %28 = vector.load %arg6[%c0_22, %c0_23, %c0_24] : memref<2x1x4xf32, #tpu.memory_space<vmem>>, vector<1x1x4xf32>
    %29 = vector.shape_cast %28 : vector<1x1x4xf32> to vector<1x4xf32>
    %30 = vector.broadcast %29 : vector<1x4xf32> to vector<16x4xf32>
    %31 = arith.addf %27, %30 : vector<16x4xf32>
    %cst_25 = arith.constant 0.000000e+00 : f32
    %32 = vector.broadcast %cst_25 : f32 to vector<16x4xf32>
    %33 = arith.maximumf %31, %32 : vector<16x4xf32>
    %cst_26 = arith.constant 0.000000e+00 : f32
    %34 = vector.broadcast %cst_26 : f32 to vector<16x4xf32>
    %35 = arith.subf %34, %33 : vector<16x4xf32>
    %36 = math.exp %35 : vector<16x4xf32>
    %c0_27 = arith.constant 0 : index
    %c0_28 = arith.constant 0 : index
    %c0_29 = arith.constant 0 : index
    %37 = vector.load %arg11[%c0_27, %c0_28, %c0_29] : memref<2x4x4xf32, #tpu.memory_space<vmem>>, vector<1x4x4xf32>
    %38 = vector.shape_cast %37 : vector<1x4x4xf32> to vector<4x4xf32>
    %cst_30 = arith.constant dense<0.000000e+00> : vector<16x4xf32>
    %39 = tpu.matmul %36, %38, %cst_30 {dimension_numbers = #tpu.dot_dimension_numbers<[1], [0], [0], [1], [0, 0, 1, 1], [], []>} : vector<16x4xf32>, vector<4x4xf32>, vector<16x4xf32> -> vector<16x4xf32>
    %c0_31 = arith.constant 0 : index
    %c0_32 = arith.constant 0 : index
    %c0_33 = arith.constant 0 : index
    %40 = vector.load %arg12[%c0_31, %c0_32, %c0_33] : memref<2x4x4xf32, #tpu.memory_space<vmem>>, vector<1x4x4xf32>
    %41 = vector.shape_cast %40 : vector<1x4x4xf32> to vector<4x4xf32>
    %cst_34 = arith.constant dense<0.000000e+00> : vector<16x4xf32>
    %42 = tpu.matmul %10, %41, %cst_34 {dimension_numbers = #tpu.dot_dimension_numbers<[1], [0], [0], [1], [0, 0, 1, 1], [], []>} : vector<16x4xf32>, vector<4x4xf32>, vector<16x4xf32> -> vector<16x4xf32>
    %43 = arith.addf %39, %42 : vector<16x4xf32>
    %c0_35 = arith.constant 0 : index
    %c0_36 = arith.constant 0 : index
    %c0_37 = arith.constant 0 : index
    %44 = vector.load %arg13[%c0_35, %c0_36, %c0_37] : memref<2x1x4xf32, #tpu.memory_space<vmem>>, vector<1x1x4xf32>
    %45 = vector.shape_cast %44 : vector<1x1x4xf32> to vector<1x4xf32>
    %46 = vector.broadcast %45 : vector<1x4xf32> to vector<16x4xf32>
    %47 = arith.addf %43, %46 : vector<16x4xf32>
    %cst_38 = arith.constant 0.000000e+00 : f32
    %48 = vector.broadcast %cst_38 : f32 to vector<16x4xf32>
    %49 = arith.subf %48, %47 : vector<16x4xf32>
    %50 = math.exp %49 : vector<16x4xf32>
    %cst_39 = arith.constant 1.000000e+00 : f32
    %51 = vector.broadcast %cst_39 : f32 to vector<16x4xf32>
    %52 = arith.addf %51, %50 : vector<16x4xf32>
    %cst_40 = arith.constant 1.000000e+00 : f32
    %53 = vector.broadcast %cst_40 : f32 to vector<16x4xf32>
    %54 = arith.divf %53, %52 : vector<16x4xf32>
    %55 = vector.shape_cast %54 : vector<16x4xf32> to vector<2x8x4xf32>
    %c0_41 = arith.constant 0 : index
    %c0_42 = arith.constant 0 : index
    %c0_43 = arith.constant 0 : index
    %56 = vector.load %arg15[%c0_41, %c0_42, %c0_43] : memref<2x4x128xf32, #tpu.memory_space<vmem>>, vector<1x4x128xf32>
    %57 = vector.shape_cast %56 : vector<1x4x128xf32> to vector<4x128xf32>
    %cst_44 = arith.constant dense<0.000000e+00> : vector<16x128xf32>
    %58 = tpu.matmul %10, %57, %cst_44 {dimension_numbers = #tpu.dot_dimension_numbers<[1], [0], [0], [1], [0, 0, 1, 1], [], []>} : vector<16x4xf32>, vector<4x128xf32>, vector<16x128xf32> -> vector<16x128xf32>
    %c0_45 = arith.constant 0 : index
    %c0_46 = arith.constant 0 : index
    %c0_47 = arith.constant 0 : index
    %59 = vector.load %arg17[%c0_45, %c0_46, %c0_47] : memref<2x1x128xf32, #tpu.memory_space<vmem>>, vector<1x1x128xf32>
    %60 = vector.shape_cast %59 : vector<1x1x128xf32> to vector<1x128xf32>
    %61 = vector.broadcast %60 : vector<1x128xf32> to vector<16x128xf32>
    %62 = arith.addf %58, %61 : vector<16x128xf32>
    %63 = vector.shape_cast %62 : vector<16x128xf32> to vector<2x8x128xf32>
    %cst_48 = arith.constant dense<0.000000e+00> : vector<2x8xf32>
    %64 = vector.multi_reduction <add>, %6, %cst_48 [2] : vector<2x8x4xf32> to vector<2x8xf32>
    %65 = vector.shape_cast %64 : vector<2x8xf32> to vector<2x8x1xf32>
    %cst_49 = arith.constant dense<0.000000e+00> : vector<8x1xf32>
    %66 = vector.multi_reduction <add>, %65, %cst_49 [0] : vector<2x8x1xf32> to vector<8x1xf32>
    %67 = vector.shape_cast %66 : vector<8x1xf32> to vector<1x8x1xf32>
    %cst_50 = arith.constant 9.99999996E-13 : f32
    %68 = vector.broadcast %cst_50 : f32 to vector<1x8x1xf32>
    %69 = arith.addf %67, %68 : vector<1x8x1xf32>
    %cst_51 = arith.constant 1.000000e+00 : f32
    %70 = vector.broadcast %cst_51 : f32 to vector<1x8x1xf32>
    %71 = arith.divf %70, %69 : vector<1x8x1xf32>
    %72 = vector.broadcast %71 : vector<1x8x1xf32> to vector<2x8x4xf32>
    %73 = arith.mulf %6, %72 : vector<2x8x4xf32>
    %c0_52 = arith.constant 0 : index
    %c0_53 = arith.constant 0 : index
    %c0_54 = arith.constant 0 : index
    %74 = vector.load %arg7[%c0_52, %c0_53, %c0_54] : memref<2x32x4xf32, #tpu.memory_space<vmem>>, vector<1x32x4xf32>
    %75 = vector.shape_cast %74 : vector<1x32x4xf32> to vector<32x4xf32>
    %c0_55 = arith.constant 0 : index
    %c0_56 = arith.constant 0 : index
    %c0_57 = arith.constant 0 : index
    %76 = vector.load %arg9[%c0_55, %c0_56, %c0_57] : memref<2x4x4xf32, #tpu.memory_space<vmem>>, vector<1x4x4xf32>
    %77 = vector.shape_cast %76 : vector<1x4x4xf32> to vector<4x4xf32>
    %c0_58 = arith.constant 0 : index
    %c0_59 = arith.constant 0 : index
    %c0_60 = arith.constant 0 : index
    %78 = vector.load %arg14[%c0_58, %c0_59, %c0_60] : memref<2x4x128xf32, #tpu.memory_space<vmem>>, vector<1x4x128xf32>
    %79 = vector.shape_cast %78 : vector<1x4x128xf32> to vector<4x128xf32>
    %c0_61 = arith.constant 0 : index
    %c0_62 = arith.constant 0 : index
    %c0_63 = arith.constant 0 : index
    %80 = vector.load %arg16[%c0_61, %c0_62, %c0_63] : memref<2x32x128xf32, #tpu.memory_space<vmem>>, vector<1x32x128xf32>
    %81 = vector.shape_cast %80 : vector<1x32x128xf32> to vector<32x128xf32>
    %c0_64 = arith.constant 0 : index
    %c0_65 = arith.constant 0 : index
    %c0_66 = arith.constant 0 : index
    %82 = vector.load %arg8[%c0_64, %c0_65, %c0_66] : memref<2x1x4xf32, #tpu.memory_space<vmem>>, vector<1x1x4xf32>
    %83 = vector.shape_cast %82 : vector<1x1x4xf32> to vector<1x4xf32>
    %84 = vector.shape_cast %83 : vector<1x4xf32> to vector<1x4xf32>
    %85 = vector.broadcast %84 : vector<1x4xf32> to vector<2x4xf32>
    %c0_67 = arith.constant 0 : index
    %c0_68 = arith.constant 0 : index
    %c0_69 = arith.constant 0 : index
    %86 = vector.load %arg10[%c0_67, %c0_68, %c0_69] : memref<2x1x4xf32, #tpu.memory_space<vmem>>, vector<1x1x4xf32>
    %87 = vector.shape_cast %86 : vector<1x1x4xf32> to vector<1x4xf32>
    %88 = vector.shape_cast %87 : vector<1x4xf32> to vector<1x4xf32>
    %89 = vector.broadcast %88 : vector<1x4xf32> to vector<2x4xf32>
    %90 = vector.extract_strided_slice %0 {offsets = [1, 0, 0, 0], sizes = [1, 2, 8, 4], strides = [1, 1, 1, 1]} : vector<2x2x8x4xf32> to vector<1x2x8x4xf32>
    %91 = vector.shape_cast %90 : vector<1x2x8x4xf32> to vector<2x8x4xf32>
    %92 = vector.extract_strided_slice %1 {offsets = [1, 0, 0, 0], sizes = [1, 2, 8, 4], strides = [1, 1, 1, 1]} : vector<2x2x8x4xf32> to vector<1x2x8x4xf32>
    %93 = vector.shape_cast %92 : vector<1x2x8x4xf32> to vector<2x8x4xf32>
    %94 = vector.extract_strided_slice %2 {offsets = [1, 0, 0, 0], sizes = [1, 2, 8, 4], strides = [1, 1, 1, 1]} : vector<2x2x8x4xf32> to vector<1x2x8x4xf32>
    %95 = vector.shape_cast %94 : vector<1x2x8x4xf32> to vector<2x8x4xf32>
    %96 = vector.shape_cast %95 : vector<2x8x4xf32> to vector<16x4xf32>
    %97 = vector.shape_cast %93 : vector<2x8x4xf32> to vector<16x4xf32>
    %c1 = arith.constant 1 : index
    %c0_70 = arith.constant 0 : index
    %c0_71 = arith.constant 0 : index
    %98 = vector.load %arg3[%c1, %c0_70, %c0_71] : memref<2x4x32xf32, #tpu.memory_space<vmem>>, vector<1x4x32xf32>
    %99 = vector.shape_cast %98 : vector<1x4x32xf32> to vector<4x32xf32>
    %cst_72 = arith.constant dense<0.000000e+00> : vector<16x32xf32>
    %100 = tpu.matmul %96, %99, %cst_72 {dimension_numbers = #tpu.dot_dimension_numbers<[1], [0], [0], [1], [0, 0, 1, 1], [], []>} : vector<16x4xf32>, vector<4x32xf32>, vector<16x32xf32> -> vector<16x32xf32>
    %c1_73 = arith.constant 1 : index
    %c0_74 = arith.constant 0 : index
    %c0_75 = arith.constant 0 : index
    %101 = vector.load %arg4[%c1_73, %c0_74, %c0_75] : memref<2x1x32xf32, #tpu.memory_space<vmem>>, vector<1x1x32xf32>
    %102 = vector.shape_cast %101 : vector<1x1x32xf32> to vector<1x32xf32>
    %103 = vector.broadcast %102 : vector<1x32xf32> to vector<16x32xf32>
    %104 = arith.addf %100, %103 : vector<16x32xf32>
    %cst_76 = arith.constant 0.000000e+00 : f32
    %105 = vector.broadcast %cst_76 : f32 to vector<16x32xf32>
    %106 = arith.maximumf %104, %105 : vector<16x32xf32>
    %cst_77 = arith.constant 0.000000e+00 : f32
    %107 = vector.broadcast %cst_77 : f32 to vector<16x32xf32>
    %108 = arith.subf %107, %106 : vector<16x32xf32>
    %109 = math.exp %108 : vector<16x32xf32>
    %110 = vector.shape_cast %109 : vector<16x32xf32> to vector<2x8x32xf32>
    %c1_78 = arith.constant 1 : index
    %c0_79 = arith.constant 0 : index
    %c0_80 = arith.constant 0 : index
    %111 = vector.load %arg5[%c1_78, %c0_79, %c0_80] : memref<2x1x4xf32, #tpu.memory_space<vmem>>, vector<1x1x4xf32>
    %112 = vector.shape_cast %111 : vector<1x1x4xf32> to vector<1x4xf32>
    %113 = vector.broadcast %112 : vector<1x4xf32> to vector<16x4xf32>
    %114 = arith.mulf %96, %113 : vector<16x4xf32>
    %c1_81 = arith.constant 1 : index
    %c0_82 = arith.constant 0 : index
    %c0_83 = arith.constant 0 : index
    %115 = vector.load %arg6[%c1_81, %c0_82, %c0_83] : memref<2x1x4xf32, #tpu.memory_space<vmem>>, vector<1x1x4xf32>
    %116 = vector.shape_cast %115 : vector<1x1x4xf32> to vector<1x4xf32>
    %117 = vector.broadcast %116 : vector<1x4xf32> to vector<16x4xf32>
    %118 = arith.addf %114, %117 : vector<16x4xf32>
    %cst_84 = arith.constant 0.000000e+00 : f32
    %119 = vector.broadcast %cst_84 : f32 to vector<16x4xf32>
    %120 = arith.maximumf %118, %119 : vector<16x4xf32>
    %cst_85 = arith.constant 0.000000e+00 : f32
    %121 = vector.broadcast %cst_85 : f32 to vector<16x4xf32>
    %122 = arith.subf %121, %120 : vector<16x4xf32>
    %123 = math.exp %122 : vector<16x4xf32>
    %c1_86 = arith.constant 1 : index
    %c0_87 = arith.constant 0 : index
    %c0_88 = arith.constant 0 : index
    %124 = vector.load %arg11[%c1_86, %c0_87, %c0_88] : memref<2x4x4xf32, #tpu.memory_space<vmem>>, vector<1x4x4xf32>
    %125 = vector.shape_cast %124 : vector<1x4x4xf32> to vector<4x4xf32>
    %cst_89 = arith.constant dense<0.000000e+00> : vector<16x4xf32>
    %126 = tpu.matmul %123, %125, %cst_89 {dimension_numbers = #tpu.dot_dimension_numbers<[1], [0], [0], [1], [0, 0, 1, 1], [], []>} : vector<16x4xf32>, vector<4x4xf32>, vector<16x4xf32> -> vector<16x4xf32>
    %c1_90 = arith.constant 1 : index
    %c0_91 = arith.constant 0 : index
    %c0_92 = arith.constant 0 : index
    %127 = vector.load %arg12[%c1_90, %c0_91, %c0_92] : memref<2x4x4xf32, #tpu.memory_space<vmem>>, vector<1x4x4xf32>
    %128 = vector.shape_cast %127 : vector<1x4x4xf32> to vector<4x4xf32>
    %cst_93 = arith.constant dense<0.000000e+00> : vector<16x4xf32>
    %129 = tpu.matmul %97, %128, %cst_93 {dimension_numbers = #tpu.dot_dimension_numbers<[1], [0], [0], [1], [0, 0, 1, 1], [], []>} : vector<16x4xf32>, vector<4x4xf32>, vector<16x4xf32> -> vector<16x4xf32>
    %130 = arith.addf %126, %129 : vector<16x4xf32>
    %c1_94 = arith.constant 1 : index
    %c0_95 = arith.constant 0 : index
    %c0_96 = arith.constant 0 : index
    %131 = vector.load %arg13[%c1_94, %c0_95, %c0_96] : memref<2x1x4xf32, #tpu.memory_space<vmem>>, vector<1x1x4xf32>
    %132 = vector.shape_cast %131 : vector<1x1x4xf32> to vector<1x4xf32>
    %133 = vector.broadcast %132 : vector<1x4xf32> to vector<16x4xf32>
    %134 = arith.addf %130, %133 : vector<16x4xf32>
    %cst_97 = arith.constant 0.000000e+00 : f32
    %135 = vector.broadcast %cst_97 : f32 to vector<16x4xf32>
    %136 = arith.subf %135, %134 : vector<16x4xf32>
    %137 = math.exp %136 : vector<16x4xf32>
    %cst_98 = arith.constant 1.000000e+00 : f32
    %138 = vector.broadcast %cst_98 : f32 to vector<16x4xf32>
    %139 = arith.addf %138, %137 : vector<16x4xf32>
    %cst_99 = arith.constant 1.000000e+00 : f32
    %140 = vector.broadcast %cst_99 : f32 to vector<16x4xf32>
    %141 = arith.divf %140, %139 : vector<16x4xf32>
    %142 = vector.shape_cast %141 : vector<16x4xf32> to vector<2x8x4xf32>
    %c1_100 = arith.constant 1 : index
    %c0_101 = arith.constant 0 : index
    %c0_102 = arith.constant 0 : index
    %143 = vector.load %arg15[%c1_100, %c0_101, %c0_102] : memref<2x4x128xf32, #tpu.memory_space<vmem>>, vector<1x4x128xf32>
    %144 = vector.shape_cast %143 : vector<1x4x128xf32> to vector<4x128xf32>
    %cst_103 = arith.constant dense<0.000000e+00> : vector<16x128xf32>
    %145 = tpu.matmul %97, %144, %cst_103 {dimension_numbers = #tpu.dot_dimension_numbers<[1], [0], [0], [1], [0, 0, 1, 1], [], []>} : vector<16x4xf32>, vector<4x128xf32>, vector<16x128xf32> -> vector<16x128xf32>
    %c1_104 = arith.constant 1 : index
    %c0_105 = arith.constant 0 : index
    %c0_106 = arith.constant 0 : index
    %146 = vector.load %arg17[%c1_104, %c0_105, %c0_106] : memref<2x1x128xf32, #tpu.memory_space<vmem>>, vector<1x1x128xf32>
    %147 = vector.shape_cast %146 : vector<1x1x128xf32> to vector<1x128xf32>
    %148 = vector.broadcast %147 : vector<1x128xf32> to vector<16x128xf32>
    %149 = arith.addf %145, %148 : vector<16x128xf32>
    %150 = vector.shape_cast %149 : vector<16x128xf32> to vector<2x8x128xf32>
    %cst_107 = arith.constant dense<0.000000e+00> : vector<2x8xf32>
    %151 = vector.multi_reduction <add>, %93, %cst_107 [2] : vector<2x8x4xf32> to vector<2x8xf32>
    %152 = vector.shape_cast %151 : vector<2x8xf32> to vector<2x8x1xf32>
    %cst_108 = arith.constant dense<0.000000e+00> : vector<8x1xf32>
    %153 = vector.multi_reduction <add>, %152, %cst_108 [0] : vector<2x8x1xf32> to vector<8x1xf32>
    %154 = vector.shape_cast %153 : vector<8x1xf32> to vector<1x8x1xf32>
    %cst_109 = arith.constant 9.99999996E-13 : f32
    %155 = vector.broadcast %cst_109 : f32 to vector<1x8x1xf32>
    %156 = arith.addf %154, %155 : vector<1x8x1xf32>
    %cst_110 = arith.constant 1.000000e+00 : f32
    %157 = vector.broadcast %cst_110 : f32 to vector<1x8x1xf32>
    %158 = arith.divf %157, %156 : vector<1x8x1xf32>
    %159 = vector.broadcast %158 : vector<1x8x1xf32> to vector<2x8x4xf32>
    %160 = arith.mulf %93, %159 : vector<2x8x4xf32>
    %c1_111 = arith.constant 1 : index
    %c0_112 = arith.constant 0 : index
    %c0_113 = arith.constant 0 : index
    %161 = vector.load %arg7[%c1_111, %c0_112, %c0_113] : memref<2x32x4xf32, #tpu.memory_space<vmem>>, vector<1x32x4xf32>
    %162 = vector.shape_cast %161 : vector<1x32x4xf32> to vector<32x4xf32>
    %c1_114 = arith.constant 1 : index
    %c0_115 = arith.constant 0 : index
    %c0_116 = arith.constant 0 : index
    %163 = vector.load %arg9[%c1_114, %c0_115, %c0_116] : memref<2x4x4xf32, #tpu.memory_space<vmem>>, vector<1x4x4xf32>
    %164 = vector.shape_cast %163 : vector<1x4x4xf32> to vector<4x4xf32>
    %c1_117 = arith.constant 1 : index
    %c0_118 = arith.constant 0 : index
    %c0_119 = arith.constant 0 : index
    %165 = vector.load %arg14[%c1_117, %c0_118, %c0_119] : memref<2x4x128xf32, #tpu.memory_space<vmem>>, vector<1x4x128xf32>
    %166 = vector.shape_cast %165 : vector<1x4x128xf32> to vector<4x128xf32>
    %c1_120 = arith.constant 1 : index
    %c0_121 = arith.constant 0 : index
    %c0_122 = arith.constant 0 : index
    %167 = vector.load %arg16[%c1_120, %c0_121, %c0_122] : memref<2x32x128xf32, #tpu.memory_space<vmem>>, vector<1x32x128xf32>
    %168 = vector.shape_cast %167 : vector<1x32x128xf32> to vector<32x128xf32>
    %c1_123 = arith.constant 1 : index
    %c0_124 = arith.constant 0 : index
    %c0_125 = arith.constant 0 : index
    %169 = vector.load %arg8[%c1_123, %c0_124, %c0_125] : memref<2x1x4xf32, #tpu.memory_space<vmem>>, vector<1x1x4xf32>
    %170 = vector.shape_cast %169 : vector<1x1x4xf32> to vector<1x4xf32>
    %171 = vector.shape_cast %170 : vector<1x4xf32> to vector<1x4xf32>
    %172 = vector.broadcast %171 : vector<1x4xf32> to vector<2x4xf32>
    %c1_126 = arith.constant 1 : index
    %c0_127 = arith.constant 0 : index
    %c0_128 = arith.constant 0 : index
    %173 = vector.load %arg10[%c1_126, %c0_127, %c0_128] : memref<2x1x4xf32, #tpu.memory_space<vmem>>, vector<1x1x4xf32>
    %174 = vector.shape_cast %173 : vector<1x1x4xf32> to vector<1x4xf32>
    %175 = vector.shape_cast %174 : vector<1x4xf32> to vector<1x4xf32>
    %176 = vector.broadcast %175 : vector<1x4xf32> to vector<2x4xf32>
    %cst_129 = arith.constant 0.000000e+00 : f32
    %177 = vector.broadcast %cst_129 : f32 to vector<2x32xf32>
    %cst_130 = arith.constant 0.000000e+00 : f32
    %178 = vector.broadcast %cst_130 : f32 to vector<2x32xf32>
    %cst_131 = arith.constant 0.000000e+00 : f32
    %179 = vector.broadcast %cst_131 : f32 to vector<2x32xf32>
    %cst_132 = arith.constant 0.000000e+00 : f32
    %180 = vector.broadcast %cst_132 : f32 to vector<2x32xf32>
    %cst_133 = arith.constant 0.000000e+00 : f32
    %181 = vector.broadcast %cst_133 : f32 to vector<2x4xf32>
    %cst_134 = arith.constant 0.000000e+00 : f32
    %182 = vector.broadcast %cst_134 : f32 to vector<2x4xf32>
    %183 = vector.extract_strided_slice %4 {offsets = [0, 0, 0], sizes = [2, 1, 4], strides = [1, 1, 1]} : vector<2x8x4xf32> to vector<2x1x4xf32>
    %184 = vector.shape_cast %183 : vector<2x1x4xf32> to vector<2x4xf32>
    %185 = vector.extract_strided_slice %6 {offsets = [0, 0, 0], sizes = [2, 1, 4], strides = [1, 1, 1]} : vector<2x8x4xf32> to vector<2x1x4xf32>
    %186 = vector.shape_cast %185 : vector<2x1x4xf32> to vector<2x4xf32>
    %187 = vector.extract_strided_slice %23 {offsets = [0, 0, 0], sizes = [2, 1, 32], strides = [1, 1, 1]} : vector<2x8x32xf32> to vector<2x1x32xf32>
    %188 = vector.shape_cast %187 : vector<2x1x32xf32> to vector<2x32xf32>
    %189 = vector.extract_strided_slice %55 {offsets = [0, 0, 0], sizes = [2, 1, 4], strides = [1, 1, 1]} : vector<2x8x4xf32> to vector<2x1x4xf32>
    %190 = vector.shape_cast %189 : vector<2x1x4xf32> to vector<2x4xf32>
    %191 = vector.extract_strided_slice %63 {offsets = [0, 0, 0], sizes = [2, 1, 128], strides = [1, 1, 1]} : vector<2x8x128xf32> to vector<2x1x128xf32>
    %192 = vector.shape_cast %191 : vector<2x1x128xf32> to vector<2x128xf32>
    %193 = vector.extract_strided_slice %73 {offsets = [0, 0, 0], sizes = [2, 1, 4], strides = [1, 1, 1]} : vector<2x8x4xf32> to vector<2x1x4xf32>
    %194 = vector.shape_cast %193 : vector<2x1x4xf32> to vector<2x4xf32>
    %195 = arith.mulf %177, %188 : vector<2x32xf32>
    %cst_135 = arith.constant dense<0.000000e+00> : vector<2x4xf32>
    %196 = tpu.matmul %195, %75, %cst_135 {dimension_numbers = #tpu.dot_dimension_numbers<[1], [0], [0], [1], [0, 0, 1, 1], [], []>} : vector<2x32xf32>, vector<32x4xf32>, vector<2x4xf32> -> vector<2x4xf32>
    %197 = arith.addf %196, %85 : vector<2x4xf32>
    %198 = arith.mulf %186, %184 : vector<2x4xf32>
    %cst_136 = arith.constant 1.000000e+00 : f32
    %199 = vector.broadcast %cst_136 : f32 to vector<2x4xf32>
    %200 = arith.subf %199, %186 : vector<2x4xf32>
    %201 = arith.mulf %200, %197 : vector<2x4xf32>
    %202 = arith.addf %198, %201 : vector<2x4xf32>
    %cst_137 = arith.constant dense<0.000000e+00> : vector<2x4xf32>
    %203 = tpu.matmul %202, %77, %cst_137 {dimension_numbers = #tpu.dot_dimension_numbers<[1], [0], [0], [1], [0, 0, 1, 1], [], []>} : vector<2x4xf32>, vector<4x4xf32>, vector<2x4xf32> -> vector<2x4xf32>
    %204 = arith.addf %203, %89 : vector<2x4xf32>
    %205 = arith.mulf %190, %204 : vector<2x4xf32>
    %cst_138 = arith.constant 1.000000e+00 : f32
    %206 = vector.broadcast %cst_138 : f32 to vector<2x4xf32>
    %207 = arith.subf %206, %190 : vector<2x4xf32>
    %208 = arith.mulf %207, %197 : vector<2x4xf32>
    %209 = arith.addf %205, %208 : vector<2x4xf32>
    %210 = arith.mulf %186, %184 : vector<2x4xf32>
    %cst_139 = arith.constant 1.000000e+00 : f32
    %211 = vector.broadcast %cst_139 : f32 to vector<2x4xf32>
    %212 = arith.subf %211, %186 : vector<2x4xf32>
    %213 = arith.mulf %212, %209 : vector<2x4xf32>
    %214 = arith.addf %210, %213 : vector<2x4xf32>
    %215 = arith.subf %197, %184 : vector<2x4xf32>
    %216 = math.absf %215 : vector<2x4xf32>
    %217 = arith.subf %204, %184 : vector<2x4xf32>
    %218 = math.absf %217 : vector<2x4xf32>
    %219 = arith.addf %216, %218 : vector<2x4xf32>
    %220 = arith.subf %209, %184 : vector<2x4xf32>
    %221 = math.absf %220 : vector<2x4xf32>
    %222 = arith.addf %219, %221 : vector<2x4xf32>
    %223 = arith.mulf %222, %194 : vector<2x4xf32>
    %224 = arith.addf %181, %223 : vector<2x4xf32>
    %cst_140 = arith.constant dense<0.000000e+00> : vector<2x128xf32>
    %225 = tpu.matmul %214, %79, %cst_140 {dimension_numbers = #tpu.dot_dimension_numbers<[1], [0], [0], [1], [0, 0, 1, 1], [], []>} : vector<2x4xf32>, vector<4x128xf32>, vector<2x128xf32> -> vector<2x128xf32>
    %cst_141 = arith.constant dense<0.000000e+00> : vector<2x128xf32>
    %226 = tpu.matmul %195, %81, %cst_141 {dimension_numbers = #tpu.dot_dimension_numbers<[1], [0], [0], [1], [0, 0, 1, 1], [], []>} : vector<2x32xf32>, vector<32x128xf32>, vector<2x128xf32> -> vector<2x128xf32>
    %227 = arith.addf %225, %226 : vector<2x128xf32>
    %228 = arith.addf %227, %192 : vector<2x128xf32>
    %cst_142 = arith.constant 0.000000e+00 : f32
    %229 = vector.broadcast %cst_142 : f32 to vector<2x128xf32>
    %230 = arith.subf %229, %228 : vector<2x128xf32>
    %231 = math.exp %230 : vector<2x128xf32>
    %cst_143 = arith.constant 1.000000e+00 : f32
    %232 = vector.broadcast %cst_143 : f32 to vector<2x128xf32>
    %233 = arith.addf %232, %231 : vector<2x128xf32>
    %cst_144 = arith.constant 1.000000e+00 : f32
    %234 = vector.broadcast %cst_144 : f32 to vector<2x128xf32>
    %235 = arith.divf %234, %233 : vector<2x128xf32>
    %236 = math.tanh %228 : vector<2x128xf32>
    %237 = vector.extract_strided_slice %235 {offsets = [0, 0], sizes = [2, 32], strides = [1, 1]} : vector<2x128xf32> to vector<2x32xf32>
    %238 = vector.extract_strided_slice %235 {offsets = [0, 32], sizes = [2, 32], strides = [1, 1]} : vector<2x128xf32> to vector<2x32xf32>
    %239 = vector.extract_strided_slice %236 {offsets = [0, 64], sizes = [2, 32], strides = [1, 1]} : vector<2x128xf32> to vector<2x32xf32>
    %240 = vector.extract_strided_slice %235 {offsets = [0, 96], sizes = [2, 32], strides = [1, 1]} : vector<2x128xf32> to vector<2x32xf32>
    %241 = arith.mulf %238, %179 : vector<2x32xf32>
    %242 = arith.mulf %237, %239 : vector<2x32xf32>
    %243 = arith.addf %241, %242 : vector<2x32xf32>
    %244 = math.tanh %243 : vector<2x32xf32>
    %245 = arith.mulf %240, %244 : vector<2x32xf32>
    %246 = vector.extract_strided_slice %91 {offsets = [0, 0, 0], sizes = [2, 1, 4], strides = [1, 1, 1]} : vector<2x8x4xf32> to vector<2x1x4xf32>
    %247 = vector.shape_cast %246 : vector<2x1x4xf32> to vector<2x4xf32>
    %248 = vector.extract_strided_slice %93 {offsets = [0, 0, 0], sizes = [2, 1, 4], strides = [1, 1, 1]} : vector<2x8x4xf32> to vector<2x1x4xf32>
    %249 = vector.shape_cast %248 : vector<2x1x4xf32> to vector<2x4xf32>
    %250 = vector.extract_strided_slice %110 {offsets = [0, 0, 0], sizes = [2, 1, 32], strides = [1, 1, 1]} : vector<2x8x32xf32> to vector<2x1x32xf32>
    %251 = vector.shape_cast %250 : vector<2x1x32xf32> to vector<2x32xf32>
    %252 = vector.extract_strided_slice %142 {offsets = [0, 0, 0], sizes = [2, 1, 4], strides = [1, 1, 1]} : vector<2x8x4xf32> to vector<2x1x4xf32>
    %253 = vector.shape_cast %252 : vector<2x1x4xf32> to vector<2x4xf32>
    %254 = vector.extract_strided_slice %150 {offsets = [0, 0, 0], sizes = [2, 1, 128], strides = [1, 1, 1]} : vector<2x8x128xf32> to vector<2x1x128xf32>
    %255 = vector.shape_cast %254 : vector<2x1x128xf32> to vector<2x128xf32>
    %256 = vector.extract_strided_slice %160 {offsets = [0, 0, 0], sizes = [2, 1, 4], strides = [1, 1, 1]} : vector<2x8x4xf32> to vector<2x1x4xf32>
    %257 = vector.shape_cast %256 : vector<2x1x4xf32> to vector<2x4xf32>
    %258 = arith.mulf %178, %251 : vector<2x32xf32>
    %cst_145 = arith.constant dense<0.000000e+00> : vector<2x4xf32>
    %259 = tpu.matmul %258, %162, %cst_145 {dimension_numbers = #tpu.dot_dimension_numbers<[1], [0], [0], [1], [0, 0, 1, 1], [], []>} : vector<2x32xf32>, vector<32x4xf32>, vector<2x4xf32> -> vector<2x4xf32>
    %260 = arith.addf %259, %172 : vector<2x4xf32>
    %261 = arith.mulf %249, %247 : vector<2x4xf32>
    %cst_146 = arith.constant 1.000000e+00 : f32
    %262 = vector.broadcast %cst_146 : f32 to vector<2x4xf32>
    %263 = arith.subf %262, %249 : vector<2x4xf32>
    %264 = arith.mulf %263, %260 : vector<2x4xf32>
    %265 = arith.addf %261, %264 : vector<2x4xf32>
    %cst_147 = arith.constant dense<0.000000e+00> : vector<2x4xf32>
    %266 = tpu.matmul %265, %164, %cst_147 {dimension_numbers = #tpu.dot_dimension_numbers<[1], [0], [0], [1], [0, 0, 1, 1], [], []>} : vector<2x4xf32>, vector<4x4xf32>, vector<2x4xf32> -> vector<2x4xf32>
    %267 = arith.addf %266, %176 : vector<2x4xf32>
    %268 = arith.mulf %253, %267 : vector<2x4xf32>
    %cst_148 = arith.constant 1.000000e+00 : f32
    %269 = vector.broadcast %cst_148 : f32 to vector<2x4xf32>
    %270 = arith.subf %269, %253 : vector<2x4xf32>
    %271 = arith.mulf %270, %260 : vector<2x4xf32>
    %272 = arith.addf %268, %271 : vector<2x4xf32>
    %273 = arith.mulf %249, %247 : vector<2x4xf32>
    %cst_149 = arith.constant 1.000000e+00 : f32
    %274 = vector.broadcast %cst_149 : f32 to vector<2x4xf32>
    %275 = arith.subf %274, %249 : vector<2x4xf32>
    %276 = arith.mulf %275, %272 : vector<2x4xf32>
    %277 = arith.addf %273, %276 : vector<2x4xf32>
    %278 = arith.subf %260, %247 : vector<2x4xf32>
    %279 = math.absf %278 : vector<2x4xf32>
    %280 = arith.subf %267, %247 : vector<2x4xf32>
    %281 = math.absf %280 : vector<2x4xf32>
    %282 = arith.addf %279, %281 : vector<2x4xf32>
    %283 = arith.subf %272, %247 : vector<2x4xf32>
    %284 = math.absf %283 : vector<2x4xf32>
    %285 = arith.addf %282, %284 : vector<2x4xf32>
    %286 = arith.mulf %285, %257 : vector<2x4xf32>
    %287 = arith.addf %182, %286 : vector<2x4xf32>
    %cst_150 = arith.constant dense<0.000000e+00> : vector<2x128xf32>
    %288 = tpu.matmul %277, %166, %cst_150 {dimension_numbers = #tpu.dot_dimension_numbers<[1], [0], [0], [1], [0, 0, 1, 1], [], []>} : vector<2x4xf32>, vector<4x128xf32>, vector<2x128xf32> -> vector<2x128xf32>
    %cst_151 = arith.constant dense<0.000000e+00> : vector<2x128xf32>
    %289 = tpu.matmul %258, %168, %cst_151 {dimension_numbers = #tpu.dot_dimension_numbers<[1], [0], [0], [1], [0, 0, 1, 1], [], []>} : vector<2x32xf32>, vector<32x128xf32>, vector<2x128xf32> -> vector<2x128xf32>
    %290 = arith.addf %288, %289 : vector<2x128xf32>
    %291 = arith.addf %290, %255 : vector<2x128xf32>
    %cst_152 = arith.constant 0.000000e+00 : f32
    %292 = vector.broadcast %cst_152 : f32 to vector<2x128xf32>
    %293 = arith.subf %292, %291 : vector<2x128xf32>
    %294 = math.exp %293 : vector<2x128xf32>
    %cst_153 = arith.constant 1.000000e+00 : f32
    %295 = vector.broadcast %cst_153 : f32 to vector<2x128xf32>
    %296 = arith.addf %295, %294 : vector<2x128xf32>
    %cst_154 = arith.constant 1.000000e+00 : f32
    %297 = vector.broadcast %cst_154 : f32 to vector<2x128xf32>
    %298 = arith.divf %297, %296 : vector<2x128xf32>
    %299 = math.tanh %291 : vector<2x128xf32>
    %300 = vector.extract_strided_slice %298 {offsets = [0, 0], sizes = [2, 32], strides = [1, 1]} : vector<2x128xf32> to vector<2x32xf32>
    %301 = vector.extract_strided_slice %298 {offsets = [0, 32], sizes = [2, 32], strides = [1, 1]} : vector<2x128xf32> to vector<2x32xf32>
    %302 = vector.extract_strided_slice %299 {offsets = [0, 64], sizes = [2, 32], strides = [1, 1]} : vector<2x128xf32> to vector<2x32xf32>
    %303 = vector.extract_strided_slice %298 {offsets = [0, 96], sizes = [2, 32], strides = [1, 1]} : vector<2x128xf32> to vector<2x32xf32>
    %304 = arith.mulf %301, %180 : vector<2x32xf32>
    %305 = arith.mulf %300, %302 : vector<2x32xf32>
    %306 = arith.addf %304, %305 : vector<2x32xf32>
    %307 = math.tanh %306 : vector<2x32xf32>
    %308 = arith.mulf %303, %307 : vector<2x32xf32>
    %309 = vector.extract_strided_slice %4 {offsets = [0, 1, 0], sizes = [2, 1, 4], strides = [1, 1, 1]} : vector<2x8x4xf32> to vector<2x1x4xf32>
    %310 = vector.shape_cast %309 : vector<2x1x4xf32> to vector<2x4xf32>
    %311 = vector.extract_strided_slice %6 {offsets = [0, 1, 0], sizes = [2, 1, 4], strides = [1, 1, 1]} : vector<2x8x4xf32> to vector<2x1x4xf32>
    %312 = vector.shape_cast %311 : vector<2x1x4xf32> to vector<2x4xf32>
    %313 = vector.extract_strided_slice %23 {offsets = [0, 1, 0], sizes = [2, 1, 32], strides = [1, 1, 1]} : vector<2x8x32xf32> to vector<2x1x32xf32>
    %314 = vector.shape_cast %313 : vector<2x1x32xf32> to vector<2x32xf32>
    %315 = vector.extract_strided_slice %55 {offsets = [0, 1, 0], sizes = [2, 1, 4], strides = [1, 1, 1]} : vector<2x8x4xf32> to vector<2x1x4xf32>
    %316 = vector.shape_cast %315 : vector<2x1x4xf32> to vector<2x4xf32>
    %317 = vector.extract_strided_slice %63 {offsets = [0, 1, 0], sizes = [2, 1, 128], strides = [1, 1, 1]} : vector<2x8x128xf32> to vector<2x1x128xf32>
    %318 = vector.shape_cast %317 : vector<2x1x128xf32> to vector<2x128xf32>
    %319 = vector.extract_strided_slice %73 {offsets = [0, 1, 0], sizes = [2, 1, 4], strides = [1, 1, 1]} : vector<2x8x4xf32> to vector<2x1x4xf32>
    %320 = vector.shape_cast %319 : vector<2x1x4xf32> to vector<2x4xf32>
    %321 = arith.mulf %245, %314 : vector<2x32xf32>
    %cst_155 = arith.constant dense<0.000000e+00> : vector<2x4xf32>
    %322 = tpu.matmul %321, %75, %cst_155 {dimension_numbers = #tpu.dot_dimension_numbers<[1], [0], [0], [1], [0, 0, 1, 1], [], []>} : vector<2x32xf32>, vector<32x4xf32>, vector<2x4xf32> -> vector<2x4xf32>
    %323 = arith.addf %322, %85 : vector<2x4xf32>
    %324 = arith.mulf %312, %310 : vector<2x4xf32>
    %cst_156 = arith.constant 1.000000e+00 : f32
    %325 = vector.broadcast %cst_156 : f32 to vector<2x4xf32>
    %326 = arith.subf %325, %312 : vector<2x4xf32>
    %327 = arith.mulf %326, %323 : vector<2x4xf32>
    %328 = arith.addf %324, %327 : vector<2x4xf32>
    %cst_157 = arith.constant dense<0.000000e+00> : vector<2x4xf32>
    %329 = tpu.matmul %328, %77, %cst_157 {dimension_numbers = #tpu.dot_dimension_numbers<[1], [0], [0], [1], [0, 0, 1, 1], [], []>} : vector<2x4xf32>, vector<4x4xf32>, vector<2x4xf32> -> vector<2x4xf32>
    %330 = arith.addf %329, %89 : vector<2x4xf32>
    %331 = arith.mulf %316, %330 : vector<2x4xf32>
    %cst_158 = arith.constant 1.000000e+00 : f32
    %332 = vector.broadcast %cst_158 : f32 to vector<2x4xf32>
    %333 = arith.subf %332, %316 : vector<2x4xf32>
    %334 = arith.mulf %333, %323 : vector<2x4xf32>
    %335 = arith.addf %331, %334 : vector<2x4xf32>
    %336 = arith.mulf %312, %310 : vector<2x4xf32>
    %cst_159 = arith.constant 1.000000e+00 : f32
    %337 = vector.broadcast %cst_159 : f32 to vector<2x4xf32>
    %338 = arith.subf %337, %312 : vector<2x4xf32>
    %339 = arith.mulf %338, %335 : vector<2x4xf32>
    %340 = arith.addf %336, %339 : vector<2x4xf32>
    %341 = arith.subf %323, %310 : vector<2x4xf32>
    %342 = math.absf %341 : vector<2x4xf32>
    %343 = arith.subf %330, %310 : vector<2x4xf32>
    %344 = math.absf %343 : vector<2x4xf32>
    %345 = arith.addf %342, %344 : vector<2x4xf32>
    %346 = arith.subf %335, %310 : vector<2x4xf32>
    %347 = math.absf %346 : vector<2x4xf32>
    %348 = arith.addf %345, %347 : vector<2x4xf32>
    %349 = arith.mulf %348, %320 : vector<2x4xf32>
    %350 = arith.addf %224, %349 : vector<2x4xf32>
    %cst_160 = arith.constant dense<0.000000e+00> : vector<2x128xf32>
    %351 = tpu.matmul %340, %79, %cst_160 {dimension_numbers = #tpu.dot_dimension_numbers<[1], [0], [0], [1], [0, 0, 1, 1], [], []>} : vector<2x4xf32>, vector<4x128xf32>, vector<2x128xf32> -> vector<2x128xf32>
    %cst_161 = arith.constant dense<0.000000e+00> : vector<2x128xf32>
    %352 = tpu.matmul %321, %81, %cst_161 {dimension_numbers = #tpu.dot_dimension_numbers<[1], [0], [0], [1], [0, 0, 1, 1], [], []>} : vector<2x32xf32>, vector<32x128xf32>, vector<2x128xf32> -> vector<2x128xf32>
    %353 = arith.addf %351, %352 : vector<2x128xf32>
    %354 = arith.addf %353, %318 : vector<2x128xf32>
    %cst_162 = arith.constant 0.000000e+00 : f32
    %355 = vector.broadcast %cst_162 : f32 to vector<2x128xf32>
    %356 = arith.subf %355, %354 : vector<2x128xf32>
    %357 = math.exp %356 : vector<2x128xf32>
    %cst_163 = arith.constant 1.000000e+00 : f32
    %358 = vector.broadcast %cst_163 : f32 to vector<2x128xf32>
    %359 = arith.addf %358, %357 : vector<2x128xf32>
    %cst_164 = arith.constant 1.000000e+00 : f32
    %360 = vector.broadcast %cst_164 : f32 to vector<2x128xf32>
    %361 = arith.divf %360, %359 : vector<2x128xf32>
    %362 = math.tanh %354 : vector<2x128xf32>
    %363 = vector.extract_strided_slice %361 {offsets = [0, 0], sizes = [2, 32], strides = [1, 1]} : vector<2x128xf32> to vector<2x32xf32>
    %364 = vector.extract_strided_slice %361 {offsets = [0, 32], sizes = [2, 32], strides = [1, 1]} : vector<2x128xf32> to vector<2x32xf32>
    %365 = vector.extract_strided_slice %362 {offsets = [0, 64], sizes = [2, 32], strides = [1, 1]} : vector<2x128xf32> to vector<2x32xf32>
    %366 = vector.extract_strided_slice %361 {offsets = [0, 96], sizes = [2, 32], strides = [1, 1]} : vector<2x128xf32> to vector<2x32xf32>
    %367 = arith.mulf %364, %243 : vector<2x32xf32>
    %368 = arith.mulf %363, %365 : vector<2x32xf32>
    %369 = arith.addf %367, %368 : vector<2x32xf32>
    %370 = math.tanh %369 : vector<2x32xf32>
    %371 = arith.mulf %366, %370 : vector<2x32xf32>
    %372 = vector.extract_strided_slice %91 {offsets = [0, 1, 0], sizes = [2, 1, 4], strides = [1, 1, 1]} : vector<2x8x4xf32> to vector<2x1x4xf32>
    %373 = vector.shape_cast %372 : vector<2x1x4xf32> to vector<2x4xf32>
    %374 = vector.extract_strided_slice %93 {offsets = [0, 1, 0], sizes = [2, 1, 4], strides = [1, 1, 1]} : vector<2x8x4xf32> to vector<2x1x4xf32>
    %375 = vector.shape_cast %374 : vector<2x1x4xf32> to vector<2x4xf32>
    %376 = vector.extract_strided_slice %110 {offsets = [0, 1, 0], sizes = [2, 1, 32], strides = [1, 1, 1]} : vector<2x8x32xf32> to vector<2x1x32xf32>
    %377 = vector.shape_cast %376 : vector<2x1x32xf32> to vector<2x32xf32>
    %378 = vector.extract_strided_slice %142 {offsets = [0, 1, 0], sizes = [2, 1, 4], strides = [1, 1, 1]} : vector<2x8x4xf32> to vector<2x1x4xf32>
    %379 = vector.shape_cast %378 : vector<2x1x4xf32> to vector<2x4xf32>
    %380 = vector.extract_strided_slice %150 {offsets = [0, 1, 0], sizes = [2, 1, 128], strides = [1, 1, 1]} : vector<2x8x128xf32> to vector<2x1x128xf32>
    %381 = vector.shape_cast %380 : vector<2x1x128xf32> to vector<2x128xf32>
    %382 = vector.extract_strided_slice %160 {offsets = [0, 1, 0], sizes = [2, 1, 4], strides = [1, 1, 1]} : vector<2x8x4xf32> to vector<2x1x4xf32>
    %383 = vector.shape_cast %382 : vector<2x1x4xf32> to vector<2x4xf32>
    %384 = arith.mulf %308, %377 : vector<2x32xf32>
    %cst_165 = arith.constant dense<0.000000e+00> : vector<2x4xf32>
    %385 = tpu.matmul %384, %162, %cst_165 {dimension_numbers = #tpu.dot_dimension_numbers<[1], [0], [0], [1], [0, 0, 1, 1], [], []>} : vector<2x32xf32>, vector<32x4xf32>, vector<2x4xf32> -> vector<2x4xf32>
    %386 = arith.addf %385, %172 : vector<2x4xf32>
    %387 = arith.mulf %375, %373 : vector<2x4xf32>
    %cst_166 = arith.constant 1.000000e+00 : f32
    %388 = vector.broadcast %cst_166 : f32 to vector<2x4xf32>
    %389 = arith.subf %388, %375 : vector<2x4xf32>
    %390 = arith.mulf %389, %386 : vector<2x4xf32>
    %391 = arith.addf %387, %390 : vector<2x4xf32>
    %cst_167 = arith.constant dense<0.000000e+00> : vector<2x4xf32>
    %392 = tpu.matmul %391, %164, %cst_167 {dimension_numbers = #tpu.dot_dimension_numbers<[1], [0], [0], [1], [0, 0, 1, 1], [], []>} : vector<2x4xf32>, vector<4x4xf32>, vector<2x4xf32> -> vector<2x4xf32>
    %393 = arith.addf %392, %176 : vector<2x4xf32>
    %394 = arith.mulf %379, %393 : vector<2x4xf32>
    %cst_168 = arith.constant 1.000000e+00 : f32
    %395 = vector.broadcast %cst_168 : f32 to vector<2x4xf32>
    %396 = arith.subf %395, %379 : vector<2x4xf32>
    %397 = arith.mulf %396, %386 : vector<2x4xf32>
    %398 = arith.addf %394, %397 : vector<2x4xf32>
    %399 = arith.mulf %375, %373 : vector<2x4xf32>
    %cst_169 = arith.constant 1.000000e+00 : f32
    %400 = vector.broadcast %cst_169 : f32 to vector<2x4xf32>
    %401 = arith.subf %400, %375 : vector<2x4xf32>
    %402 = arith.mulf %401, %398 : vector<2x4xf32>
    %403 = arith.addf %399, %402 : vector<2x4xf32>
    %404 = arith.subf %386, %373 : vector<2x4xf32>
    %405 = math.absf %404 : vector<2x4xf32>
    %406 = arith.subf %393, %373 : vector<2x4xf32>
    %407 = math.absf %406 : vector<2x4xf32>
    %408 = arith.addf %405, %407 : vector<2x4xf32>
    %409 = arith.subf %398, %373 : vector<2x4xf32>
    %410 = math.absf %409 : vector<2x4xf32>
    %411 = arith.addf %408, %410 : vector<2x4xf32>
    %412 = arith.mulf %411, %383 : vector<2x4xf32>
    %413 = arith.addf %287, %412 : vector<2x4xf32>
    %cst_170 = arith.constant dense<0.000000e+00> : vector<2x128xf32>
    %414 = tpu.matmul %403, %166, %cst_170 {dimension_numbers = #tpu.dot_dimension_numbers<[1], [0], [0], [1], [0, 0, 1, 1], [], []>} : vector<2x4xf32>, vector<4x128xf32>, vector<2x128xf32> -> vector<2x128xf32>
    %cst_171 = arith.constant dense<0.000000e+00> : vector<2x128xf32>
    %415 = tpu.matmul %384, %168, %cst_171 {dimension_numbers = #tpu.dot_dimension_numbers<[1], [0], [0], [1], [0, 0, 1, 1], [], []>} : vector<2x32xf32>, vector<32x128xf32>, vector<2x128xf32> -> vector<2x128xf32>
    %416 = arith.addf %414, %415 : vector<2x128xf32>
    %417 = arith.addf %416, %381 : vector<2x128xf32>
    %cst_172 = arith.constant 0.000000e+00 : f32
    %418 = vector.broadcast %cst_172 : f32 to vector<2x128xf32>
    %419 = arith.subf %418, %417 : vector<2x128xf32>
    %420 = math.exp %419 : vector<2x128xf32>
    %cst_173 = arith.constant 1.000000e+00 : f32
    %421 = vector.broadcast %cst_173 : f32 to vector<2x128xf32>
    %422 = arith.addf %421, %420 : vector<2x128xf32>
    %cst_174 = arith.constant 1.000000e+00 : f32
    %423 = vector.broadcast %cst_174 : f32 to vector<2x128xf32>
    %424 = arith.divf %423, %422 : vector<2x128xf32>
    %425 = math.tanh %417 : vector<2x128xf32>
    %426 = vector.extract_strided_slice %424 {offsets = [0, 0], sizes = [2, 32], strides = [1, 1]} : vector<2x128xf32> to vector<2x32xf32>
    %427 = vector.extract_strided_slice %424 {offsets = [0, 32], sizes = [2, 32], strides = [1, 1]} : vector<2x128xf32> to vector<2x32xf32>
    %428 = vector.extract_strided_slice %425 {offsets = [0, 64], sizes = [2, 32], strides = [1, 1]} : vector<2x128xf32> to vector<2x32xf32>
    %429 = vector.extract_strided_slice %424 {offsets = [0, 96], sizes = [2, 32], strides = [1, 1]} : vector<2x128xf32> to vector<2x32xf32>
    %430 = arith.mulf %427, %306 : vector<2x32xf32>
    %431 = arith.mulf %426, %428 : vector<2x32xf32>
    %432 = arith.addf %430, %431 : vector<2x32xf32>
    %433 = math.tanh %432 : vector<2x32xf32>
    %434 = arith.mulf %429, %433 : vector<2x32xf32>
    %435 = vector.extract_strided_slice %4 {offsets = [0, 2, 0], sizes = [2, 1, 4], strides = [1, 1, 1]} : vector<2x8x4xf32> to vector<2x1x4xf32>
    %436 = vector.shape_cast %435 : vector<2x1x4xf32> to vector<2x4xf32>
    %437 = vector.extract_strided_slice %6 {offsets = [0, 2, 0], sizes = [2, 1, 4], strides = [1, 1, 1]} : vector<2x8x4xf32> to vector<2x1x4xf32>
    %438 = vector.shape_cast %437 : vector<2x1x4xf32> to vector<2x4xf32>
    %439 = vector.extract_strided_slice %23 {offsets = [0, 2, 0], sizes = [2, 1, 32], strides = [1, 1, 1]} : vector<2x8x32xf32> to vector<2x1x32xf32>
    %440 = vector.shape_cast %439 : vector<2x1x32xf32> to vector<2x32xf32>
    %441 = vector.extract_strided_slice %55 {offsets = [0, 2, 0], sizes = [2, 1, 4], strides = [1, 1, 1]} : vector<2x8x4xf32> to vector<2x1x4xf32>
    %442 = vector.shape_cast %441 : vector<2x1x4xf32> to vector<2x4xf32>
    %443 = vector.extract_strided_slice %63 {offsets = [0, 2, 0], sizes = [2, 1, 128], strides = [1, 1, 1]} : vector<2x8x128xf32> to vector<2x1x128xf32>
    %444 = vector.shape_cast %443 : vector<2x1x128xf32> to vector<2x128xf32>
    %445 = vector.extract_strided_slice %73 {offsets = [0, 2, 0], sizes = [2, 1, 4], strides = [1, 1, 1]} : vector<2x8x4xf32> to vector<2x1x4xf32>
    %446 = vector.shape_cast %445 : vector<2x1x4xf32> to vector<2x4xf32>
    %447 = arith.mulf %371, %440 : vector<2x32xf32>
    %cst_175 = arith.constant dense<0.000000e+00> : vector<2x4xf32>
    %448 = tpu.matmul %447, %75, %cst_175 {dimension_numbers = #tpu.dot_dimension_numbers<[1], [0], [0], [1], [0, 0, 1, 1], [], []>} : vector<2x32xf32>, vector<32x4xf32>, vector<2x4xf32> -> vector<2x4xf32>
    %449 = arith.addf %448, %85 : vector<2x4xf32>
    %450 = arith.mulf %438, %436 : vector<2x4xf32>
    %cst_176 = arith.constant 1.000000e+00 : f32
    %451 = vector.broadcast %cst_176 : f32 to vector<2x4xf32>
    %452 = arith.subf %451, %438 : vector<2x4xf32>
    %453 = arith.mulf %452, %449 : vector<2x4xf32>
    %454 = arith.addf %450, %453 : vector<2x4xf32>
    %cst_177 = arith.constant dense<0.000000e+00> : vector<2x4xf32>
    %455 = tpu.matmul %454, %77, %cst_177 {dimension_numbers = #tpu.dot_dimension_numbers<[1], [0], [0], [1], [0, 0, 1, 1], [], []>} : vector<2x4xf32>, vector<4x4xf32>, vector<2x4xf32> -> vector<2x4xf32>
    %456 = arith.addf %455, %89 : vector<2x4xf32>
    %457 = arith.mulf %442, %456 : vector<2x4xf32>
    %cst_178 = arith.constant 1.000000e+00 : f32
    %458 = vector.broadcast %cst_178 : f32 to vector<2x4xf32>
    %459 = arith.subf %458, %442 : vector<2x4xf32>
    %460 = arith.mulf %459, %449 : vector<2x4xf32>
    %461 = arith.addf %457, %460 : vector<2x4xf32>
    %462 = arith.mulf %438, %436 : vector<2x4xf32>
    %cst_179 = arith.constant 1.000000e+00 : f32
    %463 = vector.broadcast %cst_179 : f32 to vector<2x4xf32>
    %464 = arith.subf %463, %438 : vector<2x4xf32>
    %465 = arith.mulf %464, %461 : vector<2x4xf32>
    %466 = arith.addf %462, %465 : vector<2x4xf32>
    %467 = arith.subf %449, %436 : vector<2x4xf32>
    %468 = math.absf %467 : vector<2x4xf32>
    %469 = arith.subf %456, %436 : vector<2x4xf32>
    %470 = math.absf %469 : vector<2x4xf32>
    %471 = arith.addf %468, %470 : vector<2x4xf32>
    %472 = arith.subf %461, %436 : vector<2x4xf32>
    %473 = math.absf %472 : vector<2x4xf32>
    %474 = arith.addf %471, %473 : vector<2x4xf32>
    %475 = arith.mulf %474, %446 : vector<2x4xf32>
    %476 = arith.addf %350, %475 : vector<2x4xf32>
    %cst_180 = arith.constant dense<0.000000e+00> : vector<2x128xf32>
    %477 = tpu.matmul %466, %79, %cst_180 {dimension_numbers = #tpu.dot_dimension_numbers<[1], [0], [0], [1], [0, 0, 1, 1], [], []>} : vector<2x4xf32>, vector<4x128xf32>, vector<2x128xf32> -> vector<2x128xf32>
    %cst_181 = arith.constant dense<0.000000e+00> : vector<2x128xf32>
    %478 = tpu.matmul %447, %81, %cst_181 {dimension_numbers = #tpu.dot_dimension_numbers<[1], [0], [0], [1], [0, 0, 1, 1], [], []>} : vector<2x32xf32>, vector<32x128xf32>, vector<2x128xf32> -> vector<2x128xf32>
    %479 = arith.addf %477, %478 : vector<2x128xf32>
    %480 = arith.addf %479, %444 : vector<2x128xf32>
    %cst_182 = arith.constant 0.000000e+00 : f32
    %481 = vector.broadcast %cst_182 : f32 to vector<2x128xf32>
    %482 = arith.subf %481, %480 : vector<2x128xf32>
    %483 = math.exp %482 : vector<2x128xf32>
    %cst_183 = arith.constant 1.000000e+00 : f32
    %484 = vector.broadcast %cst_183 : f32 to vector<2x128xf32>
    %485 = arith.addf %484, %483 : vector<2x128xf32>
    %cst_184 = arith.constant 1.000000e+00 : f32
    %486 = vector.broadcast %cst_184 : f32 to vector<2x128xf32>
    %487 = arith.divf %486, %485 : vector<2x128xf32>
    %488 = math.tanh %480 : vector<2x128xf32>
    %489 = vector.extract_strided_slice %487 {offsets = [0, 0], sizes = [2, 32], strides = [1, 1]} : vector<2x128xf32> to vector<2x32xf32>
    %490 = vector.extract_strided_slice %487 {offsets = [0, 32], sizes = [2, 32], strides = [1, 1]} : vector<2x128xf32> to vector<2x32xf32>
    %491 = vector.extract_strided_slice %488 {offsets = [0, 64], sizes = [2, 32], strides = [1, 1]} : vector<2x128xf32> to vector<2x32xf32>
    %492 = vector.extract_strided_slice %487 {offsets = [0, 96], sizes = [2, 32], strides = [1, 1]} : vector<2x128xf32> to vector<2x32xf32>
    %493 = arith.mulf %490, %369 : vector<2x32xf32>
    %494 = arith.mulf %489, %491 : vector<2x32xf32>
    %495 = arith.addf %493, %494 : vector<2x32xf32>
    %496 = math.tanh %495 : vector<2x32xf32>
    %497 = arith.mulf %492, %496 : vector<2x32xf32>
    %498 = vector.extract_strided_slice %91 {offsets = [0, 2, 0], sizes = [2, 1, 4], strides = [1, 1, 1]} : vector<2x8x4xf32> to vector<2x1x4xf32>
    %499 = vector.shape_cast %498 : vector<2x1x4xf32> to vector<2x4xf32>
    %500 = vector.extract_strided_slice %93 {offsets = [0, 2, 0], sizes = [2, 1, 4], strides = [1, 1, 1]} : vector<2x8x4xf32> to vector<2x1x4xf32>
    %501 = vector.shape_cast %500 : vector<2x1x4xf32> to vector<2x4xf32>
    %502 = vector.extract_strided_slice %110 {offsets = [0, 2, 0], sizes = [2, 1, 32], strides = [1, 1, 1]} : vector<2x8x32xf32> to vector<2x1x32xf32>
    %503 = vector.shape_cast %502 : vector<2x1x32xf32> to vector<2x32xf32>
    %504 = vector.extract_strided_slice %142 {offsets = [0, 2, 0], sizes = [2, 1, 4], strides = [1, 1, 1]} : vector<2x8x4xf32> to vector<2x1x4xf32>
    %505 = vector.shape_cast %504 : vector<2x1x4xf32> to vector<2x4xf32>
    %506 = vector.extract_strided_slice %150 {offsets = [0, 2, 0], sizes = [2, 1, 128], strides = [1, 1, 1]} : vector<2x8x128xf32> to vector<2x1x128xf32>
    %507 = vector.shape_cast %506 : vector<2x1x128xf32> to vector<2x128xf32>
    %508 = vector.extract_strided_slice %160 {offsets = [0, 2, 0], sizes = [2, 1, 4], strides = [1, 1, 1]} : vector<2x8x4xf32> to vector<2x1x4xf32>
    %509 = vector.shape_cast %508 : vector<2x1x4xf32> to vector<2x4xf32>
    %510 = arith.mulf %434, %503 : vector<2x32xf32>
    %cst_185 = arith.constant dense<0.000000e+00> : vector<2x4xf32>
    %511 = tpu.matmul %510, %162, %cst_185 {dimension_numbers = #tpu.dot_dimension_numbers<[1], [0], [0], [1], [0, 0, 1, 1], [], []>} : vector<2x32xf32>, vector<32x4xf32>, vector<2x4xf32> -> vector<2x4xf32>
    %512 = arith.addf %511, %172 : vector<2x4xf32>
    %513 = arith.mulf %501, %499 : vector<2x4xf32>
    %cst_186 = arith.constant 1.000000e+00 : f32
    %514 = vector.broadcast %cst_186 : f32 to vector<2x4xf32>
    %515 = arith.subf %514, %501 : vector<2x4xf32>
    %516 = arith.mulf %515, %512 : vector<2x4xf32>
    %517 = arith.addf %513, %516 : vector<2x4xf32>
    %cst_187 = arith.constant dense<0.000000e+00> : vector<2x4xf32>
    %518 = tpu.matmul %517, %164, %cst_187 {dimension_numbers = #tpu.dot_dimension_numbers<[1], [0], [0], [1], [0, 0, 1, 1], [], []>} : vector<2x4xf32>, vector<4x4xf32>, vector<2x4xf32> -> vector<2x4xf32>
    %519 = arith.addf %518, %176 : vector<2x4xf32>
    %520 = arith.mulf %505, %519 : vector<2x4xf32>
    %cst_188 = arith.constant 1.000000e+00 : f32
    %521 = vector.broadcast %cst_188 : f32 to vector<2x4xf32>
    %522 = arith.subf %521, %505 : vector<2x4xf32>
    %523 = arith.mulf %522, %512 : vector<2x4xf32>
    %524 = arith.addf %520, %523 : vector<2x4xf32>
    %525 = arith.mulf %501, %499 : vector<2x4xf32>
    %cst_189 = arith.constant 1.000000e+00 : f32
    %526 = vector.broadcast %cst_189 : f32 to vector<2x4xf32>
    %527 = arith.subf %526, %501 : vector<2x4xf32>
    %528 = arith.mulf %527, %524 : vector<2x4xf32>
    %529 = arith.addf %525, %528 : vector<2x4xf32>
    %530 = arith.subf %512, %499 : vector<2x4xf32>
    %531 = math.absf %530 : vector<2x4xf32>
    %532 = arith.subf %519, %499 : vector<2x4xf32>
    %533 = math.absf %532 : vector<2x4xf32>
    %534 = arith.addf %531, %533 : vector<2x4xf32>
    %535 = arith.subf %524, %499 : vector<2x4xf32>
    %536 = math.absf %535 : vector<2x4xf32>
    %537 = arith.addf %534, %536 : vector<2x4xf32>
    %538 = arith.mulf %537, %509 : vector<2x4xf32>
    %539 = arith.addf %413, %538 : vector<2x4xf32>
    %cst_190 = arith.constant dense<0.000000e+00> : vector<2x128xf32>
    %540 = tpu.matmul %529, %166, %cst_190 {dimension_numbers = #tpu.dot_dimension_numbers<[1], [0], [0], [1], [0, 0, 1, 1], [], []>} : vector<2x4xf32>, vector<4x128xf32>, vector<2x128xf32> -> vector<2x128xf32>
    %cst_191 = arith.constant dense<0.000000e+00> : vector<2x128xf32>
    %541 = tpu.matmul %510, %168, %cst_191 {dimension_numbers = #tpu.dot_dimension_numbers<[1], [0], [0], [1], [0, 0, 1, 1], [], []>} : vector<2x32xf32>, vector<32x128xf32>, vector<2x128xf32> -> vector<2x128xf32>
    %542 = arith.addf %540, %541 : vector<2x128xf32>
    %543 = arith.addf %542, %507 : vector<2x128xf32>
    %cst_192 = arith.constant 0.000000e+00 : f32
    %544 = vector.broadcast %cst_192 : f32 to vector<2x128xf32>
    %545 = arith.subf %544, %543 : vector<2x128xf32>
    %546 = math.exp %545 : vector<2x128xf32>
    %cst_193 = arith.constant 1.000000e+00 : f32
    %547 = vector.broadcast %cst_193 : f32 to vector<2x128xf32>
    %548 = arith.addf %547, %546 : vector<2x128xf32>
    %cst_194 = arith.constant 1.000000e+00 : f32
    %549 = vector.broadcast %cst_194 : f32 to vector<2x128xf32>
    %550 = arith.divf %549, %548 : vector<2x128xf32>
    %551 = math.tanh %543 : vector<2x128xf32>
    %552 = vector.extract_strided_slice %550 {offsets = [0, 0], sizes = [2, 32], strides = [1, 1]} : vector<2x128xf32> to vector<2x32xf32>
    %553 = vector.extract_strided_slice %550 {offsets = [0, 32], sizes = [2, 32], strides = [1, 1]} : vector<2x128xf32> to vector<2x32xf32>
    %554 = vector.extract_strided_slice %551 {offsets = [0, 64], sizes = [2, 32], strides = [1, 1]} : vector<2x128xf32> to vector<2x32xf32>
    %555 = vector.extract_strided_slice %550 {offsets = [0, 96], sizes = [2, 32], strides = [1, 1]} : vector<2x128xf32> to vector<2x32xf32>
    %556 = arith.mulf %553, %432 : vector<2x32xf32>
    %557 = arith.mulf %552, %554 : vector<2x32xf32>
    %558 = arith.addf %556, %557 : vector<2x32xf32>
    %559 = math.tanh %558 : vector<2x32xf32>
    %560 = arith.mulf %555, %559 : vector<2x32xf32>
    %561 = vector.extract_strided_slice %4 {offsets = [0, 3, 0], sizes = [2, 1, 4], strides = [1, 1, 1]} : vector<2x8x4xf32> to vector<2x1x4xf32>
    %562 = vector.shape_cast %561 : vector<2x1x4xf32> to vector<2x4xf32>
    %563 = vector.extract_strided_slice %6 {offsets = [0, 3, 0], sizes = [2, 1, 4], strides = [1, 1, 1]} : vector<2x8x4xf32> to vector<2x1x4xf32>
    %564 = vector.shape_cast %563 : vector<2x1x4xf32> to vector<2x4xf32>
    %565 = vector.extract_strided_slice %23 {offsets = [0, 3, 0], sizes = [2, 1, 32], strides = [1, 1, 1]} : vector<2x8x32xf32> to vector<2x1x32xf32>
    %566 = vector.shape_cast %565 : vector<2x1x32xf32> to vector<2x32xf32>
    %567 = vector.extract_strided_slice %55 {offsets = [0, 3, 0], sizes = [2, 1, 4], strides = [1, 1, 1]} : vector<2x8x4xf32> to vector<2x1x4xf32>
    %568 = vector.shape_cast %567 : vector<2x1x4xf32> to vector<2x4xf32>
    %569 = vector.extract_strided_slice %63 {offsets = [0, 3, 0], sizes = [2, 1, 128], strides = [1, 1, 1]} : vector<2x8x128xf32> to vector<2x1x128xf32>
    %570 = vector.shape_cast %569 : vector<2x1x128xf32> to vector<2x128xf32>
    %571 = vector.extract_strided_slice %73 {offsets = [0, 3, 0], sizes = [2, 1, 4], strides = [1, 1, 1]} : vector<2x8x4xf32> to vector<2x1x4xf32>
    %572 = vector.shape_cast %571 : vector<2x1x4xf32> to vector<2x4xf32>
    %573 = arith.mulf %497, %566 : vector<2x32xf32>
    %cst_195 = arith.constant dense<0.000000e+00> : vector<2x4xf32>
    %574 = tpu.matmul %573, %75, %cst_195 {dimension_numbers = #tpu.dot_dimension_numbers<[1], [0], [0], [1], [0, 0, 1, 1], [], []>} : vector<2x32xf32>, vector<32x4xf32>, vector<2x4xf32> -> vector<2x4xf32>
    %575 = arith.addf %574, %85 : vector<2x4xf32>
    %576 = arith.mulf %564, %562 : vector<2x4xf32>
    %cst_196 = arith.constant 1.000000e+00 : f32
    %577 = vector.broadcast %cst_196 : f32 to vector<2x4xf32>
    %578 = arith.subf %577, %564 : vector<2x4xf32>
    %579 = arith.mulf %578, %575 : vector<2x4xf32>
    %580 = arith.addf %576, %579 : vector<2x4xf32>
    %cst_197 = arith.constant dense<0.000000e+00> : vector<2x4xf32>
    %581 = tpu.matmul %580, %77, %cst_197 {dimension_numbers = #tpu.dot_dimension_numbers<[1], [0], [0], [1], [0, 0, 1, 1], [], []>} : vector<2x4xf32>, vector<4x4xf32>, vector<2x4xf32> -> vector<2x4xf32>
    %582 = arith.addf %581, %89 : vector<2x4xf32>
    %583 = arith.mulf %568, %582 : vector<2x4xf32>
    %cst_198 = arith.constant 1.000000e+00 : f32
    %584 = vector.broadcast %cst_198 : f32 to vector<2x4xf32>
    %585 = arith.subf %584, %568 : vector<2x4xf32>
    %586 = arith.mulf %585, %575 : vector<2x4xf32>
    %587 = arith.addf %583, %586 : vector<2x4xf32>
    %588 = arith.mulf %564, %562 : vector<2x4xf32>
    %cst_199 = arith.constant 1.000000e+00 : f32
    %589 = vector.broadcast %cst_199 : f32 to vector<2x4xf32>
    %590 = arith.subf %589, %564 : vector<2x4xf32>
    %591 = arith.mulf %590, %587 : vector<2x4xf32>
    %592 = arith.addf %588, %591 : vector<2x4xf32>
    %593 = arith.subf %575, %562 : vector<2x4xf32>
    %594 = math.absf %593 : vector<2x4xf32>
    %595 = arith.subf %582, %562 : vector<2x4xf32>
    %596 = math.absf %595 : vector<2x4xf32>
    %597 = arith.addf %594, %596 : vector<2x4xf32>
    %598 = arith.subf %587, %562 : vector<2x4xf32>
    %599 = math.absf %598 : vector<2x4xf32>
    %600 = arith.addf %597, %599 : vector<2x4xf32>
    %601 = arith.mulf %600, %572 : vector<2x4xf32>
    %602 = arith.addf %476, %601 : vector<2x4xf32>
    %cst_200 = arith.constant dense<0.000000e+00> : vector<2x128xf32>
    %603 = tpu.matmul %592, %79, %cst_200 {dimension_numbers = #tpu.dot_dimension_numbers<[1], [0], [0], [1], [0, 0, 1, 1], [], []>} : vector<2x4xf32>, vector<4x128xf32>, vector<2x128xf32> -> vector<2x128xf32>
    %cst_201 = arith.constant dense<0.000000e+00> : vector<2x128xf32>
    %604 = tpu.matmul %573, %81, %cst_201 {dimension_numbers = #tpu.dot_dimension_numbers<[1], [0], [0], [1], [0, 0, 1, 1], [], []>} : vector<2x32xf32>, vector<32x128xf32>, vector<2x128xf32> -> vector<2x128xf32>
    %605 = arith.addf %603, %604 : vector<2x128xf32>
    %606 = arith.addf %605, %570 : vector<2x128xf32>
    %cst_202 = arith.constant 0.000000e+00 : f32
    %607 = vector.broadcast %cst_202 : f32 to vector<2x128xf32>
    %608 = arith.subf %607, %606 : vector<2x128xf32>
    %609 = math.exp %608 : vector<2x128xf32>
    %cst_203 = arith.constant 1.000000e+00 : f32
    %610 = vector.broadcast %cst_203 : f32 to vector<2x128xf32>
    %611 = arith.addf %610, %609 : vector<2x128xf32>
    %cst_204 = arith.constant 1.000000e+00 : f32
    %612 = vector.broadcast %cst_204 : f32 to vector<2x128xf32>
    %613 = arith.divf %612, %611 : vector<2x128xf32>
    %614 = math.tanh %606 : vector<2x128xf32>
    %615 = vector.extract_strided_slice %613 {offsets = [0, 0], sizes = [2, 32], strides = [1, 1]} : vector<2x128xf32> to vector<2x32xf32>
    %616 = vector.extract_strided_slice %613 {offsets = [0, 32], sizes = [2, 32], strides = [1, 1]} : vector<2x128xf32> to vector<2x32xf32>
    %617 = vector.extract_strided_slice %614 {offsets = [0, 64], sizes = [2, 32], strides = [1, 1]} : vector<2x128xf32> to vector<2x32xf32>
    %618 = vector.extract_strided_slice %613 {offsets = [0, 96], sizes = [2, 32], strides = [1, 1]} : vector<2x128xf32> to vector<2x32xf32>
    %619 = arith.mulf %616, %495 : vector<2x32xf32>
    %620 = arith.mulf %615, %617 : vector<2x32xf32>
    %621 = arith.addf %619, %620 : vector<2x32xf32>
    %622 = math.tanh %621 : vector<2x32xf32>
    %623 = arith.mulf %618, %622 : vector<2x32xf32>
    %624 = vector.extract_strided_slice %91 {offsets = [0, 3, 0], sizes = [2, 1, 4], strides = [1, 1, 1]} : vector<2x8x4xf32> to vector<2x1x4xf32>
    %625 = vector.shape_cast %624 : vector<2x1x4xf32> to vector<2x4xf32>
    %626 = vector.extract_strided_slice %93 {offsets = [0, 3, 0], sizes = [2, 1, 4], strides = [1, 1, 1]} : vector<2x8x4xf32> to vector<2x1x4xf32>
    %627 = vector.shape_cast %626 : vector<2x1x4xf32> to vector<2x4xf32>
    %628 = vector.extract_strided_slice %110 {offsets = [0, 3, 0], sizes = [2, 1, 32], strides = [1, 1, 1]} : vector<2x8x32xf32> to vector<2x1x32xf32>
    %629 = vector.shape_cast %628 : vector<2x1x32xf32> to vector<2x32xf32>
    %630 = vector.extract_strided_slice %142 {offsets = [0, 3, 0], sizes = [2, 1, 4], strides = [1, 1, 1]} : vector<2x8x4xf32> to vector<2x1x4xf32>
    %631 = vector.shape_cast %630 : vector<2x1x4xf32> to vector<2x4xf32>
    %632 = vector.extract_strided_slice %150 {offsets = [0, 3, 0], sizes = [2, 1, 128], strides = [1, 1, 1]} : vector<2x8x128xf32> to vector<2x1x128xf32>
    %633 = vector.shape_cast %632 : vector<2x1x128xf32> to vector<2x128xf32>
    %634 = vector.extract_strided_slice %160 {offsets = [0, 3, 0], sizes = [2, 1, 4], strides = [1, 1, 1]} : vector<2x8x4xf32> to vector<2x1x4xf32>
    %635 = vector.shape_cast %634 : vector<2x1x4xf32> to vector<2x4xf32>
    %636 = arith.mulf %560, %629 : vector<2x32xf32>
    %cst_205 = arith.constant dense<0.000000e+00> : vector<2x4xf32>
    %637 = tpu.matmul %636, %162, %cst_205 {dimension_numbers = #tpu.dot_dimension_numbers<[1], [0], [0], [1], [0, 0, 1, 1], [], []>} : vector<2x32xf32>, vector<32x4xf32>, vector<2x4xf32> -> vector<2x4xf32>
    %638 = arith.addf %637, %172 : vector<2x4xf32>
    %639 = arith.mulf %627, %625 : vector<2x4xf32>
    %cst_206 = arith.constant 1.000000e+00 : f32
    %640 = vector.broadcast %cst_206 : f32 to vector<2x4xf32>
    %641 = arith.subf %640, %627 : vector<2x4xf32>
    %642 = arith.mulf %641, %638 : vector<2x4xf32>
    %643 = arith.addf %639, %642 : vector<2x4xf32>
    %cst_207 = arith.constant dense<0.000000e+00> : vector<2x4xf32>
    %644 = tpu.matmul %643, %164, %cst_207 {dimension_numbers = #tpu.dot_dimension_numbers<[1], [0], [0], [1], [0, 0, 1, 1], [], []>} : vector<2x4xf32>, vector<4x4xf32>, vector<2x4xf32> -> vector<2x4xf32>
    %645 = arith.addf %644, %176 : vector<2x4xf32>
    %646 = arith.mulf %631, %645 : vector<2x4xf32>
    %cst_208 = arith.constant 1.000000e+00 : f32
    %647 = vector.broadcast %cst_208 : f32 to vector<2x4xf32>
    %648 = arith.subf %647, %631 : vector<2x4xf32>
    %649 = arith.mulf %648, %638 : vector<2x4xf32>
    %650 = arith.addf %646, %649 : vector<2x4xf32>
    %651 = arith.mulf %627, %625 : vector<2x4xf32>
    %cst_209 = arith.constant 1.000000e+00 : f32
    %652 = vector.broadcast %cst_209 : f32 to vector<2x4xf32>
    %653 = arith.subf %652, %627 : vector<2x4xf32>
    %654 = arith.mulf %653, %650 : vector<2x4xf32>
    %655 = arith.addf %651, %654 : vector<2x4xf32>
    %656 = arith.subf %638, %625 : vector<2x4xf32>
    %657 = math.absf %656 : vector<2x4xf32>
    %658 = arith.subf %645, %625 : vector<2x4xf32>
    %659 = math.absf %658 : vector<2x4xf32>
    %660 = arith.addf %657, %659 : vector<2x4xf32>
    %661 = arith.subf %650, %625 : vector<2x4xf32>
    %662 = math.absf %661 : vector<2x4xf32>
    %663 = arith.addf %660, %662 : vector<2x4xf32>
    %664 = arith.mulf %663, %635 : vector<2x4xf32>
    %665 = arith.addf %539, %664 : vector<2x4xf32>
    %cst_210 = arith.constant dense<0.000000e+00> : vector<2x128xf32>
    %666 = tpu.matmul %655, %166, %cst_210 {dimension_numbers = #tpu.dot_dimension_numbers<[1], [0], [0], [1], [0, 0, 1, 1], [], []>} : vector<2x4xf32>, vector<4x128xf32>, vector<2x128xf32> -> vector<2x128xf32>
    %cst_211 = arith.constant dense<0.000000e+00> : vector<2x128xf32>
    %667 = tpu.matmul %636, %168, %cst_211 {dimension_numbers = #tpu.dot_dimension_numbers<[1], [0], [0], [1], [0, 0, 1, 1], [], []>} : vector<2x32xf32>, vector<32x128xf32>, vector<2x128xf32> -> vector<2x128xf32>
    %668 = arith.addf %666, %667 : vector<2x128xf32>
    %669 = arith.addf %668, %633 : vector<2x128xf32>
    %cst_212 = arith.constant 0.000000e+00 : f32
    %670 = vector.broadcast %cst_212 : f32 to vector<2x128xf32>
    %671 = arith.subf %670, %669 : vector<2x128xf32>
    %672 = math.exp %671 : vector<2x128xf32>
    %cst_213 = arith.constant 1.000000e+00 : f32
    %673 = vector.broadcast %cst_213 : f32 to vector<2x128xf32>
    %674 = arith.addf %673, %672 : vector<2x128xf32>
    %cst_214 = arith.constant 1.000000e+00 : f32
    %675 = vector.broadcast %cst_214 : f32 to vector<2x128xf32>
    %676 = arith.divf %675, %674 : vector<2x128xf32>
    %677 = math.tanh %669 : vector<2x128xf32>
    %678 = vector.extract_strided_slice %676 {offsets = [0, 0], sizes = [2, 32], strides = [1, 1]} : vector<2x128xf32> to vector<2x32xf32>
    %679 = vector.extract_strided_slice %676 {offsets = [0, 32], sizes = [2, 32], strides = [1, 1]} : vector<2x128xf32> to vector<2x32xf32>
    %680 = vector.extract_strided_slice %677 {offsets = [0, 64], sizes = [2, 32], strides = [1, 1]} : vector<2x128xf32> to vector<2x32xf32>
    %681 = vector.extract_strided_slice %676 {offsets = [0, 96], sizes = [2, 32], strides = [1, 1]} : vector<2x128xf32> to vector<2x32xf32>
    %682 = arith.mulf %679, %558 : vector<2x32xf32>
    %683 = arith.mulf %678, %680 : vector<2x32xf32>
    %684 = arith.addf %682, %683 : vector<2x32xf32>
    %685 = math.tanh %684 : vector<2x32xf32>
    %686 = arith.mulf %681, %685 : vector<2x32xf32>
    %687 = vector.extract_strided_slice %4 {offsets = [0, 4, 0], sizes = [2, 1, 4], strides = [1, 1, 1]} : vector<2x8x4xf32> to vector<2x1x4xf32>
    %688 = vector.shape_cast %687 : vector<2x1x4xf32> to vector<2x4xf32>
    %689 = vector.extract_strided_slice %6 {offsets = [0, 4, 0], sizes = [2, 1, 4], strides = [1, 1, 1]} : vector<2x8x4xf32> to vector<2x1x4xf32>
    %690 = vector.shape_cast %689 : vector<2x1x4xf32> to vector<2x4xf32>
    %691 = vector.extract_strided_slice %23 {offsets = [0, 4, 0], sizes = [2, 1, 32], strides = [1, 1, 1]} : vector<2x8x32xf32> to vector<2x1x32xf32>
    %692 = vector.shape_cast %691 : vector<2x1x32xf32> to vector<2x32xf32>
    %693 = vector.extract_strided_slice %55 {offsets = [0, 4, 0], sizes = [2, 1, 4], strides = [1, 1, 1]} : vector<2x8x4xf32> to vector<2x1x4xf32>
    %694 = vector.shape_cast %693 : vector<2x1x4xf32> to vector<2x4xf32>
    %695 = vector.extract_strided_slice %63 {offsets = [0, 4, 0], sizes = [2, 1, 128], strides = [1, 1, 1]} : vector<2x8x128xf32> to vector<2x1x128xf32>
    %696 = vector.shape_cast %695 : vector<2x1x128xf32> to vector<2x128xf32>
    %697 = vector.extract_strided_slice %73 {offsets = [0, 4, 0], sizes = [2, 1, 4], strides = [1, 1, 1]} : vector<2x8x4xf32> to vector<2x1x4xf32>
    %698 = vector.shape_cast %697 : vector<2x1x4xf32> to vector<2x4xf32>
    %699 = arith.mulf %623, %692 : vector<2x32xf32>
    %cst_215 = arith.constant dense<0.000000e+00> : vector<2x4xf32>
    %700 = tpu.matmul %699, %75, %cst_215 {dimension_numbers = #tpu.dot_dimension_numbers<[1], [0], [0], [1], [0, 0, 1, 1], [], []>} : vector<2x32xf32>, vector<32x4xf32>, vector<2x4xf32> -> vector<2x4xf32>
    %701 = arith.addf %700, %85 : vector<2x4xf32>
    %702 = arith.mulf %690, %688 : vector<2x4xf32>
    %cst_216 = arith.constant 1.000000e+00 : f32
    %703 = vector.broadcast %cst_216 : f32 to vector<2x4xf32>
    %704 = arith.subf %703, %690 : vector<2x4xf32>
    %705 = arith.mulf %704, %701 : vector<2x4xf32>
    %706 = arith.addf %702, %705 : vector<2x4xf32>
    %cst_217 = arith.constant dense<0.000000e+00> : vector<2x4xf32>
    %707 = tpu.matmul %706, %77, %cst_217 {dimension_numbers = #tpu.dot_dimension_numbers<[1], [0], [0], [1], [0, 0, 1, 1], [], []>} : vector<2x4xf32>, vector<4x4xf32>, vector<2x4xf32> -> vector<2x4xf32>
    %708 = arith.addf %707, %89 : vector<2x4xf32>
    %709 = arith.mulf %694, %708 : vector<2x4xf32>
    %cst_218 = arith.constant 1.000000e+00 : f32
    %710 = vector.broadcast %cst_218 : f32 to vector<2x4xf32>
    %711 = arith.subf %710, %694 : vector<2x4xf32>
    %712 = arith.mulf %711, %701 : vector<2x4xf32>
    %713 = arith.addf %709, %712 : vector<2x4xf32>
    %714 = arith.mulf %690, %688 : vector<2x4xf32>
    %cst_219 = arith.constant 1.000000e+00 : f32
    %715 = vector.broadcast %cst_219 : f32 to vector<2x4xf32>
    %716 = arith.subf %715, %690 : vector<2x4xf32>
    %717 = arith.mulf %716, %713 : vector<2x4xf32>
    %718 = arith.addf %714, %717 : vector<2x4xf32>
    %719 = arith.subf %701, %688 : vector<2x4xf32>
    %720 = math.absf %719 : vector<2x4xf32>
    %721 = arith.subf %708, %688 : vector<2x4xf32>
    %722 = math.absf %721 : vector<2x4xf32>
    %723 = arith.addf %720, %722 : vector<2x4xf32>
    %724 = arith.subf %713, %688 : vector<2x4xf32>
    %725 = math.absf %724 : vector<2x4xf32>
    %726 = arith.addf %723, %725 : vector<2x4xf32>
    %727 = arith.mulf %726, %698 : vector<2x4xf32>
    %728 = arith.addf %602, %727 : vector<2x4xf32>
    %cst_220 = arith.constant dense<0.000000e+00> : vector<2x128xf32>
    %729 = tpu.matmul %718, %79, %cst_220 {dimension_numbers = #tpu.dot_dimension_numbers<[1], [0], [0], [1], [0, 0, 1, 1], [], []>} : vector<2x4xf32>, vector<4x128xf32>, vector<2x128xf32> -> vector<2x128xf32>
    %cst_221 = arith.constant dense<0.000000e+00> : vector<2x128xf32>
    %730 = tpu.matmul %699, %81, %cst_221 {dimension_numbers = #tpu.dot_dimension_numbers<[1], [0], [0], [1], [0, 0, 1, 1], [], []>} : vector<2x32xf32>, vector<32x128xf32>, vector<2x128xf32> -> vector<2x128xf32>
    %731 = arith.addf %729, %730 : vector<2x128xf32>
    %732 = arith.addf %731, %696 : vector<2x128xf32>
    %cst_222 = arith.constant 0.000000e+00 : f32
    %733 = vector.broadcast %cst_222 : f32 to vector<2x128xf32>
    %734 = arith.subf %733, %732 : vector<2x128xf32>
    %735 = math.exp %734 : vector<2x128xf32>
    %cst_223 = arith.constant 1.000000e+00 : f32
    %736 = vector.broadcast %cst_223 : f32 to vector<2x128xf32>
    %737 = arith.addf %736, %735 : vector<2x128xf32>
    %cst_224 = arith.constant 1.000000e+00 : f32
    %738 = vector.broadcast %cst_224 : f32 to vector<2x128xf32>
    %739 = arith.divf %738, %737 : vector<2x128xf32>
    %740 = math.tanh %732 : vector<2x128xf32>
    %741 = vector.extract_strided_slice %739 {offsets = [0, 0], sizes = [2, 32], strides = [1, 1]} : vector<2x128xf32> to vector<2x32xf32>
    %742 = vector.extract_strided_slice %739 {offsets = [0, 32], sizes = [2, 32], strides = [1, 1]} : vector<2x128xf32> to vector<2x32xf32>
    %743 = vector.extract_strided_slice %740 {offsets = [0, 64], sizes = [2, 32], strides = [1, 1]} : vector<2x128xf32> to vector<2x32xf32>
    %744 = vector.extract_strided_slice %739 {offsets = [0, 96], sizes = [2, 32], strides = [1, 1]} : vector<2x128xf32> to vector<2x32xf32>
    %745 = arith.mulf %742, %621 : vector<2x32xf32>
    %746 = arith.mulf %741, %743 : vector<2x32xf32>
    %747 = arith.addf %745, %746 : vector<2x32xf32>
    %748 = math.tanh %747 : vector<2x32xf32>
    %749 = arith.mulf %744, %748 : vector<2x32xf32>
    %750 = vector.extract_strided_slice %91 {offsets = [0, 4, 0], sizes = [2, 1, 4], strides = [1, 1, 1]} : vector<2x8x4xf32> to vector<2x1x4xf32>
    %751 = vector.shape_cast %750 : vector<2x1x4xf32> to vector<2x4xf32>
    %752 = vector.extract_strided_slice %93 {offsets = [0, 4, 0], sizes = [2, 1, 4], strides = [1, 1, 1]} : vector<2x8x4xf32> to vector<2x1x4xf32>
    %753 = vector.shape_cast %752 : vector<2x1x4xf32> to vector<2x4xf32>
    %754 = vector.extract_strided_slice %110 {offsets = [0, 4, 0], sizes = [2, 1, 32], strides = [1, 1, 1]} : vector<2x8x32xf32> to vector<2x1x32xf32>
    %755 = vector.shape_cast %754 : vector<2x1x32xf32> to vector<2x32xf32>
    %756 = vector.extract_strided_slice %142 {offsets = [0, 4, 0], sizes = [2, 1, 4], strides = [1, 1, 1]} : vector<2x8x4xf32> to vector<2x1x4xf32>
    %757 = vector.shape_cast %756 : vector<2x1x4xf32> to vector<2x4xf32>
    %758 = vector.extract_strided_slice %150 {offsets = [0, 4, 0], sizes = [2, 1, 128], strides = [1, 1, 1]} : vector<2x8x128xf32> to vector<2x1x128xf32>
    %759 = vector.shape_cast %758 : vector<2x1x128xf32> to vector<2x128xf32>
    %760 = vector.extract_strided_slice %160 {offsets = [0, 4, 0], sizes = [2, 1, 4], strides = [1, 1, 1]} : vector<2x8x4xf32> to vector<2x1x4xf32>
    %761 = vector.shape_cast %760 : vector<2x1x4xf32> to vector<2x4xf32>
    %762 = arith.mulf %686, %755 : vector<2x32xf32>
    %cst_225 = arith.constant dense<0.000000e+00> : vector<2x4xf32>
    %763 = tpu.matmul %762, %162, %cst_225 {dimension_numbers = #tpu.dot_dimension_numbers<[1], [0], [0], [1], [0, 0, 1, 1], [], []>} : vector<2x32xf32>, vector<32x4xf32>, vector<2x4xf32> -> vector<2x4xf32>
    %764 = arith.addf %763, %172 : vector<2x4xf32>
    %765 = arith.mulf %753, %751 : vector<2x4xf32>
    %cst_226 = arith.constant 1.000000e+00 : f32
    %766 = vector.broadcast %cst_226 : f32 to vector<2x4xf32>
    %767 = arith.subf %766, %753 : vector<2x4xf32>
    %768 = arith.mulf %767, %764 : vector<2x4xf32>
    %769 = arith.addf %765, %768 : vector<2x4xf32>
    %cst_227 = arith.constant dense<0.000000e+00> : vector<2x4xf32>
    %770 = tpu.matmul %769, %164, %cst_227 {dimension_numbers = #tpu.dot_dimension_numbers<[1], [0], [0], [1], [0, 0, 1, 1], [], []>} : vector<2x4xf32>, vector<4x4xf32>, vector<2x4xf32> -> vector<2x4xf32>
    %771 = arith.addf %770, %176 : vector<2x4xf32>
    %772 = arith.mulf %757, %771 : vector<2x4xf32>
    %cst_228 = arith.constant 1.000000e+00 : f32
    %773 = vector.broadcast %cst_228 : f32 to vector<2x4xf32>
    %774 = arith.subf %773, %757 : vector<2x4xf32>
    %775 = arith.mulf %774, %764 : vector<2x4xf32>
    %776 = arith.addf %772, %775 : vector<2x4xf32>
    %777 = arith.mulf %753, %751 : vector<2x4xf32>
    %cst_229 = arith.constant 1.000000e+00 : f32
    %778 = vector.broadcast %cst_229 : f32 to vector<2x4xf32>
    %779 = arith.subf %778, %753 : vector<2x4xf32>
    %780 = arith.mulf %779, %776 : vector<2x4xf32>
    %781 = arith.addf %777, %780 : vector<2x4xf32>
    %782 = arith.subf %764, %751 : vector<2x4xf32>
    %783 = math.absf %782 : vector<2x4xf32>
    %784 = arith.subf %771, %751 : vector<2x4xf32>
    %785 = math.absf %784 : vector<2x4xf32>
    %786 = arith.addf %783, %785 : vector<2x4xf32>
    %787 = arith.subf %776, %751 : vector<2x4xf32>
    %788 = math.absf %787 : vector<2x4xf32>
    %789 = arith.addf %786, %788 : vector<2x4xf32>
    %790 = arith.mulf %789, %761 : vector<2x4xf32>
    %791 = arith.addf %665, %790 : vector<2x4xf32>
    %cst_230 = arith.constant dense<0.000000e+00> : vector<2x128xf32>
    %792 = tpu.matmul %781, %166, %cst_230 {dimension_numbers = #tpu.dot_dimension_numbers<[1], [0], [0], [1], [0, 0, 1, 1], [], []>} : vector<2x4xf32>, vector<4x128xf32>, vector<2x128xf32> -> vector<2x128xf32>
    %cst_231 = arith.constant dense<0.000000e+00> : vector<2x128xf32>
    %793 = tpu.matmul %762, %168, %cst_231 {dimension_numbers = #tpu.dot_dimension_numbers<[1], [0], [0], [1], [0, 0, 1, 1], [], []>} : vector<2x32xf32>, vector<32x128xf32>, vector<2x128xf32> -> vector<2x128xf32>
    %794 = arith.addf %792, %793 : vector<2x128xf32>
    %795 = arith.addf %794, %759 : vector<2x128xf32>
    %cst_232 = arith.constant 0.000000e+00 : f32
    %796 = vector.broadcast %cst_232 : f32 to vector<2x128xf32>
    %797 = arith.subf %796, %795 : vector<2x128xf32>
    %798 = math.exp %797 : vector<2x128xf32>
    %cst_233 = arith.constant 1.000000e+00 : f32
    %799 = vector.broadcast %cst_233 : f32 to vector<2x128xf32>
    %800 = arith.addf %799, %798 : vector<2x128xf32>
    %cst_234 = arith.constant 1.000000e+00 : f32
    %801 = vector.broadcast %cst_234 : f32 to vector<2x128xf32>
    %802 = arith.divf %801, %800 : vector<2x128xf32>
    %803 = math.tanh %795 : vector<2x128xf32>
    %804 = vector.extract_strided_slice %802 {offsets = [0, 0], sizes = [2, 32], strides = [1, 1]} : vector<2x128xf32> to vector<2x32xf32>
    %805 = vector.extract_strided_slice %802 {offsets = [0, 32], sizes = [2, 32], strides = [1, 1]} : vector<2x128xf32> to vector<2x32xf32>
    %806 = vector.extract_strided_slice %803 {offsets = [0, 64], sizes = [2, 32], strides = [1, 1]} : vector<2x128xf32> to vector<2x32xf32>
    %807 = vector.extract_strided_slice %802 {offsets = [0, 96], sizes = [2, 32], strides = [1, 1]} : vector<2x128xf32> to vector<2x32xf32>
    %808 = arith.mulf %805, %684 : vector<2x32xf32>
    %809 = arith.mulf %804, %806 : vector<2x32xf32>
    %810 = arith.addf %808, %809 : vector<2x32xf32>
    %811 = math.tanh %810 : vector<2x32xf32>
    %812 = arith.mulf %807, %811 : vector<2x32xf32>
    %813 = vector.extract_strided_slice %4 {offsets = [0, 5, 0], sizes = [2, 1, 4], strides = [1, 1, 1]} : vector<2x8x4xf32> to vector<2x1x4xf32>
    %814 = vector.shape_cast %813 : vector<2x1x4xf32> to vector<2x4xf32>
    %815 = vector.extract_strided_slice %6 {offsets = [0, 5, 0], sizes = [2, 1, 4], strides = [1, 1, 1]} : vector<2x8x4xf32> to vector<2x1x4xf32>
    %816 = vector.shape_cast %815 : vector<2x1x4xf32> to vector<2x4xf32>
    %817 = vector.extract_strided_slice %23 {offsets = [0, 5, 0], sizes = [2, 1, 32], strides = [1, 1, 1]} : vector<2x8x32xf32> to vector<2x1x32xf32>
    %818 = vector.shape_cast %817 : vector<2x1x32xf32> to vector<2x32xf32>
    %819 = vector.extract_strided_slice %55 {offsets = [0, 5, 0], sizes = [2, 1, 4], strides = [1, 1, 1]} : vector<2x8x4xf32> to vector<2x1x4xf32>
    %820 = vector.shape_cast %819 : vector<2x1x4xf32> to vector<2x4xf32>
    %821 = vector.extract_strided_slice %63 {offsets = [0, 5, 0], sizes = [2, 1, 128], strides = [1, 1, 1]} : vector<2x8x128xf32> to vector<2x1x128xf32>
    %822 = vector.shape_cast %821 : vector<2x1x128xf32> to vector<2x128xf32>
    %823 = vector.extract_strided_slice %73 {offsets = [0, 5, 0], sizes = [2, 1, 4], strides = [1, 1, 1]} : vector<2x8x4xf32> to vector<2x1x4xf32>
    %824 = vector.shape_cast %823 : vector<2x1x4xf32> to vector<2x4xf32>
    %825 = arith.mulf %749, %818 : vector<2x32xf32>
    %cst_235 = arith.constant dense<0.000000e+00> : vector<2x4xf32>
    %826 = tpu.matmul %825, %75, %cst_235 {dimension_numbers = #tpu.dot_dimension_numbers<[1], [0], [0], [1], [0, 0, 1, 1], [], []>} : vector<2x32xf32>, vector<32x4xf32>, vector<2x4xf32> -> vector<2x4xf32>
    %827 = arith.addf %826, %85 : vector<2x4xf32>
    %828 = arith.mulf %816, %814 : vector<2x4xf32>
    %cst_236 = arith.constant 1.000000e+00 : f32
    %829 = vector.broadcast %cst_236 : f32 to vector<2x4xf32>
    %830 = arith.subf %829, %816 : vector<2x4xf32>
    %831 = arith.mulf %830, %827 : vector<2x4xf32>
    %832 = arith.addf %828, %831 : vector<2x4xf32>
    %cst_237 = arith.constant dense<0.000000e+00> : vector<2x4xf32>
    %833 = tpu.matmul %832, %77, %cst_237 {dimension_numbers = #tpu.dot_dimension_numbers<[1], [0], [0], [1], [0, 0, 1, 1], [], []>} : vector<2x4xf32>, vector<4x4xf32>, vector<2x4xf32> -> vector<2x4xf32>
    %834 = arith.addf %833, %89 : vector<2x4xf32>
    %835 = arith.mulf %820, %834 : vector<2x4xf32>
    %cst_238 = arith.constant 1.000000e+00 : f32
    %836 = vector.broadcast %cst_238 : f32 to vector<2x4xf32>
    %837 = arith.subf %836, %820 : vector<2x4xf32>
    %838 = arith.mulf %837, %827 : vector<2x4xf32>
    %839 = arith.addf %835, %838 : vector<2x4xf32>
    %840 = arith.mulf %816, %814 : vector<2x4xf32>
    %cst_239 = arith.constant 1.000000e+00 : f32
    %841 = vector.broadcast %cst_239 : f32 to vector<2x4xf32>
    %842 = arith.subf %841, %816 : vector<2x4xf32>
    %843 = arith.mulf %842, %839 : vector<2x4xf32>
    %844 = arith.addf %840, %843 : vector<2x4xf32>
    %845 = arith.subf %827, %814 : vector<2x4xf32>
    %846 = math.absf %845 : vector<2x4xf32>
    %847 = arith.subf %834, %814 : vector<2x4xf32>
    %848 = math.absf %847 : vector<2x4xf32>
    %849 = arith.addf %846, %848 : vector<2x4xf32>
    %850 = arith.subf %839, %814 : vector<2x4xf32>
    %851 = math.absf %850 : vector<2x4xf32>
    %852 = arith.addf %849, %851 : vector<2x4xf32>
    %853 = arith.mulf %852, %824 : vector<2x4xf32>
    %854 = arith.addf %728, %853 : vector<2x4xf32>
    %cst_240 = arith.constant dense<0.000000e+00> : vector<2x128xf32>
    %855 = tpu.matmul %844, %79, %cst_240 {dimension_numbers = #tpu.dot_dimension_numbers<[1], [0], [0], [1], [0, 0, 1, 1], [], []>} : vector<2x4xf32>, vector<4x128xf32>, vector<2x128xf32> -> vector<2x128xf32>
    %cst_241 = arith.constant dense<0.000000e+00> : vector<2x128xf32>
    %856 = tpu.matmul %825, %81, %cst_241 {dimension_numbers = #tpu.dot_dimension_numbers<[1], [0], [0], [1], [0, 0, 1, 1], [], []>} : vector<2x32xf32>, vector<32x128xf32>, vector<2x128xf32> -> vector<2x128xf32>
    %857 = arith.addf %855, %856 : vector<2x128xf32>
    %858 = arith.addf %857, %822 : vector<2x128xf32>
    %cst_242 = arith.constant 0.000000e+00 : f32
    %859 = vector.broadcast %cst_242 : f32 to vector<2x128xf32>
    %860 = arith.subf %859, %858 : vector<2x128xf32>
    %861 = math.exp %860 : vector<2x128xf32>
    %cst_243 = arith.constant 1.000000e+00 : f32
    %862 = vector.broadcast %cst_243 : f32 to vector<2x128xf32>
    %863 = arith.addf %862, %861 : vector<2x128xf32>
    %cst_244 = arith.constant 1.000000e+00 : f32
    %864 = vector.broadcast %cst_244 : f32 to vector<2x128xf32>
    %865 = arith.divf %864, %863 : vector<2x128xf32>
    %866 = math.tanh %858 : vector<2x128xf32>
    %867 = vector.extract_strided_slice %865 {offsets = [0, 0], sizes = [2, 32], strides = [1, 1]} : vector<2x128xf32> to vector<2x32xf32>
    %868 = vector.extract_strided_slice %865 {offsets = [0, 32], sizes = [2, 32], strides = [1, 1]} : vector<2x128xf32> to vector<2x32xf32>
    %869 = vector.extract_strided_slice %866 {offsets = [0, 64], sizes = [2, 32], strides = [1, 1]} : vector<2x128xf32> to vector<2x32xf32>
    %870 = vector.extract_strided_slice %865 {offsets = [0, 96], sizes = [2, 32], strides = [1, 1]} : vector<2x128xf32> to vector<2x32xf32>
    %871 = arith.mulf %868, %747 : vector<2x32xf32>
    %872 = arith.mulf %867, %869 : vector<2x32xf32>
    %873 = arith.addf %871, %872 : vector<2x32xf32>
    %874 = math.tanh %873 : vector<2x32xf32>
    %875 = arith.mulf %870, %874 : vector<2x32xf32>
    %876 = vector.extract_strided_slice %91 {offsets = [0, 5, 0], sizes = [2, 1, 4], strides = [1, 1, 1]} : vector<2x8x4xf32> to vector<2x1x4xf32>
    %877 = vector.shape_cast %876 : vector<2x1x4xf32> to vector<2x4xf32>
    %878 = vector.extract_strided_slice %93 {offsets = [0, 5, 0], sizes = [2, 1, 4], strides = [1, 1, 1]} : vector<2x8x4xf32> to vector<2x1x4xf32>
    %879 = vector.shape_cast %878 : vector<2x1x4xf32> to vector<2x4xf32>
    %880 = vector.extract_strided_slice %110 {offsets = [0, 5, 0], sizes = [2, 1, 32], strides = [1, 1, 1]} : vector<2x8x32xf32> to vector<2x1x32xf32>
    %881 = vector.shape_cast %880 : vector<2x1x32xf32> to vector<2x32xf32>
    %882 = vector.extract_strided_slice %142 {offsets = [0, 5, 0], sizes = [2, 1, 4], strides = [1, 1, 1]} : vector<2x8x4xf32> to vector<2x1x4xf32>
    %883 = vector.shape_cast %882 : vector<2x1x4xf32> to vector<2x4xf32>
    %884 = vector.extract_strided_slice %150 {offsets = [0, 5, 0], sizes = [2, 1, 128], strides = [1, 1, 1]} : vector<2x8x128xf32> to vector<2x1x128xf32>
    %885 = vector.shape_cast %884 : vector<2x1x128xf32> to vector<2x128xf32>
    %886 = vector.extract_strided_slice %160 {offsets = [0, 5, 0], sizes = [2, 1, 4], strides = [1, 1, 1]} : vector<2x8x4xf32> to vector<2x1x4xf32>
    %887 = vector.shape_cast %886 : vector<2x1x4xf32> to vector<2x4xf32>
    %888 = arith.mulf %812, %881 : vector<2x32xf32>
    %cst_245 = arith.constant dense<0.000000e+00> : vector<2x4xf32>
    %889 = tpu.matmul %888, %162, %cst_245 {dimension_numbers = #tpu.dot_dimension_numbers<[1], [0], [0], [1], [0, 0, 1, 1], [], []>} : vector<2x32xf32>, vector<32x4xf32>, vector<2x4xf32> -> vector<2x4xf32>
    %890 = arith.addf %889, %172 : vector<2x4xf32>
    %891 = arith.mulf %879, %877 : vector<2x4xf32>
    %cst_246 = arith.constant 1.000000e+00 : f32
    %892 = vector.broadcast %cst_246 : f32 to vector<2x4xf32>
    %893 = arith.subf %892, %879 : vector<2x4xf32>
    %894 = arith.mulf %893, %890 : vector<2x4xf32>
    %895 = arith.addf %891, %894 : vector<2x4xf32>
    %cst_247 = arith.constant dense<0.000000e+00> : vector<2x4xf32>
    %896 = tpu.matmul %895, %164, %cst_247 {dimension_numbers = #tpu.dot_dimension_numbers<[1], [0], [0], [1], [0, 0, 1, 1], [], []>} : vector<2x4xf32>, vector<4x4xf32>, vector<2x4xf32> -> vector<2x4xf32>
    %897 = arith.addf %896, %176 : vector<2x4xf32>
    %898 = arith.mulf %883, %897 : vector<2x4xf32>
    %cst_248 = arith.constant 1.000000e+00 : f32
    %899 = vector.broadcast %cst_248 : f32 to vector<2x4xf32>
    %900 = arith.subf %899, %883 : vector<2x4xf32>
    %901 = arith.mulf %900, %890 : vector<2x4xf32>
    %902 = arith.addf %898, %901 : vector<2x4xf32>
    %903 = arith.mulf %879, %877 : vector<2x4xf32>
    %cst_249 = arith.constant 1.000000e+00 : f32
    %904 = vector.broadcast %cst_249 : f32 to vector<2x4xf32>
    %905 = arith.subf %904, %879 : vector<2x4xf32>
    %906 = arith.mulf %905, %902 : vector<2x4xf32>
    %907 = arith.addf %903, %906 : vector<2x4xf32>
    %908 = arith.subf %890, %877 : vector<2x4xf32>
    %909 = math.absf %908 : vector<2x4xf32>
    %910 = arith.subf %897, %877 : vector<2x4xf32>
    %911 = math.absf %910 : vector<2x4xf32>
    %912 = arith.addf %909, %911 : vector<2x4xf32>
    %913 = arith.subf %902, %877 : vector<2x4xf32>
    %914 = math.absf %913 : vector<2x4xf32>
    %915 = arith.addf %912, %914 : vector<2x4xf32>
    %916 = arith.mulf %915, %887 : vector<2x4xf32>
    %917 = arith.addf %791, %916 : vector<2x4xf32>
    %cst_250 = arith.constant dense<0.000000e+00> : vector<2x128xf32>
    %918 = tpu.matmul %907, %166, %cst_250 {dimension_numbers = #tpu.dot_dimension_numbers<[1], [0], [0], [1], [0, 0, 1, 1], [], []>} : vector<2x4xf32>, vector<4x128xf32>, vector<2x128xf32> -> vector<2x128xf32>
    %cst_251 = arith.constant dense<0.000000e+00> : vector<2x128xf32>
    %919 = tpu.matmul %888, %168, %cst_251 {dimension_numbers = #tpu.dot_dimension_numbers<[1], [0], [0], [1], [0, 0, 1, 1], [], []>} : vector<2x32xf32>, vector<32x128xf32>, vector<2x128xf32> -> vector<2x128xf32>
    %920 = arith.addf %918, %919 : vector<2x128xf32>
    %921 = arith.addf %920, %885 : vector<2x128xf32>
    %cst_252 = arith.constant 0.000000e+00 : f32
    %922 = vector.broadcast %cst_252 : f32 to vector<2x128xf32>
    %923 = arith.subf %922, %921 : vector<2x128xf32>
    %924 = math.exp %923 : vector<2x128xf32>
    %cst_253 = arith.constant 1.000000e+00 : f32
    %925 = vector.broadcast %cst_253 : f32 to vector<2x128xf32>
    %926 = arith.addf %925, %924 : vector<2x128xf32>
    %cst_254 = arith.constant 1.000000e+00 : f32
    %927 = vector.broadcast %cst_254 : f32 to vector<2x128xf32>
    %928 = arith.divf %927, %926 : vector<2x128xf32>
    %929 = math.tanh %921 : vector<2x128xf32>
    %930 = vector.extract_strided_slice %928 {offsets = [0, 0], sizes = [2, 32], strides = [1, 1]} : vector<2x128xf32> to vector<2x32xf32>
    %931 = vector.extract_strided_slice %928 {offsets = [0, 32], sizes = [2, 32], strides = [1, 1]} : vector<2x128xf32> to vector<2x32xf32>
    %932 = vector.extract_strided_slice %929 {offsets = [0, 64], sizes = [2, 32], strides = [1, 1]} : vector<2x128xf32> to vector<2x32xf32>
    %933 = vector.extract_strided_slice %928 {offsets = [0, 96], sizes = [2, 32], strides = [1, 1]} : vector<2x128xf32> to vector<2x32xf32>
    %934 = arith.mulf %931, %810 : vector<2x32xf32>
    %935 = arith.mulf %930, %932 : vector<2x32xf32>
    %936 = arith.addf %934, %935 : vector<2x32xf32>
    %937 = math.tanh %936 : vector<2x32xf32>
    %938 = arith.mulf %933, %937 : vector<2x32xf32>
    %939 = vector.extract_strided_slice %4 {offsets = [0, 6, 0], sizes = [2, 1, 4], strides = [1, 1, 1]} : vector<2x8x4xf32> to vector<2x1x4xf32>
    %940 = vector.shape_cast %939 : vector<2x1x4xf32> to vector<2x4xf32>
    %941 = vector.extract_strided_slice %6 {offsets = [0, 6, 0], sizes = [2, 1, 4], strides = [1, 1, 1]} : vector<2x8x4xf32> to vector<2x1x4xf32>
    %942 = vector.shape_cast %941 : vector<2x1x4xf32> to vector<2x4xf32>
    %943 = vector.extract_strided_slice %23 {offsets = [0, 6, 0], sizes = [2, 1, 32], strides = [1, 1, 1]} : vector<2x8x32xf32> to vector<2x1x32xf32>
    %944 = vector.shape_cast %943 : vector<2x1x32xf32> to vector<2x32xf32>
    %945 = vector.extract_strided_slice %55 {offsets = [0, 6, 0], sizes = [2, 1, 4], strides = [1, 1, 1]} : vector<2x8x4xf32> to vector<2x1x4xf32>
    %946 = vector.shape_cast %945 : vector<2x1x4xf32> to vector<2x4xf32>
    %947 = vector.extract_strided_slice %63 {offsets = [0, 6, 0], sizes = [2, 1, 128], strides = [1, 1, 1]} : vector<2x8x128xf32> to vector<2x1x128xf32>
    %948 = vector.shape_cast %947 : vector<2x1x128xf32> to vector<2x128xf32>
    %949 = vector.extract_strided_slice %73 {offsets = [0, 6, 0], sizes = [2, 1, 4], strides = [1, 1, 1]} : vector<2x8x4xf32> to vector<2x1x4xf32>
    %950 = vector.shape_cast %949 : vector<2x1x4xf32> to vector<2x4xf32>
    %951 = arith.mulf %875, %944 : vector<2x32xf32>
    %cst_255 = arith.constant dense<0.000000e+00> : vector<2x4xf32>
    %952 = tpu.matmul %951, %75, %cst_255 {dimension_numbers = #tpu.dot_dimension_numbers<[1], [0], [0], [1], [0, 0, 1, 1], [], []>} : vector<2x32xf32>, vector<32x4xf32>, vector<2x4xf32> -> vector<2x4xf32>
    %953 = arith.addf %952, %85 : vector<2x4xf32>
    %954 = arith.mulf %942, %940 : vector<2x4xf32>
    %cst_256 = arith.constant 1.000000e+00 : f32
    %955 = vector.broadcast %cst_256 : f32 to vector<2x4xf32>
    %956 = arith.subf %955, %942 : vector<2x4xf32>
    %957 = arith.mulf %956, %953 : vector<2x4xf32>
    %958 = arith.addf %954, %957 : vector<2x4xf32>
    %cst_257 = arith.constant dense<0.000000e+00> : vector<2x4xf32>
    %959 = tpu.matmul %958, %77, %cst_257 {dimension_numbers = #tpu.dot_dimension_numbers<[1], [0], [0], [1], [0, 0, 1, 1], [], []>} : vector<2x4xf32>, vector<4x4xf32>, vector<2x4xf32> -> vector<2x4xf32>
    %960 = arith.addf %959, %89 : vector<2x4xf32>
    %961 = arith.mulf %946, %960 : vector<2x4xf32>
    %cst_258 = arith.constant 1.000000e+00 : f32
    %962 = vector.broadcast %cst_258 : f32 to vector<2x4xf32>
    %963 = arith.subf %962, %946 : vector<2x4xf32>
    %964 = arith.mulf %963, %953 : vector<2x4xf32>
    %965 = arith.addf %961, %964 : vector<2x4xf32>
    %966 = arith.mulf %942, %940 : vector<2x4xf32>
    %cst_259 = arith.constant 1.000000e+00 : f32
    %967 = vector.broadcast %cst_259 : f32 to vector<2x4xf32>
    %968 = arith.subf %967, %942 : vector<2x4xf32>
    %969 = arith.mulf %968, %965 : vector<2x4xf32>
    %970 = arith.addf %966, %969 : vector<2x4xf32>
    %971 = arith.subf %953, %940 : vector<2x4xf32>
    %972 = math.absf %971 : vector<2x4xf32>
    %973 = arith.subf %960, %940 : vector<2x4xf32>
    %974 = math.absf %973 : vector<2x4xf32>
    %975 = arith.addf %972, %974 : vector<2x4xf32>
    %976 = arith.subf %965, %940 : vector<2x4xf32>
    %977 = math.absf %976 : vector<2x4xf32>
    %978 = arith.addf %975, %977 : vector<2x4xf32>
    %979 = arith.mulf %978, %950 : vector<2x4xf32>
    %980 = arith.addf %854, %979 : vector<2x4xf32>
    %cst_260 = arith.constant dense<0.000000e+00> : vector<2x128xf32>
    %981 = tpu.matmul %970, %79, %cst_260 {dimension_numbers = #tpu.dot_dimension_numbers<[1], [0], [0], [1], [0, 0, 1, 1], [], []>} : vector<2x4xf32>, vector<4x128xf32>, vector<2x128xf32> -> vector<2x128xf32>
    %cst_261 = arith.constant dense<0.000000e+00> : vector<2x128xf32>
    %982 = tpu.matmul %951, %81, %cst_261 {dimension_numbers = #tpu.dot_dimension_numbers<[1], [0], [0], [1], [0, 0, 1, 1], [], []>} : vector<2x32xf32>, vector<32x128xf32>, vector<2x128xf32> -> vector<2x128xf32>
    %983 = arith.addf %981, %982 : vector<2x128xf32>
    %984 = arith.addf %983, %948 : vector<2x128xf32>
    %cst_262 = arith.constant 0.000000e+00 : f32
    %985 = vector.broadcast %cst_262 : f32 to vector<2x128xf32>
    %986 = arith.subf %985, %984 : vector<2x128xf32>
    %987 = math.exp %986 : vector<2x128xf32>
    %cst_263 = arith.constant 1.000000e+00 : f32
    %988 = vector.broadcast %cst_263 : f32 to vector<2x128xf32>
    %989 = arith.addf %988, %987 : vector<2x128xf32>
    %cst_264 = arith.constant 1.000000e+00 : f32
    %990 = vector.broadcast %cst_264 : f32 to vector<2x128xf32>
    %991 = arith.divf %990, %989 : vector<2x128xf32>
    %992 = math.tanh %984 : vector<2x128xf32>
    %993 = vector.extract_strided_slice %991 {offsets = [0, 0], sizes = [2, 32], strides = [1, 1]} : vector<2x128xf32> to vector<2x32xf32>
    %994 = vector.extract_strided_slice %991 {offsets = [0, 32], sizes = [2, 32], strides = [1, 1]} : vector<2x128xf32> to vector<2x32xf32>
    %995 = vector.extract_strided_slice %992 {offsets = [0, 64], sizes = [2, 32], strides = [1, 1]} : vector<2x128xf32> to vector<2x32xf32>
    %996 = vector.extract_strided_slice %991 {offsets = [0, 96], sizes = [2, 32], strides = [1, 1]} : vector<2x128xf32> to vector<2x32xf32>
    %997 = arith.mulf %994, %873 : vector<2x32xf32>
    %998 = arith.mulf %993, %995 : vector<2x32xf32>
    %999 = arith.addf %997, %998 : vector<2x32xf32>
    %1000 = math.tanh %999 : vector<2x32xf32>
    %1001 = arith.mulf %996, %1000 : vector<2x32xf32>
    %1002 = vector.extract_strided_slice %91 {offsets = [0, 6, 0], sizes = [2, 1, 4], strides = [1, 1, 1]} : vector<2x8x4xf32> to vector<2x1x4xf32>
    %1003 = vector.shape_cast %1002 : vector<2x1x4xf32> to vector<2x4xf32>
    %1004 = vector.extract_strided_slice %93 {offsets = [0, 6, 0], sizes = [2, 1, 4], strides = [1, 1, 1]} : vector<2x8x4xf32> to vector<2x1x4xf32>
    %1005 = vector.shape_cast %1004 : vector<2x1x4xf32> to vector<2x4xf32>
    %1006 = vector.extract_strided_slice %110 {offsets = [0, 6, 0], sizes = [2, 1, 32], strides = [1, 1, 1]} : vector<2x8x32xf32> to vector<2x1x32xf32>
    %1007 = vector.shape_cast %1006 : vector<2x1x32xf32> to vector<2x32xf32>
    %1008 = vector.extract_strided_slice %142 {offsets = [0, 6, 0], sizes = [2, 1, 4], strides = [1, 1, 1]} : vector<2x8x4xf32> to vector<2x1x4xf32>
    %1009 = vector.shape_cast %1008 : vector<2x1x4xf32> to vector<2x4xf32>
    %1010 = vector.extract_strided_slice %150 {offsets = [0, 6, 0], sizes = [2, 1, 128], strides = [1, 1, 1]} : vector<2x8x128xf32> to vector<2x1x128xf32>
    %1011 = vector.shape_cast %1010 : vector<2x1x128xf32> to vector<2x128xf32>
    %1012 = vector.extract_strided_slice %160 {offsets = [0, 6, 0], sizes = [2, 1, 4], strides = [1, 1, 1]} : vector<2x8x4xf32> to vector<2x1x4xf32>
    %1013 = vector.shape_cast %1012 : vector<2x1x4xf32> to vector<2x4xf32>
    %1014 = arith.mulf %938, %1007 : vector<2x32xf32>
    %cst_265 = arith.constant dense<0.000000e+00> : vector<2x4xf32>
    %1015 = tpu.matmul %1014, %162, %cst_265 {dimension_numbers = #tpu.dot_dimension_numbers<[1], [0], [0], [1], [0, 0, 1, 1], [], []>} : vector<2x32xf32>, vector<32x4xf32>, vector<2x4xf32> -> vector<2x4xf32>
    %1016 = arith.addf %1015, %172 : vector<2x4xf32>
    %1017 = arith.mulf %1005, %1003 : vector<2x4xf32>
    %cst_266 = arith.constant 1.000000e+00 : f32
    %1018 = vector.broadcast %cst_266 : f32 to vector<2x4xf32>
    %1019 = arith.subf %1018, %1005 : vector<2x4xf32>
    %1020 = arith.mulf %1019, %1016 : vector<2x4xf32>
    %1021 = arith.addf %1017, %1020 : vector<2x4xf32>
    %cst_267 = arith.constant dense<0.000000e+00> : vector<2x4xf32>
    %1022 = tpu.matmul %1021, %164, %cst_267 {dimension_numbers = #tpu.dot_dimension_numbers<[1], [0], [0], [1], [0, 0, 1, 1], [], []>} : vector<2x4xf32>, vector<4x4xf32>, vector<2x4xf32> -> vector<2x4xf32>
    %1023 = arith.addf %1022, %176 : vector<2x4xf32>
    %1024 = arith.mulf %1009, %1023 : vector<2x4xf32>
    %cst_268 = arith.constant 1.000000e+00 : f32
    %1025 = vector.broadcast %cst_268 : f32 to vector<2x4xf32>
    %1026 = arith.subf %1025, %1009 : vector<2x4xf32>
    %1027 = arith.mulf %1026, %1016 : vector<2x4xf32>
    %1028 = arith.addf %1024, %1027 : vector<2x4xf32>
    %1029 = arith.mulf %1005, %1003 : vector<2x4xf32>
    %cst_269 = arith.constant 1.000000e+00 : f32
    %1030 = vector.broadcast %cst_269 : f32 to vector<2x4xf32>
    %1031 = arith.subf %1030, %1005 : vector<2x4xf32>
    %1032 = arith.mulf %1031, %1028 : vector<2x4xf32>
    %1033 = arith.addf %1029, %1032 : vector<2x4xf32>
    %1034 = arith.subf %1016, %1003 : vector<2x4xf32>
    %1035 = math.absf %1034 : vector<2x4xf32>
    %1036 = arith.subf %1023, %1003 : vector<2x4xf32>
    %1037 = math.absf %1036 : vector<2x4xf32>
    %1038 = arith.addf %1035, %1037 : vector<2x4xf32>
    %1039 = arith.subf %1028, %1003 : vector<2x4xf32>
    %1040 = math.absf %1039 : vector<2x4xf32>
    %1041 = arith.addf %1038, %1040 : vector<2x4xf32>
    %1042 = arith.mulf %1041, %1013 : vector<2x4xf32>
    %1043 = arith.addf %917, %1042 : vector<2x4xf32>
    %cst_270 = arith.constant dense<0.000000e+00> : vector<2x128xf32>
    %1044 = tpu.matmul %1033, %166, %cst_270 {dimension_numbers = #tpu.dot_dimension_numbers<[1], [0], [0], [1], [0, 0, 1, 1], [], []>} : vector<2x4xf32>, vector<4x128xf32>, vector<2x128xf32> -> vector<2x128xf32>
    %cst_271 = arith.constant dense<0.000000e+00> : vector<2x128xf32>
    %1045 = tpu.matmul %1014, %168, %cst_271 {dimension_numbers = #tpu.dot_dimension_numbers<[1], [0], [0], [1], [0, 0, 1, 1], [], []>} : vector<2x32xf32>, vector<32x128xf32>, vector<2x128xf32> -> vector<2x128xf32>
    %1046 = arith.addf %1044, %1045 : vector<2x128xf32>
    %1047 = arith.addf %1046, %1011 : vector<2x128xf32>
    %cst_272 = arith.constant 0.000000e+00 : f32
    %1048 = vector.broadcast %cst_272 : f32 to vector<2x128xf32>
    %1049 = arith.subf %1048, %1047 : vector<2x128xf32>
    %1050 = math.exp %1049 : vector<2x128xf32>
    %cst_273 = arith.constant 1.000000e+00 : f32
    %1051 = vector.broadcast %cst_273 : f32 to vector<2x128xf32>
    %1052 = arith.addf %1051, %1050 : vector<2x128xf32>
    %cst_274 = arith.constant 1.000000e+00 : f32
    %1053 = vector.broadcast %cst_274 : f32 to vector<2x128xf32>
    %1054 = arith.divf %1053, %1052 : vector<2x128xf32>
    %1055 = math.tanh %1047 : vector<2x128xf32>
    %1056 = vector.extract_strided_slice %1054 {offsets = [0, 0], sizes = [2, 32], strides = [1, 1]} : vector<2x128xf32> to vector<2x32xf32>
    %1057 = vector.extract_strided_slice %1054 {offsets = [0, 32], sizes = [2, 32], strides = [1, 1]} : vector<2x128xf32> to vector<2x32xf32>
    %1058 = vector.extract_strided_slice %1055 {offsets = [0, 64], sizes = [2, 32], strides = [1, 1]} : vector<2x128xf32> to vector<2x32xf32>
    %1059 = vector.extract_strided_slice %1054 {offsets = [0, 96], sizes = [2, 32], strides = [1, 1]} : vector<2x128xf32> to vector<2x32xf32>
    %1060 = arith.mulf %1057, %936 : vector<2x32xf32>
    %1061 = arith.mulf %1056, %1058 : vector<2x32xf32>
    %1062 = arith.addf %1060, %1061 : vector<2x32xf32>
    %1063 = math.tanh %1062 : vector<2x32xf32>
    %1064 = arith.mulf %1059, %1063 : vector<2x32xf32>
    %1065 = vector.extract_strided_slice %4 {offsets = [0, 7, 0], sizes = [2, 1, 4], strides = [1, 1, 1]} : vector<2x8x4xf32> to vector<2x1x4xf32>
    %1066 = vector.shape_cast %1065 : vector<2x1x4xf32> to vector<2x4xf32>
    %1067 = vector.extract_strided_slice %6 {offsets = [0, 7, 0], sizes = [2, 1, 4], strides = [1, 1, 1]} : vector<2x8x4xf32> to vector<2x1x4xf32>
    %1068 = vector.shape_cast %1067 : vector<2x1x4xf32> to vector<2x4xf32>
    %1069 = vector.extract_strided_slice %23 {offsets = [0, 7, 0], sizes = [2, 1, 32], strides = [1, 1, 1]} : vector<2x8x32xf32> to vector<2x1x32xf32>
    %1070 = vector.shape_cast %1069 : vector<2x1x32xf32> to vector<2x32xf32>
    %1071 = vector.extract_strided_slice %55 {offsets = [0, 7, 0], sizes = [2, 1, 4], strides = [1, 1, 1]} : vector<2x8x4xf32> to vector<2x1x4xf32>
    %1072 = vector.shape_cast %1071 : vector<2x1x4xf32> to vector<2x4xf32>
    %1073 = vector.extract_strided_slice %63 {offsets = [0, 7, 0], sizes = [2, 1, 128], strides = [1, 1, 1]} : vector<2x8x128xf32> to vector<2x1x128xf32>
    %1074 = vector.shape_cast %1073 : vector<2x1x128xf32> to vector<2x128xf32>
    %1075 = vector.extract_strided_slice %73 {offsets = [0, 7, 0], sizes = [2, 1, 4], strides = [1, 1, 1]} : vector<2x8x4xf32> to vector<2x1x4xf32>
    %1076 = vector.shape_cast %1075 : vector<2x1x4xf32> to vector<2x4xf32>
    %1077 = arith.mulf %1001, %1070 : vector<2x32xf32>
    %cst_275 = arith.constant dense<0.000000e+00> : vector<2x4xf32>
    %1078 = tpu.matmul %1077, %75, %cst_275 {dimension_numbers = #tpu.dot_dimension_numbers<[1], [0], [0], [1], [0, 0, 1, 1], [], []>} : vector<2x32xf32>, vector<32x4xf32>, vector<2x4xf32> -> vector<2x4xf32>
    %1079 = arith.addf %1078, %85 : vector<2x4xf32>
    %1080 = arith.mulf %1068, %1066 : vector<2x4xf32>
    %cst_276 = arith.constant 1.000000e+00 : f32
    %1081 = vector.broadcast %cst_276 : f32 to vector<2x4xf32>
    %1082 = arith.subf %1081, %1068 : vector<2x4xf32>
    %1083 = arith.mulf %1082, %1079 : vector<2x4xf32>
    %1084 = arith.addf %1080, %1083 : vector<2x4xf32>
    %cst_277 = arith.constant dense<0.000000e+00> : vector<2x4xf32>
    %1085 = tpu.matmul %1084, %77, %cst_277 {dimension_numbers = #tpu.dot_dimension_numbers<[1], [0], [0], [1], [0, 0, 1, 1], [], []>} : vector<2x4xf32>, vector<4x4xf32>, vector<2x4xf32> -> vector<2x4xf32>
    %1086 = arith.addf %1085, %89 : vector<2x4xf32>
    %1087 = arith.mulf %1072, %1086 : vector<2x4xf32>
    %cst_278 = arith.constant 1.000000e+00 : f32
    %1088 = vector.broadcast %cst_278 : f32 to vector<2x4xf32>
    %1089 = arith.subf %1088, %1072 : vector<2x4xf32>
    %1090 = arith.mulf %1089, %1079 : vector<2x4xf32>
    %1091 = arith.addf %1087, %1090 : vector<2x4xf32>
    %1092 = arith.mulf %1068, %1066 : vector<2x4xf32>
    %cst_279 = arith.constant 1.000000e+00 : f32
    %1093 = vector.broadcast %cst_279 : f32 to vector<2x4xf32>
    %1094 = arith.subf %1093, %1068 : vector<2x4xf32>
    %1095 = arith.mulf %1094, %1091 : vector<2x4xf32>
    %1096 = arith.addf %1092, %1095 : vector<2x4xf32>
    %1097 = arith.subf %1079, %1066 : vector<2x4xf32>
    %1098 = math.absf %1097 : vector<2x4xf32>
    %1099 = arith.subf %1086, %1066 : vector<2x4xf32>
    %1100 = math.absf %1099 : vector<2x4xf32>
    %1101 = arith.addf %1098, %1100 : vector<2x4xf32>
    %1102 = arith.subf %1091, %1066 : vector<2x4xf32>
    %1103 = math.absf %1102 : vector<2x4xf32>
    %1104 = arith.addf %1101, %1103 : vector<2x4xf32>
    %1105 = arith.mulf %1104, %1076 : vector<2x4xf32>
    %1106 = arith.addf %980, %1105 : vector<2x4xf32>
    %cst_280 = arith.constant dense<0.000000e+00> : vector<2x128xf32>
    %1107 = tpu.matmul %1096, %79, %cst_280 {dimension_numbers = #tpu.dot_dimension_numbers<[1], [0], [0], [1], [0, 0, 1, 1], [], []>} : vector<2x4xf32>, vector<4x128xf32>, vector<2x128xf32> -> vector<2x128xf32>
    %cst_281 = arith.constant dense<0.000000e+00> : vector<2x128xf32>
    %1108 = tpu.matmul %1077, %81, %cst_281 {dimension_numbers = #tpu.dot_dimension_numbers<[1], [0], [0], [1], [0, 0, 1, 1], [], []>} : vector<2x32xf32>, vector<32x128xf32>, vector<2x128xf32> -> vector<2x128xf32>
    %1109 = arith.addf %1107, %1108 : vector<2x128xf32>
    %1110 = arith.addf %1109, %1074 : vector<2x128xf32>
    %cst_282 = arith.constant 0.000000e+00 : f32
    %1111 = vector.broadcast %cst_282 : f32 to vector<2x128xf32>
    %1112 = arith.subf %1111, %1110 : vector<2x128xf32>
    %1113 = math.exp %1112 : vector<2x128xf32>
    %cst_283 = arith.constant 1.000000e+00 : f32
    %1114 = vector.broadcast %cst_283 : f32 to vector<2x128xf32>
    %1115 = arith.addf %1114, %1113 : vector<2x128xf32>
    %cst_284 = arith.constant 1.000000e+00 : f32
    %1116 = vector.broadcast %cst_284 : f32 to vector<2x128xf32>
    %1117 = arith.divf %1116, %1115 : vector<2x128xf32>
    %1118 = math.tanh %1110 : vector<2x128xf32>
    %1119 = vector.extract_strided_slice %1117 {offsets = [0, 0], sizes = [2, 32], strides = [1, 1]} : vector<2x128xf32> to vector<2x32xf32>
    %1120 = vector.extract_strided_slice %1117 {offsets = [0, 32], sizes = [2, 32], strides = [1, 1]} : vector<2x128xf32> to vector<2x32xf32>
    %1121 = vector.extract_strided_slice %1118 {offsets = [0, 64], sizes = [2, 32], strides = [1, 1]} : vector<2x128xf32> to vector<2x32xf32>
    %1122 = vector.extract_strided_slice %1117 {offsets = [0, 96], sizes = [2, 32], strides = [1, 1]} : vector<2x128xf32> to vector<2x32xf32>
    %1123 = arith.mulf %1120, %999 : vector<2x32xf32>
    %1124 = arith.mulf %1119, %1121 : vector<2x32xf32>
    %1125 = arith.addf %1123, %1124 : vector<2x32xf32>
    %1126 = math.tanh %1125 : vector<2x32xf32>
    %1127 = arith.mulf %1122, %1126 : vector<2x32xf32>
    %1128 = vector.extract_strided_slice %91 {offsets = [0, 7, 0], sizes = [2, 1, 4], strides = [1, 1, 1]} : vector<2x8x4xf32> to vector<2x1x4xf32>
    %1129 = vector.shape_cast %1128 : vector<2x1x4xf32> to vector<2x4xf32>
    %1130 = vector.extract_strided_slice %93 {offsets = [0, 7, 0], sizes = [2, 1, 4], strides = [1, 1, 1]} : vector<2x8x4xf32> to vector<2x1x4xf32>
    %1131 = vector.shape_cast %1130 : vector<2x1x4xf32> to vector<2x4xf32>
    %1132 = vector.extract_strided_slice %110 {offsets = [0, 7, 0], sizes = [2, 1, 32], strides = [1, 1, 1]} : vector<2x8x32xf32> to vector<2x1x32xf32>
    %1133 = vector.shape_cast %1132 : vector<2x1x32xf32> to vector<2x32xf32>
    %1134 = vector.extract_strided_slice %142 {offsets = [0, 7, 0], sizes = [2, 1, 4], strides = [1, 1, 1]} : vector<2x8x4xf32> to vector<2x1x4xf32>
    %1135 = vector.shape_cast %1134 : vector<2x1x4xf32> to vector<2x4xf32>
    %1136 = vector.extract_strided_slice %150 {offsets = [0, 7, 0], sizes = [2, 1, 128], strides = [1, 1, 1]} : vector<2x8x128xf32> to vector<2x1x128xf32>
    %1137 = vector.shape_cast %1136 : vector<2x1x128xf32> to vector<2x128xf32>
    %1138 = vector.extract_strided_slice %160 {offsets = [0, 7, 0], sizes = [2, 1, 4], strides = [1, 1, 1]} : vector<2x8x4xf32> to vector<2x1x4xf32>
    %1139 = vector.shape_cast %1138 : vector<2x1x4xf32> to vector<2x4xf32>
    %1140 = arith.mulf %1064, %1133 : vector<2x32xf32>
    %cst_285 = arith.constant dense<0.000000e+00> : vector<2x4xf32>
    %1141 = tpu.matmul %1140, %162, %cst_285 {dimension_numbers = #tpu.dot_dimension_numbers<[1], [0], [0], [1], [0, 0, 1, 1], [], []>} : vector<2x32xf32>, vector<32x4xf32>, vector<2x4xf32> -> vector<2x4xf32>
    %1142 = arith.addf %1141, %172 : vector<2x4xf32>
    %1143 = arith.mulf %1131, %1129 : vector<2x4xf32>
    %cst_286 = arith.constant 1.000000e+00 : f32
    %1144 = vector.broadcast %cst_286 : f32 to vector<2x4xf32>
    %1145 = arith.subf %1144, %1131 : vector<2x4xf32>
    %1146 = arith.mulf %1145, %1142 : vector<2x4xf32>
    %1147 = arith.addf %1143, %1146 : vector<2x4xf32>
    %cst_287 = arith.constant dense<0.000000e+00> : vector<2x4xf32>
    %1148 = tpu.matmul %1147, %164, %cst_287 {dimension_numbers = #tpu.dot_dimension_numbers<[1], [0], [0], [1], [0, 0, 1, 1], [], []>} : vector<2x4xf32>, vector<4x4xf32>, vector<2x4xf32> -> vector<2x4xf32>
    %1149 = arith.addf %1148, %176 : vector<2x4xf32>
    %1150 = arith.mulf %1135, %1149 : vector<2x4xf32>
    %cst_288 = arith.constant 1.000000e+00 : f32
    %1151 = vector.broadcast %cst_288 : f32 to vector<2x4xf32>
    %1152 = arith.subf %1151, %1135 : vector<2x4xf32>
    %1153 = arith.mulf %1152, %1142 : vector<2x4xf32>
    %1154 = arith.addf %1150, %1153 : vector<2x4xf32>
    %1155 = arith.mulf %1131, %1129 : vector<2x4xf32>
    %cst_289 = arith.constant 1.000000e+00 : f32
    %1156 = vector.broadcast %cst_289 : f32 to vector<2x4xf32>
    %1157 = arith.subf %1156, %1131 : vector<2x4xf32>
    %1158 = arith.mulf %1157, %1154 : vector<2x4xf32>
    %1159 = arith.addf %1155, %1158 : vector<2x4xf32>
    %1160 = arith.subf %1142, %1129 : vector<2x4xf32>
    %1161 = math.absf %1160 : vector<2x4xf32>
    %1162 = arith.subf %1149, %1129 : vector<2x4xf32>
    %1163 = math.absf %1162 : vector<2x4xf32>
    %1164 = arith.addf %1161, %1163 : vector<2x4xf32>
    %1165 = arith.subf %1154, %1129 : vector<2x4xf32>
    %1166 = math.absf %1165 : vector<2x4xf32>
    %1167 = arith.addf %1164, %1166 : vector<2x4xf32>
    %1168 = arith.mulf %1167, %1139 : vector<2x4xf32>
    %1169 = arith.addf %1043, %1168 : vector<2x4xf32>
    %cst_290 = arith.constant dense<0.000000e+00> : vector<2x128xf32>
    %1170 = tpu.matmul %1159, %166, %cst_290 {dimension_numbers = #tpu.dot_dimension_numbers<[1], [0], [0], [1], [0, 0, 1, 1], [], []>} : vector<2x4xf32>, vector<4x128xf32>, vector<2x128xf32> -> vector<2x128xf32>
    %cst_291 = arith.constant dense<0.000000e+00> : vector<2x128xf32>
    %1171 = tpu.matmul %1140, %168, %cst_291 {dimension_numbers = #tpu.dot_dimension_numbers<[1], [0], [0], [1], [0, 0, 1, 1], [], []>} : vector<2x32xf32>, vector<32x128xf32>, vector<2x128xf32> -> vector<2x128xf32>
    %1172 = arith.addf %1170, %1171 : vector<2x128xf32>
    %1173 = arith.addf %1172, %1137 : vector<2x128xf32>
    %cst_292 = arith.constant 0.000000e+00 : f32
    %1174 = vector.broadcast %cst_292 : f32 to vector<2x128xf32>
    %1175 = arith.subf %1174, %1173 : vector<2x128xf32>
    %1176 = math.exp %1175 : vector<2x128xf32>
    %cst_293 = arith.constant 1.000000e+00 : f32
    %1177 = vector.broadcast %cst_293 : f32 to vector<2x128xf32>
    %1178 = arith.addf %1177, %1176 : vector<2x128xf32>
    %cst_294 = arith.constant 1.000000e+00 : f32
    %1179 = vector.broadcast %cst_294 : f32 to vector<2x128xf32>
    %1180 = arith.divf %1179, %1178 : vector<2x128xf32>
    %1181 = math.tanh %1173 : vector<2x128xf32>
    %1182 = vector.extract_strided_slice %1180 {offsets = [0, 0], sizes = [2, 32], strides = [1, 1]} : vector<2x128xf32> to vector<2x32xf32>
    %1183 = vector.extract_strided_slice %1180 {offsets = [0, 32], sizes = [2, 32], strides = [1, 1]} : vector<2x128xf32> to vector<2x32xf32>
    %1184 = vector.extract_strided_slice %1181 {offsets = [0, 64], sizes = [2, 32], strides = [1, 1]} : vector<2x128xf32> to vector<2x32xf32>
    %1185 = vector.extract_strided_slice %1180 {offsets = [0, 96], sizes = [2, 32], strides = [1, 1]} : vector<2x128xf32> to vector<2x32xf32>
    %1186 = arith.mulf %1183, %1062 : vector<2x32xf32>
    %1187 = arith.mulf %1182, %1184 : vector<2x32xf32>
    %1188 = arith.addf %1186, %1187 : vector<2x32xf32>
    %1189 = math.tanh %1188 : vector<2x32xf32>
    %1190 = arith.mulf %1185, %1189 : vector<2x32xf32>
    %1191 = vector.shape_cast %209 : vector<2x4xf32> to vector<1x2x4xf32>
    %1192 = vector.shape_cast %335 : vector<2x4xf32> to vector<1x2x4xf32>
    %1193 = vector.shape_cast %461 : vector<2x4xf32> to vector<1x2x4xf32>
    %1194 = vector.shape_cast %587 : vector<2x4xf32> to vector<1x2x4xf32>
    %1195 = vector.shape_cast %713 : vector<2x4xf32> to vector<1x2x4xf32>
    %1196 = vector.shape_cast %839 : vector<2x4xf32> to vector<1x2x4xf32>
    %1197 = vector.shape_cast %965 : vector<2x4xf32> to vector<1x2x4xf32>
    %1198 = vector.shape_cast %1091 : vector<2x4xf32> to vector<1x2x4xf32>
    %1199 = tpu.concatenate %1191, %1192, %1193, %1194, %1195, %1196, %1197, %1198 in 0 : vector<1x2x4xf32>, vector<1x2x4xf32>, vector<1x2x4xf32>, vector<1x2x4xf32>, vector<1x2x4xf32>, vector<1x2x4xf32>, vector<1x2x4xf32>, vector<1x2x4xf32> -> vector<8x2x4xf32>
    %c0_295 = arith.constant 0 : index
    %c0_296 = arith.constant 0 : index
    %c0_297 = arith.constant 0 : index
    %c0_298 = arith.constant 0 : index
    %1200 = vector.load %arg19[%c0_295, %c0_296, %c0_297, %c0_298] : memref<2x8x2x4xf32, #tpu.memory_space<vmem>>, vector<1x8x2x4xf32>
    %1201 = vector.shape_cast %1200 : vector<1x8x2x4xf32> to vector<8x2x4xf32>
    %1202 = vector.shape_cast %1199 : vector<8x2x4xf32> to vector<1x8x2x4xf32>
    tpu.vector_store %arg19[%c0_295, %c0_296, %c0_297, %c0_298], %1202 {strides = array<i32>} : memref<2x8x2x4xf32, #tpu.memory_space<vmem>>, vector<1x8x2x4xf32>,
    %1203 = vector.shape_cast %214 : vector<2x4xf32> to vector<1x2x4xf32>
    %1204 = vector.shape_cast %340 : vector<2x4xf32> to vector<1x2x4xf32>
    %1205 = vector.shape_cast %466 : vector<2x4xf32> to vector<1x2x4xf32>
    %1206 = vector.shape_cast %592 : vector<2x4xf32> to vector<1x2x4xf32>
    %1207 = vector.shape_cast %718 : vector<2x4xf32> to vector<1x2x4xf32>
    %1208 = vector.shape_cast %844 : vector<2x4xf32> to vector<1x2x4xf32>
    %1209 = vector.shape_cast %970 : vector<2x4xf32> to vector<1x2x4xf32>
    %1210 = vector.shape_cast %1096 : vector<2x4xf32> to vector<1x2x4xf32>
    %1211 = tpu.concatenate %1203, %1204, %1205, %1206, %1207, %1208, %1209, %1210 in 0 : vector<1x2x4xf32>, vector<1x2x4xf32>, vector<1x2x4xf32>, vector<1x2x4xf32>, vector<1x2x4xf32>, vector<1x2x4xf32>, vector<1x2x4xf32>, vector<1x2x4xf32> -> vector<8x2x4xf32>
    %c0_299 = arith.constant 0 : index
    %c0_300 = arith.constant 0 : index
    %c0_301 = arith.constant 0 : index
    %c0_302 = arith.constant 0 : index
    %1212 = vector.load %arg18[%c0_299, %c0_300, %c0_301, %c0_302] : memref<2x8x2x4xf32, #tpu.memory_space<vmem>>, vector<1x8x2x4xf32>
    %1213 = vector.shape_cast %1212 : vector<1x8x2x4xf32> to vector<8x2x4xf32>
    %1214 = vector.shape_cast %1211 : vector<8x2x4xf32> to vector<1x8x2x4xf32>
    tpu.vector_store %arg18[%c0_299, %c0_300, %c0_301, %c0_302], %1214 {strides = array<i32>} : memref<2x8x2x4xf32, #tpu.memory_space<vmem>>, vector<1x8x2x4xf32>,
    %c0_303 = arith.constant 0 : index
    %c0_304 = arith.constant 0 : index
    %c0_305 = arith.constant 0 : index
    %1215 = vector.load %arg20[%c0_303, %c0_304, %c0_305] : memref<2x2x32xf32, #tpu.memory_space<vmem>>, vector<1x2x32xf32>
    %1216 = vector.shape_cast %1215 : vector<1x2x32xf32> to vector<2x32xf32>
    %1217 = vector.shape_cast %1127 : vector<2x32xf32> to vector<1x2x32xf32>
    tpu.vector_store %arg20[%c0_303, %c0_304, %c0_305], %1217 {strides = array<i32>} : memref<2x2x32xf32, #tpu.memory_space<vmem>>, vector<1x2x32xf32>,
    %1218 = vector.shape_cast %1106 : vector<2x4xf32> to vector<1x2x4xf32>
    %cst_306 = arith.constant dense<0.000000e+00> : vector<1xf32>
    %1219 = vector.multi_reduction <add>, %1218, %cst_306 [1, 2] : vector<1x2x4xf32> to vector<1xf32>
    %1220 = vector.shape_cast %1219 : vector<1xf32> to vector<1x1x1xf32>
    %1221 = vector.extract %1220[0, 0, 0] : f32 from vector<1x1x1xf32>
    %cst_307 = arith.constant 2.400000e+01 : f32
    %1222 = arith.divf %1221, %cst_307 : f32
    %c0_308 = arith.constant 0 : index
    %1223 = memref.load %arg21[%c0_308] : memref<2xf32, #tpu.memory_space<smem>>
    memref.store %1222, %arg21[%c0_308] : memref<2xf32, #tpu.memory_space<smem>>
    %1224 = vector.shape_cast %272 : vector<2x4xf32> to vector<1x2x4xf32>
    %1225 = vector.shape_cast %398 : vector<2x4xf32> to vector<1x2x4xf32>
    %1226 = vector.shape_cast %524 : vector<2x4xf32> to vector<1x2x4xf32>
    %1227 = vector.shape_cast %650 : vector<2x4xf32> to vector<1x2x4xf32>
    %1228 = vector.shape_cast %776 : vector<2x4xf32> to vector<1x2x4xf32>
    %1229 = vector.shape_cast %902 : vector<2x4xf32> to vector<1x2x4xf32>
    %1230 = vector.shape_cast %1028 : vector<2x4xf32> to vector<1x2x4xf32>
    %1231 = vector.shape_cast %1154 : vector<2x4xf32> to vector<1x2x4xf32>
    %1232 = tpu.concatenate %1224, %1225, %1226, %1227, %1228, %1229, %1230, %1231 in 0 : vector<1x2x4xf32>, vector<1x2x4xf32>, vector<1x2x4xf32>, vector<1x2x4xf32>, vector<1x2x4xf32>, vector<1x2x4xf32>, vector<1x2x4xf32>, vector<1x2x4xf32> -> vector<8x2x4xf32>
    %c1_309 = arith.constant 1 : index
    %c0_310 = arith.constant 0 : index
    %c0_311 = arith.constant 0 : index
    %c0_312 = arith.constant 0 : index
    %1233 = vector.load %arg19[%c1_309, %c0_310, %c0_311, %c0_312] : memref<2x8x2x4xf32, #tpu.memory_space<vmem>>, vector<1x8x2x4xf32>
    %1234 = vector.shape_cast %1233 : vector<1x8x2x4xf32> to vector<8x2x4xf32>
    %1235 = vector.shape_cast %1232 : vector<8x2x4xf32> to vector<1x8x2x4xf32>
    tpu.vector_store %arg19[%c1_309, %c0_310, %c0_311, %c0_312], %1235 {strides = array<i32>} : memref<2x8x2x4xf32, #tpu.memory_space<vmem>>, vector<1x8x2x4xf32>,
    %1236 = vector.shape_cast %277 : vector<2x4xf32> to vector<1x2x4xf32>
    %1237 = vector.shape_cast %403 : vector<2x4xf32> to vector<1x2x4xf32>
    %1238 = vector.shape_cast %529 : vector<2x4xf32> to vector<1x2x4xf32>
    %1239 = vector.shape_cast %655 : vector<2x4xf32> to vector<1x2x4xf32>
    %1240 = vector.shape_cast %781 : vector<2x4xf32> to vector<1x2x4xf32>
    %1241 = vector.shape_cast %907 : vector<2x4xf32> to vector<1x2x4xf32>
    %1242 = vector.shape_cast %1033 : vector<2x4xf32> to vector<1x2x4xf32>
    %1243 = vector.shape_cast %1159 : vector<2x4xf32> to vector<1x2x4xf32>
    %1244 = tpu.concatenate %1236, %1237, %1238, %1239, %1240, %1241, %1242, %1243 in 0 : vector<1x2x4xf32>, vector<1x2x4xf32>, vector<1x2x4xf32>, vector<1x2x4xf32>, vector<1x2x4xf32>, vector<1x2x4xf32>, vector<1x2x4xf32>, vector<1x2x4xf32> -> vector<8x2x4xf32>
    %c1_313 = arith.constant 1 : index
    %c0_314 = arith.constant 0 : index
    %c0_315 = arith.constant 0 : index
    %c0_316 = arith.constant 0 : index
    %1245 = vector.load %arg18[%c1_313, %c0_314, %c0_315, %c0_316] : memref<2x8x2x4xf32, #tpu.memory_space<vmem>>, vector<1x8x2x4xf32>
    %1246 = vector.shape_cast %1245 : vector<1x8x2x4xf32> to vector<8x2x4xf32>
    %1247 = vector.shape_cast %1244 : vector<8x2x4xf32> to vector<1x8x2x4xf32>
    tpu.vector_store %arg18[%c1_313, %c0_314, %c0_315, %c0_316], %1247 {strides = array<i32>} : memref<2x8x2x4xf32, #tpu.memory_space<vmem>>, vector<1x8x2x4xf32>,
    %c1_317 = arith.constant 1 : index
    %c0_318 = arith.constant 0 : index
    %c0_319 = arith.constant 0 : index
    %1248 = vector.load %arg20[%c1_317, %c0_318, %c0_319] : memref<2x2x32xf32, #tpu.memory_space<vmem>>, vector<1x2x32xf32>
    %1249 = vector.shape_cast %1248 : vector<1x2x32xf32> to vector<2x32xf32>
    %1250 = vector.shape_cast %1190 : vector<2x32xf32> to vector<1x2x32xf32>
    tpu.vector_store %arg20[%c1_317, %c0_318, %c0_319], %1250 {strides = array<i32>} : memref<2x2x32xf32, #tpu.memory_space<vmem>>, vector<1x2x32xf32>,
    %1251 = vector.shape_cast %1169 : vector<2x4xf32> to vector<1x2x4xf32>
    %cst_320 = arith.constant dense<0.000000e+00> : vector<1xf32>
    %1252 = vector.multi_reduction <add>, %1251, %cst_320 [1, 2] : vector<1x2x4xf32> to vector<1xf32>
    %1253 = vector.shape_cast %1252 : vector<1xf32> to vector<1x1x1xf32>
    %1254 = vector.extract %1253[0, 0, 0] : f32 from vector<1x1x1xf32>
    %cst_321 = arith.constant 2.400000e+01 : f32
    %1255 = arith.divf %1254, %cst_321 : f32
    %c1_322 = arith.constant 1 : index
    %1256 = memref.load %arg21[%c1_322] : memref<2xf32, #tpu.memory_space<smem>>
    memref.store %1255, %arg21[%c1_322] : memref<2xf32, #tpu.memory_space<smem>>
    return
  }
}

</mosaic_0001>

<llo_original>
// kernel: backbone_brits_forward.1
$region0: #{backbone_brits_forward.1}
  #allocation0 [shape = 'u32[]', space=smem, size = 0x4, offset = 0x4, fixed_abs, tag = 'smem constant byte address 0x4 - core index']
  #allocation1 [shape = 'u32[144,128]{1,0:T(1,128)}', space=vmem, size = 0x12000, scoped, tag = 'internal scratch']
  %s0 = inlined_call_operand.vmem [shape: f32[2,2,8,4], index: 0, kind: input, shape index: {}]
  %s1 = inlined_call_operand.vmem [shape: f32[2,2,8,4], index: 1, kind: input, shape index: {}]
  %s2 = inlined_call_operand.vmem [shape: f32[2,2,8,4], index: 2, kind: input, shape index: {}]
  %s3 = inlined_call_operand.vmem [shape: f32[2,4,32], index: 3, kind: input, shape index: {}]
  %s4 = inlined_call_operand.vmem [shape: f32[2,1,32], index: 4, kind: input, shape index: {}]
  %s5 = inlined_call_operand.vmem [shape: f32[2,1,4], index: 5, kind: input, shape index: {}]
  %s6 = inlined_call_operand.vmem [shape: f32[2,1,4], index: 6, kind: input, shape index: {}]
  %s7 = inlined_call_operand.vmem [shape: f32[2,32,4], index: 7, kind: input, shape index: {}]
  %s8 = inlined_call_operand.vmem [shape: f32[2,1,4], index: 8, kind: input, shape index: {}]
  %s9 = inlined_call_operand.vmem [shape: f32[2,4,4], index: 9, kind: input, shape index: {}]
  %s10 = inlined_call_operand.vmem [shape: f32[2,1,4], index: 10, kind: input, shape index: {}]
  %s11 = inlined_call_operand.vmem [shape: f32[2,4,4], index: 11, kind: input, shape index: {}]
  %s12 = inlined_call_operand.vmem [shape: f32[2,4,4], index: 12, kind: input, shape index: {}]
  %s13 = inlined_call_operand.vmem [shape: f32[2,1,4], index: 13, kind: input, shape index: {}]
  %s14 = inlined_call_operand.vmem [shape: f32[2,4,128], index: 14, kind: input, shape index: {}]
  %s15 = inlined_call_operand.vmem [shape: f32[2,4,128], index: 15, kind: input, shape index: {}]
  %s16 = inlined_call_operand.vmem [shape: f32[2,32,128], index: 16, kind: input, shape index: {}]
  %s17 = inlined_call_operand.vmem [shape: f32[2,1,128], index: 17, kind: input, shape index: {}]
  %s18 = inlined_call_operand.vmem [shape: f32[2,8,2,4], index: 18, kind: output, shape index: {0}]
  %s19 = inlined_call_operand.vmem [shape: f32[2,8,2,4], index: 19, kind: output, shape index: {1}]
  %s20 = inlined_call_operand.vmem [shape: f32[2,2,32], index: 20, kind: output, shape index: {2}]
  %s21 = inlined_call_operand.vmem [shape: f32[2], index: 21, kind: output, shape index: {3}]
  %22 = xla_tuple %s18, %s19, %s20, %s21
  %s23 = sld [smem:[#allocation0]]
  $region106: #{backbone_brits_forward.1} parent=0
    _
  %s25 = ssub.s32 1, %s23
  %s26 = scalar_select 0, %s25, %s23
  $region1: #{backbone_brits_forward.1} parent=0
    #allocation2 [shape = 'u8[512]{0}', space=smem, size = 0x200, scoped, tag = 'output window, operand 3, single buffered']
    #allocation3 [shape = 's32[1]{0}', space=sflag, size = 0x4, scoped, tag = 'scoped memory for backbone_brits_forward.1']
    %27 = vsyncpa [#allocation3], 0
    // Predicated region
    $region2: #{backbone_brits_forward.1} parent=1 // pred_check
      _
    $region3: #{backbone_brits_forward.1} parent=1 // pred_check_branch
      %29 = sbr.rel (0) target = $region5
    $region4: #{backbone_brits_forward.1} parent=1 // pred_region
      _
    $region5: #{backbone_brits_forward.1} parent=1 // pred_fallthru
      _
    // Predicated region
    $region6: #{backbone_brits_forward.1} parent=1 // pred_check
      _
    $region7: #{backbone_brits_forward.1} parent=1 // pred_check_branch
      %31 = sbr.rel (0) target = $region9
    $region8: #{backbone_brits_forward.1} parent=1 // pred_region
      _
    $region9: #{backbone_brits_forward.1} parent=1 // pred_fallthru
      _
    // Predicated region
    $region10: #{backbone_brits_forward.1} parent=1 // pred_check
      _
    $region11: #{backbone_brits_forward.1} parent=1 // pred_check_branch
      %33 = sbr.rel (0) target = $region13
    $region12: #{backbone_brits_forward.1} parent=1 // pred_region
      _
    $region13: #{backbone_brits_forward.1} parent=1 // pred_fallthru
      _
    // Predicated region
    $region14: #{backbone_brits_forward.1} parent=1 // pred_check
      _
    $region15: #{backbone_brits_forward.1} parent=1 // pred_check_branch
      %35 = sbr.rel (0) target = $region17
    $region16: #{backbone_brits_forward.1} parent=1 // pred_region
      _
    $region17: #{backbone_brits_forward.1} parent=1 // pred_fallthru
      _
    // Predicated region
    $region18: #{backbone_brits_forward.1} parent=1 // pred_check
      _
    $region19: #{backbone_brits_forward.1} parent=1 // pred_check_branch
      %37 = sbr.rel (0) target = $region21
    $region20: #{backbone_brits_forward.1} parent=1 // pred_region
      _
    $region21: #{backbone_brits_forward.1} parent=1 // pred_fallthru
      _
    // Predicated region
    $region22: #{backbone_brits_forward.1} parent=1 // pred_check
      _
    $region23: #{backbone_brits_forward.1} parent=1 // pred_check_branch
      %39 = sbr.rel (0) target = $region25
    $region24: #{backbone_brits_forward.1} parent=1 // pred_region
      _
    $region25: #{backbone_brits_forward.1} parent=1 // pred_fallthru
      _
    // Predicated region
    $region26: #{backbone_brits_forward.1} parent=1 // pred_check
      _
    $region27: #{backbone_brits_forward.1} parent=1 // pred_check_branch
      %41 = sbr.rel (0) target = $region29
    $region28: #{backbone_brits_forward.1} parent=1 // pred_region
      _
    $region29: #{backbone_brits_forward.1} parent=1 // pred_fallthru
      _
    // Predicated region
    $region30: #{backbone_brits_forward.1} parent=1 // pred_check
      _
    $region31: #{backbone_brits_forward.1} parent=1 // pred_check_branch
      %43 = sbr.rel (0) target = $region33
    $region32: #{backbone_brits_forward.1} parent=1 // pred_region
      _
    $region33: #{backbone_brits_forward.1} parent=1 // pred_fallthru
      _
    // Predicated region
    $region34: #{backbone_brits_forward.1} parent=1 // pred_check
      _
    $region35: #{backbone_brits_forward.1} parent=1 // pred_check_branch
      %45 = sbr.rel (0) target = $region37
    $region36: #{backbone_brits_forward.1} parent=1 // pred_region
      _
    $region37: #{backbone_brits_forward.1} parent=1 // pred_fallthru
      _
    // Predicated region
    $region38: #{backbone_brits_forward.1} parent=1 // pred_check
      _
    $region39: #{backbone_brits_forward.1} parent=1 // pred_check_branch
      %47 = sbr.rel (0) target = $region41
    $region40: #{backbone_brits_forward.1} parent=1 // pred_region
      _
    $region41: #{backbone_brits_forward.1} parent=1 // pred_fallthru
      _
    // Predicated region
    $region42: #{backbone_brits_forward.1} parent=1 // pred_check
      _
    $region43: #{backbone_brits_forward.1} parent=1 // pred_check_branch
      %49 = sbr.rel (0) target = $region45
    $region44: #{backbone_brits_forward.1} parent=1 // pred_region
      _
    $region45: #{backbone_brits_forward.1} parent=1 // pred_fallthru
      _
    // Predicated region
    $region46: #{backbone_brits_forward.1} parent=1 // pred_check
      _
    $region47: #{backbone_brits_forward.1} parent=1 // pred_check_branch
      %51 = sbr.rel (0) target = $region49
    $region48: #{backbone_brits_forward.1} parent=1 // pred_region
      _
    $region49: #{backbone_brits_forward.1} parent=1 // pred_fallthru
      _
    // Predicated region
    $region50: #{backbone_brits_forward.1} parent=1 // pred_check
      _
    $region51: #{backbone_brits_forward.1} parent=1 // pred_check_branch
      %53 = sbr.rel (0) target = $region53
    $region52: #{backbone_brits_forward.1} parent=1 // pred_region
      _
    $region53: #{backbone_brits_forward.1} parent=1 // pred_fallthru
      _
    // Predicated region
    $region54: #{backbone_brits_forward.1} parent=1 // pred_check
      _
    $region55: #{backbone_brits_forward.1} parent=1 // pred_check_branch
      %55 = sbr.rel (0) target = $region57
    $region56: #{backbone_brits_forward.1} parent=1 // pred_region
      _
    $region57: #{backbone_brits_forward.1} parent=1 // pred_fallthru
      _
    // Predicated region
    $region58: #{backbone_brits_forward.1} parent=1 // pred_check
      _
    $region59: #{backbone_brits_forward.1} parent=1 // pred_check_branch
      %57 = sbr.rel (0) target = $region61
    $region60: #{backbone_brits_forward.1} parent=1 // pred_region
      _
    $region61: #{backbone_brits_forward.1} parent=1 // pred_fallthru
      _
    // Predicated region
    $region62: #{backbone_brits_forward.1} parent=1 // pred_check
      _
    $region63: #{backbone_brits_forward.1} parent=1 // pred_check_branch
      %59 = sbr.rel (0) target = $region65
    $region64: #{backbone_brits_forward.1} parent=1 // pred_region
      _
    $region65: #{backbone_brits_forward.1} parent=1 // pred_fallthru
      _
    // Predicated region
    $region66: #{backbone_brits_forward.1} parent=1 // pred_check
      _
    $region67: #{backbone_brits_forward.1} parent=1 // pred_check_branch
      %61 = sbr.rel (0) target = $region69
    $region68: #{backbone_brits_forward.1} parent=1 // pred_region
      _
    $region69: #{backbone_brits_forward.1} parent=1 // pred_fallthru
      _
    // Predicated region
    $region70: #{backbone_brits_forward.1} parent=1 // pred_check
      _
    $region71: #{backbone_brits_forward.1} parent=1 // pred_check_branch
      %63 = sbr.rel (0) target = $region73
    $region72: #{backbone_brits_forward.1} parent=1 // pred_region
      _
    $region73: #{backbone_brits_forward.1} parent=1 // pred_fallthru
      _
    %v64 = vld [vmem:[%s0] sm:$0xff]
    %v65 = vld [vmem:[%s0 + $0x8] sm:$0xff]
    %v66 = vld [vmem:[%s0 + $0x10] sm:$0xff]
    %v67 = vld [vmem:[%s0 + $0x18] sm:$0xff]
    %v68 = vld [vmem:[%s1] sm:$0xff]
    %v69 = vld [vmem:[%s1 + $0x8] sm:$0xff]
    %v70 = vld [vmem:[%s1 + $0x10] sm:$0xff]
    %v71 = vld [vmem:[%s1 + $0x18] sm:$0xff]
    %v72 = vld [vmem:[%s2] sm:$0xff]
    %v73 = vld [vmem:[%s2 + $0x8] sm:$0xff]
    %v74 = vld [vmem:[%s2 + $0x10] sm:$0xff]
    %v75 = vld [vmem:[%s2 + $0x18] sm:$0xff]
    %v76 = vld [vmem:[%s3] sm:$0xf]
    %v77 = vld [vmem:[%s4] sm:$0x1]
    %v79 = vlaneseq
    %v80 = vshrl.u32 %v79, 7
    %v81 = vsub.s32 0, %v80
    %v82 = vrot.slane %v77, %v81
    %vm84 = vcmask 31744
    %v86 = vsel %vm84, %v72, 0
    %v89 = vsel %vm84, %v73, 0
    %vm91 = vcmask 1043456
    %v93 = vsel %vm91, %v76, 0
    %95 = vmatprep.subr.mxu0 0.0
    %96 = vmatpush1.msra.mxu0 %v93
    %97 = vmatprep.subr.mxu0 0.0
    %98 = vmatpush1.msra.mxu0 0.0
    %99 = vmatprep.subr.mxu0 0.0
    %100 = vmatpush1.msra.mxu0 0.0
    %101 = vmatprep.subr.mxu0 0.0
    %102 = vmatpush1.msra.mxu0 0.0
    %103 = vmatprep.subr.mxu0 0.0
    %104 = vmatpush1.msra.mxu0 0.0
    %105 = vmatprep.subr.mxu0 0.0
    %106 = vmatpush1.msra.mxu0 0.0
    %107 = vmatprep.subr.mxu0 0.0
    %108 = vmatpush1.msra.mxu0 0.0
    %109 = vmatprep.subr.mxu0 0.0
    %110 = vmatpush1.msra.mxu0 0.0
    %111 = vmatprep.subr.mxu0 0.0
    %112 = vmatpush1.msra.mxu0 0.0
    %113 = vmatprep.subr.mxu0 0.0
    %114 = vmatpush1.msra.mxu0 0.0
    %115 = vmatprep.subr.mxu0 0.0
    %116 = vmatpush1.msra.mxu0 0.0
    %117 = vmatprep.subr.mxu0 0.0
    %118 = vmatpush1.msra.mxu0 0.0
    %119 = vmatprep.subr.mxu0 0.0
    %120 = vmatpush1.msra.mxu0 0.0
    %121 = vmatprep.subr.mxu0 0.0
    %122 = vmatpush1.msra.mxu0 0.0
    %123 = vmatprep.subr.mxu0 0.0
    %124 = vmatpush1.msra.mxu0 0.0
    %125 = vmatprep.subr.mxu0 0.0
    %126 = vmatpush1.msra.mxu0 0.0
    %127 = vmatprep.subr.mxu0 0.0
    %128 = vmatpush1.msra.mxu0 0.0
    %129 = vmatprep.subr.mxu0 0.0
    %130 = vmatpush1.msra.mxu0 0.0
    %131 = vmatprep.subr.mxu0 0.0
    %132 = vmatpush1.msra.mxu0 0.0
    %133 = vmatprep.subr.mxu0 0.0
    %134 = vmatpush1.msra.mxu0 0.0
    %135 = vmatprep.subr.mxu0 0.0
    %136 = vmatpush1.msra.mxu0 0.0
    %137 = vmatprep.subr.mxu0 0.0
    %138 = vmatpush1.msra.mxu0 0.0
    %139 = vmatprep.subr.mxu0 0.0
    %140 = vmatpush1.msra.mxu0 0.0
    %141 = vmatprep.subr.mxu0 0.0
    %142 = vmatpush1.msra.mxu0 0.0
    %143 = vmatprep.subr.mxu0 0.0
    %144 = vmatpush1.msra.mxu0 0.0
    %145 = vmatprep.subr.mxu0 0.0
    %146 = vmatpush1.msra.mxu0 0.0
    %147 = vmatprep.subr.mxu0 0.0
    %148 = vmatpush1.msra.mxu0 0.0
    %149 = vmatprep.subr.mxu0 0.0
    %150 = vmatpush1.msra.mxu0 0.0
    %151 = vmatprep.subr.mxu0 0.0
    %152 = vmatpush1.msra.mxu0 0.0
    %153 = vmatprep.subr.mxu0 0.0
    %154 = vmatpush1.msra.mxu0 0.0
    %155 = vmatprep.subr.mxu0 0.0
    %156 = vmatpush1.msra.mxu0 0.0
    %157 = vmatprep.subr.mxu0 0.0
    %158 = vmatpush1.msra.mxu0 0.0
    %159 = vmatprep.mubr.f32.mxu0 0.0
    %160 = vmatmul.mubr.f32.gmra.mrb[0].mxu0 %v86
    %v161 = vpop.f32.mrb[0].mxu0
    %v162 = vadd.f32 %v82, %v161
    %v163 = vpop.f32.mrb[0].mxu0
    %164 = vmatprep.mubr.f32.mxu0 0.0
    %165 = vmatmul.mubr.f32.gmra.mrb[0].mxu0 %v89
    %v166 = vpop.f32.mrb[0].mxu0
    %v167 = vadd.f32 %v82, %v166
    %v168 = vpop.f32.mrb[0].mxu0
    %169 = vdwg.mxu0
    %v170 = vmax.f32 %v162, 0.0
    %v171 = vmax.f32 %v167, 0.0
    %v172 = vsub.f32 0.0, %v170
    %v173 = vsub.f32 0.0, %v171
    %v174 = vmul.f32 %v172, 1.442695
    %v175 = vpow.pop %v174
    %v176 = vmul.f32 %v173, 1.442695
    %v177 = vpow.pop %v176
    %v178 = vld [vmem:[%s5] sm:$0x1]
    %v180 = vlaneseq
    %v181 = vshrl.u32 %v180, 7
    %v182 = vsub.s32 0, %v181
    %v183 = vrot.slane %v178, %v182
    %v185 = vmul.f32 %v72, %v183
    %v186 = vmul.f32 %v73, %v183
    %v187 = vld [vmem:[%s6] sm:$0x1]
    %v189 = vlaneseq
    %v190 = vshrl.u32 %v189, 7
    %v191 = vsub.s32 0, %v190
    %v192 = vrot.slane %v187, %v191
    %v194 = vadd.f32 %v185, %v192
    %v195 = vadd.f32 %v186, %v192
    %v196 = vmax.f32 %v194, 0.0
    %v197 = vmax.f32 %v195, 0.0
    %v198 = vsub.f32 0.0, %v196
    %v199 = vsub.f32 0.0, %v197
    %v200 = vmul.f32 %v198, 1.442695
    %v201 = vpow.pop %v200
    %v202 = vmul.f32 %v199, 1.442695
    %v203 = vpow.pop %v202
    %v204 = vld [vmem:[%s11] sm:$0xf]
    %v205 = vld [vmem:[%s12] sm:$0xf]
    %v207 = vsel %vm84, %v68, 0
    %v210 = vsel %vm84, %v69, 0
    %v213 = vsel %vm91, %v205, 0
    %215 = vmatprep.subr.mxu0 0.0
    %216 = vmatpush1.msra.mxu0 %v213
    %217 = vmatprep.subr.mxu0 0.0
    %218 = vmatpush1.msra.mxu0 0.0
    %219 = vmatprep.subr.mxu0 0.0
    %220 = vmatpush1.msra.mxu0 0.0
    %221 = vmatprep.subr.mxu0 0.0
    %222 = vmatpush1.msra.mxu0 0.0
    %223 = vmatprep.subr.mxu0 0.0
    %224 = vmatpush1.msra.mxu0 0.0
    %225 = vmatprep.subr.mxu0 0.0
    %226 = vmatpush1.msra.mxu0 0.0
    %227 = vmatprep.subr.mxu0 0.0
    %228 = vmatpush1.msra.mxu0 0.0
    %229 = vmatprep.subr.mxu0 0.0
    %230 = vmatpush1.msra.mxu0 0.0
    %231 = vmatprep.subr.mxu0 0.0
    %232 = vmatpush1.msra.mxu0 0.0
    %233 = vmatprep.subr.mxu0 0.0
    %234 = vmatpush1.msra.mxu0 0.0
    %235 = vmatprep.subr.mxu0 0.0
    %236 = vmatpush1.msra.mxu0 0.0
    %237 = vmatprep.subr.mxu0 0.0
    %238 = vmatpush1.msra.mxu0 0.0
    %239 = vmatprep.subr.mxu0 0.0
    %240 = vmatpush1.msra.mxu0 0.0
    %241 = vmatprep.subr.mxu0 0.0
    %242 = vmatpush1.msra.mxu0 0.0
    %243 = vmatprep.subr.mxu0 0.0
    %244 = vmatpush1.msra.mxu0 0.0
    %245 = vmatprep.subr.mxu0 0.0
    %246 = vmatpush1.msra.mxu0 0.0
    %247 = vmatprep.subr.mxu0 0.0
    %248 = vmatpush1.msra.mxu0 0.0
    %249 = vmatprep.subr.mxu0 0.0
    %250 = vmatpush1.msra.mxu0 0.0
    %251 = vmatprep.subr.mxu0 0.0
    %252 = vmatpush1.msra.mxu0 0.0
    %253 = vmatprep.subr.mxu0 0.0
    %254 = vmatpush1.msra.mxu0 0.0
    %255 = vmatprep.subr.mxu0 0.0
    %256 = vmatpush1.msra.mxu0 0.0
    %257 = vmatprep.subr.mxu0 0.0
    %258 = vmatpush1.msra.mxu0 0.0
    %259 = vmatprep.subr.mxu0 0.0
    %260 = vmatpush1.msra.mxu0 0.0
    %261 = vmatprep.subr.mxu0 0.0
    %262 = vmatpush1.msra.mxu0 0.0
    %263 = vmatprep.subr.mxu0 0.0
    %264 = vmatpush1.msra.mxu0 0.0
    %265 = vmatprep.subr.mxu0 0.0
    %266 = vmatpush1.msra.mxu0 0.0
    %267 = vmatprep.subr.mxu0 0.0
    %268 = vmatpush1.msra.mxu0 0.0
    %269 = vmatprep.subr.mxu0 0.0
    %270 = vmatpush1.msra.mxu0 0.0
    %271 = vmatprep.subr.mxu0 0.0
    %272 = vmatpush1.msra.mxu0 0.0
    %273 = vmatprep.subr.mxu0 0.0
    %274 = vmatpush1.msra.mxu0 0.0
    %275 = vmatprep.subr.mxu0 0.0
    %276 = vmatpush1.msra.mxu0 0.0
    %277 = vmatprep.subr.mxu0 0.0
    %278 = vmatpush1.msra.mxu0 0.0
    %279 = vmatprep.mubr.f32.mxu0 0.0
    %280 = vmatmul.mubr.f32.gmra.mrb[0].mxu0 %v207
    %v281 = vpop.f32.mrb[0].mxu0
    %v282 = vadd.f32 0.0, %v281
    %v283 = vpop.f32.mrb[0].mxu0
    %284 = vmatprep.mubr.f32.mxu0 0.0
    %285 = vmatmul.mubr.f32.gmra.mrb[0].mxu0 %v210
    %v286 = vpop.f32.mrb[0].mxu0
    %v287 = vadd.f32 0.0, %v286
    %v288 = vpop.f32.mrb[0].mxu0
    %289 = vdwg.mxu0
    %v291 = vsel %vm84, %v201, 0
    %v294 = vsel %vm84, %v203, 0
    %v297 = vsel %vm91, %v204, 0
    %299 = vmatprep.subr.mxu0 0.0
    %300 = vmatpush1.msra.mxu0 %v297
    %301 = vmatprep.subr.mxu0 0.0
    %302 = vmatpush1.msra.mxu0 0.0
    %303 = vmatprep.subr.mxu0 0.0
    %304 = vmatpush1.msra.mxu0 0.0
    %305 = vmatprep.subr.mxu0 0.0
    %306 = vmatpush1.msra.mxu0 0.0
    %307 = vmatprep.subr.mxu0 0.0
    %308 = vmatpush1.msra.mxu0 0.0
    %309 = vmatprep.subr.mxu0 0.0
    %310 = vmatpush1.msra.mxu0 0.0
    %311 = vmatprep.subr.mxu0 0.0
    %312 = vmatpush1.msra.mxu0 0.0
    %313 = vmatprep.subr.mxu0 0.0
    %314 = vmatpush1.msra.mxu0 0.0
    %315 = vmatprep.subr.mxu0 0.0
    %316 = vmatpush1.msra.mxu0 0.0
    %317 = vmatprep.subr.mxu0 0.0
    %318 = vmatpush1.msra.mxu0 0.0
    %319 = vmatprep.subr.mxu0 0.0
    %320 = vmatpush1.msra.mxu0 0.0
    %321 = vmatprep.subr.mxu0 0.0
    %322 = vmatpush1.msra.mxu0 0.0
    %323 = vmatprep.subr.mxu0 0.0
    %324 = vmatpush1.msra.mxu0 0.0
    %325 = vmatprep.subr.mxu0 0.0
    %326 = vmatpush1.msra.mxu0 0.0
    %327 = vmatprep.subr.mxu0 0.0
    %328 = vmatpush1.msra.mxu0 0.0
    %329 = vmatprep.subr.mxu0 0.0
    %330 = vmatpush1.msra.mxu0 0.0
    %331 = vmatprep.subr.mxu0 0.0
    %332 = vmatpush1.msra.mxu0 0.0
    %333 = vmatprep.subr.mxu0 0.0
    %334 = vmatpush1.msra.mxu0 0.0
    %335 = vmatprep.subr.mxu0 0.0
    %336 = vmatpush1.msra.mxu0 0.0
    %337 = vmatprep.subr.mxu0 0.0
    %338 = vmatpush1.msra.mxu0 0.0
    %339 = vmatprep.subr.mxu0 0.0
    %340 = vmatpush1.msra.mxu0 0.0
    %341 = vmatprep.subr.mxu0 0.0
    %342 = vmatpush1.msra.mxu0 0.0
    %343 = vmatprep.subr.mxu0 0.0
    %344 = vmatpush1.msra.mxu0 0.0
    %345 = vmatprep.subr.mxu0 0.0
    %346 = vmatpush1.msra.mxu0 0.0
    %347 = vmatprep.subr.mxu0 0.0
    %348 = vmatpush1.msra.mxu0 0.0
    %349 = vmatprep.subr.mxu0 0.0
    %350 = vmatpush1.msra.mxu0 0.0
    %351 = vmatprep.subr.mxu0 0.0
    %352 = vmatpush1.msra.mxu0 0.0
    %353 = vmatprep.subr.mxu0 0.0
    %354 = vmatpush1.msra.mxu0 0.0
    %355 = vmatprep.subr.mxu0 0.0
    %356 = vmatpush1.msra.mxu0 0.0
    %357 = vmatprep.subr.mxu0 0.0
    %358 = vmatpush1.msra.mxu0 0.0
    %359 = vmatprep.subr.mxu0 0.0
    %360 = vmatpush1.msra.mxu0 0.0
    %361 = vmatprep.subr.mxu0 0.0
    %362 = vmatpush1.msra.mxu0 0.0
    %363 = vmatprep.mubr.f32.mxu0 0.0
    %364 = vmatmul.mubr.f32.gmra.mrb[0].mxu0 %v291
    %v365 = vpop.f32.mrb[0].mxu0
    %v366 = vadd.f32 %v282, %v365
    %v367 = vpop.f32.mrb[0].mxu0
    %368 = vmatprep.mubr.f32.mxu0 0.0
    %369 = vmatmul.mubr.f32.gmra.mrb[0].mxu0 %v294
    %v370 = vpop.f32.mrb[0].mxu0
    %v371 = vadd.f32 %v287, %v370
    %v372 = vpop.f32.mrb[0].mxu0
    %373 = vdwg.mxu0
    %v374 = vld [vmem:[%s13] sm:$0x1]
    %v376 = vlaneseq
    %v377 = vshrl.u32 %v376, 7
    %v378 = vsub.s32 0, %v377
    %v379 = vrot.slane %v374, %v378
    %v381 = vadd.f32 %v366, %v379
    %v382 = vadd.f32 %v371, %v379
    %v383 = vsub.f32 0.0, %v381
    %v384 = vsub.f32 0.0, %v382
    %v385 = vmul.f32 %v383, 1.442695
    %v386 = vpow.pop %v385
    %v387 = vmul.f32 %v384, 1.442695
    %v388 = vpow.pop %v387
    %v389 = vadd.f32 %v386, 1.0
    %v390 = vadd.f32 %v388, 1.0
    %v391 = vrcp.pop %v389
    %v392 = vmul.f32 1.0, %v391
    %v393 = vrcp.pop %v390
    %v394 = vmul.f32 1.0, %v393
    %v395 = vld [vmem:[%s15] sm:$0xf]
    %v396 = vld [vmem:[%s17] sm:$0x1]
    %v398 = vlaneseq
    %v399 = vshrl.u32 %v398, 7
    %v400 = vsub.s32 0, %v399
    %v401 = vrot.slane %v396, %v400
    %v404 = vsel %vm91, %v395, 0
    %406 = vmatprep.subr.mxu0 0.0
    %407 = vmatpush1.msra.mxu0 %v404
    %408 = vmatprep.subr.mxu0 0.0
    %409 = vmatpush1.msra.mxu0 0.0
    %410 = vmatprep.subr.mxu0 0.0
    %411 = vmatpush1.msra.mxu0 0.0
    %412 = vmatprep.subr.mxu0 0.0
    %413 = vmatpush1.msra.mxu0 0.0
    %414 = vmatprep.subr.mxu0 0.0
    %415 = vmatpush1.msra.mxu0 0.0
    %416 = vmatprep.subr.mxu0 0.0
    %417 = vmatpush1.msra.mxu0 0.0
    %418 = vmatprep.subr.mxu0 0.0
    %419 = vmatpush1.msra.mxu0 0.0
    %420 = vmatprep.subr.mxu0 0.0
    %421 = vmatpush1.msra.mxu0 0.0
    %422 = vmatprep.subr.mxu0 0.0
    %423 = vmatpush1.msra.mxu0 0.0
    %424 = vmatprep.subr.mxu0 0.0
    %425 = vmatpush1.msra.mxu0 0.0
    %426 = vmatprep.subr.mxu0 0.0
    %427 = vmatpush1.msra.mxu0 0.0
    %428 = vmatprep.subr.mxu0 0.0
    %429 = vmatpush1.msra.mxu0 0.0
    %430 = vmatprep.subr.mxu0 0.0
    %431 = vmatpush1.msra.mxu0 0.0
    %432 = vmatprep.subr.mxu0 0.0
    %433 = vmatpush1.msra.mxu0 0.0
    %434 = vmatprep.subr.mxu0 0.0
    %435 = vmatpush1.msra.mxu0 0.0
    %436 = vmatprep.subr.mxu0 0.0
    %437 = vmatpush1.msra.mxu0 0.0
    %438 = vmatprep.subr.mxu0 0.0
    %439 = vmatpush1.msra.mxu0 0.0
    %440 = vmatprep.subr.mxu0 0.0
    %441 = vmatpush1.msra.mxu0 0.0
    %442 = vmatprep.subr.mxu0 0.0
    %443 = vmatpush1.msra.mxu0 0.0
    %444 = vmatprep.subr.mxu0 0.0
    %445 = vmatpush1.msra.mxu0 0.0
    %446 = vmatprep.subr.mxu0 0.0
    %447 = vmatpush1.msra.mxu0 0.0
    %448 = vmatprep.subr.mxu0 0.0
    %449 = vmatpush1.msra.mxu0 0.0
    %450 = vmatprep.subr.mxu0 0.0
    %451 = vmatpush1.msra.mxu0 0.0
    %452 = vmatprep.subr.mxu0 0.0
    %453 = vmatpush1.msra.mxu0 0.0
    %454 = vmatprep.subr.mxu0 0.0
    %455 = vmatpush1.msra.mxu0 0.0
    %456 = vmatprep.subr.mxu0 0.0
    %457 = vmatpush1.msra.mxu0 0.0
    %458 = vmatprep.subr.mxu0 0.0
    %459 = vmatpush1.msra.mxu0 0.0
    %460 = vmatprep.subr.mxu0 0.0
    %461 = vmatpush1.msra.mxu0 0.0
    %462 = vmatprep.subr.mxu0 0.0
    %463 = vmatpush1.msra.mxu0 0.0
    %464 = vmatprep.subr.mxu0 0.0
    %465 = vmatpush1.msra.mxu0 0.0
    %466 = vmatprep.subr.mxu0 0.0
    %467 = vmatpush1.msra.mxu0 0.0
    %468 = vmatprep.subr.mxu0 0.0
    %469 = vmatpush1.msra.mxu0 0.0
    %470 = vmatprep.mubr.f32.mxu0 0.0
    %471 = vmatmul.mubr.f32.gmra.mrb[0].mxu0 %v207
    %v472 = vpop.f32.mrb[0].mxu0
    %v473 = vadd.f32 %v401, %v472
    %v474 = vpop.f32.mrb[0].mxu0
    %475 = vmatprep.mubr.f32.mxu0 0.0
    %476 = vmatmul.mubr.f32.gmra.mrb[0].mxu0 %v210
    %v477 = vpop.f32.mrb[0].mxu0
    %v478 = vadd.f32 %v401, %v477
    %v479 = vpop.f32.mrb[0].mxu0
    %480 = vdwg.mxu0
    %v481 = vsel %vm84, %v68, 0.0
    %482 = vadd.xlane.f32.xlu0 %v481
    %v483 = vpop.xlane.xlu0 %482
    %v484 = vsel %vm84, %v69, 0.0
    %485 = vadd.xlane.f32.xlu0 %v484
    %v486 = vpop.xlane.xlu0 %485
    %v487 = vadd.f32 %v483, %v486
    %v488 = vadd.f32 %v487, 1e-12
    %v489 = vrcp.pop %v488
    %v490 = vmul.f32 1.0, %v489
    %v491 = vmul.f32 %v68, %v490
    %v492 = vmul.f32 %v69, %v490
    %v493 = vld [vmem:[%s7] sm:$0xff]
    %v494 = vld [vmem:[%s7 + $0x8] sm:$0xff]
    %v495 = vld [vmem:[%s7 + $0x10] sm:$0xff]
    %v496 = vld [vmem:[%s7 + $0x18] sm:$0xff]
    %v497 = vld [vmem:[%s9] sm:$0xf]
    %v498 = vld [vmem:[%s14] sm:$0xf]
    %v499 = vld [vmem:[%s16] sm:$0xff]
    %v500 = vld [vmem:[%s16 + $0x8] sm:$0xff]
    %v501 = vld [vmem:[%s16 + $0x10] sm:$0xff]
    %v502 = vld [vmem:[%s16 + $0x18] sm:$0xff]
    %v503 = vld [vmem:[%s8] sm:$0x1]
    %v505 = vlaneseq
    %v506 = vshrl.u32 %v505, 7
    %v507 = vsub.s32 0, %v506
    %v508 = vrot.slane %v503, %v507
    %v510 = vld [vmem:[%s10] sm:$0x1]
    %v512 = vlaneseq
    %v513 = vshrl.u32 %v512, 7
    %v514 = vsub.s32 0, %v513
    %v515 = vrot.slane %v510, %v514
    %s517 = scalar_lea.vmem %s3, 4
    %v518 = vld [vmem:[%s517] sm:$0xf]
    %s519 = scalar_lea.vmem %s4, 1
    %v520 = vld [vmem:[%s519] sm:$0x1]
    %v522 = vlaneseq
    %v523 = vshrl.u32 %v522, 7
    %v524 = vsub.s32 0, %v523
    %v525 = vrot.slane %v520, %v524
    %v528 = vsel %vm84, %v74, 0
    %v531 = vsel %vm84, %v75, 0
    %v534 = vsel %vm91, %v518, 0
    %536 = vmatprep.subr.mxu0 0.0
    %537 = vmatpush1.msra.mxu0 %v534
    %538 = vmatprep.subr.mxu0 0.0
    %539 = vmatpush1.msra.mxu0 0.0
    %540 = vmatprep.subr.mxu0 0.0
    %541 = vmatpush1.msra.mxu0 0.0
    %542 = vmatprep.subr.mxu0 0.0
    %543 = vmatpush1.msra.mxu0 0.0
    %544 = vmatprep.subr.mxu0 0.0
    %545 = vmatpush1.msra.mxu0 0.0
    %546 = vmatprep.subr.mxu0 0.0
    %547 = vmatpush1.msra.mxu0 0.0
    %548 = vmatprep.subr.mxu0 0.0
    %549 = vmatpush1.msra.mxu0 0.0
    %550 = vmatprep.subr.mxu0 0.0
    %551 = vmatpush1.msra.mxu0 0.0
    %552 = vmatprep.subr.mxu0 0.0
    %553 = vmatpush1.msra.mxu0 0.0
    %554 = vmatprep.subr.mxu0 0.0
    %555 = vmatpush1.msra.mxu0 0.0
    %556 = vmatprep.subr.mxu0 0.0
    %557 = vmatpush1.msra.mxu0 0.0
    %558 = vmatprep.subr.mxu0 0.0
    %559 = vmatpush1.msra.mxu0 0.0
    %560 = vmatprep.subr.mxu0 0.0
    %561 = vmatpush1.msra.mxu0 0.0
    %562 = vmatprep.subr.mxu0 0.0
    %563 = vmatpush1.msra.mxu0 0.0
    %564 = vmatprep.subr.mxu0 0.0
    %565 = vmatpush1.msra.mxu0 0.0
    %566 = vmatprep.subr.mxu0 0.0
    %567 = vmatpush1.msra.mxu0 0.0
    %568 = vmatprep.subr.mxu0 0.0
    %569 = vmatpush1.msra.mxu0 0.0
    %570 = vmatprep.subr.mxu0 0.0
    %571 = vmatpush1.msra.mxu0 0.0
    %572 = vmatprep.subr.mxu0 0.0
    %573 = vmatpush1.msra.mxu0 0.0
    %574 = vmatprep.subr.mxu0 0.0
    %575 = vmatpush1.msra.mxu0 0.0
    %576 = vmatprep.subr.mxu0 0.0
    %577 = vmatpush1.msra.mxu0 0.0
    %578 = vmatprep.subr.mxu0 0.0
    %579 = vmatpush1.msra.mxu0 0.0
    %580 = vmatprep.subr.mxu0 0.0
    %581 = vmatpush1.msra.mxu0 0.0
    %582 = vmatprep.subr.mxu0 0.0
    %583 = vmatpush1.msra.mxu0 0.0
    %584 = vmatprep.subr.mxu0 0.0
    %585 = vmatpush1.msra.mxu0 0.0
    %586 = vmatprep.subr.mxu0 0.0
    %587 = vmatpush1.msra.mxu0 0.0
    %588 = vmatprep.subr.mxu0 0.0
    %589 = vmatpush1.msra.mxu0 0.0
    %590 = vmatprep.subr.mxu0 0.0
    %591 = vmatpush1.msra.mxu0 0.0
    %592 = vmatprep.subr.mxu0 0.0
    %593 = vmatpush1.msra.mxu0 0.0
    %594 = vmatprep.subr.mxu0 0.0
    %595 = vmatpush1.msra.mxu0 0.0
    %596 = vmatprep.subr.mxu0 0.0
    %597 = vmatpush1.msra.mxu0 0.0
    %598 = vmatprep.subr.mxu0 0.0
    %599 = vmatpush1.msra.mxu0 0.0
    %600 = vmatprep.mubr.f32.mxu0 0.0
    %601 = vmatmul.mubr.f32.gmra.mrb[0].mxu0 %v528
    %v602 = vpop.f32.mrb[0].mxu0
    %v603 = vadd.f32 %v525, %v602
    %v604 = vpop.f32.mrb[0].mxu0
    %605 = vmatprep.mubr.f32.mxu0 0.0
    %606 = vmatmul.mubr.f32.gmra.mrb[0].mxu0 %v531
    %v607 = vpop.f32.mrb[0].mxu0
    %v608 = vadd.f32 %v525, %v607
    %v609 = vpop.f32.mrb[0].mxu0
    %610 = vdwg.mxu0
    %v611 = vmax.f32 %v603, 0.0
    %v612 = vmax.f32 %v608, 0.0
    %v613 = vsub.f32 0.0, %v611
    %v614 = vsub.f32 0.0, %v612
    %v615 = vmul.f32 %v613, 1.442695
    %v616 = vpow.pop %v615
    %v617 = vmul.f32 %v614, 1.442695
    %v618 = vpow.pop %v617
    %s619 = scalar_lea.vmem %s5, 1
    %v620 = vld [vmem:[%s619] sm:$0x1]
    %v622 = vlaneseq
    %v623 = vshrl.u32 %v622, 7
    %v624 = vsub.s32 0, %v623
    %v625 = vrot.slane %v620, %v624
    %v627 = vmul.f32 %v74, %v625
    %v628 = vmul.f32 %v75, %v625
    %s629 = scalar_lea.vmem %s6, 1
    %v630 = vld [vmem:[%s629] sm:$0x1]
    %v632 = vlaneseq
    %v633 = vshrl.u32 %v632, 7
    %v634 = vsub.s32 0, %v633
    %v635 = vrot.slane %v630, %v634
    %v637 = vadd.f32 %v627, %v635
    %v638 = vadd.f32 %v628, %v635
    %v639 = vmax.f32 %v637, 0.0
    %v640 = vmax.f32 %v638, 0.0
    %v641 = vsub.f32 0.0, %v639
    %v642 = vsub.f32 0.0, %v640
    %v643 = vmul.f32 %v641, 1.442695
    %v644 = vpow.pop %v643
    %v645 = vmul.f32 %v642, 1.442695
    %v646 = vpow.pop %v645
    %s647 = scalar_lea.vmem %s11, 4
    %v648 = vld [vmem:[%s647] sm:$0xf]
    %s649 = scalar_lea.vmem %s12, 4
    %v650 = vld [vmem:[%s649] sm:$0xf]
    %v652 = vsel %vm84, %v70, 0
    %v655 = vsel %vm84, %v71, 0
    %v658 = vsel %vm91, %v650, 0
    %660 = vmatprep.subr.mxu0 0.0
    %661 = vmatpush1.msra.mxu0 %v658
    %662 = vmatprep.subr.mxu0 0.0
    %663 = vmatpush1.msra.mxu0 0.0
    %664 = vmatprep.subr.mxu0 0.0
    %665 = vmatpush1.msra.mxu0 0.0
    %666 = vmatprep.subr.mxu0 0.0
    %667 = vmatpush1.msra.mxu0 0.0
    %668 = vmatprep.subr.mxu0 0.0
    %669 = vmatpush1.msra.mxu0 0.0
    %670 = vmatprep.subr.mxu0 0.0
    %671 = vmatpush1.msra.mxu0 0.0
    %672 = vmatprep.subr.mxu0 0.0
    %673 = vmatpush1.msra.mxu0 0.0
    %674 = vmatprep.subr.mxu0 0.0
    %675 = vmatpush1.msra.mxu0 0.0
    %676 = vmatprep.subr.mxu0 0.0
    %677 = vmatpush1.msra.mxu0 0.0
    %678 = vmatprep.subr.mxu0 0.0
    %679 = vmatpush1.msra.mxu0 0.0
    %680 = vmatprep.subr.mxu0 0.0
    %681 = vmatpush1.msra.mxu0 0.0
    %682 = vmatprep.subr.mxu0 0.0
    %683 = vmatpush1.msra.mxu0 0.0
    %684 = vmatprep.subr.mxu0 0.0
    %685 = vmatpush1.msra.mxu0 0.0
    %686 = vmatprep.subr.mxu0 0.0
    %687 = vmatpush1.msra.mxu0 0.0
    %688 = vmatprep.subr.mxu0 0.0
    %689 = vmatpush1.msra.mxu0 0.0
    %690 = vmatprep.subr.mxu0 0.0
    %691 = vmatpush1.msra.mxu0 0.0
    %692 = vmatprep.subr.mxu0 0.0
    %693 = vmatpush1.msra.mxu0 0.0
    %694 = vmatprep.subr.mxu0 0.0
    %695 = vmatpush1.msra.mxu0 0.0
    %696 = vmatprep.subr.mxu0 0.0
    %697 = vmatpush1.msra.mxu0 0.0
    %698 = vmatprep.subr.mxu0 0.0
    %699 = vmatpush1.msra.mxu0 0.0
    %700 = vmatprep.subr.mxu0 0.0
    %701 = vmatpush1.msra.mxu0 0.0
    %702 = vmatprep.subr.mxu0 0.0
    %703 = vmatpush1.msra.mxu0 0.0
    %704 = vmatprep.subr.mxu0 0.0
    %705 = vmatpush1.msra.mxu0 0.0
    %706 = vmatprep.subr.mxu0 0.0
    %707 = vmatpush1.msra.mxu0 0.0
    %708 = vmatprep.subr.mxu0 0.0
    %709 = vmatpush1.msra.mxu0 0.0
    %710 = vmatprep.subr.mxu0 0.0
    %711 = vmatpush1.msra.mxu0 0.0
    %712 = vmatprep.subr.mxu0 0.0
    %713 = vmatpush1.msra.mxu0 0.0
    %714 = vmatprep.subr.mxu0 0.0
    %715 = vmatpush1.msra.mxu0 0.0
    %716 = vmatprep.subr.mxu0 0.0
    %717 = vmatpush1.msra.mxu0 0.0
    %718 = vmatprep.subr.mxu0 0.0
    %719 = vmatpush1.msra.mxu0 0.0
    %720 = vmatprep.subr.mxu0 0.0
    %721 = vmatpush1.msra.mxu0 0.0
    %722 = vmatprep.subr.mxu0 0.0
    %723 = vmatpush1.msra.mxu0 0.0
    %724 = vmatprep.mubr.f32.mxu0 0.0
    %725 = vmatmul.mubr.f32.gmra.mrb[0].mxu0 %v652
    %v726 = vpop.f32.mrb[0].mxu0
    %v727 = vadd.f32 0.0, %v726
    %v728 = vpop.f32.mrb[0].mxu0
    %729 = vmatprep.mubr.f32.mxu0 0.0
    %730 = vmatmul.mubr.f32.gmra.mrb[0].mxu0 %v655
    %v731 = vpop.f32.mrb[0].mxu0
    %v732 = vadd.f32 0.0, %v731
    %v733 = vpop.f32.mrb[0].mxu0
    %734 = vdwg.mxu0
    %v736 = vsel %vm84, %v644, 0
    %v739 = vsel %vm84, %v646, 0
    %v742 = vsel %vm91, %v648, 0
    %744 = vmatprep.subr.mxu0 0.0
    %745 = vmatpush1.msra.mxu0 %v742
    %746 = vmatprep.subr.mxu0 0.0
    %747 = vmatpush1.msra.mxu0 0.0
    %748 = vmatprep.subr.mxu0 0.0
    %749 = vmatpush1.msra.mxu0 0.0
    %750 = vmatprep.subr.mxu0 0.0
    %751 = vmatpush1.msra.mxu0 0.0
    %752 = vmatprep.subr.mxu0 0.0
    %753 = vmatpush1.msra.mxu0 0.0
    %754 = vmatprep.subr.mxu0 0.0
    %755 = vmatpush1.msra.mxu0 0.0
    %756 = vmatprep.subr.mxu0 0.0
    %757 = vmatpush1.msra.mxu0 0.0
    %758 = vmatprep.subr.mxu0 0.0
    %759 = vmatpush1.msra.mxu0 0.0
    %760 = vmatprep.subr.mxu0 0.0
    %761 = vmatpush1.msra.mxu0 0.0
    %762 = vmatprep.subr.mxu0 0.0
    %763 = vmatpush1.msra.mxu0 0.0
    %764 = vmatprep.subr.mxu0 0.0
    %765 = vmatpush1.msra.mxu0 0.0
    %766 = vmatprep.subr.mxu0 0.0
    %767 = vmatpush1.msra.mxu0 0.0
    %768 = vmatprep.subr.mxu0 0.0
    %769 = vmatpush1.msra.mxu0 0.0
    %770 = vmatprep.subr.mxu0 0.0
    %771 = vmatpush1.msra.mxu0 0.0
    %772 = vmatprep.subr.mxu0 0.0
    %773 = vmatpush1.msra.mxu0 0.0
    %774 = vmatprep.subr.mxu0 0.0
    %775 = vmatpush1.msra.mxu0 0.0
    %776 = vmatprep.subr.mxu0 0.0
    %777 = vmatpush1.msra.mxu0 0.0
    %778 = vmatprep.subr.mxu0 0.0
    %779 = vmatpush1.msra.mxu0 0.0
    %780 = vmatprep.subr.mxu0 0.0
    %781 = vmatpush1.msra.mxu0 0.0
    %782 = vmatprep.subr.mxu0 0.0
    %783 = vmatpush1.msra.mxu0 0.0
    %784 = vmatprep.subr.mxu0 0.0
    %785 = vmatpush1.msra.mxu0 0.0
    %786 = vmatprep.subr.mxu0 0.0
    %787 = vmatpush1.msra.mxu0 0.0
    %788 = vmatprep.subr.mxu0 0.0
    %789 = vmatpush1.msra.mxu0 0.0
    %790 = vmatprep.subr.mxu0 0.0
    %791 = vmatpush1.msra.mxu0 0.0
    %792 = vmatprep.subr.mxu0 0.0
    %793 = vmatpush1.msra.mxu0 0.0
    %794 = vmatprep.subr.mxu0 0.0
    %795 = vmatpush1.msra.mxu0 0.0
    %796 = vmatprep.subr.mxu0 0.0
    %797 = vmatpush1.msra.mxu0 0.0
    %798 = vmatprep.subr.mxu0 0.0
    %799 = vmatpush1.msra.mxu0 0.0
    %800 = vmatprep.subr.mxu0 0.0
    %801 = vmatpush1.msra.mxu0 0.0
    %802 = vmatprep.subr.mxu0 0.0
    %803 = vmatpush1.msra.mxu0 0.0
    %804 = vmatprep.subr.mxu0 0.0
    %805 = vmatpush1.msra.mxu0 0.0
    %806 = vmatprep.subr.mxu0 0.0
    %807 = vmatpush1.msra.mxu0 0.0
    %808 = vmatprep.mubr.f32.mxu0 0.0
    %809 = vmatmul.mubr.f32.gmra.mrb[0].mxu0 %v736
    %v810 = vpop.f32.mrb[0].mxu0
    %v811 = vadd.f32 %v727, %v810
    %v812 = vpop.f32.mrb[0].mxu0
    %813 = vmatprep.mubr.f32.mxu0 0.0
    %814 = vmatmul.mubr.f32.gmra.mrb[0].mxu0 %v739
    %v815 = vpop.f32.mrb[0].mxu0
    %v816 = vadd.f32 %v732, %v815
    %v817 = vpop.f32.mrb[0].mxu0
    %818 = vdwg.mxu0
    %s819 = scalar_lea.vmem %s13, 1
    %v820 = vld [vmem:[%s819] sm:$0x1]
    %v822 = vlaneseq
    %v823 = vshrl.u32 %v822, 7
    %v824 = vsub.s32 0, %v823
    %v825 = vrot.slane %v820, %v824
    %v827 = vadd.f32 %v811, %v825
    %v828 = vadd.f32 %v816, %v825
    %v829 = vsub.f32 0.0, %v827
    %v830 = vsub.f32 0.0, %v828
    %v831 = vmul.f32 %v829, 1.442695
    %v832 = vpow.pop %v831
    %v833 = vmul.f32 %v830, 1.442695
    %v834 = vpow.pop %v833
    %v835 = vadd.f32 %v832, 1.0
    %v836 = vadd.f32 %v834, 1.0
    %v837 = vrcp.pop %v835
    %v838 = vmul.f32 1.0, %v837
    %v839 = vrcp.pop %v836
    %v840 = vmul.f32 1.0, %v839
    %s841 = scalar_lea.vmem %s15, 4
    %v842 = vld [vmem:[%s841] sm:$0xf]
    %s843 = scalar_lea.vmem %s17, 1
    %v844 = vld [vmem:[%s843] sm:$0x1]
    %v846 = vlaneseq
    %v847 = vshrl.u32 %v846, 7
    %v848 = vsub.s32 0, %v847
    %v849 = vrot.slane %v844, %v848
    %v852 = vsel %vm91, %v842, 0
    %854 = vmatprep.subr.mxu0 0.0
    %855 = vmatpush1.msra.mxu0 %v852
    %856 = vmatprep.subr.mxu0 0.0
    %857 = vmatpush1.msra.mxu0 0.0
    %858 = vmatprep.subr.mxu0 0.0
    %859 = vmatpush1.msra.mxu0 0.0
    %860 = vmatprep.subr.mxu0 0.0
    %861 = vmatpush1.msra.mxu0 0.0
    %862 = vmatprep.subr.mxu0 0.0
    %863 = vmatpush1.msra.mxu0 0.0
    %864 = vmatprep.subr.mxu0 0.0
    %865 = vmatpush1.msra.mxu0 0.0
    %866 = vmatprep.subr.mxu0 0.0
    %867 = vmatpush1.msra.mxu0 0.0
    %868 = vmatprep.subr.mxu0 0.0
    %869 = vmatpush1.msra.mxu0 0.0
    %870 = vmatprep.subr.mxu0 0.0
    %871 = vmatpush1.msra.mxu0 0.0
    %872 = vmatprep.subr.mxu0 0.0
    %873 = vmatpush1.msra.mxu0 0.0
    %874 = vmatprep.subr.mxu0 0.0
    %875 = vmatpush1.msra.mxu0 0.0
    %876 = vmatprep.subr.mxu0 0.0
    %877 = vmatpush1.msra.mxu0 0.0
    %878 = vmatprep.subr.mxu0 0.0
    %879 = vmatpush1.msra.mxu0 0.0
    %880 = vmatprep.subr.mxu0 0.0
    %881 = vmatpush1.msra.mxu0 0.0
    %882 = vmatprep.subr.mxu0 0.0
    %883 = vmatpush1.msra.mxu0 0.0
    %884 = vmatprep.subr.mxu0 0.0
    %885 = vmatpush1.msra.mxu0 0.0
    %886 = vmatprep.subr.mxu0 0.0
    %887 = vmatpush1.msra.mxu0 0.0
    %888 = vmatprep.subr.mxu0 0.0
    %889 = vmatpush1.msra.mxu0 0.0
    %890 = vmatprep.subr.mxu0 0.0
    %891 = vmatpush1.msra.mxu0 0.0
    %892 = vmatprep.subr.mxu0 0.0
    %893 = vmatpush1.msra.mxu0 0.0
    %894 = vmatprep.subr.mxu0 0.0
    %895 = vmatpush1.msra.mxu0 0.0
    %896 = vmatprep.subr.mxu0 0.0
    %897 = vmatpush1.msra.mxu0 0.0
    %898 = vmatprep.subr.mxu0 0.0
    %899 = vmatpush1.msra.mxu0 0.0
    %900 = vmatprep.subr.mxu0 0.0
    %901 = vmatpush1.msra.mxu0 0.0
    %902 = vmatprep.subr.mxu0 0.0
    %903 = vmatpush1.msra.mxu0 0.0
    %904 = vmatprep.subr.mxu0 0.0
    %905 = vmatpush1.msra.mxu0 0.0
    %906 = vmatprep.subr.mxu0 0.0
    %907 = vmatpush1.msra.mxu0 0.0
    %908 = vmatprep.subr.mxu0 0.0
    %909 = vmatpush1.msra.mxu0 0.0
    %910 = vmatprep.subr.mxu0 0.0
    %911 = vmatpush1.msra.mxu0 0.0
    %912 = vmatprep.subr.mxu0 0.0
    %913 = vmatpush1.msra.mxu0 0.0
    %914 = vmatprep.subr.mxu0 0.0
    %915 = vmatpush1.msra.mxu0 0.0
    %916 = vmatprep.subr.mxu0 0.0
    %917 = vmatpush1.msra.mxu0 0.0
    %918 = vmatprep.mubr.f32.mxu0 0.0
    %919 = vmatmul.mubr.f32.gmra.mrb[0].mxu0 %v652
    %v920 = vpop.f32.mrb[0].mxu0
    %v921 = vadd.f32 %v849, %v920
    %v922 = vpop.f32.mrb[0].mxu0
    %923 = vmatprep.mubr.f32.mxu0 0.0
    %924 = vmatmul.mubr.f32.gmra.mrb[0].mxu0 %v655
    %v925 = vpop.f32.mrb[0].mxu0
    %v926 = vadd.f32 %v849, %v925
    %v927 = vpop.f32.mrb[0].mxu0
    %928 = vdwg.mxu0
    %v929 = vsel %vm84, %v70, 0.0
    %930 = vadd.xlane.f32.xlu0 %v929
    %v931 = vpop.xlane.xlu0 %930
    %v932 = vsel %vm84, %v71, 0.0
    %933 = vadd.xlane.f32.xlu0 %v932
    %v934 = vpop.xlane.xlu0 %933
    %v935 = vadd.f32 %v931, %v934
    %v936 = vadd.f32 %v935, 1e-12
    %v937 = vrcp.pop %v936
    %v938 = vmul.f32 1.0, %v937
    %v939 = vmul.f32 %v70, %v938
    %v940 = vmul.f32 %v71, %v938
    %s941 = scalar_lea.vmem %s7, 32
    %v942 = vld [vmem:[%s941] sm:$0xff]
    %v943 = vld [vmem:[%s941 + $0x8] sm:$0xff]
    %v944 = vld [vmem:[%s941 + $0x10] sm:$0xff]
    %v945 = vld [vmem:[%s941 + $0x18] sm:$0xff]
    %s946 = scalar_lea.vmem %s9, 4
    %v947 = vld [vmem:[%s946] sm:$0xf]
    %s948 = scalar_lea.vmem %s14, 4
    %v949 = vld [vmem:[%s948] sm:$0xf]
    %s950 = scalar_lea.vmem %s16, 32
    %v951 = vld [vmem:[%s950] sm:$0xff]
    %v952 = vld [vmem:[%s950 + $0x8] sm:$0xff]
    %v953 = vld [vmem:[%s950 + $0x10] sm:$0xff]
    %v954 = vld [vmem:[%s950 + $0x18] sm:$0xff]
    %s955 = scalar_lea.vmem %s8, 1
    %v956 = vld [vmem:[%s955] sm:$0x1]
    %v958 = vlaneseq
    %v959 = vshrl.u32 %v958, 7
    %v960 = vsub.s32 0, %v959
    %v961 = vrot.slane %v956, %v960
    %s963 = scalar_lea.vmem %s10, 1
    %v964 = vld [vmem:[%s963] sm:$0x1]
    %v966 = vlaneseq
    %v967 = vshrl.u32 %v966, 7
    %v968 = vsub.s32 0, %v967
    %v969 = vrot.slane %v964, %v968
    %v971 = vmul.f32 %v175, 0.0
    %v972 = vmul.f32 %v177, 0.0
    %v975 = vrot.slane %v972, 7
    %vm976 = vcmask 1041409
    %v977 = vsel %vm976, %v975, %v971
    %vm978 = vcmask 261120
    %v979 = vsel %vm978, %v977, 0
    %981 = vmatprep.subr.mxu0 0.0
    %982 = vmatpush1.msra.mxu0 %v493
    %983 = vmatprep.subr.mxu0 0.0
    %984 = vmatpush1.msra.mxu0 %v494
    %985 = vmatprep.subr.mxu0 0.0
    %986 = vmatpush1.msra.mxu0 %v495
    %987 = vmatprep.subr.mxu0 0.0
    %988 = vmatpush1.msra.mxu0 %v496
    %989 = vmatprep.subr.mxu0 0.0
    %990 = vmatpush1.msra.mxu0 0.0
    %991 = vmatprep.subr.mxu0 0.0
    %992 = vmatpush1.msra.mxu0 0.0
    %993 = vmatprep.subr.mxu0 0.0
    %994 = vmatpush1.msra.mxu0 0.0
    %995 = vmatprep.subr.mxu0 0.0
    %996 = vmatpush1.msra.mxu0 0.0
    %997 = vmatprep.subr.mxu0 0.0
    %998 = vmatpush1.msra.mxu0 0.0
    %999 = vmatprep.subr.mxu0 0.0
    %1000 = vmatpush1.msra.mxu0 0.0
    %1001 = vmatprep.subr.mxu0 0.0
    %1002 = vmatpush1.msra.mxu0 0.0
    %1003 = vmatprep.subr.mxu0 0.0
    %1004 = vmatpush1.msra.mxu0 0.0
    %1005 = vmatprep.subr.mxu0 0.0
    %1006 = vmatpush1.msra.mxu0 0.0
    %1007 = vmatprep.subr.mxu0 0.0
    %1008 = vmatpush1.msra.mxu0 0.0
    %1009 = vmatprep.subr.mxu0 0.0
    %1010 = vmatpush1.msra.mxu0 0.0
    %1011 = vmatprep.subr.mxu0 0.0
    %1012 = vmatpush1.msra.mxu0 0.0
    %1013 = vmatprep.subr.mxu0 0.0
    %1014 = vmatpush1.msra.mxu0 0.0
    %1015 = vmatprep.subr.mxu0 0.0
    %1016 = vmatpush1.msra.mxu0 0.0
    %1017 = vmatprep.subr.mxu0 0.0
    %1018 = vmatpush1.msra.mxu0 0.0
    %1019 = vmatprep.subr.mxu0 0.0
    %1020 = vmatpush1.msra.mxu0 0.0
    %1021 = vmatprep.subr.mxu0 0.0
    %1022 = vmatpush1.msra.mxu0 0.0
    %1023 = vmatprep.subr.mxu0 0.0
    %1024 = vmatpush1.msra.mxu0 0.0
    %1025 = vmatprep.subr.mxu0 0.0
    %1026 = vmatpush1.msra.mxu0 0.0
    %1027 = vmatprep.subr.mxu0 0.0
    %1028 = vmatpush1.msra.mxu0 0.0
    %1029 = vmatprep.subr.mxu0 0.0
    %1030 = vmatpush1.msra.mxu0 0.0
    %1031 = vmatprep.subr.mxu0 0.0
    %1032 = vmatpush1.msra.mxu0 0.0
    %1033 = vmatprep.subr.mxu0 0.0
    %1034 = vmatpush1.msra.mxu0 0.0
    %1035 = vmatprep.subr.mxu0 0.0
    %1036 = vmatpush1.msra.mxu0 0.0
    %1037 = vmatprep.subr.mxu0 0.0
    %1038 = vmatpush1.msra.mxu0 0.0
    %1039 = vmatprep.subr.mxu0 0.0
    %1040 = vmatpush1.msra.mxu0 0.0
    %1041 = vmatprep.subr.mxu0 0.0
    %1042 = vmatpush1.msra.mxu0 0.0
    %1043 = vmatprep.subr.mxu0 0.0
    %1044 = vmatpush1.msra.mxu0 0.0
    %1045 = vmatprep.mubr.f32.mxu0 0.0
    %1046 = vmatmul.mubr.f32.gmra.mrb[0].mxu0 %v979
    %v1047 = vpop.f32.mrb[0].mxu0
    %v1048 = vadd.f32 %v508, %v1047
    %v1049 = vpop.f32.mrb[0].mxu0
    %1050 = vdwg.mxu0
    %v1051 = vmul.f32 %v68, %v64
    %v1052 = vmul.f32 %v69, %v65
    %v1053 = vsub.f32 1.0, %v68
    %v1054 = vsub.f32 1.0, %v69
    %v1056 = vrot.slane %v1048, 1
    %v1059 = vmul.f32 %v1053, %v1048
    %v1060 = vmul.f32 %v1054, %v1056
    %v1061 = vadd.f32 %v1051, %v1059
    %v1062 = vadd.f32 %v1052, %v1060
    %v1065 = vrot.slane %v1062, 7
    %v1066 = vsel %vm976, %v1065, %v1061
    %v1067 = vsel %vm84, %v1066, 0
    %v1070 = vsel %vm91, %v497, 0
    %1072 = vmatprep.subr.mxu0 0.0
    %1073 = vmatpush1.msra.mxu0 %v1070
    %1074 = vmatprep.subr.mxu0 0.0
    %1075 = vmatpush1.msra.mxu0 0.0
    %1076 = vmatprep.subr.mxu0 0.0
    %1077 = vmatpush1.msra.mxu0 0.0
    %1078 = vmatprep.subr.mxu0 0.0
    %1079 = vmatpush1.msra.mxu0 0.0
    %1080 = vmatprep.subr.mxu0 0.0
    %1081 = vmatpush1.msra.mxu0 0.0
    %1082 = vmatprep.subr.mxu0 0.0
    %1083 = vmatpush1.msra.mxu0 0.0
    %1084 = vmatprep.subr.mxu0 0.0
    %1085 = vmatpush1.msra.mxu0 0.0
    %1086 = vmatprep.subr.mxu0 0.0
    %1087 = vmatpush1.msra.mxu0 0.0
    %1088 = vmatprep.subr.mxu0 0.0
    %1089 = vmatpush1.msra.mxu0 0.0
    %1090 = vmatprep.subr.mxu0 0.0
    %1091 = vmatpush1.msra.mxu0 0.0
    %1092 = vmatprep.subr.mxu0 0.0
    %1093 = vmatpush1.msra.mxu0 0.0
    %1094 = vmatprep.subr.mxu0 0.0
    %1095 = vmatpush1.msra.mxu0 0.0
    %1096 = vmatprep.subr.mxu0 0.0
    %1097 = vmatpush1.msra.mxu0 0.0
    %1098 = vmatprep.subr.mxu0 0.0
    %1099 = vmatpush1.msra.mxu0 0.0
    %1100 = vmatprep.subr.mxu0 0.0
    %1101 = vmatpush1.msra.mxu0 0.0
    %1102 = vmatprep.subr.mxu0 0.0
    %1103 = vmatpush1.msra.mxu0 0.0
    %1104 = vmatprep.subr.mxu0 0.0
    %1105 = vmatpush1.msra.mxu0 0.0
    %1106 = vmatprep.subr.mxu0 0.0
    %1107 = vmatpush1.msra.mxu0 0.0
    %1108 = vmatprep.subr.mxu0 0.0
    %1109 = vmatpush1.msra.mxu0 0.0
    %1110 = vmatprep.subr.mxu0 0.0
    %1111 = vmatpush1.msra.mxu0 0.0
    %1112 = vmatprep.subr.mxu0 0.0
    %1113 = vmatpush1.msra.mxu0 0.0
    %1114 = vmatprep.subr.mxu0 0.0
    %1115 = vmatpush1.msra.mxu0 0.0
    %1116 = vmatprep.subr.mxu0 0.0
    %1117 = vmatpush1.msra.mxu0 0.0
    %1118 = vmatprep.subr.mxu0 0.0
    %1119 = vmatpush1.msra.mxu0 0.0
    %1120 = vmatprep.subr.mxu0 0.0
    %1121 = vmatpush1.msra.mxu0 0.0
    %1122 = vmatprep.subr.mxu0 0.0
    %1123 = vmatpush1.msra.mxu0 0.0
    %1124 = vmatprep.subr.mxu0 0.0
    %1125 = vmatpush1.msra.mxu0 0.0
    %1126 = vmatprep.subr.mxu0 0.0
    %1127 = vmatpush1.msra.mxu0 0.0
    %1128 = vmatprep.subr.mxu0 0.0
    %1129 = vmatpush1.msra.mxu0 0.0
    %1130 = vmatprep.subr.mxu0 0.0
    %1131 = vmatpush1.msra.mxu0 0.0
    %1132 = vmatprep.subr.mxu0 0.0
    %1133 = vmatpush1.msra.mxu0 0.0
    %1134 = vmatprep.subr.mxu0 0.0
    %1135 = vmatpush1.msra.mxu0 0.0
    %1136 = vmatprep.mubr.f32.mxu0 0.0
    %1137 = vmatmul.mubr.f32.gmra.mrb[0].mxu0 %v1067
    %v1138 = vpop.f32.mrb[0].mxu0
    %v1139 = vadd.f32 %v515, %v1138
    %v1140 = vpop.f32.mrb[0].mxu0
    %1141 = vdwg.mxu0
    %v1143 = vrot.slane %v1139, 1
    %v1146 = vmul.f32 %v392, %v1139
    %v1147 = vmul.f32 %v394, %v1143
    %v1148 = vsub.f32 1.0, %v392
    %v1149 = vsub.f32 1.0, %v394
    %v1150 = vmul.f32 %v1148, %v1048
    %v1151 = vmul.f32 %v1149, %v1056
    %v1152 = vadd.f32 %v1146, %v1150
    %v1153 = vadd.f32 %v1147, %v1151
    %v1154 = vmul.f32 %v1053, %v1152
    %v1155 = vmul.f32 %v1054, %v1153
    %v1156 = vadd.f32 %v1051, %v1154
    %v1157 = vadd.f32 %v1052, %v1155
    %v1160 = vrot.slane %v65, 7
    %v1161 = vsel %vm976, %v1160, %v64
    %v1163 = vsub.f32 %v1048, %v1161
    %v1164 = vand.u32 2147483647, %v1163
    %v1165 = vsub.f32 %v1139, %v1161
    %v1166 = vand.u32 2147483647, %v1165
    %v1167 = vadd.f32 %v1164, %v1166
    %v1168 = vsub.f32 %v1152, %v64
    %v1169 = vsub.f32 %v1153, %v65
    %v1170 = vand.u32 2147483647, %v1168
    %v1171 = vand.u32 2147483647, %v1169
    %v1174 = vrot.slane %v1171, 7
    %v1175 = vsel %vm976, %v1174, %v1170
    %v1177 = vadd.f32 %v1167, %v1175
    %v1180 = vrot.slane %v492, 7
    %v1181 = vsel %vm976, %v1180, %v491
    %v1183 = vmul.f32 %v1177, %v1181
    %v1184 = vadd.f32 %v1183, 0.0
    %1185 = vmatprep.subr.mxu0 0.0
    %1186 = vmatpush1.msra.mxu0 %v499
    %1187 = vmatprep.subr.mxu0 0.0
    %1188 = vmatpush1.msra.mxu0 %v500
    %1189 = vmatprep.subr.mxu0 0.0
    %1190 = vmatpush1.msra.mxu0 %v501
    %1191 = vmatprep.subr.mxu0 0.0
    %1192 = vmatpush1.msra.mxu0 %v502
    %1193 = vmatprep.subr.mxu0 0.0
    %1194 = vmatpush1.msra.mxu0 0.0
    %1195 = vmatprep.subr.mxu0 0.0
    %1196 = vmatpush1.msra.mxu0 0.0
    %1197 = vmatprep.subr.mxu0 0.0
    %1198 = vmatpush1.msra.mxu0 0.0
    %1199 = vmatprep.subr.mxu0 0.0
    %1200 = vmatpush1.msra.mxu0 0.0
    %1201 = vmatprep.subr.mxu0 0.0
    %1202 = vmatpush1.msra.mxu0 0.0
    %1203 = vmatprep.subr.mxu0 0.0
    %1204 = vmatpush1.msra.mxu0 0.0
    %1205 = vmatprep.subr.mxu0 0.0
    %1206 = vmatpush1.msra.mxu0 0.0
    %1207 = vmatprep.subr.mxu0 0.0
    %1208 = vmatpush1.msra.mxu0 0.0
    %1209 = vmatprep.subr.mxu0 0.0
    %1210 = vmatpush1.msra.mxu0 0.0
    %1211 = vmatprep.subr.mxu0 0.0
    %1212 = vmatpush1.msra.mxu0 0.0
    %1213 = vmatprep.subr.mxu0 0.0
    %1214 = vmatpush1.msra.mxu0 0.0
    %1215 = vmatprep.subr.mxu0 0.0
    %1216 = vmatpush1.msra.mxu0 0.0
    %1217 = vmatprep.subr.mxu0 0.0
    %1218 = vmatpush1.msra.mxu0 0.0
    %1219 = vmatprep.subr.mxu0 0.0
    %1220 = vmatpush1.msra.mxu0 0.0
    %1221 = vmatprep.subr.mxu0 0.0
    %1222 = vmatpush1.msra.mxu0 0.0
    %1223 = vmatprep.subr.mxu0 0.0
    %1224 = vmatpush1.msra.mxu0 0.0
    %1225 = vmatprep.subr.mxu0 0.0
    %1226 = vmatpush1.msra.mxu0 0.0
    %1227 = vmatprep.subr.mxu0 0.0
    %1228 = vmatpush1.msra.mxu0 0.0
    %1229 = vmatprep.subr.mxu0 0.0
    %1230 = vmatpush1.msra.mxu0 0.0
    %1231 = vmatprep.subr.mxu0 0.0
    %1232 = vmatpush1.msra.mxu0 0.0
    %1233 = vmatprep.subr.mxu0 0.0
    %1234 = vmatpush1.msra.mxu0 0.0
    %1235 = vmatprep.subr.mxu0 0.0
    %1236 = vmatpush1.msra.mxu0 0.0
    %1237 = vmatprep.subr.mxu0 0.0
    %1238 = vmatpush1.msra.mxu0 0.0
    %1239 = vmatprep.subr.mxu0 0.0
    %1240 = vmatpush1.msra.mxu0 0.0
    %1241 = vmatprep.subr.mxu0 0.0
    %1242 = vmatpush1.msra.mxu0 0.0
    %1243 = vmatprep.subr.mxu0 0.0
    %1244 = vmatpush1.msra.mxu0 0.0
    %1245 = vmatprep.subr.mxu0 0.0
    %1246 = vmatpush1.msra.mxu0 0.0
    %1247 = vmatprep.subr.mxu0 0.0
    %1248 = vmatpush1.msra.mxu0 0.0
    %1249 = vmatprep.mubr.f32.mxu0 0.0
    %1250 = vmatmul.mubr.f32.gmra.mrb[0].mxu0 %v979
    %v1251 = vpop.f32.mrb[0].mxu0
    %v1252 = vadd.f32 0.0, %v1251
    %v1253 = vpop.f32.mrb[0].mxu0
    %1254 = vdwg.mxu0
    %v1257 = vrot.slane %v1157, 7
    %v1258 = vsel %vm976, %v1257, %v1156
    %v1259 = vsel %vm84, %v1258, 0
    %v1262 = vsel %vm91, %v498, 0
    %1264 = vmatprep.subr.mxu0 0.0
    %1265 = vmatpush1.msra.mxu0 %v1262
    %1266 = vmatprep.subr.mxu0 0.0
    %1267 = vmatpush1.msra.mxu0 0.0
    %1268 = vmatprep.subr.mxu0 0.0
    %1269 = vmatpush1.msra.mxu0 0.0
    %1270 = vmatprep.subr.mxu0 0.0
    %1271 = vmatpush1.msra.mxu0 0.0
    %1272 = vmatprep.subr.mxu0 0.0
    %1273 = vmatpush1.msra.mxu0 0.0
    %1274 = vmatprep.subr.mxu0 0.0
    %1275 = vmatpush1.msra.mxu0 0.0
    %1276 = vmatprep.subr.mxu0 0.0
    %1277 = vmatpush1.msra.mxu0 0.0
    %1278 = vmatprep.subr.mxu0 0.0
    %1279 = vmatpush1.msra.mxu0 0.0
    %1280 = vmatprep.subr.mxu0 0.0
    %1281 = vmatpush1.msra.mxu0 0.0
    %1282 = vmatprep.subr.mxu0 0.0
    %1283 = vmatpush1.msra.mxu0 0.0
    %1284 = vmatprep.subr.mxu0 0.0
    %1285 = vmatpush1.msra.mxu0 0.0
    %1286 = vmatprep.subr.mxu0 0.0
    %1287 = vmatpush1.msra.mxu0 0.0
    %1288 = vmatprep.subr.mxu0 0.0
    %1289 = vmatpush1.msra.mxu0 0.0
    %1290 = vmatprep.subr.mxu0 0.0
    %1291 = vmatpush1.msra.mxu0 0.0
    %1292 = vmatprep.subr.mxu0 0.0
    %1293 = vmatpush1.msra.mxu0 0.0
    %1294 = vmatprep.subr.mxu0 0.0
    %1295 = vmatpush1.msra.mxu0 0.0
    %1296 = vmatprep.subr.mxu0 0.0
    %1297 = vmatpush1.msra.mxu0 0.0
    %1298 = vmatprep.subr.mxu0 0.0
    %1299 = vmatpush1.msra.mxu0 0.0
    %1300 = vmatprep.subr.mxu0 0.0
    %1301 = vmatpush1.msra.mxu0 0.0
    %1302 = vmatprep.subr.mxu0 0.0
    %1303 = vmatpush1.msra.mxu0 0.0
    %1304 = vmatprep.subr.mxu0 0.0
    %1305 = vmatpush1.msra.mxu0 0.0
    %1306 = vmatprep.subr.mxu0 0.0
    %1307 = vmatpush1.msra.mxu0 0.0
    %1308 = vmatprep.subr.mxu0 0.0
    %1309 = vmatpush1.msra.mxu0 0.0
    %1310 = vmatprep.subr.mxu0 0.0
    %1311 = vmatpush1.msra.mxu0 0.0
    %1312 = vmatprep.subr.mxu0 0.0
    %1313 = vmatpush1.msra.mxu0 0.0
    %1314 = vmatprep.subr.mxu0 0.0
    %1315 = vmatpush1.msra.mxu0 0.0
    %1316 = vmatprep.subr.mxu0 0.0
    %1317 = vmatpush1.msra.mxu0 0.0
    %1318 = vmatprep.subr.mxu0 0.0
    %1319 = vmatpush1.msra.mxu0 0.0
    %1320 = vmatprep.subr.mxu0 0.0
    %1321 = vmatpush1.msra.mxu0 0.0
    %1322 = vmatprep.subr.mxu0 0.0
    %1323 = vmatpush1.msra.mxu0 0.0
    %1324 = vmatprep.subr.mxu0 0.0
    %1325 = vmatpush1.msra.mxu0 0.0
    %1326 = vmatprep.subr.mxu0 0.0
    %1327 = vmatpush1.msra.mxu0 0.0
    %1328 = vmatprep.mubr.f32.mxu0 0.0
    %1329 = vmatmul.mubr.f32.gmra.mrb[0].mxu0 %v1259
    %v1330 = vpop.f32.mrb[0].mxu0
    %v1331 = vadd.f32 %v1252, %v1330
    %v1332 = vpop.f32.mrb[0].mxu0
    %1333 = vdwg.mxu0
    %v1336 = vrot.slane %v478, 7
    %v1337 = vsel %vm976, %v1336, %v473
    %v1339 = vadd.f32 %v1331, %v1337
    %v1340 = vsub.f32 0.0, %v1339
    %v1341 = vmul.f32 %v1340, 1.442695
    %v1342 = vpow.pop %v1341
    %v1343 = vadd.f32 %v1342, 1.0
    %v1344 = vrcp.pop %v1343
    %v1345 = vmul.f32 1.0, %v1344
    %v1346 = vtanh.pop %v1339
    %v1347 = vmul.f32 %v1345, 0.0
    %1349 = vrot.lane.b32.xlu0 %v1346, 64
    %v1350 = vpop.permute.xlu0 %1349
    %v1352 = vmul.f32 %v1345, %v1350
    %1354 = vrot.lane.b32.xlu0 %v1352, 32
    %v1355 = vpop.permute.xlu0 %1354
    %v1357 = vadd.f32 %v1347, %v1355
    %v1358 = vtanh.pop %v1357
    %1360 = vrot.lane.b32.xlu0 %v1358, 64
    %v1361 = vpop.permute.xlu0 %1360
    %v1363 = vmul.f32 %v1345, %v1361
    %v1364 = vmul.f32 %v616, 0.0
    %v1365 = vmul.f32 %v618, 0.0
    %v1368 = vrot.slane %v1365, 7
    %v1369 = vsel %vm976, %v1368, %v1364
    %v1370 = vsel %vm978, %v1369, 0
    %1372 = vmatprep.subr.mxu0 0.0
    %1373 = vmatpush1.msra.mxu0 %v942
    %1374 = vmatprep.subr.mxu0 0.0
    %1375 = vmatpush1.msra.mxu0 %v943
    %1376 = vmatprep.subr.mxu0 0.0
    %1377 = vmatpush1.msra.mxu0 %v944
    %1378 = vmatprep.subr.mxu0 0.0
    %1379 = vmatpush1.msra.mxu0 %v945
    %1380 = vmatprep.subr.mxu0 0.0
    %1381 = vmatpush1.msra.mxu0 0.0
    %1382 = vmatprep.subr.mxu0 0.0
    %1383 = vmatpush1.msra.mxu0 0.0
    %1384 = vmatprep.subr.mxu0 0.0
    %1385 = vmatpush1.msra.mxu0 0.0
    %1386 = vmatprep.subr.mxu0 0.0
    %1387 = vmatpush1.msra.mxu0 0.0
    %1388 = vmatprep.subr.mxu0 0.0
    %1389 = vmatpush1.msra.mxu0 0.0
    %1390 = vmatprep.subr.mxu0 0.0
    %1391 = vmatpush1.msra.mxu0 0.0
    %1392 = vmatprep.subr.mxu0 0.0
    %1393 = vmatpush1.msra.mxu0 0.0
    %1394 = vmatprep.subr.mxu0 0.0
    %1395 = vmatpush1.msra.mxu0 0.0
    %1396 = vmatprep.subr.mxu0 0.0
    %1397 = vmatpush1.msra.mxu0 0.0
    %1398 = vmatprep.subr.mxu0 0.0
    %1399 = vmatpush1.msra.mxu0 0.0
    %1400 = vmatprep.subr.mxu0 0.0
    %1401 = vmatpush1.msra.mxu0 0.0
    %1402 = vmatprep.subr.mxu0 0.0
    %1403 = vmatpush1.msra.mxu0 0.0
    %1404 = vmatprep.subr.mxu0 0.0
    %1405 = vmatpush1.msra.mxu0 0.0
    %1406 = vmatprep.subr.mxu0 0.0
    %1407 = vmatpush1.msra.mxu0 0.0
    %1408 = vmatprep.subr.mxu0 0.0
    %1409 = vmatpush1.msra.mxu0 0.0
    %1410 = vmatprep.subr.mxu0 0.0
    %1411 = vmatpush1.msra.mxu0 0.0
    %1412 = vmatprep.subr.mxu0 0.0
    %1413 = vmatpush1.msra.mxu0 0.0
    %1414 = vmatprep.subr.mxu0 0.0
    %1415 = vmatpush1.msra.mxu0 0.0
    %1416 = vmatprep.subr.mxu0 0.0
    %1417 = vmatpush1.msra.mxu0 0.0
    %1418 = vmatprep.subr.mxu0 0.0
    %1419 = vmatpush1.msra.mxu0 0.0
    %1420 = vmatprep.subr.mxu0 0.0
    %1421 = vmatpush1.msra.mxu0 0.0
    %1422 = vmatprep.subr.mxu0 0.0
    %1423 = vmatpush1.msra.mxu0 0.0
    %1424 = vmatprep.subr.mxu0 0.0
    %1425 = vmatpush1.msra.mxu0 0.0
    %1426 = vmatprep.subr.mxu0 0.0
    %1427 = vmatpush1.msra.mxu0 0.0
    %1428 = vmatprep.subr.mxu0 0.0
    %1429 = vmatpush1.msra.mxu0 0.0
    %1430 = vmatprep.subr.mxu0 0.0
    %1431 = vmatpush1.msra.mxu0 0.0
    %1432 = vmatprep.subr.mxu0 0.0
    %1433 = vmatpush1.msra.mxu0 0.0
    %1434 = vmatprep.subr.mxu0 0.0
    %1435 = vmatpush1.msra.mxu0 0.0
    %1436 = vmatprep.mubr.f32.mxu0 0.0
    %1437 = vmatmul.mubr.f32.gmra.mrb[0].mxu0 %v1370
    %v1438 = vpop.f32.mrb[0].mxu0
    %v1439 = vadd.f32 %v961, %v1438
    %v1440 = vpop.f32.mrb[0].mxu0
    %1441 = vdwg.mxu0
    %v1442 = vmul.f32 %v70, %v66
    %v1443 = vmul.f32 %v71, %v67
    %v1444 = vsub.f32 1.0, %v70
    %v1445 = vsub.f32 1.0, %v71
    %v1447 = vrot.slane %v1439, 1
    %v1450 = vmul.f32 %v1444, %v1439
    %v1451 = vmul.f32 %v1445, %v1447
    %v1452 = vadd.f32 %v1442, %v1450
    %v1453 = vadd.f32 %v1443, %v1451
    %v1456 = vrot.slane %v1453, 7
    %v1457 = vsel %vm976, %v1456, %v1452
    %v1458 = vsel %vm84, %v1457, 0
    %v1461 = vsel %vm91, %v947, 0
    %1463 = vmatprep.subr.mxu0 0.0
    %1464 = vmatpush1.msra.mxu0 %v1461
    %1465 = vmatprep.subr.mxu0 0.0
    %1466 = vmatpush1.msra.mxu0 0.0
    %1467 = vmatprep.subr.mxu0 0.0
    %1468 = vmatpush1.msra.mxu0 0.0
    %1469 = vmatprep.subr.mxu0 0.0
    %1470 = vmatpush1.msra.mxu0 0.0
    %1471 = vmatprep.subr.mxu0 0.0
    %1472 = vmatpush1.msra.mxu0 0.0
    %1473 = vmatprep.subr.mxu0 0.0
    %1474 = vmatpush1.msra.mxu0 0.0
    %1475 = vmatprep.subr.mxu0 0.0
    %1476 = vmatpush1.msra.mxu0 0.0
    %1477 = vmatprep.subr.mxu0 0.0
    %1478 = vmatpush1.msra.mxu0 0.0
    %1479 = vmatprep.subr.mxu0 0.0
    %1480 = vmatpush1.msra.mxu0 0.0
    %1481 = vmatprep.subr.mxu0 0.0
    %1482 = vmatpush1.msra.mxu0 0.0
    %1483 = vmatprep.subr.mxu0 0.0
    %1484 = vmatpush1.msra.mxu0 0.0
    %1485 = vmatprep.subr.mxu0 0.0
    %1486 = vmatpush1.msra.mxu0 0.0
    %1487 = vmatprep.subr.mxu0 0.0
    %1488 = vmatpush1.msra.mxu0 0.0
    %1489 = vmatprep.subr.mxu0 0.0
    %1490 = vmatpush1.msra.mxu0 0.0
    %1491 = vmatprep.subr.mxu0 0.0
    %1492 = vmatpush1.msra.mxu0 0.0
    %1493 = vmatprep.subr.mxu0 0.0
    %1494 = vmatpush1.msra.mxu0 0.0
    %1495 = vmatprep.subr.mxu0 0.0
    %1496 = vmatpush1.msra.mxu0 0.0
    %1497 = vmatprep.subr.mxu0 0.0
    %1498 = vmatpush1.msra.mxu0 0.0
    %1499 = vmatprep.subr.mxu0 0.0
    %1500 = vmatpush1.msra.mxu0 0.0
    %1501 = vmatprep.subr.mxu0 0.0
    %1502 = vmatpush1.msra.mxu0 0.0
    %1503 = vmatprep.subr.mxu0 0.0
    %1504 = vmatpush1.msra.mxu0 0.0
    %1505 = vmatprep.subr.mxu0 0.0
    %1506 = vmatpush1.msra.mxu0 0.0
    %1507 = vmatprep.subr.mxu0 0.0
    %1508 = vmatpush1.msra.mxu0 0.0
    %1509 = vmatprep.subr.mxu0 0.0
    %1510 = vmatpush1.msra.mxu0 0.0
    %1511 = vmatprep.subr.mxu0 0.0
    %1512 = vmatpush1.msra.mxu0 0.0
    %1513 = vmatprep.subr.mxu0 0.0
    %1514 = vmatpush1.msra.mxu0 0.0
    %1515 = vmatprep.subr.mxu0 0.0
    %1516 = vmatpush1.msra.mxu0 0.0
    %1517 = vmatprep.subr.mxu0 0.0
    %1518 = vmatpush1.msra.mxu0 0.0
    %1519 = vmatprep.subr.mxu0 0.0
    %1520 = vmatpush1.msra.mxu0 0.0
    %1521 = vmatprep.subr.mxu0 0.0
    %1522 = vmatpush1.msra.mxu0 0.0
    %1523 = vmatprep.subr.mxu0 0.0
    %1524 = vmatpush1.msra.mxu0 0.0
    %1525 = vmatprep.subr.mxu0 0.0
    %1526 = vmatpush1.msra.mxu0 0.0
    %1527 = vmatprep.mubr.f32.mxu0 0.0
    %1528 = vmatmul.mubr.f32.gmra.mrb[0].mxu0 %v1458
    %v1529 = vpop.f32.mrb[0].mxu0
    %v1530 = vadd.f32 %v969, %v1529
    %v1531 = vpop.f32.mrb[0].mxu0
    %1532 = vdwg.mxu0
    %v1534 = vrot.slane %v1530, 1
    %v1537 = vmul.f32 %v838, %v1530
    %v1538 = vmul.f32 %v840, %v1534
    %v1539 = vsub.f32 1.0, %v838
    %v1540 = vsub.f32 1.0, %v840
    %v1541 = vmul.f32 %v1539, %v1439
    %v1542 = vmul.f32 %v1540, %v1447
    %v1543 = vadd.f32 %v1537, %v1541
    %v1544 = vadd.f32 %v1538, %v1542
    %v1545 = vmul.f32 %v1444, %v1543
    %v1546 = vmul.f32 %v1445, %v1544
    %v1547 = vadd.f32 %v1442, %v1545
    %v1548 = vadd.f32 %v1443, %v1546
    %v1551 = vrot.slane %v67, 7
    %v1552 = vsel %vm976, %v1551, %v66
    %v1554 = vsub.f32 %v1439, %v1552
    %v1555 = vand.u32 2147483647, %v1554
    %v1556 = vsub.f32 %v1530, %v1552
    %v1557 = vand.u32 2147483647, %v1556
    %v1558 = vadd.f32 %v1555, %v1557
    %v1559 = vsub.f32 %v1543, %v66
    %v1560 = vsub.f32 %v1544, %v67
    %v1561 = vand.u32 2147483647, %v1559
    %v1562 = vand.u32 2147483647, %v1560
    %v1565 = vrot.slane %v1562, 7
    %v1566 = vsel %vm976, %v1565, %v1561
    %v1568 = vadd.f32 %v1558, %v1566
    %v1571 = vrot.slane %v940, 7
    %v1572 = vsel %vm976, %v1571, %v939
    %v1574 = vmul.f32 %v1568, %v1572
    %v1575 = vadd.f32 %v1574, 0.0
    %1576 = vmatprep.subr.mxu0 0.0
    %1577 = vmatpush1.msra.mxu0 %v951
    %1578 = vmatprep.subr.mxu0 0.0
    %1579 = vmatpush1.msra.mxu0 %v952
    %1580 = vmatprep.subr.mxu0 0.0
    %1581 = vmatpush1.msra.mxu0 %v953
    %1582 = vmatprep.subr.mxu0 0.0
    %1583 = vmatpush1.msra.mxu0 %v954
    %1584 = vmatprep.subr.mxu0 0.0
    %1585 = vmatpush1.msra.mxu0 0.0
    %1586 = vmatprep.subr.mxu0 0.0
    %1587 = vmatpush1.msra.mxu0 0.0
    %1588 = vmatprep.subr.mxu0 0.0
    %1589 = vmatpush1.msra.mxu0 0.0
    %1590 = vmatprep.subr.mxu0 0.0
    %1591 = vmatpush1.msra.mxu0 0.0
    %1592 = vmatprep.subr.mxu0 0.0
    %1593 = vmatpush1.msra.mxu0 0.0
    %1594 = vmatprep.subr.mxu0 0.0
    %1595 = vmatpush1.msra.mxu0 0.0
    %1596 = vmatprep.subr.mxu0 0.0
    %1597 = vmatpush1.msra.mxu0 0.0
    %1598 = vmatprep.subr.mxu0 0.0
    %1599 = vmatpush1.msra.mxu0 0.0
    %1600 = vmatprep.subr.mxu0 0.0
    %1601 = vmatpush1.msra.mxu0 0.0
    %1602 = vmatprep.subr.mxu0 0.0
    %1603 = vmatpush1.msra.mxu0 0.0
    %1604 = vmatprep.subr.mxu0 0.0
    %1605 = vmatpush1.msra.mxu0 0.0
    %1606 = vmatprep.subr.mxu0 0.0
    %1607 = vmatpush1.msra.mxu0 0.0
    %1608 = vmatprep.subr.mxu0 0.0
    %1609 = vmatpush1.msra.mxu0 0.0
    %1610 = vmatprep.subr.mxu0 0.0
    %1611 = vmatpush1.msra.mxu0 0.0
    %1612 = vmatprep.subr.mxu0 0.0
    %1613 = vmatpush1.msra.mxu0 0.0
    %1614 = vmatprep.subr.mxu0 0.0
    %1615 = vmatpush1.msra.mxu0 0.0
    %1616 = vmatprep.subr.mxu0 0.0
    %1617 = vmatpush1.msra.mxu0 0.0
    %1618 = vmatprep.subr.mxu0 0.0
    %1619 = vmatpush1.msra.mxu0 0.0
    %1620 = vmatprep.subr.mxu0 0.0
    %1621 = vmatpush1.msra.mxu0 0.0
    %1622 = vmatprep.subr.mxu0 0.0
    %1623 = vmatpush1.msra.mxu0 0.0
    %1624 = vmatprep.subr.mxu0 0.0
    %1625 = vmatpush1.msra.mxu0 0.0
    %1626 = vmatprep.subr.mxu0 0.0
    %1627 = vmatpush1.msra.mxu0 0.0
    %1628 = vmatprep.subr.mxu0 0.0
    %1629 = vmatpush1.msra.mxu0 0.0
    %1630 = vmatprep.subr.mxu0 0.0
    %1631 = vmatpush1.msra.mxu0 0.0
    %1632 = vmatprep.subr.mxu0 0.0
    %1633 = vmatpush1.msra.mxu0 0.0
    %1634 = vmatprep.subr.mxu0 0.0
    %1635 = vmatpush1.msra.mxu0 0.0
    %1636 = vmatprep.subr.mxu0 0.0
    %1637 = vmatpush1.msra.mxu0 0.0
    %1638 = vmatprep.subr.mxu0 0.0
    %1639 = vmatpush1.msra.mxu0 0.0
    %1640 = vmatprep.mubr.f32.mxu0 0.0
    %1641 = vmatmul.mubr.f32.gmra.mrb[0].mxu0 %v1370
    %v1642 = vpop.f32.mrb[0].mxu0
    %v1643 = vadd.f32 0.0, %v1642
    %v1644 = vpop.f32.mrb[0].mxu0
    %1645 = vdwg.mxu0
    %v1648 = vrot.slane %v1548, 7
    %v1649 = vsel %vm976, %v1648, %v1547
    %v1650 = vsel %vm84, %v1649, 0
    %v1653 = vsel %vm91, %v949, 0
    %1655 = vmatprep.subr.mxu0 0.0
    %1656 = vmatpush1.msra.mxu0 %v1653
    %1657 = vmatprep.subr.mxu0 0.0
    %1658 = vmatpush1.msra.mxu0 0.0
    %1659 = vmatprep.subr.mxu0 0.0
    %1660 = vmatpush1.msra.mxu0 0.0
    %1661 = vmatprep.subr.mxu0 0.0
    %1662 = vmatpush1.msra.mxu0 0.0
    %1663 = vmatprep.subr.mxu0 0.0
    %1664 = vmatpush1.msra.mxu0 0.0
    %1665 = vmatprep.subr.mxu0 0.0
    %1666 = vmatpush1.msra.mxu0 0.0
    %1667 = vmatprep.subr.mxu0 0.0
    %1668 = vmatpush1.msra.mxu0 0.0
    %1669 = vmatprep.subr.mxu0 0.0
    %1670 = vmatpush1.msra.mxu0 0.0
    %1671 = vmatprep.subr.mxu0 0.0
    %1672 = vmatpush1.msra.mxu0 0.0
    %1673 = vmatprep.subr.mxu0 0.0
    %1674 = vmatpush1.msra.mxu0 0.0
    %1675 = vmatprep.subr.mxu0 0.0
    %1676 = vmatpush1.msra.mxu0 0.0
    %1677 = vmatprep.subr.mxu0 0.0
    %1678 = vmatpush1.msra.mxu0 0.0
    %1679 = vmatprep.subr.mxu0 0.0
    %1680 = vmatpush1.msra.mxu0 0.0
    %1681 = vmatprep.subr.mxu0 0.0
    %1682 = vmatpush1.msra.mxu0 0.0
    %1683 = vmatprep.subr.mxu0 0.0
    %1684 = vmatpush1.msra.mxu0 0.0
    %1685 = vmatprep.subr.mxu0 0.0
    %1686 = vmatpush1.msra.mxu0 0.0
    %1687 = vmatprep.subr.mxu0 0.0
    %1688 = vmatpush1.msra.mxu0 0.0
    %1689 = vmatprep.subr.mxu0 0.0
    %1690 = vmatpush1.msra.mxu0 0.0
    %1691 = vmatprep.subr.mxu0 0.0
    %1692 = vmatpush1.msra.mxu0 0.0
    %1693 = vmatprep.subr.mxu0 0.0
    %1694 = vmatpush1.msra.mxu0 0.0
    %1695 = vmatprep.subr.mxu0 0.0
    %1696 = vmatpush1.msra.mxu0 0.0
    %1697 = vmatprep.subr.mxu0 0.0
    %1698 = vmatpush1.msra.mxu0 0.0
    %1699 = vmatprep.subr.mxu0 0.0
    %1700 = vmatpush1.msra.mxu0 0.0
    %1701 = vmatprep.subr.mxu0 0.0
    %1702 = vmatpush1.msra.mxu0 0.0
    %1703 = vmatprep.subr.mxu0 0.0
    %1704 = vmatpush1.msra.mxu0 0.0
    %1705 = vmatprep.subr.mxu0 0.0
    %1706 = vmatpush1.msra.mxu0 0.0
    %1707 = vmatprep.subr.mxu0 0.0
    %1708 = vmatpush1.msra.mxu0 0.0
    %1709 = vmatprep.subr.mxu0 0.0
    %1710 = vmatpush1.msra.mxu0 0.0
    %1711 = vmatprep.subr.mxu0 0.0
    %1712 = vmatpush1.msra.mxu0 0.0
    %1713 = vmatprep.subr.mxu0 0.0
    %1714 = vmatpush1.msra.mxu0 0.0
    %1715 = vmatprep.subr.mxu0 0.0
    %1716 = vmatpush1.msra.mxu0 0.0
    %1717 = vmatprep.subr.mxu0 0.0
    %1718 = vmatpush1.msra.mxu0 0.0
    %1719 = vmatprep.mubr.f32.mxu0 0.0
    %1720 = vmatmul.mubr.f32.gmra.mrb[0].mxu0 %v1650
    %v1721 = vpop.f32.mrb[0].mxu0
    %v1722 = vadd.f32 %v1643, %v1721
    %v1723 = vpop.f32.mrb[0].mxu0
    %1724 = vdwg.mxu0
    %v1727 = vrot.slane %v926, 7
    %v1728 = vsel %vm976, %v1727, %v921
    %v1730 = vadd.f32 %v1722, %v1728
    %v1731 = vsub.f32 0.0, %v1730
    %v1732 = vmul.f32 %v1731, 1.442695
    %v1733 = vpow.pop %v1732
    %v1734 = vadd.f32 %v1733, 1.0
    %v1735 = vrcp.pop %v1734
    %v1736 = vmul.f32 1.0, %v1735
    %v1737 = vtanh.pop %v1730
    %v1738 = vmul.f32 %v1736, 0.0
    %1740 = vrot.lane.b32.xlu0 %v1737, 64
    %v1741 = vpop.permute.xlu0 %1740
    %v1743 = vmul.f32 %v1736, %v1741
    %1745 = vrot.lane.b32.xlu0 %v1743, 32
    %v1746 = vpop.permute.xlu0 %1745
    %v1748 = vadd.f32 %v1738, %v1746
    %v1749 = vtanh.pop %v1748
    %1751 = vrot.lane.b32.xlu0 %v1749, 64
    %v1752 = vpop.permute.xlu0 %1751
    %v1754 = vmul.f32 %v1736, %v1752
    %v1757 = vrot.slane %v175, 1
    %v1758 = vsel %vm976, %v177, %v1757
    %1759 = vrot.lane.b32.xlu0 %v1758, 96
    %v1760 = vpop.permute.xlu0 %1759
    %v1762 = vmul.f32 %v1363, %v1760
    %1764 = vrot.lane.b32.xlu0 %v1762, 32
    %v1765 = vpop.permute.xlu0 %1764
    %v1766 = vsel %vm978, %v1765, 0
    %1768 = vmatprep.subr.mxu0 0.0
    %1769 = vmatpush1.msra.mxu0 %v493
    %1770 = vmatprep.subr.mxu0 0.0
    %1771 = vmatpush1.msra.mxu0 %v494
    %1772 = vmatprep.subr.mxu0 0.0
    %1773 = vmatpush1.msra.mxu0 %v495
    %1774 = vmatprep.subr.mxu0 0.0
    %1775 = vmatpush1.msra.mxu0 %v496
    %1776 = vmatprep.subr.mxu0 0.0
    %1777 = vmatpush1.msra.mxu0 0.0
    %1778 = vmatprep.subr.mxu0 0.0
    %1779 = vmatpush1.msra.mxu0 0.0
    %1780 = vmatprep.subr.mxu0 0.0
    %1781 = vmatpush1.msra.mxu0 0.0
    %1782 = vmatprep.subr.mxu0 0.0
    %1783 = vmatpush1.msra.mxu0 0.0
    %1784 = vmatprep.subr.mxu0 0.0
    %1785 = vmatpush1.msra.mxu0 0.0
    %1786 = vmatprep.subr.mxu0 0.0
    %1787 = vmatpush1.msra.mxu0 0.0
    %1788 = vmatprep.subr.mxu0 0.0
    %1789 = vmatpush1.msra.mxu0 0.0
    %1790 = vmatprep.subr.mxu0 0.0
    %1791 = vmatpush1.msra.mxu0 0.0
    %1792 = vmatprep.subr.mxu0 0.0
    %1793 = vmatpush1.msra.mxu0 0.0
    %1794 = vmatprep.subr.mxu0 0.0
    %1795 = vmatpush1.msra.mxu0 0.0
    %1796 = vmatprep.subr.mxu0 0.0
    %1797 = vmatpush1.msra.mxu0 0.0
    %1798 = vmatprep.subr.mxu0 0.0
    %1799 = vmatpush1.msra.mxu0 0.0
    %1800 = vmatprep.subr.mxu0 0.0
    %1801 = vmatpush1.msra.mxu0 0.0
    %1802 = vmatprep.subr.mxu0 0.0
    %1803 = vmatpush1.msra.mxu0 0.0
    %1804 = vmatprep.subr.mxu0 0.0
    %1805 = vmatpush1.msra.mxu0 0.0
    %1806 = vmatprep.subr.mxu0 0.0
    %1807 = vmatpush1.msra.mxu0 0.0
    %1808 = vmatprep.subr.mxu0 0.0
    %1809 = vmatpush1.msra.mxu0 0.0
    %1810 = vmatprep.subr.mxu0 0.0
    %1811 = vmatpush1.msra.mxu0 0.0
    %1812 = vmatprep.subr.mxu0 0.0
    %1813 = vmatpush1.msra.mxu0 0.0
    %1814 = vmatprep.subr.mxu0 0.0
    %1815 = vmatpush1.msra.mxu0 0.0
    %1816 = vmatprep.subr.mxu0 0.0
    %1817 = vmatpush1.msra.mxu0 0.0
    %1818 = vmatprep.subr.mxu0 0.0
    %1819 = vmatpush1.msra.mxu0 0.0
    %1820 = vmatprep.subr.mxu0 0.0
    %1821 = vmatpush1.msra.mxu0 0.0
    %1822 = vmatprep.subr.mxu0 0.0
    %1823 = vmatpush1.msra.mxu0 0.0
    %1824 = vmatprep.subr.mxu0 0.0
    %1825 = vmatpush1.msra.mxu0 0.0
    %1826 = vmatprep.subr.mxu0 0.0
    %1827 = vmatpush1.msra.mxu0 0.0
    %1828 = vmatprep.subr.mxu0 0.0
    %1829 = vmatpush1.msra.mxu0 0.0
    %1830 = vmatprep.subr.mxu0 0.0
    %1831 = vmatpush1.msra.mxu0 0.0
    %1832 = vmatprep.mubr.f32.mxu0 0.0
    %1833 = vmatmul.mubr.f32.gmra.mrb[0].mxu0 %v1766
    %v1834 = vpop.f32.mrb[0].mxu0
    %v1835 = vadd.f32 %v508, %v1834
    %v1836 = vpop.f32.mrb[0].mxu0
    %1837 = vdwg.mxu0
    %v1839 = vrot.slane %v1835, 7
    %v1842 = vmul.f32 %v1053, %v1839
    %v1843 = vmul.f32 %v1054, %v1835
    %v1844 = vadd.f32 %v1051, %v1842
    %v1845 = vadd.f32 %v1052, %v1843
    %v1848 = vrot.slane %v1844, 1
    %v1849 = vsel %vm976, %v1845, %v1848
    %v1850 = vsel %vm84, %v1849, 0
    %1852 = vmatprep.subr.mxu0 0.0
    %1853 = vmatpush1.msra.mxu0 %v1070
    %1854 = vmatprep.subr.mxu0 0.0
    %1855 = vmatpush1.msra.mxu0 0.0
    %1856 = vmatprep.subr.mxu0 0.0
    %1857 = vmatpush1.msra.mxu0 0.0
    %1858 = vmatprep.subr.mxu0 0.0
    %1859 = vmatpush1.msra.mxu0 0.0
    %1860 = vmatprep.subr.mxu0 0.0
    %1861 = vmatpush1.msra.mxu0 0.0
    %1862 = vmatprep.subr.mxu0 0.0
    %1863 = vmatpush1.msra.mxu0 0.0
    %1864 = vmatprep.subr.mxu0 0.0
    %1865 = vmatpush1.msra.mxu0 0.0
    %1866 = vmatprep.subr.mxu0 0.0
    %1867 = vmatpush1.msra.mxu0 0.0
    %1868 = vmatprep.subr.mxu0 0.0
    %1869 = vmatpush1.msra.mxu0 0.0
    %1870 = vmatprep.subr.mxu0 0.0
    %1871 = vmatpush1.msra.mxu0 0.0
    %1872 = vmatprep.subr.mxu0 0.0
    %1873 = vmatpush1.msra.mxu0 0.0
    %1874 = vmatprep.subr.mxu0 0.0
    %1875 = vmatpush1.msra.mxu0 0.0
    %1876 = vmatprep.subr.mxu0 0.0
    %1877 = vmatpush1.msra.mxu0 0.0
    %1878 = vmatprep.subr.mxu0 0.0
    %1879 = vmatpush1.msra.mxu0 0.0
    %1880 = vmatprep.subr.mxu0 0.0
    %1881 = vmatpush1.msra.mxu0 0.0
    %1882 = vmatprep.subr.mxu0 0.0
    %1883 = vmatpush1.msra.mxu0 0.0
    %1884 = vmatprep.subr.mxu0 0.0
    %1885 = vmatpush1.msra.mxu0 0.0
    %1886 = vmatprep.subr.mxu0 0.0
    %1887 = vmatpush1.msra.mxu0 0.0
    %1888 = vmatprep.subr.mxu0 0.0
    %1889 = vmatpush1.msra.mxu0 0.0
    %1890 = vmatprep.subr.mxu0 0.0
    %1891 = vmatpush1.msra.mxu0 0.0
    %1892 = vmatprep.subr.mxu0 0.0
    %1893 = vmatpush1.msra.mxu0 0.0
    %1894 = vmatprep.subr.mxu0 0.0
    %1895 = vmatpush1.msra.mxu0 0.0
    %1896 = vmatprep.subr.mxu0 0.0
    %1897 = vmatpush1.msra.mxu0 0.0
    %1898 = vmatprep.subr.mxu0 0.0
    %1899 = vmatpush1.msra.mxu0 0.0
    %1900 = vmatprep.subr.mxu0 0.0
    %1901 = vmatpush1.msra.mxu0 0.0
    %1902 = vmatprep.subr.mxu0 0.0
    %1903 = vmatpush1.msra.mxu0 0.0
    %1904 = vmatprep.subr.mxu0 0.0
    %1905 = vmatpush1.msra.mxu0 0.0
    %1906 = vmatprep.subr.mxu0 0.0
    %1907 = vmatpush1.msra.mxu0 0.0
    %1908 = vmatprep.subr.mxu0 0.0
    %1909 = vmatpush1.msra.mxu0 0.0
    %1910 = vmatprep.subr.mxu0 0.0
    %1911 = vmatpush1.msra.mxu0 0.0
    %1912 = vmatprep.subr.mxu0 0.0
    %1913 = vmatpush1.msra.mxu0 0.0
    %1914 = vmatprep.subr.mxu0 0.0
    %1915 = vmatpush1.msra.mxu0 0.0
    %1916 = vmatprep.mubr.f32.mxu0 0.0
    %1917 = vmatmul.mubr.f32.gmra.mrb[0].mxu0 %v1850
    %v1918 = vpop.f32.mrb[0].mxu0
    %v1919 = vadd.f32 %v515, %v1918
    %v1920 = vpop.f32.mrb[0].mxu0
    %1921 = vdwg.mxu0
    %v1923 = vrot.slane %v1919, 7
    %v1926 = vmul.f32 %v392, %v1923
    %v1927 = vmul.f32 %v394, %v1919
    %v1928 = vmul.f32 %v1148, %v1839
    %v1929 = vmul.f32 %v1149, %v1835
    %v1930 = vadd.f32 %v1926, %v1928
    %v1931 = vadd.f32 %v1927, %v1929
    %v1932 = vmul.f32 %v1053, %v1930
    %v1933 = vmul.f32 %v1054, %v1931
    %v1934 = vadd.f32 %v1051, %v1932
    %v1935 = vadd.f32 %v1052, %v1933
    %v1936 = vrot.slane %v64, 1
    %v1937 = vsel %vm976, %v65, %v1936
    %v1939 = vsub.f32 %v1835, %v1937
    %v1940 = vand.u32 2147483647, %v1939
    %v1941 = vsub.f32 %v1919, %v1937
    %v1942 = vand.u32 2147483647, %v1941
    %v1943 = vadd.f32 %v1940, %v1942
    %v1944 = vsub.f32 %v1930, %v64
    %v1945 = vsub.f32 %v1931, %v65
    %v1946 = vand.u32 2147483647, %v1944
    %v1947 = vand.u32 2147483647, %v1945
    %v1950 = vrot.slane %v1946, 1
    %v1951 = vsel %vm976, %v1947, %v1950
    %v1953 = vadd.f32 %v1943, %v1951
    %v1954 = vrot.slane %v491, 1
    %v1955 = vsel %vm976, %v492, %v1954
    %v1957 = vmul.f32 %v1953, %v1955
    %v1958 = vadd.f32 %v1184, %v1957
    %1959 = vmatprep.subr.mxu0 0.0
    %1960 = vmatpush1.msra.mxu0 %v499
    %1961 = vmatprep.subr.mxu0 0.0
    %1962 = vmatpush1.msra.mxu0 %v500
    %1963 = vmatprep.subr.mxu0 0.0
    %1964 = vmatpush1.msra.mxu0 %v501
    %1965 = vmatprep.subr.mxu0 0.0
    %1966 = vmatpush1.msra.mxu0 %v502
    %1967 = vmatprep.subr.mxu0 0.0
    %1968 = vmatpush1.msra.mxu0 0.0
    %1969 = vmatprep.subr.mxu0 0.0
    %1970 = vmatpush1.msra.mxu0 0.0
    %1971 = vmatprep.subr.mxu0 0.0
    %1972 = vmatpush1.msra.mxu0 0.0
    %1973 = vmatprep.subr.mxu0 0.0
    %1974 = vmatpush1.msra.mxu0 0.0
    %1975 = vmatprep.subr.mxu0 0.0
    %1976 = vmatpush1.msra.mxu0 0.0
    %1977 = vmatprep.subr.mxu0 0.0
    %1978 = vmatpush1.msra.mxu0 0.0
    %1979 = vmatprep.subr.mxu0 0.0
    %1980 = vmatpush1.msra.mxu0 0.0
    %1981 = vmatprep.subr.mxu0 0.0
    %1982 = vmatpush1.msra.mxu0 0.0
    %1983 = vmatprep.subr.mxu0 0.0
    %1984 = vmatpush1.msra.mxu0 0.0
    %1985 = vmatprep.subr.mxu0 0.0
    %1986 = vmatpush1.msra.mxu0 0.0
    %1987 = vmatprep.subr.mxu0 0.0
    %1988 = vmatpush1.msra.mxu0 0.0
    %1989 = vmatprep.subr.mxu0 0.0
    %1990 = vmatpush1.msra.mxu0 0.0
    %1991 = vmatprep.subr.mxu0 0.0
    %1992 = vmatpush1.msra.mxu0 0.0
    %1993 = vmatprep.subr.mxu0 0.0
    %1994 = vmatpush1.msra.mxu0 0.0
    %1995 = vmatprep.subr.mxu0 0.0
    %1996 = vmatpush1.msra.mxu0 0.0
    %1997 = vmatprep.subr.mxu0 0.0
    %1998 = vmatpush1.msra.mxu0 0.0
    %1999 = vmatprep.subr.mxu0 0.0
    %2000 = vmatpush1.msra.mxu0 0.0
    %2001 = vmatprep.subr.mxu0 0.0
    %2002 = vmatpush1.msra.mxu0 0.0
    %2003 = vmatprep.subr.mxu0 0.0
    %2004 = vmatpush1.msra.mxu0 0.0
    %2005 = vmatprep.subr.mxu0 0.0
    %2006 = vmatpush1.msra.mxu0 0.0
    %2007 = vmatprep.subr.mxu0 0.0
    %2008 = vmatpush1.msra.mxu0 0.0
    %2009 = vmatprep.subr.mxu0 0.0
    %2010 = vmatpush1.msra.mxu0 0.0
    %2011 = vmatprep.subr.mxu0 0.0
    %2012 = vmatpush1.msra.mxu0 0.0
    %2013 = vmatprep.subr.mxu0 0.0
    %2014 = vmatpush1.msra.mxu0 0.0
    %2015 = vmatprep.subr.mxu0 0.0
    %2016 = vmatpush1.msra.mxu0 0.0
    %2017 = vmatprep.subr.mxu0 0.0
    %2018 = vmatpush1.msra.mxu0 0.0
    %2019 = vmatprep.subr.mxu0 0.0
    %2020 = vmatpush1.msra.mxu0 0.0
    %2021 = vmatprep.subr.mxu0 0.0
    %2022 = vmatpush1.msra.mxu0 0.0
    %2023 = vmatprep.mubr.f32.mxu0 0.0
    %2024 = vmatmul.mubr.f32.gmra.mrb[0].mxu0 %v1766
    %v2025 = vpop.f32.mrb[0].mxu0
    %v2026 = vadd.f32 0.0, %v2025
    %v2027 = vpop.f32.mrb[0].mxu0
    %2028 = vdwg.mxu0
    %v2031 = vrot.slane %v1934, 1
    %v2032 = vsel %vm976, %v1935, %v2031
    %v2033 = vsel %vm84, %v2032, 0
    %2035 = vmatprep.subr.mxu0 0.0
    %2036 = vmatpush1.msra.mxu0 %v1262
    %2037 = vmatprep.subr.mxu0 0.0
    %2038 = vmatpush1.msra.mxu0 0.0
    %2039 = vmatprep.subr.mxu0 0.0
    %2040 = vmatpush1.msra.mxu0 0.0
    %2041 = vmatprep.subr.mxu0 0.0
    %2042 = vmatpush1.msra.mxu0 0.0
    %2043 = vmatprep.subr.mxu0 0.0
    %2044 = vmatpush1.msra.mxu0 0.0
    %2045 = vmatprep.subr.mxu0 0.0
    %2046 = vmatpush1.msra.mxu0 0.0
    %2047 = vmatprep.subr.mxu0 0.0
    %2048 = vmatpush1.msra.mxu0 0.0
    %2049 = vmatprep.subr.mxu0 0.0
    %2050 = vmatpush1.msra.mxu0 0.0
    %2051 = vmatprep.subr.mxu0 0.0
    %2052 = vmatpush1.msra.mxu0 0.0
    %2053 = vmatprep.subr.mxu0 0.0
    %2054 = vmatpush1.msra.mxu0 0.0
    %2055 = vmatprep.subr.mxu0 0.0
    %2056 = vmatpush1.msra.mxu0 0.0
    %2057 = vmatprep.subr.mxu0 0.0
    %2058 = vmatpush1.msra.mxu0 0.0
    %2059 = vmatprep.subr.mxu0 0.0
    %2060 = vmatpush1.msra.mxu0 0.0
    %2061 = vmatprep.subr.mxu0 0.0
    %2062 = vmatpush1.msra.mxu0 0.0
    %2063 = vmatprep.subr.mxu0 0.0
    %2064 = vmatpush1.msra.mxu0 0.0
    %2065 = vmatprep.subr.mxu0 0.0
    %2066 = vmatpush1.msra.mxu0 0.0
    %2067 = vmatprep.subr.mxu0 0.0
    %2068 = vmatpush1.msra.mxu0 0.0
    %2069 = vmatprep.subr.mxu0 0.0
    %2070 = vmatpush1.msra.mxu0 0.0
    %2071 = vmatprep.subr.mxu0 0.0
    %2072 = vmatpush1.msra.mxu0 0.0
    %2073 = vmatprep.subr.mxu0 0.0
    %2074 = vmatpush1.msra.mxu0 0.0
    %2075 = vmatprep.subr.mxu0 0.0
    %2076 = vmatpush1.msra.mxu0 0.0
    %2077 = vmatprep.subr.mxu0 0.0
    %2078 = vmatpush1.msra.mxu0 0.0
    %2079 = vmatprep.subr.mxu0 0.0
    %2080 = vmatpush1.msra.mxu0 0.0
    %2081 = vmatprep.subr.mxu0 0.0
    %2082 = vmatpush1.msra.mxu0 0.0
    %2083 = vmatprep.subr.mxu0 0.0
    %2084 = vmatpush1.msra.mxu0 0.0
    %2085 = vmatprep.subr.mxu0 0.0
    %2086 = vmatpush1.msra.mxu0 0.0
    %2087 = vmatprep.subr.mxu0 0.0
    %2088 = vmatpush1.msra.mxu0 0.0
    %2089 = vmatprep.subr.mxu0 0.0
    %2090 = vmatpush1.msra.mxu0 0.0
    %2091 = vmatprep.subr.mxu0 0.0
    %2092 = vmatpush1.msra.mxu0 0.0
    %2093 = vmatprep.subr.mxu0 0.0
    %2094 = vmatpush1.msra.mxu0 0.0
    %2095 = vmatprep.subr.mxu0 0.0
    %2096 = vmatpush1.msra.mxu0 0.0
    %2097 = vmatprep.subr.mxu0 0.0
    %2098 = vmatpush1.msra.mxu0 0.0
    %2099 = vmatprep.mubr.f32.mxu0 0.0
    %2100 = vmatmul.mubr.f32.gmra.mrb[0].mxu0 %v2033
    %v2101 = vpop.f32.mrb[0].mxu0
    %v2102 = vadd.f32 %v2026, %v2101
    %v2103 = vpop.f32.mrb[0].mxu0
    %2104 = vdwg.mxu0
    %v2105 = vrot.slane %v473, 1
    %v2106 = vsel %vm976, %v478, %v2105
    %v2108 = vadd.f32 %v2102, %v2106
    %v2109 = vsub.f32 0.0, %v2108
    %v2110 = vmul.f32 %v2109, 1.442695
    %v2111 = vpow.pop %v2110
    %v2112 = vadd.f32 %v2111, 1.0
    %v2113 = vrcp.pop %v2112
    %v2114 = vmul.f32 1.0, %v2113
    %v2115 = vtanh.pop %v2108
    %v2116 = vmul.f32 %v2114, %v1357
    %2118 = vrot.lane.b32.xlu0 %v2115, 64
    %v2119 = vpop.permute.xlu0 %2118
    %v2121 = vmul.f32 %v2114, %v2119
    %2123 = vrot.lane.b32.xlu0 %v2121, 32
    %v2124 = vpop.permute.xlu0 %2123
    %v2126 = vadd.f32 %v2116, %v2124
    %v2127 = vtanh.pop %v2126
    %2129 = vrot.lane.b32.xlu0 %v2127, 64
    %v2130 = vpop.permute.xlu0 %2129
    %v2132 = vmul.f32 %v2114, %v2130
    %v2135 = vrot.slane %v616, 1
    %v2136 = vsel %vm976, %v618, %v2135
    %2137 = vrot.lane.b32.xlu0 %v2136, 96
    %v2138 = vpop.permute.xlu0 %2137
    %v2140 = vmul.f32 %v1754, %v2138
    %2142 = vrot.lane.b32.xlu0 %v2140, 32
    %v2143 = vpop.permute.xlu0 %2142
    %v2144 = vsel %vm978, %v2143, 0
    %2146 = vmatprep.subr.mxu0 0.0
    %2147 = vmatpush1.msra.mxu0 %v942
    %2148 = vmatprep.subr.mxu0 0.0
    %2149 = vmatpush1.msra.mxu0 %v943
    %2150 = vmatprep.subr.mxu0 0.0
    %2151 = vmatpush1.msra.mxu0 %v944
    %2152 = vmatprep.subr.mxu0 0.0
    %2153 = vmatpush1.msra.mxu0 %v945
    %2154 = vmatprep.subr.mxu0 0.0
    %2155 = vmatpush1.msra.mxu0 0.0
    %2156 = vmatprep.subr.mxu0 0.0
    %2157 = vmatpush1.msra.mxu0 0.0
    %2158 = vmatprep.subr.mxu0 0.0
    %2159 = vmatpush1.msra.mxu0 0.0
    %2160 = vmatprep.subr.mxu0 0.0
    %2161 = vmatpush1.msra.mxu0 0.0
    %2162 = vmatprep.subr.mxu0 0.0
    %2163 = vmatpush1.msra.mxu0 0.0
    %2164 = vmatprep.subr.mxu0 0.0
    %2165 = vmatpush1.msra.mxu0 0.0
    %2166 = vmatprep.subr.mxu0 0.0
    %2167 = vmatpush1.msra.mxu0 0.0
    %2168 = vmatprep.subr.mxu0 0.0
    %2169 = vmatpush1.msra.mxu0 0.0
    %2170 = vmatprep.subr.mxu0 0.0
    %2171 = vmatpush1.msra.mxu0 0.0
    %2172 = vmatprep.subr.mxu0 0.0
    %2173 = vmatpush1.msra.mxu0 0.0
    %2174 = vmatprep.subr.mxu0 0.0
    %2175 = vmatpush1.msra.mxu0 0.0
    %2176 = vmatprep.subr.mxu0 0.0
    %2177 = vmatpush1.msra.mxu0 0.0
    %2178 = vmatprep.subr.mxu0 0.0
    %2179 = vmatpush1.msra.mxu0 0.0
    %2180 = vmatprep.subr.mxu0 0.0
    %2181 = vmatpush1.msra.mxu0 0.0
    %2182 = vmatprep.subr.mxu0 0.0
    %2183 = vmatpush1.msra.mxu0 0.0
    %2184 = vmatprep.subr.mxu0 0.0
    %2185 = vmatpush1.msra.mxu0 0.0
    %2186 = vmatprep.subr.mxu0 0.0
    %2187 = vmatpush1.msra.mxu0 0.0
    %2188 = vmatprep.subr.mxu0 0.0
    %2189 = vmatpush1.msra.mxu0 0.0
    %2190 = vmatprep.subr.mxu0 0.0
    %2191 = vmatpush1.msra.mxu0 0.0
    %2192 = vmatprep.subr.mxu0 0.0
    %2193 = vmatpush1.msra.mxu0 0.0
    %2194 = vmatprep.subr.mxu0 0.0
    %2195 = vmatpush1.msra.mxu0 0.0
    %2196 = vmatprep.subr.mxu0 0.0
    %2197 = vmatpush1.msra.mxu0 0.0
    %2198 = vmatprep.subr.mxu0 0.0
    %2199 = vmatpush1.msra.mxu0 0.0
    %2200 = vmatprep.subr.mxu0 0.0
    %2201 = vmatpush1.msra.mxu0 0.0
    %2202 = vmatprep.subr.mxu0 0.0
    %2203 = vmatpush1.msra.mxu0 0.0
    %2204 = vmatprep.subr.mxu0 0.0
    %2205 = vmatpush1.msra.mxu0 0.0
    %2206 = vmatprep.subr.mxu0 0.0
    %2207 = vmatpush1.msra.mxu0 0.0
    %2208 = vmatprep.subr.mxu0 0.0
    %2209 = vmatpush1.msra.mxu0 0.0
    %2210 = vmatprep.mubr.f32.mxu0 0.0
    %2211 = vmatmul.mubr.f32.gmra.mrb[0].mxu0 %v2144
    %v2212 = vpop.f32.mrb[0].mxu0
    %v2213 = vadd.f32 %v961, %v2212
    %v2214 = vpop.f32.mrb[0].mxu0
    %2215 = vdwg.mxu0
    %v2217 = vrot.slane %v2213, 7
    %v2220 = vmul.f32 %v1444, %v2217
    %v2221 = vmul.f32 %v1445, %v2213
    %v2222 = vadd.f32 %v1442, %v2220
    %v2223 = vadd.f32 %v1443, %v2221
    %v2226 = vrot.slane %v2222, 1
    %v2227 = vsel %vm976, %v2223, %v2226
    %v2228 = vsel %vm84, %v2227, 0
    %2230 = vmatprep.subr.mxu0 0.0
    %2231 = vmatpush1.msra.mxu0 %v1461
    %2232 = vmatprep.subr.mxu0 0.0
    %2233 = vmatpush1.msra.mxu0 0.0
    %2234 = vmatprep.subr.mxu0 0.0
    %2235 = vmatpush1.msra.mxu0 0.0
    %2236 = vmatprep.subr.mxu0 0.0
    %2237 = vmatpush1.msra.mxu0 0.0
    %2238 = vmatprep.subr.mxu0 0.0
    %2239 = vmatpush1.msra.mxu0 0.0
    %2240 = vmatprep.subr.mxu0 0.0
    %2241 = vmatpush1.msra.mxu0 0.0
    %2242 = vmatprep.subr.mxu0 0.0
    %2243 = vmatpush1.msra.mxu0 0.0
    %2244 = vmatprep.subr.mxu0 0.0
    %2245 = vmatpush1.msra.mxu0 0.0
    %2246 = vmatprep.subr.mxu0 0.0
    %2247 = vmatpush1.msra.mxu0 0.0
    %2248 = vmatprep.subr.mxu0 0.0
    %2249 = vmatpush1.msra.mxu0 0.0
    %2250 = vmatprep.subr.mxu0 0.0
    %2251 = vmatpush1.msra.mxu0 0.0
    %2252 = vmatprep.subr.mxu0 0.0
    %2253 = vmatpush1.msra.mxu0 0.0
    %2254 = vmatprep.subr.mxu0 0.0
    %2255 = vmatpush1.msra.mxu0 0.0
    %2256 = vmatprep.subr.mxu0 0.0
    %2257 = vmatpush1.msra.mxu0 0.0
    %2258 = vmatprep.subr.mxu0 0.0
    %2259 = vmatpush1.msra.mxu0 0.0
    %2260 = vmatprep.subr.mxu0 0.0
    %2261 = vmatpush1.msra.mxu0 0.0
    %2262 = vmatprep.subr.mxu0 0.0
    %2263 = vmatpush1.msra.mxu0 0.0
    %2264 = vmatprep.subr.mxu0 0.0
    %2265 = vmatpush1.msra.mxu0 0.0
    %2266 = vmatprep.subr.mxu0 0.0
    %2267 = vmatpush1.msra.mxu0 0.0
    %2268 = vmatprep.subr.mxu0 0.0
    %2269 = vmatpush1.msra.mxu0 0.0
    %2270 = vmatprep.subr.mxu0 0.0
    %2271 = vmatpush1.msra.mxu0 0.0
    %2272 = vmatprep.subr.mxu0 0.0
    %2273 = vmatpush1.msra.mxu0 0.0
    %2274 = vmatprep.subr.mxu0 0.0
    %2275 = vmatpush1.msra.mxu0 0.0
    %2276 = vmatprep.subr.mxu0 0.0
    %2277 = vmatpush1.msra.mxu0 0.0
    %2278 = vmatprep.subr.mxu0 0.0
    %2279 = vmatpush1.msra.mxu0 0.0
    %2280 = vmatprep.subr.mxu0 0.0
    %2281 = vmatpush1.msra.mxu0 0.0
    %2282 = vmatprep.subr.mxu0 0.0
    %2283 = vmatpush1.msra.mxu0 0.0
    %2284 = vmatprep.subr.mxu0 0.0
    %2285 = vmatpush1.msra.mxu0 0.0
    %2286 = vmatprep.subr.mxu0 0.0
    %2287 = vmatpush1.msra.mxu0 0.0
    %2288 = vmatprep.subr.mxu0 0.0
    %2289 = vmatpush1.msra.mxu0 0.0
    %2290 = vmatprep.subr.mxu0 0.0
    %2291 = vmatpush1.msra.mxu0 0.0
    %2292 = vmatprep.subr.mxu0 0.0
    %2293 = vmatpush1.msra.mxu0 0.0
    %2294 = vmatprep.mubr.f32.mxu0 0.0
    %2295 = vmatmul.mubr.f32.gmra.mrb[0].mxu0 %v2228
    %v2296 = vpop.f32.mrb[0].mxu0
    %v2297 = vadd.f32 %v969, %v2296
    %v2298 = vpop.f32.mrb[0].mxu0
    %2299 = vdwg.mxu0
    %v2301 = vrot.slane %v2297, 7
    %v2304 = vmul.f32 %v838, %v2301
    %v2305 = vmul.f32 %v840, %v2297
    %v2306 = vmul.f32 %v1539, %v2217
    %v2307 = vmul.f32 %v1540, %v2213
    %v2308 = vadd.f32 %v2304, %v2306
    %v2309 = vadd.f32 %v2305, %v2307
    %v2310 = vmul.f32 %v1444, %v2308
    %v2311 = vmul.f32 %v1445, %v2309
    %v2312 = vadd.f32 %v1442, %v2310
    %v2313 = vadd.f32 %v1443, %v2311
    %v2314 = vrot.slane %v66, 1
    %v2315 = vsel %vm976, %v67, %v2314
    %v2317 = vsub.f32 %v2213, %v2315
    %v2318 = vand.u32 2147483647, %v2317
    %v2319 = vsub.f32 %v2297, %v2315
    %v2320 = vand.u32 2147483647, %v2319
    %v2321 = vadd.f32 %v2318, %v2320
    %v2322 = vsub.f32 %v2308, %v66
    %v2323 = vsub.f32 %v2309, %v67
    %v2324 = vand.u32 2147483647, %v2322
    %v2325 = vand.u32 2147483647, %v2323
    %v2328 = vrot.slane %v2324, 1
    %v2329 = vsel %vm976, %v2325, %v2328
    %v2331 = vadd.f32 %v2321, %v2329
    %v2332 = vrot.slane %v939, 1
    %v2333 = vsel %vm976, %v940, %v2332
    %v2335 = vmul.f32 %v2331, %v2333
    %v2336 = vadd.f32 %v1575, %v2335
    %2337 = vmatprep.subr.mxu0 0.0
    %2338 = vmatpush1.msra.mxu0 %v951
    %2339 = vmatprep.subr.mxu0 0.0
    %2340 = vmatpush1.msra.mxu0 %v952
    %2341 = vmatprep.subr.mxu0 0.0
    %2342 = vmatpush1.msra.mxu0 %v953
    %2343 = vmatprep.subr.mxu0 0.0
    %2344 = vmatpush1.msra.mxu0 %v954
    %2345 = vmatprep.subr.mxu0 0.0
    %2346 = vmatpush1.msra.mxu0 0.0
    %2347 = vmatprep.subr.mxu0 0.0
    %2348 = vmatpush1.msra.mxu0 0.0
    %2349 = vmatprep.subr.mxu0 0.0
    %2350 = vmatpush1.msra.mxu0 0.0
    %2351 = vmatprep.subr.mxu0 0.0
    %2352 = vmatpush1.msra.mxu0 0.0
    %2353 = vmatprep.subr.mxu0 0.0
    %2354 = vmatpush1.msra.mxu0 0.0
    %2355 = vmatprep.subr.mxu0 0.0
    %2356 = vmatpush1.msra.mxu0 0.0
    %2357 = vmatprep.subr.mxu0 0.0
    %2358 = vmatpush1.msra.mxu0 0.0
    %2359 = vmatprep.subr.mxu0 0.0
    %2360 = vmatpush1.msra.mxu0 0.0
    %2361 = vmatprep.subr.mxu0 0.0
    %2362 = vmatpush1.msra.mxu0 0.0
    %2363 = vmatprep.subr.mxu0 0.0
    %2364 = vmatpush1.msra.mxu0 0.0
    %2365 = vmatprep.subr.mxu0 0.0
    %2366 = vmatpush1.msra.mxu0 0.0
    %2367 = vmatprep.subr.mxu0 0.0
    %2368 = vmatpush1.msra.mxu0 0.0
    %2369 = vmatprep.subr.mxu0 0.0
    %2370 = vmatpush1.msra.mxu0 0.0
    %2371 = vmatprep.subr.mxu0 0.0
    %2372 = vmatpush1.msra.mxu0 0.0
    %2373 = vmatprep.subr.mxu0 0.0
    %2374 = vmatpush1.msra.mxu0 0.0
    %2375 = vmatprep.subr.mxu0 0.0
    %2376 = vmatpush1.msra.mxu0 0.0
    %2377 = vmatprep.subr.mxu0 0.0
    %2378 = vmatpush1.msra.mxu0 0.0
    %2379 = vmatprep.subr.mxu0 0.0
    %2380 = vmatpush1.msra.mxu0 0.0
    %2381 = vmatprep.subr.mxu0 0.0
    %2382 = vmatpush1.msra.mxu0 0.0
    %2383 = vmatprep.subr.mxu0 0.0
    %2384 = vmatpush1.msra.mxu0 0.0
    %2385 = vmatprep.subr.mxu0 0.0
    %2386 = vmatpush1.msra.mxu0 0.0
    %2387 = vmatprep.subr.mxu0 0.0
    %2388 = vmatpush1.msra.mxu0 0.0
    %2389 = vmatprep.subr.mxu0 0.0
    %2390 = vmatpush1.msra.mxu0 0.0
    %2391 = vmatprep.subr.mxu0 0.0
    %2392 = vmatpush1.msra.mxu0 0.0
    %2393 = vmatprep.subr.mxu0 0.0
    %2394 = vmatpush1.msra.mxu0 0.0
    %2395 = vmatprep.subr.mxu0 0.0
    %2396 = vmatpush1.msra.mxu0 0.0
    %2397 = vmatprep.subr.mxu0 0.0
    %2398 = vmatpush1.msra.mxu0 0.0
    %2399 = vmatprep.subr.mxu0 0.0
    %2400 = vmatpush1.msra.mxu0 0.0
    %2401 = vmatprep.mubr.f32.mxu0 0.0
    %2402 = vmatmul.mubr.f32.gmra.mrb[0].mxu0 %v2144
    %v2403 = vpop.f32.mrb[0].mxu0
    %v2404 = vadd.f32 0.0, %v2403
    %v2405 = vpop.f32.mrb[0].mxu0
    %2406 = vdwg.mxu0
    %v2409 = vrot.slane %v2312, 1
    %v2410 = vsel %vm976, %v2313, %v2409
    %v2411 = vsel %vm84, %v2410, 0
    %2413 = vmatprep.subr.mxu0 0.0
    %2414 = vmatpush1.msra.mxu0 %v1653
    %2415 = vmatprep.subr.mxu0 0.0
    %2416 = vmatpush1.msra.mxu0 0.0
    %2417 = vmatprep.subr.mxu0 0.0
    %2418 = vmatpush1.msra.mxu0 0.0
    %2419 = vmatprep.subr.mxu0 0.0
    %2420 = vmatpush1.msra.mxu0 0.0
    %2421 = vmatprep.subr.mxu0 0.0
    %2422 = vmatpush1.msra.mxu0 0.0
    %2423 = vmatprep.subr.mxu0 0.0
    %2424 = vmatpush1.msra.mxu0 0.0
    %2425 = vmatprep.subr.mxu0 0.0
    %2426 = vmatpush1.msra.mxu0 0.0
    %2427 = vmatprep.subr.mxu0 0.0
    %2428 = vmatpush1.msra.mxu0 0.0
    %2429 = vmatprep.subr.mxu0 0.0
    %2430 = vmatpush1.msra.mxu0 0.0
    %2431 = vmatprep.subr.mxu0 0.0
    %2432 = vmatpush1.msra.mxu0 0.0
    %2433 = vmatprep.subr.mxu0 0.0
    %2434 = vmatpush1.msra.mxu0 0.0
    %2435 = vmatprep.subr.mxu0 0.0
    %2436 = vmatpush1.msra.mxu0 0.0
    %2437 = vmatprep.subr.mxu0 0.0
    %2438 = vmatpush1.msra.mxu0 0.0
    %2439 = vmatprep.subr.mxu0 0.0
    %2440 = vmatpush1.msra.mxu0 0.0
    %2441 = vmatprep.subr.mxu0 0.0
    %2442 = vmatpush1.msra.mxu0 0.0
    %2443 = vmatprep.subr.mxu0 0.0
    %2444 = vmatpush1.msra.mxu0 0.0
    %2445 = vmatprep.subr.mxu0 0.0
    %2446 = vmatpush1.msra.mxu0 0.0
    %2447 = vmatprep.subr.mxu0 0.0
    %2448 = vmatpush1.msra.mxu0 0.0
    %2449 = vmatprep.subr.mxu0 0.0
    %2450 = vmatpush1.msra.mxu0 0.0
    %2451 = vmatprep.subr.mxu0 0.0
    %2452 = vmatpush1.msra.mxu0 0.0
    %2453 = vmatprep.subr.mxu0 0.0
    %2454 = vmatpush1.msra.mxu0 0.0
    %2455 = vmatprep.subr.mxu0 0.0
    %2456 = vmatpush1.msra.mxu0 0.0
    %2457 = vmatprep.subr.mxu0 0.0
    %2458 = vmatpush1.msra.mxu0 0.0
    %2459 = vmatprep.subr.mxu0 0.0
    %2460 = vmatpush1.msra.mxu0 0.0
    %2461 = vmatprep.subr.mxu0 0.0
    %2462 = vmatpush1.msra.mxu0 0.0
    %2463 = vmatprep.subr.mxu0 0.0
    %2464 = vmatpush1.msra.mxu0 0.0
    %2465 = vmatprep.subr.mxu0 0.0
    %2466 = vmatpush1.msra.mxu0 0.0
    %2467 = vmatprep.subr.mxu0 0.0
    %2468 = vmatpush1.msra.mxu0 0.0
    %2469 = vmatprep.subr.mxu0 0.0
    %2470 = vmatpush1.msra.mxu0 0.0
    %2471 = vmatprep.subr.mxu0 0.0
    %2472 = vmatpush1.msra.mxu0 0.0
    %2473 = vmatprep.subr.mxu0 0.0
    %2474 = vmatpush1.msra.mxu0 0.0
    %2475 = vmatprep.subr.mxu0 0.0
    %2476 = vmatpush1.msra.mxu0 0.0
    %2477 = vmatprep.mubr.f32.mxu0 0.0
    %2478 = vmatmul.mubr.f32.gmra.mrb[0].mxu0 %v2411
    %v2479 = vpop.f32.mrb[0].mxu0
    %v2480 = vadd.f32 %v2404, %v2479
    %v2481 = vpop.f32.mrb[0].mxu0
    %2482 = vdwg.mxu0
    %v2483 = vrot.slane %v921, 1
    %v2484 = vsel %vm976, %v926, %v2483
    %v2486 = vadd.f32 %v2480, %v2484
    %v2487 = vsub.f32 0.0, %v2486
    %v2488 = vmul.f32 %v2487, 1.442695
    %v2489 = vpow.pop %v2488
    %v2490 = vadd.f32 %v2489, 1.0
    %v2491 = vrcp.pop %v2490
    %v2492 = vmul.f32 1.0, %v2491
    %v2493 = vtanh.pop %v2486
    %v2494 = vmul.f32 %v2492, %v1748
    %2496 = vrot.lane.b32.xlu0 %v2493, 64
    %v2497 = vpop.permute.xlu0 %2496
    %v2499 = vmul.f32 %v2492, %v2497
    %2501 = vrot.lane.b32.xlu0 %v2499, 32
    %v2502 = vpop.permute.xlu0 %2501
    %v2504 = vadd.f32 %v2494, %v2502
    %v2505 = vtanh.pop %v2504
    %2507 = vrot.lane.b32.xlu0 %v2505, 64
    %v2508 = vpop.permute.xlu0 %2507
    %v2510 = vmul.f32 %v2492, %v2508
    %v2511 = vrot.slane %v175, 2
    %v2512 = vrot.slane %v177, 1
    %v2513 = vsel %vm976, %v2512, %v2511
    %2514 = vrot.lane.b32.xlu0 %v2513, 96
    %v2515 = vpop.permute.xlu0 %2514
    %v2517 = vmul.f32 %v2132, %v2515
    %2519 = vrot.lane.b32.xlu0 %v2517, 32
    %v2520 = vpop.permute.xlu0 %2519
    %v2521 = vsel %vm978, %v2520, 0
    %2523 = vmatprep.subr.mxu0 0.0
    %2524 = vmatpush1.msra.mxu0 %v493
    %2525 = vmatprep.subr.mxu0 0.0
    %2526 = vmatpush1.msra.mxu0 %v494
    %2527 = vmatprep.subr.mxu0 0.0
    %2528 = vmatpush1.msra.mxu0 %v495
    %2529 = vmatprep.subr.mxu0 0.0
    %2530 = vmatpush1.msra.mxu0 %v496
    %2531 = vmatprep.subr.mxu0 0.0
    %2532 = vmatpush1.msra.mxu0 0.0
    %2533 = vmatprep.subr.mxu0 0.0
    %2534 = vmatpush1.msra.mxu0 0.0
    %2535 = vmatprep.subr.mxu0 0.0
    %2536 = vmatpush1.msra.mxu0 0.0
    %2537 = vmatprep.subr.mxu0 0.0
    %2538 = vmatpush1.msra.mxu0 0.0
    %2539 = vmatprep.subr.mxu0 0.0
    %2540 = vmatpush1.msra.mxu0 0.0
    %2541 = vmatprep.subr.mxu0 0.0
    %2542 = vmatpush1.msra.mxu0 0.0
    %2543 = vmatprep.subr.mxu0 0.0
    %2544 = vmatpush1.msra.mxu0 0.0
    %2545 = vmatprep.subr.mxu0 0.0
    %2546 = vmatpush1.msra.mxu0 0.0
    %2547 = vmatprep.subr.mxu0 0.0
    %2548 = vmatpush1.msra.mxu0 0.0
    %2549 = vmatprep.subr.mxu0 0.0
    %2550 = vmatpush1.msra.mxu0 0.0
    %2551 = vmatprep.subr.mxu0 0.0
    %2552 = vmatpush1.msra.mxu0 0.0
    %2553 = vmatprep.subr.mxu0 0.0
    %2554 = vmatpush1.msra.mxu0 0.0
    %2555 = vmatprep.subr.mxu0 0.0
    %2556 = vmatpush1.msra.mxu0 0.0
    %2557 = vmatprep.subr.mxu0 0.0
    %2558 = vmatpush1.msra.mxu0 0.0
    %2559 = vmatprep.subr.mxu0 0.0
    %2560 = vmatpush1.msra.mxu0 0.0
    %2561 = vmatprep.subr.mxu0 0.0
    %2562 = vmatpush1.msra.mxu0 0.0
    %2563 = vmatprep.subr.mxu0 0.0
    %2564 = vmatpush1.msra.mxu0 0.0
    %2565 = vmatprep.subr.mxu0 0.0
    %2566 = vmatpush1.msra.mxu0 0.0
    %2567 = vmatprep.subr.mxu0 0.0
    %2568 = vmatpush1.msra.mxu0 0.0
    %2569 = vmatprep.subr.mxu0 0.0
    %2570 = vmatpush1.msra.mxu0 0.0
    %2571 = vmatprep.subr.mxu0 0.0
    %2572 = vmatpush1.msra.mxu0 0.0
    %2573 = vmatprep.subr.mxu0 0.0
    %2574 = vmatpush1.msra.mxu0 0.0
    %2575 = vmatprep.subr.mxu0 0.0
    %2576 = vmatpush1.msra.mxu0 0.0
    %2577 = vmatprep.subr.mxu0 0.0
    %2578 = vmatpush1.msra.mxu0 0.0
    %2579 = vmatprep.subr.mxu0 0.0
    %2580 = vmatpush1.msra.mxu0 0.0
    %2581 = vmatprep.subr.mxu0 0.0
    %2582 = vmatpush1.msra.mxu0 0.0
    %2583 = vmatprep.subr.mxu0 0.0
    %2584 = vmatpush1.msra.mxu0 0.0
    %2585 = vmatprep.subr.mxu0 0.0
    %2586 = vmatpush1.msra.mxu0 0.0
    %2587 = vmatprep.mubr.f32.mxu0 0.0
    %2588 = vmatmul.mubr.f32.gmra.mrb[0].mxu0 %v2521
    %v2589 = vpop.f32.mrb[0].mxu0
    %v2590 = vadd.f32 %v508, %v2589
    %v2591 = vpop.f32.mrb[0].mxu0
    %2592 = vdwg.mxu0
    %v2594 = vrot.slane %v2590, 6
    %v2595 = vrot.slane %v2590, 7
    %v2598 = vmul.f32 %v1053, %v2594
    %v2599 = vmul.f32 %v1054, %v2595
    %v2600 = vadd.f32 %v1051, %v2598
    %v2601 = vadd.f32 %v1052, %v2599
    %v2604 = vrot.slane %v2600, 2
    %v2605 = vrot.slane %v2601, 1
    %v2606 = vsel %vm976, %v2605, %v2604
    %v2607 = vsel %vm84, %v2606, 0
    %2609 = vmatprep.subr.mxu0 0.0
    %2610 = vmatpush1.msra.mxu0 %v1070
    %2611 = vmatprep.subr.mxu0 0.0
    %2612 = vmatpush1.msra.mxu0 0.0
    %2613 = vmatprep.subr.mxu0 0.0
    %2614 = vmatpush1.msra.mxu0 0.0
    %2615 = vmatprep.subr.mxu0 0.0
    %2616 = vmatpush1.msra.mxu0 0.0
    %2617 = vmatprep.subr.mxu0 0.0
    %2618 = vmatpush1.msra.mxu0 0.0
    %2619 = vmatprep.subr.mxu0 0.0
    %2620 = vmatpush1.msra.mxu0 0.0
    %2621 = vmatprep.subr.mxu0 0.0
    %2622 = vmatpush1.msra.mxu0 0.0
    %2623 = vmatprep.subr.mxu0 0.0
    %2624 = vmatpush1.msra.mxu0 0.0
    %2625 = vmatprep.subr.mxu0 0.0
    %2626 = vmatpush1.msra.mxu0 0.0
    %2627 = vmatprep.subr.mxu0 0.0
    %2628 = vmatpush1.msra.mxu0 0.0
    %2629 = vmatprep.subr.mxu0 0.0
    %2630 = vmatpush1.msra.mxu0 0.0
    %2631 = vmatprep.subr.mxu0 0.0
    %2632 = vmatpush1.msra.mxu0 0.0
    %2633 = vmatprep.subr.mxu0 0.0
    %2634 = vmatpush1.msra.mxu0 0.0
    %2635 = vmatprep.subr.mxu0 0.0
    %2636 = vmatpush1.msra.mxu0 0.0
    %2637 = vmatprep.subr.mxu0 0.0
    %2638 = vmatpush1.msra.mxu0 0.0
    %2639 = vmatprep.subr.mxu0 0.0
    %2640 = vmatpush1.msra.mxu0 0.0
    %2641 = vmatprep.subr.mxu0 0.0
    %2642 = vmatpush1.msra.mxu0 0.0
    %2643 = vmatprep.subr.mxu0 0.0
    %2644 = vmatpush1.msra.mxu0 0.0
    %2645 = vmatprep.subr.mxu0 0.0
    %2646 = vmatpush1.msra.mxu0 0.0
    %2647 = vmatprep.subr.mxu0 0.0
    %2648 = vmatpush1.msra.mxu0 0.0
    %2649 = vmatprep.subr.mxu0 0.0
    %2650 = vmatpush1.msra.mxu0 0.0
    %2651 = vmatprep.subr.mxu0 0.0
    %2652 = vmatpush1.msra.mxu0 0.0
    %2653 = vmatprep.subr.mxu0 0.0
    %2654 = vmatpush1.msra.mxu0 0.0
    %2655 = vmatprep.subr.mxu0 0.0
    %2656 = vmatpush1.msra.mxu0 0.0
    %2657 = vmatprep.subr.mxu0 0.0
    %2658 = vmatpush1.msra.mxu0 0.0
    %2659 = vmatprep.subr.mxu0 0.0
    %2660 = vmatpush1.msra.mxu0 0.0
    %2661 = vmatprep.subr.mxu0 0.0
    %2662 = vmatpush1.msra.mxu0 0.0
    %2663 = vmatprep.subr.mxu0 0.0
    %2664 = vmatpush1.msra.mxu0 0.0
    %2665 = vmatprep.subr.mxu0 0.0
    %2666 = vmatpush1.msra.mxu0 0.0
    %2667 = vmatprep.subr.mxu0 0.0
    %2668 = vmatpush1.msra.mxu0 0.0
    %2669 = vmatprep.subr.mxu0 0.0
    %2670 = vmatpush1.msra.mxu0 0.0
    %2671 = vmatprep.subr.mxu0 0.0
    %2672 = vmatpush1.msra.mxu0 0.0
    %2673 = vmatprep.mubr.f32.mxu0 0.0
    %2674 = vmatmul.mubr.f32.gmra.mrb[0].mxu0 %v2607
    %v2675 = vpop.f32.mrb[0].mxu0
    %v2676 = vadd.f32 %v515, %v2675
    %v2677 = vpop.f32.mrb[0].mxu0
    %2678 = vdwg.mxu0
    %v2680 = vrot.slane %v2676, 6
    %v2681 = vrot.slane %v2676, 7
    %v2684 = vmul.f32 %v392, %v2680
    %v2685 = vmul.f32 %v394, %v2681
    %v2686 = vmul.f32 %v1148, %v2594
    %v2687 = vmul.f32 %v1149, %v2595
    %v2688 = vadd.f32 %v2684, %v2686
    %v2689 = vadd.f32 %v2685, %v2687
    %v2690 = vmul.f32 %v1053, %v2688
    %v2691 = vmul.f32 %v1054, %v2689
    %v2692 = vadd.f32 %v1051, %v2690
    %v2693 = vadd.f32 %v1052, %v2691
    %v2694 = vrot.slane %v64, 2
    %v2695 = vrot.slane %v65, 1
    %v2696 = vsel %vm976, %v2695, %v2694
    %v2698 = vsub.f32 %v2590, %v2696
    %v2699 = vand.u32 2147483647, %v2698
    %v2700 = vsub.f32 %v2676, %v2696
    %v2701 = vand.u32 2147483647, %v2700
    %v2702 = vadd.f32 %v2699, %v2701
    %v2703 = vsub.f32 %v2688, %v64
    %v2704 = vsub.f32 %v2689, %v65
    %v2705 = vand.u32 2147483647, %v2703
    %v2706 = vand.u32 2147483647, %v2704
    %v2709 = vrot.slane %v2705, 2
    %v2710 = vrot.slane %v2706, 1
    %v2711 = vsel %vm976, %v2710, %v2709
    %v2713 = vadd.f32 %v2702, %v2711
    %v2714 = vrot.slane %v491, 2
    %v2715 = vrot.slane %v492, 1
    %v2716 = vsel %vm976, %v2715, %v2714
    %v2718 = vmul.f32 %v2713, %v2716
    %v2719 = vadd.f32 %v1958, %v2718
    %2720 = vmatprep.subr.mxu0 0.0
    %2721 = vmatpush1.msra.mxu0 %v499
    %2722 = vmatprep.subr.mxu0 0.0
    %2723 = vmatpush1.msra.mxu0 %v500
    %2724 = vmatprep.subr.mxu0 0.0
    %2725 = vmatpush1.msra.mxu0 %v501
    %2726 = vmatprep.subr.mxu0 0.0
    %2727 = vmatpush1.msra.mxu0 %v502
    %2728 = vmatprep.subr.mxu0 0.0
    %2729 = vmatpush1.msra.mxu0 0.0
    %2730 = vmatprep.subr.mxu0 0.0
    %2731 = vmatpush1.msra.mxu0 0.0
    %2732 = vmatprep.subr.mxu0 0.0
    %2733 = vmatpush1.msra.mxu0 0.0
    %2734 = vmatprep.subr.mxu0 0.0
    %2735 = vmatpush1.msra.mxu0 0.0
    %2736 = vmatprep.subr.mxu0 0.0
    %2737 = vmatpush1.msra.mxu0 0.0
    %2738 = vmatprep.subr.mxu0 0.0
    %2739 = vmatpush1.msra.mxu0 0.0
    %2740 = vmatprep.subr.mxu0 0.0
    %2741 = vmatpush1.msra.mxu0 0.0
    %2742 = vmatprep.subr.mxu0 0.0
    %2743 = vmatpush1.msra.mxu0 0.0
    %2744 = vmatprep.subr.mxu0 0.0
    %2745 = vmatpush1.msra.mxu0 0.0
    %2746 = vmatprep.subr.mxu0 0.0
    %2747 = vmatpush1.msra.mxu0 0.0
    %2748 = vmatprep.subr.mxu0 0.0
    %2749 = vmatpush1.msra.mxu0 0.0
    %2750 = vmatprep.subr.mxu0 0.0
    %2751 = vmatpush1.msra.mxu0 0.0
    %2752 = vmatprep.subr.mxu0 0.0
    %2753 = vmatpush1.msra.mxu0 0.0
    %2754 = vmatprep.subr.mxu0 0.0
    %2755 = vmatpush1.msra.mxu0 0.0
    %2756 = vmatprep.subr.mxu0 0.0
    %2757 = vmatpush1.msra.mxu0 0.0
    %2758 = vmatprep.subr.mxu0 0.0
    %2759 = vmatpush1.msra.mxu0 0.0
    %2760 = vmatprep.subr.mxu0 0.0
    %2761 = vmatpush1.msra.mxu0 0.0
    %2762 = vmatprep.subr.mxu0 0.0
    %2763 = vmatpush1.msra.mxu0 0.0
    %2764 = vmatprep.subr.mxu0 0.0
    %2765 = vmatpush1.msra.mxu0 0.0
    %2766 = vmatprep.subr.mxu0 0.0
    %2767 = vmatpush1.msra.mxu0 0.0
    %2768 = vmatprep.subr.mxu0 0.0
    %2769 = vmatpush1.msra.mxu0 0.0
    %2770 = vmatprep.subr.mxu0 0.0
    %2771 = vmatpush1.msra.mxu0 0.0
    %2772 = vmatprep.subr.mxu0 0.0
    %2773 = vmatpush1.msra.mxu0 0.0
    %2774 = vmatprep.subr.mxu0 0.0
    %2775 = vmatpush1.msra.mxu0 0.0
    %2776 = vmatprep.subr.mxu0 0.0
    %2777 = vmatpush1.msra.mxu0 0.0
    %2778 = vmatprep.subr.mxu0 0.0
    %2779 = vmatpush1.msra.mxu0 0.0
    %2780 = vmatprep.subr.mxu0 0.0
    %2781 = vmatpush1.msra.mxu0 0.0
    %2782 = vmatprep.subr.mxu0 0.0
    %2783 = vmatpush1.msra.mxu0 0.0
    %2784 = vmatprep.mubr.f32.mxu0 0.0
    %2785 = vmatmul.mubr.f32.gmra.mrb[0].mxu0 %v2521
    %v2786 = vpop.f32.mrb[0].mxu0
    %v2787 = vadd.f32 0.0, %v2786
    %v2788 = vpop.f32.mrb[0].mxu0
    %2789 = vdwg.mxu0
    %v2792 = vrot.slane %v2692, 2
    %v2793 = vrot.slane %v2693, 1
    %v2794 = vsel %vm976, %v2793, %v2792
    %v2795 = vsel %vm84, %v2794, 0
    %2797 = vmatprep.subr.mxu0 0.0
    %2798 = vmatpush1.msra.mxu0 %v1262
    %2799 = vmatprep.subr.mxu0 0.0
    %2800 = vmatpush1.msra.mxu0 0.0
    %2801 = vmatprep.subr.mxu0 0.0
    %2802 = vmatpush1.msra.mxu0 0.0
    %2803 = vmatprep.subr.mxu0 0.0
    %2804 = vmatpush1.msra.mxu0 0.0
    %2805 = vmatprep.subr.mxu0 0.0
    %2806 = vmatpush1.msra.mxu0 0.0
    %2807 = vmatprep.subr.mxu0 0.0
    %2808 = vmatpush1.msra.mxu0 0.0
    %2809 = vmatprep.subr.mxu0 0.0
    %2810 = vmatpush1.msra.mxu0 0.0
    %2811 = vmatprep.subr.mxu0 0.0
    %2812 = vmatpush1.msra.mxu0 0.0
    %2813 = vmatprep.subr.mxu0 0.0
    %2814 = vmatpush1.msra.mxu0 0.0
    %2815 = vmatprep.subr.mxu0 0.0
    %2816 = vmatpush1.msra.mxu0 0.0
    %2817 = vmatprep.subr.mxu0 0.0
    %2818 = vmatpush1.msra.mxu0 0.0
    %2819 = vmatprep.subr.mxu0 0.0
    %2820 = vmatpush1.msra.mxu0 0.0
    %2821 = vmatprep.subr.mxu0 0.0
    %2822 = vmatpush1.msra.mxu0 0.0
    %2823 = vmatprep.subr.mxu0 0.0
    %2824 = vmatpush1.msra.mxu0 0.0
    %2825 = vmatprep.subr.mxu0 0.0
    %2826 = vmatpush1.msra.mxu0 0.0
    %2827 = vmatprep.subr.mxu0 0.0
    %2828 = vmatpush1.msra.mxu0 0.0
    %2829 = vmatprep.subr.mxu0 0.0
    %2830 = vmatpush1.msra.mxu0 0.0
    %2831 = vmatprep.subr.mxu0 0.0
    %2832 = vmatpush1.msra.mxu0 0.0
    %2833 = vmatprep.subr.mxu0 0.0
    %2834 = vmatpush1.msra.mxu0 0.0
    %2835 = vmatprep.subr.mxu0 0.0
    %2836 = vmatpush1.msra.mxu0 0.0
    %2837 = vmatprep.subr.mxu0 0.0
    %2838 = vmatpush1.msra.mxu0 0.0
    %2839 = vmatprep.subr.mxu0 0.0
    %2840 = vmatpush1.msra.mxu0 0.0
    %2841 = vmatprep.subr.mxu0 0.0
    %2842 = vmatpush1.msra.mxu0 0.0
    %2843 = vmatprep.subr.mxu0 0.0
    %2844 = vmatpush1.msra.mxu0 0.0
    %2845 = vmatprep.subr.mxu0 0.0
    %2846 = vmatpush1.msra.mxu0 0.0
    %2847 = vmatprep.subr.mxu0 0.0
    %2848 = vmatpush1.msra.mxu0 0.0
    %2849 = vmatprep.subr.mxu0 0.0
    %2850 = vmatpush1.msra.mxu0 0.0
    %2851 = vmatprep.subr.mxu0 0.0
    %2852 = vmatpush1.msra.mxu0 0.0
    %2853 = vmatprep.subr.mxu0 0.0
    %2854 = vmatpush1.msra.mxu0 0.0
    %2855 = vmatprep.subr.mxu0 0.0
    %2856 = vmatpush1.msra.mxu0 0.0
    %2857 = vmatprep.subr.mxu0 0.0
    %2858 = vmatpush1.msra.mxu0 0.0
    %2859 = vmatprep.subr.mxu0 0.0
    %2860 = vmatpush1.msra.mxu0 0.0
    %2861 = vmatprep.mubr.f32.mxu0 0.0
    %2862 = vmatmul.mubr.f32.gmra.mrb[0].mxu0 %v2795
    %v2863 = vpop.f32.mrb[0].mxu0
    %v2864 = vadd.f32 %v2787, %v2863
    %v2865 = vpop.f32.mrb[0].mxu0
    %2866 = vdwg.mxu0
    %v2867 = vrot.slane %v473, 2
    %v2868 = vrot.slane %v478, 1
    %v2869 = vsel %vm976, %v2868, %v2867
    %v2871 = vadd.f32 %v2864, %v2869
    %v2872 = vsub.f32 0.0, %v2871
    %v2873 = vmul.f32 %v2872, 1.442695
    %v2874 = vpow.pop %v2873
    %v2875 = vadd.f32 %v2874, 1.0
    %v2876 = vrcp.pop %v2875
    %v2877 = vmul.f32 1.0, %v2876
    %v2878 = vtanh.pop %v2871
    %v2879 = vmul.f32 %v2877, %v2126
    %2881 = vrot.lane.b32.xlu0 %v2878, 64
    %v2882 = vpop.permute.xlu0 %2881
    %v2884 = vmul.f32 %v2877, %v2882
    %2886 = vrot.lane.b32.xlu0 %v2884, 32
    %v2887 = vpop.permute.xlu0 %2886
    %v2889 = vadd.f32 %v2879, %v2887
    %v2890 = vtanh.pop %v2889
    %2892 = vrot.lane.b32.xlu0 %v2890, 64
    %v2893 = vpop.permute.xlu0 %2892
    %v2895 = vmul.f32 %v2877, %v2893
    %v2896 = vrot.slane %v616, 2
    %v2897 = vrot.slane %v618, 1
    %v2898 = vsel %vm976, %v2897, %v2896
    %2899 = vrot.lane.b32.xlu0 %v2898, 96
    %v2900 = vpop.permute.xlu0 %2899
    %v2902 = vmul.f32 %v2510, %v2900
    %2904 = vrot.lane.b32.xlu0 %v2902, 32
    %v2905 = vpop.permute.xlu0 %2904
    %v2906 = vsel %vm978, %v2905, 0
    %2908 = vmatprep.subr.mxu0 0.0
    %2909 = vmatpush1.msra.mxu0 %v942
    %2910 = vmatprep.subr.mxu0 0.0
    %2911 = vmatpush1.msra.mxu0 %v943
    %2912 = vmatprep.subr.mxu0 0.0
    %2913 = vmatpush1.msra.mxu0 %v944
    %2914 = vmatprep.subr.mxu0 0.0
    %2915 = vmatpush1.msra.mxu0 %v945
    %2916 = vmatprep.subr.mxu0 0.0
    %2917 = vmatpush1.msra.mxu0 0.0
    %2918 = vmatprep.subr.mxu0 0.0
    %2919 = vmatpush1.msra.mxu0 0.0
    %2920 = vmatprep.subr.mxu0 0.0
    %2921 = vmatpush1.msra.mxu0 0.0
    %2922 = vmatprep.subr.mxu0 0.0
    %2923 = vmatpush1.msra.mxu0 0.0
    %2924 = vmatprep.subr.mxu0 0.0
    %2925 = vmatpush1.msra.mxu0 0.0
    %2926 = vmatprep.subr.mxu0 0.0
    %2927 = vmatpush1.msra.mxu0 0.0
    %2928 = vmatprep.subr.mxu0 0.0
    %2929 = vmatpush1.msra.mxu0 0.0
    %2930 = vmatprep.subr.mxu0 0.0
    %2931 = vmatpush1.msra.mxu0 0.0
    %2932 = vmatprep.subr.mxu0 0.0
    %2933 = vmatpush1.msra.mxu0 0.0
    %2934 = vmatprep.subr.mxu0 0.0
    %2935 = vmatpush1.msra.mxu0 0.0
    %2936 = vmatprep.subr.mxu0 0.0
    %2937 = vmatpush1.msra.mxu0 0.0
    %2938 = vmatprep.subr.mxu0 0.0
    %2939 = vmatpush1.msra.mxu0 0.0
    %2940 = vmatprep.subr.mxu0 0.0
    %2941 = vmatpush1.msra.mxu0 0.0
    %2942 = vmatprep.subr.mxu0 0.0
    %2943 = vmatpush1.msra.mxu0 0.0
    %2944 = vmatprep.subr.mxu0 0.0
    %2945 = vmatpush1.msra.mxu0 0.0
    %2946 = vmatprep.subr.mxu0 0.0
    %2947 = vmatpush1.msra.mxu0 0.0
    %2948 = vmatprep.subr.mxu0 0.0
    %2949 = vmatpush1.msra.mxu0 0.0
    %2950 = vmatprep.subr.mxu0 0.0
    %2951 = vmatpush1.msra.mxu0 0.0
    %2952 = vmatprep.subr.mxu0 0.0
    %2953 = vmatpush1.msra.mxu0 0.0
    %2954 = vmatprep.subr.mxu0 0.0
    %2955 = vmatpush1.msra.mxu0 0.0
    %2956 = vmatprep.subr.mxu0 0.0
    %2957 = vmatpush1.msra.mxu0 0.0
    %2958 = vmatprep.subr.mxu0 0.0
    %2959 = vmatpush1.msra.mxu0 0.0
    %2960 = vmatprep.subr.mxu0 0.0
    %2961 = vmatpush1.msra.mxu0 0.0
    %2962 = vmatprep.subr.mxu0 0.0
    %2963 = vmatpush1.msra.mxu0 0.0
    %2964 = vmatprep.subr.mxu0 0.0
    %2965 = vmatpush1.msra.mxu0 0.0
    %2966 = vmatprep.subr.mxu0 0.0
    %2967 = vmatpush1.msra.mxu0 0.0
    %2968 = vmatprep.subr.mxu0 0.0
    %2969 = vmatpush1.msra.mxu0 0.0
    %2970 = vmatprep.subr.mxu0 0.0
    %2971 = vmatpush1.msra.mxu0 0.0
    %2972 = vmatprep.mubr.f32.mxu0 0.0
    %2973 = vmatmul.mubr.f32.gmra.mrb[0].mxu0 %v2906
    %v2974 = vpop.f32.mrb[0].mxu0
    %v2975 = vadd.f32 %v961, %v2974
    %v2976 = vpop.f32.mrb[0].mxu0
    %2977 = vdwg.mxu0
    %v2979 = vrot.slane %v2975, 6
    %v2980 = vrot.slane %v2975, 7
    %v2983 = vmul.f32 %v1444, %v2979
    %v2984 = vmul.f32 %v1445, %v2980
    %v2985 = vadd.f32 %v1442, %v2983
    %v2986 = vadd.f32 %v1443, %v2984
    %v2989 = vrot.slane %v2985, 2
    %v2990 = vrot.slane %v2986, 1
    %v2991 = vsel %vm976, %v2990, %v2989
    %v2992 = vsel %vm84, %v2991, 0
    %2994 = vmatprep.subr.mxu0 0.0
    %2995 = vmatpush1.msra.mxu0 %v1461
    %2996 = vmatprep.subr.mxu0 0.0
    %2997 = vmatpush1.msra.mxu0 0.0
    %2998 = vmatprep.subr.mxu0 0.0
    %2999 = vmatpush1.msra.mxu0 0.0
    %3000 = vmatprep.subr.mxu0 0.0
    %3001 = vmatpush1.msra.mxu0 0.0
    %3002 = vmatprep.subr.mxu0 0.0
    %3003 = vmatpush1.msra.mxu0 0.0
    %3004 = vmatprep.subr.mxu0 0.0
    %3005 = vmatpush1.msra.mxu0 0.0
    %3006 = vmatprep.subr.mxu0 0.0
    %3007 = vmatpush1.msra.mxu0 0.0
    %3008 = vmatprep.subr.mxu0 0.0
    %3009 = vmatpush1.msra.mxu0 0.0
    %3010 = vmatprep.subr.mxu0 0.0
    %3011 = vmatpush1.msra.mxu0 0.0
    %3012 = vmatprep.subr.mxu0 0.0
    %3013 = vmatpush1.msra.mxu0 0.0
    %3014 = vmatprep.subr.mxu0 0.0
    %3015 = vmatpush1.msra.mxu0 0.0
    %3016 = vmatprep.subr.mxu0 0.0
    %3017 = vmatpush1.msra.mxu0 0.0
    %3018 = vmatprep.subr.mxu0 0.0
    %3019 = vmatpush1.msra.mxu0 0.0
    %3020 = vmatprep.subr.mxu0 0.0
    %3021 = vmatpush1.msra.mxu0 0.0
    %3022 = vmatprep.subr.mxu0 0.0
    %3023 = vmatpush1.msra.mxu0 0.0
    %3024 = vmatprep.subr.mxu0 0.0
    %3025 = vmatpush1.msra.mxu0 0.0
    %3026 = vmatprep.subr.mxu0 0.0
    %3027 = vmatpush1.msra.mxu0 0.0
    %3028 = vmatprep.subr.mxu0 0.0
    %3029 = vmatpush1.msra.mxu0 0.0
    %3030 = vmatprep.subr.mxu0 0.0
    %3031 = vmatpush1.msra.mxu0 0.0
    %3032 = vmatprep.subr.mxu0 0.0
    %3033 = vmatpush1.msra.mxu0 0.0
    %3034 = vmatprep.subr.mxu0 0.0
    %3035 = vmatpush1.msra.mxu0 0.0
    %3036 = vmatprep.subr.mxu0 0.0
    %3037 = vmatpush1.msra.mxu0 0.0
    %3038 = vmatprep.subr.mxu0 0.0
    %3039 = vmatpush1.msra.mxu0 0.0
    %3040 = vmatprep.subr.mxu0 0.0
    %3041 = vmatpush1.msra.mxu0 0.0
    %3042 = vmatprep.subr.mxu0 0.0
    %3043 = vmatpush1.msra.mxu0 0.0
    %3044 = vmatprep.subr.mxu0 0.0
    %3045 = vmatpush1.msra.mxu0 0.0
    %3046 = vmatprep.subr.mxu0 0.0
    %3047 = vmatpush1.msra.mxu0 0.0
    %3048 = vmatprep.subr.mxu0 0.0
    %3049 = vmatpush1.msra.mxu0 0.0
    %3050 = vmatprep.subr.mxu0 0.0
    %3051 = vmatpush1.msra.mxu0 0.0
    %3052 = vmatprep.subr.mxu0 0.0
    %3053 = vmatpush1.msra.mxu0 0.0
    %3054 = vmatprep.subr.mxu0 0.0
    %3055 = vmatpush1.msra.mxu0 0.0
    %3056 = vmatprep.subr.mxu0 0.0
    %3057 = vmatpush1.msra.mxu0 0.0
    %3058 = vmatprep.mubr.f32.mxu0 0.0
    %3059 = vmatmul.mubr.f32.gmra.mrb[0].mxu0 %v2992
    %v3060 = vpop.f32.mrb[0].mxu0
    %v3061 = vadd.f32 %v969, %v3060
    %v3062 = vpop.f32.mrb[0].mxu0
    %3063 = vdwg.mxu0
    %v3065 = vrot.slane %v3061, 6
    %v3066 = vrot.slane %v3061, 7
    %v3069 = vmul.f32 %v838, %v3065
    %v3070 = vmul.f32 %v840, %v3066
    %v3071 = vmul.f32 %v1539, %v2979
    %v3072 = vmul.f32 %v1540, %v2980
    %v3073 = vadd.f32 %v3069, %v3071
    %v3074 = vadd.f32 %v3070, %v3072
    %v3075 = vmul.f32 %v1444, %v3073
    %v3076 = vmul.f32 %v1445, %v3074
    %v3077 = vadd.f32 %v1442, %v3075
    %v3078 = vadd.f32 %v1443, %v3076
    %v3079 = vrot.slane %v66, 2
    %v3080 = vrot.slane %v67, 1
    %v3081 = vsel %vm976, %v3080, %v3079
    %v3083 = vsub.f32 %v2975, %v3081
    %v3084 = vand.u32 2147483647, %v3083
    %v3085 = vsub.f32 %v3061, %v3081
    %v3086 = vand.u32 2147483647, %v3085
    %v3087 = vadd.f32 %v3084, %v3086
    %v3088 = vsub.f32 %v3073, %v66
    %v3089 = vsub.f32 %v3074, %v67
    %v3090 = vand.u32 2147483647, %v3088
    %v3091 = vand.u32 2147483647, %v3089
    %v3094 = vrot.slane %v3090, 2
    %v3095 = vrot.slane %v3091, 1
    %v3096 = vsel %vm976, %v3095, %v3094
    %v3098 = vadd.f32 %v3087, %v3096
    %v3099 = vrot.slane %v939, 2
    %v3100 = vrot.slane %v940, 1
    %v3101 = vsel %vm976, %v3100, %v3099
    %v3103 = vmul.f32 %v3098, %v3101
    %v3104 = vadd.f32 %v2336, %v3103
    %3105 = vmatprep.subr.mxu0 0.0
    %3106 = vmatpush1.msra.mxu0 %v951
    %3107 = vmatprep.subr.mxu0 0.0
    %3108 = vmatpush1.msra.mxu0 %v952
    %3109 = vmatprep.subr.mxu0 0.0
    %3110 = vmatpush1.msra.mxu0 %v953
    %3111 = vmatprep.subr.mxu0 0.0
    %3112 = vmatpush1.msra.mxu0 %v954
    %3113 = vmatprep.subr.mxu0 0.0
    %3114 = vmatpush1.msra.mxu0 0.0
    %3115 = vmatprep.subr.mxu0 0.0
    %3116 = vmatpush1.msra.mxu0 0.0
    %3117 = vmatprep.subr.mxu0 0.0
    %3118 = vmatpush1.msra.mxu0 0.0
    %3119 = vmatprep.subr.mxu0 0.0
    %3120 = vmatpush1.msra.mxu0 0.0
    %3121 = vmatprep.subr.mxu0 0.0
    %3122 = vmatpush1.msra.mxu0 0.0
    %3123 = vmatprep.subr.mxu0 0.0
    %3124 = vmatpush1.msra.mxu0 0.0
    %3125 = vmatprep.subr.mxu0 0.0
    %3126 = vmatpush1.msra.mxu0 0.0
    %3127 = vmatprep.subr.mxu0 0.0
    %3128 = vmatpush1.msra.mxu0 0.0
    %3129 = vmatprep.subr.mxu0 0.0
    %3130 = vmatpush1.msra.mxu0 0.0
    %3131 = vmatprep.subr.mxu0 0.0
    %3132 = vmatpush1.msra.mxu0 0.0
    %3133 = vmatprep.subr.mxu0 0.0
    %3134 = vmatpush1.msra.mxu0 0.0
    %3135 = vmatprep.subr.mxu0 0.0
    %3136 = vmatpush1.msra.mxu0 0.0
    %3137 = vmatprep.subr.mxu0 0.0
    %3138 = vmatpush1.msra.mxu0 0.0
    %3139 = vmatprep.subr.mxu0 0.0
    %3140 = vmatpush1.msra.mxu0 0.0
    %3141 = vmatprep.subr.mxu0 0.0
    %3142 = vmatpush1.msra.mxu0 0.0
    %3143 = vmatprep.subr.mxu0 0.0
    %3144 = vmatpush1.msra.mxu0 0.0
    %3145 = vmatprep.subr.mxu0 0.0
    %3146 = vmatpush1.msra.mxu0 0.0
    %3147 = vmatprep.subr.mxu0 0.0
    %3148 = vmatpush1.msra.mxu0 0.0
    %3149 = vmatprep.subr.mxu0 0.0
    %3150 = vmatpush1.msra.mxu0 0.0
    %3151 = vmatprep.subr.mxu0 0.0
    %3152 = vmatpush1.msra.mxu0 0.0
    %3153 = vmatprep.subr.mxu0 0.0
    %3154 = vmatpush1.msra.mxu0 0.0
    %3155 = vmatprep.subr.mxu0 0.0
    %3156 = vmatpush1.msra.mxu0 0.0
    %3157 = vmatprep.subr.mxu0 0.0
    %3158 = vmatpush1.msra.mxu0 0.0
    %3159 = vmatprep.subr.mxu0 0.0
    %3160 = vmatpush1.msra.mxu0 0.0
    %3161 = vmatprep.subr.mxu0 0.0
    %3162 = vmatpush1.msra.mxu0 0.0
    %3163 = vmatprep.subr.mxu0 0.0
    %3164 = vmatpush1.msra.mxu0 0.0
    %3165 = vmatprep.subr.mxu0 0.0
    %3166 = vmatpush1.msra.mxu0 0.0
    %3167 = vmatprep.subr.mxu0 0.0
    %3168 = vmatpush1.msra.mxu0 0.0
    %3169 = vmatprep.mubr.f32.mxu0 0.0
    %3170 = vmatmul.mubr.f32.gmra.mrb[0].mxu0 %v2906
    %v3171 = vpop.f32.mrb[0].mxu0
    %v3172 = vadd.f32 0.0, %v3171
    %v3173 = vpop.f32.mrb[0].mxu0
    %3174 = vdwg.mxu0
    %v3177 = vrot.slane %v3077, 2
    %v3178 = vrot.slane %v3078, 1
    %v3179 = vsel %vm976, %v3178, %v3177
    %v3180 = vsel %vm84, %v3179, 0
    %3182 = vmatprep.subr.mxu0 0.0
    %3183 = vmatpush1.msra.mxu0 %v1653
    %3184 = vmatprep.subr.mxu0 0.0
    %3185 = vmatpush1.msra.mxu0 0.0
    %3186 = vmatprep.subr.mxu0 0.0
    %3187 = vmatpush1.msra.mxu0 0.0
    %3188 = vmatprep.subr.mxu0 0.0
    %3189 = vmatpush1.msra.mxu0 0.0
    %3190 = vmatprep.subr.mxu0 0.0
    %3191 = vmatpush1.msra.mxu0 0.0
    %3192 = vmatprep.subr.mxu0 0.0
    %3193 = vmatpush1.msra.mxu0 0.0
    %3194 = vmatprep.subr.mxu0 0.0
    %3195 = vmatpush1.msra.mxu0 0.0
    %3196 = vmatprep.subr.mxu0 0.0
    %3197 = vmatpush1.msra.mxu0 0.0
    %3198 = vmatprep.subr.mxu0 0.0
    %3199 = vmatpush1.msra.mxu0 0.0
    %3200 = vmatprep.subr.mxu0 0.0
    %3201 = vmatpush1.msra.mxu0 0.0
    %3202 = vmatprep.subr.mxu0 0.0
    %3203 = vmatpush1.msra.mxu0 0.0
    %3204 = vmatprep.subr.mxu0 0.0
    %3205 = vmatpush1.msra.mxu0 0.0
    %3206 = vmatprep.subr.mxu0 0.0
    %3207 = vmatpush1.msra.mxu0 0.0
    %3208 = vmatprep.subr.mxu0 0.0
    %3209 = vmatpush1.msra.mxu0 0.0
    %3210 = vmatprep.subr.mxu0 0.0
    %3211 = vmatpush1.msra.mxu0 0.0
    %3212 = vmatprep.subr.mxu0 0.0
    %3213 = vmatpush1.msra.mxu0 0.0
    %3214 = vmatprep.subr.mxu0 0.0
    %3215 = vmatpush1.msra.mxu0 0.0
    %3216 = vmatprep.subr.mxu0 0.0
    %3217 = vmatpush1.msra.mxu0 0.0
    %3218 = vmatprep.subr.mxu0 0.0
    %3219 = vmatpush1.msra.mxu0 0.0
    %3220 = vmatprep.subr.mxu0 0.0
    %3221 = vmatpush1.msra.mxu0 0.0
    %3222 = vmatprep.subr.mxu0 0.0
    %3223 = vmatpush1.msra.mxu0 0.0
    %3224 = vmatprep.subr.mxu0 0.0
    %3225 = vmatpush1.msra.mxu0 0.0
    %3226 = vmatprep.subr.mxu0 0.0
    %3227 = vmatpush1.msra.mxu0 0.0
    %3228 = vmatprep.subr.mxu0 0.0
    %3229 = vmatpush1.msra.mxu0 0.0
    %3230 = vmatprep.subr.mxu0 0.0
    %3231 = vmatpush1.msra.mxu0 0.0
    %3232 = vmatprep.subr.mxu0 0.0
    %3233 = vmatpush1.msra.mxu0 0.0
    %3234 = vmatprep.subr.mxu0 0.0
    %3235 = vmatpush1.msra.mxu0 0.0
    %3236 = vmatprep.subr.mxu0 0.0
    %3237 = vmatpush1.msra.mxu0 0.0
    %3238 = vmatprep.subr.mxu0 0.0
    %3239 = vmatpush1.msra.mxu0 0.0
    %3240 = vmatprep.subr.mxu0 0.0
    %3241 = vmatpush1.msra.mxu0 0.0
    %3242 = vmatprep.subr.mxu0 0.0
    %3243 = vmatpush1.msra.mxu0 0.0
    %3244 = vmatprep.subr.mxu0 0.0
    %3245 = vmatpush1.msra.mxu0 0.0
    %3246 = vmatprep.mubr.f32.mxu0 0.0
    %3247 = vmatmul.mubr.f32.gmra.mrb[0].mxu0 %v3180
    %v3248 = vpop.f32.mrb[0].mxu0
    %v3249 = vadd.f32 %v3172, %v3248
    %v3250 = vpop.f32.mrb[0].mxu0
    %3251 = vdwg.mxu0
    %v3252 = vrot.slane %v921, 2
    %v3253 = vrot.slane %v926, 1
    %v3254 = vsel %vm976, %v3253, %v3252
    %v3256 = vadd.f32 %v3249, %v3254
    %v3257 = vsub.f32 0.0, %v3256
    %v3258 = vmul.f32 %v3257, 1.442695
    %v3259 = vpow.pop %v3258
    %v3260 = vadd.f32 %v3259, 1.0
    %v3261 = vrcp.pop %v3260
    %v3262 = vmul.f32 1.0, %v3261
    %v3263 = vtanh.pop %v3256
    %v3264 = vmul.f32 %v3262, %v2504
    %3266 = vrot.lane.b32.xlu0 %v3263, 64
    %v3267 = vpop.permute.xlu0 %3266
    %v3269 = vmul.f32 %v3262, %v3267
    %3271 = vrot.lane.b32.xlu0 %v3269, 32
    %v3272 = vpop.permute.xlu0 %3271
    %v3274 = vadd.f32 %v3264, %v3272
    %v3275 = vtanh.pop %v3274
    %3277 = vrot.lane.b32.xlu0 %v3275, 64
    %v3278 = vpop.permute.xlu0 %3277
    %v3280 = vmul.f32 %v3262, %v3278
    %v3281 = vrot.slane %v175, 3
    %v3282 = vrot.slane %v177, 2
    %v3283 = vsel %vm976, %v3282, %v3281
    %3284 = vrot.lane.b32.xlu0 %v3283, 96
    %v3285 = vpop.permute.xlu0 %3284
    %v3287 = vmul.f32 %v2895, %v3285
    %3289 = vrot.lane.b32.xlu0 %v3287, 32
    %v3290 = vpop.permute.xlu0 %3289
    %v3291 = vsel %vm978, %v3290, 0
    %3293 = vmatprep.subr.mxu0 0.0
    %3294 = vmatpush1.msra.mxu0 %v493
    %3295 = vmatprep.subr.mxu0 0.0
    %3296 = vmatpush1.msra.mxu0 %v494
    %3297 = vmatprep.subr.mxu0 0.0
    %3298 = vmatpush1.msra.mxu0 %v495
    %3299 = vmatprep.subr.mxu0 0.0
    %3300 = vmatpush1.msra.mxu0 %v496
    %3301 = vmatprep.subr.mxu0 0.0
    %3302 = vmatpush1.msra.mxu0 0.0
    %3303 = vmatprep.subr.mxu0 0.0
    %3304 = vmatpush1.msra.mxu0 0.0
    %3305 = vmatprep.subr.mxu0 0.0
    %3306 = vmatpush1.msra.mxu0 0.0
    %3307 = vmatprep.subr.mxu0 0.0
    %3308 = vmatpush1.msra.mxu0 0.0
    %3309 = vmatprep.subr.mxu0 0.0
    %3310 = vmatpush1.msra.mxu0 0.0
    %3311 = vmatprep.subr.mxu0 0.0
    %3312 = vmatpush1.msra.mxu0 0.0
    %3313 = vmatprep.subr.mxu0 0.0
    %3314 = vmatpush1.msra.mxu0 0.0
    %3315 = vmatprep.subr.mxu0 0.0
    %3316 = vmatpush1.msra.mxu0 0.0
    %3317 = vmatprep.subr.mxu0 0.0
    %3318 = vmatpush1.msra.mxu0 0.0
    %3319 = vmatprep.subr.mxu0 0.0
    %3320 = vmatpush1.msra.mxu0 0.0
    %3321 = vmatprep.subr.mxu0 0.0
    %3322 = vmatpush1.msra.mxu0 0.0
    %3323 = vmatprep.subr.mxu0 0.0
    %3324 = vmatpush1.msra.mxu0 0.0
    %3325 = vmatprep.subr.mxu0 0.0
    %3326 = vmatpush1.msra.mxu0 0.0
    %3327 = vmatprep.subr.mxu0 0.0
    %3328 = vmatpush1.msra.mxu0 0.0
    %3329 = vmatprep.subr.mxu0 0.0
    %3330 = vmatpush1.msra.mxu0 0.0
    %3331 = vmatprep.subr.mxu0 0.0
    %3332 = vmatpush1.msra.mxu0 0.0
    %3333 = vmatprep.subr.mxu0 0.0
    %3334 = vmatpush1.msra.mxu0 0.0
    %3335 = vmatprep.subr.mxu0 0.0
    %3336 = vmatpush1.msra.mxu0 0.0
    %3337 = vmatprep.subr.mxu0 0.0
    %3338 = vmatpush1.msra.mxu0 0.0
    %3339 = vmatprep.subr.mxu0 0.0
    %3340 = vmatpush1.msra.mxu0 0.0
    %3341 = vmatprep.subr.mxu0 0.0
    %3342 = vmatpush1.msra.mxu0 0.0
    %3343 = vmatprep.subr.mxu0 0.0
    %3344 = vmatpush1.msra.mxu0 0.0
    %3345 = vmatprep.subr.mxu0 0.0
    %3346 = vmatpush1.msra.mxu0 0.0
    %3347 = vmatprep.subr.mxu0 0.0
    %3348 = vmatpush1.msra.mxu0 0.0
    %3349 = vmatprep.subr.mxu0 0.0
    %3350 = vmatpush1.msra.mxu0 0.0
    %3351 = vmatprep.subr.mxu0 0.0
    %3352 = vmatpush1.msra.mxu0 0.0
    %3353 = vmatprep.subr.mxu0 0.0
    %3354 = vmatpush1.msra.mxu0 0.0
    %3355 = vmatprep.subr.mxu0 0.0
    %3356 = vmatpush1.msra.mxu0 0.0
    %3357 = vmatprep.mubr.f32.mxu0 0.0
    %3358 = vmatmul.mubr.f32.gmra.mrb[0].mxu0 %v3291
    %v3359 = vpop.f32.mrb[0].mxu0
    %v3360 = vadd.f32 %v508, %v3359
    %v3361 = vpop.f32.mrb[0].mxu0
    %3362 = vdwg.mxu0
    %v3364 = vrot.slane %v3360, 5
    %v3365 = vrot.slane %v3360, 6
    %v3368 = vmul.f32 %v1053, %v3364
    %v3369 = vmul.f32 %v1054, %v3365
    %v3370 = vadd.f32 %v1051, %v3368
    %v3371 = vadd.f32 %v1052, %v3369
    %v3374 = vrot.slane %v3370, 3
    %v3375 = vrot.slane %v3371, 2
    %v3376 = vsel %vm976, %v3375, %v3374
    %v3377 = vsel %vm84, %v3376, 0
    %3379 = vmatprep.subr.mxu0 0.0
    %3380 = vmatpush1.msra.mxu0 %v1070
    %3381 = vmatprep.subr.mxu0 0.0
    %3382 = vmatpush1.msra.mxu0 0.0
    %3383 = vmatprep.subr.mxu0 0.0
    %3384 = vmatpush1.msra.mxu0 0.0
    %3385 = vmatprep.subr.mxu0 0.0
    %3386 = vmatpush1.msra.mxu0 0.0
    %3387 = vmatprep.subr.mxu0 0.0
    %3388 = vmatpush1.msra.mxu0 0.0
    %3389 = vmatprep.subr.mxu0 0.0
    %3390 = vmatpush1.msra.mxu0 0.0
    %3391 = vmatprep.subr.mxu0 0.0
    %3392 = vmatpush1.msra.mxu0 0.0
    %3393 = vmatprep.subr.mxu0 0.0
    %3394 = vmatpush1.msra.mxu0 0.0
    %3395 = vmatprep.subr.mxu0 0.0
    %3396 = vmatpush1.msra.mxu0 0.0
    %3397 = vmatprep.subr.mxu0 0.0
    %3398 = vmatpush1.msra.mxu0 0.0
    %3399 = vmatprep.subr.mxu0 0.0
    %3400 = vmatpush1.msra.mxu0 0.0
    %3401 = vmatprep.subr.mxu0 0.0
    %3402 = vmatpush1.msra.mxu0 0.0
    %3403 = vmatprep.subr.mxu0 0.0
    %3404 = vmatpush1.msra.mxu0 0.0
    %3405 = vmatprep.subr.mxu0 0.0
    %3406 = vmatpush1.msra.mxu0 0.0
    %3407 = vmatprep.subr.mxu0 0.0
    %3408 = vmatpush1.msra.mxu0 0.0
    %3409 = vmatprep.subr.mxu0 0.0
    %3410 = vmatpush1.msra.mxu0 0.0
    %3411 = vmatprep.subr.mxu0 0.0
    %3412 = vmatpush1.msra.mxu0 0.0
    %3413 = vmatprep.subr.mxu0 0.0
    %3414 = vmatpush1.msra.mxu0 0.0
    %3415 = vmatprep.subr.mxu0 0.0
    %3416 = vmatpush1.msra.mxu0 0.0
    %3417 = vmatprep.subr.mxu0 0.0
    %3418 = vmatpush1.msra.mxu0 0.0
    %3419 = vmatprep.subr.mxu0 0.0
    %3420 = vmatpush1.msra.mxu0 0.0
    %3421 = vmatprep.subr.mxu0 0.0
    %3422 = vmatpush1.msra.mxu0 0.0
    %3423 = vmatprep.subr.mxu0 0.0
    %3424 = vmatpush1.msra.mxu0 0.0
    %3425 = vmatprep.subr.mxu0 0.0
    %3426 = vmatpush1.msra.mxu0 0.0
    %3427 = vmatprep.subr.mxu0 0.0
    %3428 = vmatpush1.msra.mxu0 0.0
    %3429 = vmatprep.subr.mxu0 0.0
    %3430 = vmatpush1.msra.mxu0 0.0
    %3431 = vmatprep.subr.mxu0 0.0
    %3432 = vmatpush1.msra.mxu0 0.0
    %3433 = vmatprep.subr.mxu0 0.0
    %3434 = vmatpush1.msra.mxu0 0.0
    %3435 = vmatprep.subr.mxu0 0.0
    %3436 = vmatpush1.msra.mxu0 0.0
    %3437 = vmatprep.subr.mxu0 0.0
    %3438 = vmatpush1.msra.mxu0 0.0
    %3439 = vmatprep.subr.mxu0 0.0
    %3440 = vmatpush1.msra.mxu0 0.0
    %3441 = vmatprep.subr.mxu0 0.0
    %3442 = vmatpush1.msra.mxu0 0.0
    %3443 = vmatprep.mubr.f32.mxu0 0.0
    %3444 = vmatmul.mubr.f32.gmra.mrb[0].mxu0 %v3377
    %v3445 = vpop.f32.mrb[0].mxu0
    %v3446 = vadd.f32 %v515, %v3445
    %v3447 = vpop.f32.mrb[0].mxu0
    %3448 = vdwg.mxu0
    %v3450 = vrot.slane %v3446, 5
    %v3451 = vrot.slane %v3446, 6
    %v3454 = vmul.f32 %v392, %v3450
    %v3455 = vmul.f32 %v394, %v3451
    %v3456 = vmul.f32 %v1148, %v3364
    %v3457 = vmul.f32 %v1149, %v3365
    %v3458 = vadd.f32 %v3454, %v3456
    %v3459 = vadd.f32 %v3455, %v3457
    %v3460 = vmul.f32 %v1053, %v3458
    %v3461 = vmul.f32 %v1054, %v3459
    %v3462 = vadd.f32 %v1051, %v3460
    %v3463 = vadd.f32 %v1052, %v3461
    %v3464 = vrot.slane %v64, 3
    %v3465 = vrot.slane %v65, 2
    %v3466 = vsel %vm976, %v3465, %v3464
    %v3468 = vsub.f32 %v3360, %v3466
    %v3469 = vand.u32 2147483647, %v3468
    %v3470 = vsub.f32 %v3446, %v3466
    %v3471 = vand.u32 2147483647, %v3470
    %v3472 = vadd.f32 %v3469, %v3471
    %v3473 = vsub.f32 %v3458, %v64
    %v3474 = vsub.f32 %v3459, %v65
    %v3475 = vand.u32 2147483647, %v3473
    %v3476 = vand.u32 2147483647, %v3474
    %v3479 = vrot.slane %v3475, 3
    %v3480 = vrot.slane %v3476, 2
    %v3481 = vsel %vm976, %v3480, %v3479
    %v3483 = vadd.f32 %v3472, %v3481
    %v3484 = vrot.slane %v491, 3
    %v3485 = vrot.slane %v492, 2
    %v3486 = vsel %vm976, %v3485, %v3484
    %v3488 = vmul.f32 %v3483, %v3486
    %v3489 = vadd.f32 %v2719, %v3488
    %3490 = vmatprep.subr.mxu0 0.0
    %3491 = vmatpush1.msra.mxu0 %v499
    %3492 = vmatprep.subr.mxu0 0.0
    %3493 = vmatpush1.msra.mxu0 %v500
    %3494 = vmatprep.subr.mxu0 0.0
    %3495 = vmatpush1.msra.mxu0 %v501
    %3496 = vmatprep.subr.mxu0 0.0
    %3497 = vmatpush1.msra.mxu0 %v502
    %3498 = vmatprep.subr.mxu0 0.0
    %3499 = vmatpush1.msra.mxu0 0.0
    %3500 = vmatprep.subr.mxu0 0.0
    %3501 = vmatpush1.msra.mxu0 0.0
    %3502 = vmatprep.subr.mxu0 0.0
    %3503 = vmatpush1.msra.mxu0 0.0
    %3504 = vmatprep.subr.mxu0 0.0
    %3505 = vmatpush1.msra.mxu0 0.0
    %3506 = vmatprep.subr.mxu0 0.0
    %3507 = vmatpush1.msra.mxu0 0.0
    %3508 = vmatprep.subr.mxu0 0.0
    %3509 = vmatpush1.msra.mxu0 0.0
    %3510 = vmatprep.subr.mxu0 0.0
    %3511 = vmatpush1.msra.mxu0 0.0
    %3512 = vmatprep.subr.mxu0 0.0
    %3513 = vmatpush1.msra.mxu0 0.0
    %3514 = vmatprep.subr.mxu0 0.0
    %3515 = vmatpush1.msra.mxu0 0.0
    %3516 = vmatprep.subr.mxu0 0.0
    %3517 = vmatpush1.msra.mxu0 0.0
    %3518 = vmatprep.subr.mxu0 0.0
    %3519 = vmatpush1.msra.mxu0 0.0
    %3520 = vmatprep.subr.mxu0 0.0
    %3521 = vmatpush1.msra.mxu0 0.0
    %3522 = vmatprep.subr.mxu0 0.0
    %3523 = vmatpush1.msra.mxu0 0.0
    %3524 = vmatprep.subr.mxu0 0.0
    %3525 = vmatpush1.msra.mxu0 0.0
    %3526 = vmatprep.subr.mxu0 0.0
    %3527 = vmatpush1.msra.mxu0 0.0
    %3528 = vmatprep.subr.mxu0 0.0
    %3529 = vmatpush1.msra.mxu0 0.0
    %3530 = vmatprep.subr.mxu0 0.0
    %3531 = vmatpush1.msra.mxu0 0.0
    %3532 = vmatprep.subr.mxu0 0.0
    %3533 = vmatpush1.msra.mxu0 0.0
    %3534 = vmatprep.subr.mxu0 0.0
    %3535 = vmatpush1.msra.mxu0 0.0
    %3536 = vmatprep.subr.mxu0 0.0
    %3537 = vmatpush1.msra.mxu0 0.0
    %3538 = vmatprep.subr.mxu0 0.0
    %3539 = vmatpush1.msra.mxu0 0.0
    %3540 = vmatprep.subr.mxu0 0.0
    %3541 = vmatpush1.msra.mxu0 0.0
    %3542 = vmatprep.subr.mxu0 0.0
    %3543 = vmatpush1.msra.mxu0 0.0
    %3544 = vmatprep.subr.mxu0 0.0
    %3545 = vmatpush1.msra.mxu0 0.0
    %3546 = vmatprep.subr.mxu0 0.0
    %3547 = vmatpush1.msra.mxu0 0.0
    %3548 = vmatprep.subr.mxu0 0.0
    %3549 = vmatpush1.msra.mxu0 0.0
    %3550 = vmatprep.subr.mxu0 0.0
    %3551 = vmatpush1.msra.mxu0 0.0
    %3552 = vmatprep.subr.mxu0 0.0
    %3553 = vmatpush1.msra.mxu0 0.0
    %3554 = vmatprep.mubr.f32.mxu0 0.0
    %3555 = vmatmul.mubr.f32.gmra.mrb[0].mxu0 %v3291
    %v3556 = vpop.f32.mrb[0].mxu0
    %v3557 = vadd.f32 0.0, %v3556
    %v3558 = vpop.f32.mrb[0].mxu0
    %3559 = vdwg.mxu0
    %v3562 = vrot.slane %v3462, 3
    %v3563 = vrot.slane %v3463, 2
    %v3564 = vsel %vm976, %v3563, %v3562
    %v3565 = vsel %vm84, %v3564, 0
    %3567 = vmatprep.subr.mxu0 0.0
    %3568 = vmatpush1.msra.mxu0 %v1262
    %3569 = vmatprep.subr.mxu0 0.0
    %3570 = vmatpush1.msra.mxu0 0.0
    %3571 = vmatprep.subr.mxu0 0.0
    %3572 = vmatpush1.msra.mxu0 0.0
    %3573 = vmatprep.subr.mxu0 0.0
    %3574 = vmatpush1.msra.mxu0 0.0
    %3575 = vmatprep.subr.mxu0 0.0
    %3576 = vmatpush1.msra.mxu0 0.0
    %3577 = vmatprep.subr.mxu0 0.0
    %3578 = vmatpush1.msra.mxu0 0.0
    %3579 = vmatprep.subr.mxu0 0.0
    %3580 = vmatpush1.msra.mxu0 0.0
    %3581 = vmatprep.subr.mxu0 0.0
    %3582 = vmatpush1.msra.mxu0 0.0
    %3583 = vmatprep.subr.mxu0 0.0
    %3584 = vmatpush1.msra.mxu0 0.0
    %3585 = vmatprep.subr.mxu0 0.0
    %3586 = vmatpush1.msra.mxu0 0.0
    %3587 = vmatprep.subr.mxu0 0.0
    %3588 = vmatpush1.msra.mxu0 0.0
    %3589 = vmatprep.subr.mxu0 0.0
    %3590 = vmatpush1.msra.mxu0 0.0
    %3591 = vmatprep.subr.mxu0 0.0
    %3592 = vmatpush1.msra.mxu0 0.0
    %3593 = vmatprep.subr.mxu0 0.0
    %3594 = vmatpush1.msra.mxu0 0.0
    %3595 = vmatprep.subr.mxu0 0.0
    %3596 = vmatpush1.msra.mxu0 0.0
    %3597 = vmatprep.subr.mxu0 0.0
    %3598 = vmatpush1.msra.mxu0 0.0
    %3599 = vmatprep.subr.mxu0 0.0
    %3600 = vmatpush1.msra.mxu0 0.0
    %3601 = vmatprep.subr.mxu0 0.0
    %3602 = vmatpush1.msra.mxu0 0.0
    %3603 = vmatprep.subr.mxu0 0.0
    %3604 = vmatpush1.msra.mxu0 0.0
    %3605 = vmatprep.subr.mxu0 0.0
    %3606 = vmatpush1.msra.mxu0 0.0
    %3607 = vmatprep.subr.mxu0 0.0
    %3608 = vmatpush1.msra.mxu0 0.0
    %3609 = vmatprep.subr.mxu0 0.0
    %3610 = vmatpush1.msra.mxu0 0.0
    %3611 = vmatprep.subr.mxu0 0.0
    %3612 = vmatpush1.msra.mxu0 0.0
    %3613 = vmatprep.subr.mxu0 0.0
    %3614 = vmatpush1.msra.mxu0 0.0
    %3615 = vmatprep.subr.mxu0 0.0
    %3616 = vmatpush1.msra.mxu0 0.0
    %3617 = vmatprep.subr.mxu0 0.0
    %3618 = vmatpush1.msra.mxu0 0.0
    %3619 = vmatprep.subr.mxu0 0.0
    %3620 = vmatpush1.msra.mxu0 0.0
    %3621 = vmatprep.subr.mxu0 0.0
    %3622 = vmatpush1.msra.mxu0 0.0
    %3623 = vmatprep.subr.mxu0 0.0
    %3624 = vmatpush1.msra.mxu0 0.0
    %3625 = vmatprep.subr.mxu0 0.0
    %3626 = vmatpush1.msra.mxu0 0.0
    %3627 = vmatprep.subr.mxu0 0.0
    %3628 = vmatpush1.msra.mxu0 0.0
    %3629 = vmatprep.subr.mxu0 0.0
    %3630 = vmatpush1.msra.mxu0 0.0
    %3631 = vmatprep.mubr.f32.mxu0 0.0
    %3632 = vmatmul.mubr.f32.gmra.mrb[0].mxu0 %v3565
    %v3633 = vpop.f32.mrb[0].mxu0
    %v3634 = vadd.f32 %v3557, %v3633
    %v3635 = vpop.f32.mrb[0].mxu0
    %3636 = vdwg.mxu0
    %v3637 = vrot.slane %v473, 3
    %v3638 = vrot.slane %v478, 2
    %v3639 = vsel %vm976, %v3638, %v3637
    %v3641 = vadd.f32 %v3634, %v3639
    %v3642 = vsub.f32 0.0, %v3641
    %v3643 = vmul.f32 %v3642, 1.442695
    %v3644 = vpow.pop %v3643
    %v3645 = vadd.f32 %v3644, 1.0
    %v3646 = vrcp.pop %v3645
    %v3647 = vmul.f32 1.0, %v3646
    %v3648 = vtanh.pop %v3641
    %v3649 = vmul.f32 %v3647, %v2889
    %3651 = vrot.lane.b32.xlu0 %v3648, 64
    %v3652 = vpop.permute.xlu0 %3651
    %v3654 = vmul.f32 %v3647, %v3652
    %3656 = vrot.lane.b32.xlu0 %v3654, 32
    %v3657 = vpop.permute.xlu0 %3656
    %v3659 = vadd.f32 %v3649, %v3657
    %v3660 = vtanh.pop %v3659
    %3662 = vrot.lane.b32.xlu0 %v3660, 64
    %v3663 = vpop.permute.xlu0 %3662
    %v3665 = vmul.f32 %v3647, %v3663
    %v3666 = vrot.slane %v616, 3
    %v3667 = vrot.slane %v618, 2
    %v3668 = vsel %vm976, %v3667, %v3666
    %3669 = vrot.lane.b32.xlu0 %v3668, 96
    %v3670 = vpop.permute.xlu0 %3669
    %v3672 = vmul.f32 %v3280, %v3670
    %3674 = vrot.lane.b32.xlu0 %v3672, 32
    %v3675 = vpop.permute.xlu0 %3674
    %v3676 = vsel %vm978, %v3675, 0
    %3678 = vmatprep.subr.mxu0 0.0
    %3679 = vmatpush1.msra.mxu0 %v942
    %3680 = vmatprep.subr.mxu0 0.0
    %3681 = vmatpush1.msra.mxu0 %v943
    %3682 = vmatprep.subr.mxu0 0.0
    %3683 = vmatpush1.msra.mxu0 %v944
    %3684 = vmatprep.subr.mxu0 0.0
    %3685 = vmatpush1.msra.mxu0 %v945
    %3686 = vmatprep.subr.mxu0 0.0
    %3687 = vmatpush1.msra.mxu0 0.0
    %3688 = vmatprep.subr.mxu0 0.0
    %3689 = vmatpush1.msra.mxu0 0.0
    %3690 = vmatprep.subr.mxu0 0.0
    %3691 = vmatpush1.msra.mxu0 0.0
    %3692 = vmatprep.subr.mxu0 0.0
    %3693 = vmatpush1.msra.mxu0 0.0
    %3694 = vmatprep.subr.mxu0 0.0
    %3695 = vmatpush1.msra.mxu0 0.0
    %3696 = vmatprep.subr.mxu0 0.0
    %3697 = vmatpush1.msra.mxu0 0.0
    %3698 = vmatprep.subr.mxu0 0.0
    %3699 = vmatpush1.msra.mxu0 0.0
    %3700 = vmatprep.subr.mxu0 0.0
    %3701 = vmatpush1.msra.mxu0 0.0
    %3702 = vmatprep.subr.mxu0 0.0
    %3703 = vmatpush1.msra.mxu0 0.0
    %3704 = vmatprep.subr.mxu0 0.0
    %3705 = vmatpush1.msra.mxu0 0.0
    %3706 = vmatprep.subr.mxu0 0.0
    %3707 = vmatpush1.msra.mxu0 0.0
    %3708 = vmatprep.subr.mxu0 0.0
    %3709 = vmatpush1.msra.mxu0 0.0
    %3710 = vmatprep.subr.mxu0 0.0
    %3711 = vmatpush1.msra.mxu0 0.0
    %3712 = vmatprep.subr.mxu0 0.0
    %3713 = vmatpush1.msra.mxu0 0.0
    %3714 = vmatprep.subr.mxu0 0.0
    %3715 = vmatpush1.msra.mxu0 0.0
    %3716 = vmatprep.subr.mxu0 0.0
    %3717 = vmatpush1.msra.mxu0 0.0
    %3718 = vmatprep.subr.mxu0 0.0
    %3719 = vmatpush1.msra.mxu0 0.0
    %3720 = vmatprep.subr.mxu0 0.0
    %3721 = vmatpush1.msra.mxu0 0.0
    %3722 = vmatprep.subr.mxu0 0.0
    %3723 = vmatpush1.msra.mxu0 0.0
    %3724 = vmatprep.subr.mxu0 0.0
    %3725 = vmatpush1.msra.mxu0 0.0
    %3726 = vmatprep.subr.mxu0 0.0
    %3727 = vmatpush1.msra.mxu0 0.0
    %3728 = vmatprep.subr.mxu0 0.0
    %3729 = vmatpush1.msra.mxu0 0.0
    %3730 = vmatprep.subr.mxu0 0.0
    %3731 = vmatpush1.msra.mxu0 0.0
    %3732 = vmatprep.subr.mxu0 0.0
    %3733 = vmatpush1.msra.mxu0 0.0
    %3734 = vmatprep.subr.mxu0 0.0
    %3735 = vmatpush1.msra.mxu0 0.0
    %3736 = vmatprep.subr.mxu0 0.0
    %3737 = vmatpush1.msra.mxu0 0.0
    %3738 = vmatprep.subr.mxu0 0.0
    %3739 = vmatpush1.msra.mxu0 0.0
    %3740 = vmatprep.subr.mxu0 0.0
    %3741 = vmatpush1.msra.mxu0 0.0
    %3742 = vmatprep.mubr.f32.mxu0 0.0
    %3743 = vmatmul.mubr.f32.gmra.mrb[0].mxu0 %v3676
    %v3744 = vpop.f32.mrb[0].mxu0
    %v3745 = vadd.f32 %v961, %v3744
    %v3746 = vpop.f32.mrb[0].mxu0
    %3747 = vdwg.mxu0
    %v3749 = vrot.slane %v3745, 5
    %v3750 = vrot.slane %v3745, 6
    %v3753 = vmul.f32 %v1444, %v3749
    %v3754 = vmul.f32 %v1445, %v3750
    %v3755 = vadd.f32 %v1442, %v3753
    %v3756 = vadd.f32 %v1443, %v3754
    %v3759 = vrot.slane %v3755, 3
    %v3760 = vrot.slane %v3756, 2
    %v3761 = vsel %vm976, %v3760, %v3759
    %v3762 = vsel %vm84, %v3761, 0
    %3764 = vmatprep.subr.mxu0 0.0
    %3765 = vmatpush1.msra.mxu0 %v1461
    %3766 = vmatprep.subr.mxu0 0.0
    %3767 = vmatpush1.msra.mxu0 0.0
    %3768 = vmatprep.subr.mxu0 0.0
    %3769 = vmatpush1.msra.mxu0 0.0
    %3770 = vmatprep.subr.mxu0 0.0
    %3771 = vmatpush1.msra.mxu0 0.0
    %3772 = vmatprep.subr.mxu0 0.0
    %3773 = vmatpush1.msra.mxu0 0.0
    %3774 = vmatprep.subr.mxu0 0.0
    %3775 = vmatpush1.msra.mxu0 0.0
    %3776 = vmatprep.subr.mxu0 0.0
    %3777 = vmatpush1.msra.mxu0 0.0
    %3778 = vmatprep.subr.mxu0 0.0
    %3779 = vmatpush1.msra.mxu0 0.0
    %3780 = vmatprep.subr.mxu0 0.0
    %3781 = vmatpush1.msra.mxu0 0.0
    %3782 = vmatprep.subr.mxu0 0.0
    %3783 = vmatpush1.msra.mxu0 0.0
    %3784 = vmatprep.subr.mxu0 0.0
    %3785 = vmatpush1.msra.mxu0 0.0
    %3786 = vmatprep.subr.mxu0 0.0
    %3787 = vmatpush1.msra.mxu0 0.0
    %3788 = vmatprep.subr.mxu0 0.0
    %3789 = vmatpush1.msra.mxu0 0.0
    %3790 = vmatprep.subr.mxu0 0.0
    %3791 = vmatpush1.msra.mxu0 0.0
    %3792 = vmatprep.subr.mxu0 0.0
    %3793 = vmatpush1.msra.mxu0 0.0
    %3794 = vmatprep.subr.mxu0 0.0
    %3795 = vmatpush1.msra.mxu0 0.0
    %3796 = vmatprep.subr.mxu0 0.0
    %3797 = vmatpush1.msra.mxu0 0.0
    %3798 = vmatprep.subr.mxu0 0.0
    %3799 = vmatpush1.msra.mxu0 0.0
    %3800 = vmatprep.subr.mxu0 0.0
    %3801 = vmatpush1.msra.mxu0 0.0
    %3802 = vmatprep.subr.mxu0 0.0
    %3803 = vmatpush1.msra.mxu0 0.0
    %3804 = vmatprep.subr.mxu0 0.0
    %3805 = vmatpush1.msra.mxu0 0.0
    %3806 = vmatprep.subr.mxu0 0.0
    %3807 = vmatpush1.msra.mxu0 0.0
    %3808 = vmatprep.subr.mxu0 0.0
    %3809 = vmatpush1.msra.mxu0 0.0
    %3810 = vmatprep.subr.mxu0 0.0
    %3811 = vmatpush1.msra.mxu0 0.0
    %3812 = vmatprep.subr.mxu0 0.0
    %3813 = vmatpush1.msra.mxu0 0.0
    %3814 = vmatprep.subr.mxu0 0.0
    %3815 = vmatpush1.msra.mxu0 0.0
    %3816 = vmatprep.subr.mxu0 0.0
    %3817 = vmatpush1.msra.mxu0 0.0
    %3818 = vmatprep.subr.mxu0 0.0
    %3819 = vmatpush1.msra.mxu0 0.0
    %3820 = vmatprep.subr.mxu0 0.0
    %3821 = vmatpush1.msra.mxu0 0.0
    %3822 = vmatprep.subr.mxu0 0.0
    %3823 = vmatpush1.msra.mxu0 0.0
    %3824 = vmatprep.subr.mxu0 0.0
    %3825 = vmatpush1.msra.mxu0 0.0
    %3826 = vmatprep.subr.mxu0 0.0
    %3827 = vmatpush1.msra.mxu0 0.0
    %3828 = vmatprep.mubr.f32.mxu0 0.0
    %3829 = vmatmul.mubr.f32.gmra.mrb[0].mxu0 %v3762
    %v3830 = vpop.f32.mrb[0].mxu0
    %v3831 = vadd.f32 %v969, %v3830
    %v3832 = vpop.f32.mrb[0].mxu0
    %3833 = vdwg.mxu0
    %v3835 = vrot.slane %v3831, 5
    %v3836 = vrot.slane %v3831, 6
    %v3839 = vmul.f32 %v838, %v3835
    %v3840 = vmul.f32 %v840, %v3836
    %v3841 = vmul.f32 %v1539, %v3749
    %v3842 = vmul.f32 %v1540, %v3750
    %v3843 = vadd.f32 %v3839, %v3841
    %v3844 = vadd.f32 %v3840, %v3842
    %v3845 = vmul.f32 %v1444, %v3843
    %v3846 = vmul.f32 %v1445, %v3844
    %v3847 = vadd.f32 %v1442, %v3845
    %v3848 = vadd.f32 %v1443, %v3846
    %v3849 = vrot.slane %v66, 3
    %v3850 = vrot.slane %v67, 2
    %v3851 = vsel %vm976, %v3850, %v3849
    %v3853 = vsub.f32 %v3745, %v3851
    %v3854 = vand.u32 2147483647, %v3853
    %v3855 = vsub.f32 %v3831, %v3851
    %v3856 = vand.u32 2147483647, %v3855
    %v3857 = vadd.f32 %v3854, %v3856
    %v3858 = vsub.f32 %v3843, %v66
    %v3859 = vsub.f32 %v3844, %v67
    %v3860 = vand.u32 2147483647, %v3858
    %v3861 = vand.u32 2147483647, %v3859
    %v3864 = vrot.slane %v3860, 3
    %v3865 = vrot.slane %v3861, 2
    %v3866 = vsel %vm976, %v3865, %v3864
    %v3868 = vadd.f32 %v3857, %v3866
    %v3869 = vrot.slane %v939, 3
    %v3870 = vrot.slane %v940, 2
    %v3871 = vsel %vm976, %v3870, %v3869
    %v3873 = vmul.f32 %v3868, %v3871
    %v3874 = vadd.f32 %v3104, %v3873
    %3875 = vmatprep.subr.mxu0 0.0
    %3876 = vmatpush1.msra.mxu0 %v951
    %3877 = vmatprep.subr.mxu0 0.0
    %3878 = vmatpush1.msra.mxu0 %v952
    %3879 = vmatprep.subr.mxu0 0.0
    %3880 = vmatpush1.msra.mxu0 %v953
    %3881 = vmatprep.subr.mxu0 0.0
    %3882 = vmatpush1.msra.mxu0 %v954
    %3883 = vmatprep.subr.mxu0 0.0
    %3884 = vmatpush1.msra.mxu0 0.0
    %3885 = vmatprep.subr.mxu0 0.0
    %3886 = vmatpush1.msra.mxu0 0.0
    %3887 = vmatprep.subr.mxu0 0.0
    %3888 = vmatpush1.msra.mxu0 0.0
    %3889 = vmatprep.subr.mxu0 0.0
    %3890 = vmatpush1.msra.mxu0 0.0
    %3891 = vmatprep.subr.mxu0 0.0
    %3892 = vmatpush1.msra.mxu0 0.0
    %3893 = vmatprep.subr.mxu0 0.0
    %3894 = vmatpush1.msra.mxu0 0.0
    %3895 = vmatprep.subr.mxu0 0.0
    %3896 = vmatpush1.msra.mxu0 0.0
    %3897 = vmatprep.subr.mxu0 0.0
    %3898 = vmatpush1.msra.mxu0 0.0
    %3899 = vmatprep.subr.mxu0 0.0
    %3900 = vmatpush1.msra.mxu0 0.0
    %3901 = vmatprep.subr.mxu0 0.0
    %3902 = vmatpush1.msra.mxu0 0.0
    %3903 = vmatprep.subr.mxu0 0.0
    %3904 = vmatpush1.msra.mxu0 0.0
    %3905 = vmatprep.subr.mxu0 0.0
    %3906 = vmatpush1.msra.mxu0 0.0
    %3907 = vmatprep.subr.mxu0 0.0
    %3908 = vmatpush1.msra.mxu0 0.0
    %3909 = vmatprep.subr.mxu0 0.0
    %3910 = vmatpush1.msra.mxu0 0.0
    %3911 = vmatprep.subr.mxu0 0.0
    %3912 = vmatpush1.msra.mxu0 0.0
    %3913 = vmatprep.subr.mxu0 0.0
    %3914 = vmatpush1.msra.mxu0 0.0
    %3915 = vmatprep.subr.mxu0 0.0
    %3916 = vmatpush1.msra.mxu0 0.0
    %3917 = vmatprep.subr.mxu0 0.0
    %3918 = vmatpush1.msra.mxu0 0.0
    %3919 = vmatprep.subr.mxu0 0.0
    %3920 = vmatpush1.msra.mxu0 0.0
    %3921 = vmatprep.subr.mxu0 0.0
    %3922 = vmatpush1.msra.mxu0 0.0
    %3923 = vmatprep.subr.mxu0 0.0
    %3924 = vmatpush1.msra.mxu0 0.0
    %3925 = vmatprep.subr.mxu0 0.0
    %3926 = vmatpush1.msra.mxu0 0.0
    %3927 = vmatprep.subr.mxu0 0.0
    %3928 = vmatpush1.msra.mxu0 0.0
    %3929 = vmatprep.subr.mxu0 0.0
    %3930 = vmatpush1.msra.mxu0 0.0
    %3931 = vmatprep.subr.mxu0 0.0
    %3932 = vmatpush1.msra.mxu0 0.0
    %3933 = vmatprep.subr.mxu0 0.0
    %3934 = vmatpush1.msra.mxu0 0.0
    %3935 = vmatprep.subr.mxu0 0.0
    %3936 = vmatpush1.msra.mxu0 0.0
    %3937 = vmatprep.subr.mxu0 0.0
    %3938 = vmatpush1.msra.mxu0 0.0
    %3939 = vmatprep.mubr.f32.mxu0 0.0
    %3940 = vmatmul.mubr.f32.gmra.mrb[0].mxu0 %v3676
    %v3941 = vpop.f32.mrb[0].mxu0
    %v3942 = vadd.f32 0.0, %v3941
    %v3943 = vpop.f32.mrb[0].mxu0
    %3944 = vdwg.mxu0
    %v3947 = vrot.slane %v3847, 3
    %v3948 = vrot.slane %v3848, 2
    %v3949 = vsel %vm976, %v3948, %v3947
    %v3950 = vsel %vm84, %v3949, 0
    %3952 = vmatprep.subr.mxu0 0.0
    %3953 = vmatpush1.msra.mxu0 %v1653
    %3954 = vmatprep.subr.mxu0 0.0
    %3955 = vmatpush1.msra.mxu0 0.0
    %3956 = vmatprep.subr.mxu0 0.0
    %3957 = vmatpush1.msra.mxu0 0.0
    %3958 = vmatprep.subr.mxu0 0.0
    %3959 = vmatpush1.msra.mxu0 0.0
    %3960 = vmatprep.subr.mxu0 0.0
    %3961 = vmatpush1.msra.mxu0 0.0
    %3962 = vmatprep.subr.mxu0 0.0
    %3963 = vmatpush1.msra.mxu0 0.0
    %3964 = vmatprep.subr.mxu0 0.0
    %3965 = vmatpush1.msra.mxu0 0.0
    %3966 = vmatprep.subr.mxu0 0.0
    %3967 = vmatpush1.msra.mxu0 0.0
    %3968 = vmatprep.subr.mxu0 0.0
    %3969 = vmatpush1.msra.mxu0 0.0
    %3970 = vmatprep.subr.mxu0 0.0
    %3971 = vmatpush1.msra.mxu0 0.0
    %3972 = vmatprep.subr.mxu0 0.0
    %3973 = vmatpush1.msra.mxu0 0.0
    %3974 = vmatprep.subr.mxu0 0.0
    %3975 = vmatpush1.msra.mxu0 0.0
    %3976 = vmatprep.subr.mxu0 0.0
    %3977 = vmatpush1.msra.mxu0 0.0
    %3978 = vmatprep.subr.mxu0 0.0
    %3979 = vmatpush1.msra.mxu0 0.0
    %3980 = vmatprep.subr.mxu0 0.0
    %3981 = vmatpush1.msra.mxu0 0.0
    %3982 = vmatprep.subr.mxu0 0.0
    %3983 = vmatpush1.msra.mxu0 0.0
    %3984 = vmatprep.subr.mxu0 0.0
    %3985 = vmatpush1.msra.mxu0 0.0
    %3986 = vmatprep.subr.mxu0 0.0
    %3987 = vmatpush1.msra.mxu0 0.0
    %3988 = vmatprep.subr.mxu0 0.0
    %3989 = vmatpush1.msra.mxu0 0.0
    %3990 = vmatprep.subr.mxu0 0.0
    %3991 = vmatpush1.msra.mxu0 0.0
    %3992 = vmatprep.subr.mxu0 0.0
    %3993 = vmatpush1.msra.mxu0 0.0
    %3994 = vmatprep.subr.mxu0 0.0
    %3995 = vmatpush1.msra.mxu0 0.0
    %3996 = vmatprep.subr.mxu0 0.0
    %3997 = vmatpush1.msra.mxu0 0.0
    %3998 = vmatprep.subr.mxu0 0.0
    %3999 = vmatpush1.msra.mxu0 0.0
    %4000 = vmatprep.subr.mxu0 0.0
    %4001 = vmatpush1.msra.mxu0 0.0
    %4002 = vmatprep.subr.mxu0 0.0
    %4003 = vmatpush1.msra.mxu0 0.0
    %4004 = vmatprep.subr.mxu0 0.0
    %4005 = vmatpush1.msra.mxu0 0.0
    %4006 = vmatprep.subr.mxu0 0.0
    %4007 = vmatpush1.msra.mxu0 0.0
    %4008 = vmatprep.subr.mxu0 0.0
    %4009 = vmatpush1.msra.mxu0 0.0
    %4010 = vmatprep.subr.mxu0 0.0
    %4011 = vmatpush1.msra.mxu0 0.0
    %4012 = vmatprep.subr.mxu0 0.0
    %4013 = vmatpush1.msra.mxu0 0.0
    %4014 = vmatprep.subr.mxu0 0.0
    %4015 = vmatpush1.msra.mxu0 0.0
    %4016 = vmatprep.mubr.f32.mxu0 0.0
    %4017 = vmatmul.mubr.f32.gmra.mrb[0].mxu0 %v3950
    %v4018 = vpop.f32.mrb[0].mxu0
    %v4019 = vadd.f32 %v3942, %v4018
    %v4020 = vpop.f32.mrb[0].mxu0
    %4021 = vdwg.mxu0
    %v4022 = vrot.slane %v921, 3
    %v4023 = vrot.slane %v926, 2
    %v4024 = vsel %vm976, %v4023, %v4022
    %v4026 = vadd.f32 %v4019, %v4024
    %v4027 = vsub.f32 0.0, %v4026
    %v4028 = vmul.f32 %v4027, 1.442695
    %v4029 = vpow.pop %v4028
    %v4030 = vadd.f32 %v4029, 1.0
    %v4031 = vrcp.pop %v4030
    %v4032 = vmul.f32 1.0, %v4031
    %v4033 = vtanh.pop %v4026
    %v4034 = vmul.f32 %v4032, %v3274
    %4036 = vrot.lane.b32.xlu0 %v4033, 64
    %v4037 = vpop.permute.xlu0 %4036
    %v4039 = vmul.f32 %v4032, %v4037
    %4041 = vrot.lane.b32.xlu0 %v4039, 32
    %v4042 = vpop.permute.xlu0 %4041
    %v4044 = vadd.f32 %v4034, %v4042
    %v4045 = vtanh.pop %v4044
    %4047 = vrot.lane.b32.xlu0 %v4045, 64
    %v4048 = vpop.permute.xlu0 %4047
    %v4050 = vmul.f32 %v4032, %v4048
    %v4051 = vrot.slane %v175, 4
    %v4052 = vrot.slane %v177, 3
    %v4053 = vsel %vm976, %v4052, %v4051
    %4054 = vrot.lane.b32.xlu0 %v4053, 96
    %v4055 = vpop.permute.xlu0 %4054
    %v4057 = vmul.f32 %v3665, %v4055
    %4059 = vrot.lane.b32.xlu0 %v4057, 32
    %v4060 = vpop.permute.xlu0 %4059
    %v4061 = vsel %vm978, %v4060, 0
    %4063 = vmatprep.subr.mxu0 0.0
    %4064 = vmatpush1.msra.mxu0 %v493
    %4065 = vmatprep.subr.mxu0 0.0
    %4066 = vmatpush1.msra.mxu0 %v494
    %4067 = vmatprep.subr.mxu0 0.0
    %4068 = vmatpush1.msra.mxu0 %v495
    %4069 = vmatprep.subr.mxu0 0.0
    %4070 = vmatpush1.msra.mxu0 %v496
    %4071 = vmatprep.subr.mxu0 0.0
    %4072 = vmatpush1.msra.mxu0 0.0
    %4073 = vmatprep.subr.mxu0 0.0
    %4074 = vmatpush1.msra.mxu0 0.0
    %4075 = vmatprep.subr.mxu0 0.0
    %4076 = vmatpush1.msra.mxu0 0.0
    %4077 = vmatprep.subr.mxu0 0.0
    %4078 = vmatpush1.msra.mxu0 0.0
    %4079 = vmatprep.subr.mxu0 0.0
    %4080 = vmatpush1.msra.mxu0 0.0
    %4081 = vmatprep.subr.mxu0 0.0
    %4082 = vmatpush1.msra.mxu0 0.0
    %4083 = vmatprep.subr.mxu0 0.0
    %4084 = vmatpush1.msra.mxu0 0.0
    %4085 = vmatprep.subr.mxu0 0.0
    %4086 = vmatpush1.msra.mxu0 0.0
    %4087 = vmatprep.subr.mxu0 0.0
    %4088 = vmatpush1.msra.mxu0 0.0
    %4089 = vmatprep.subr.mxu0 0.0
    %4090 = vmatpush1.msra.mxu0 0.0
    %4091 = vmatprep.subr.mxu0 0.0
    %4092 = vmatpush1.msra.mxu0 0.0
    %4093 = vmatprep.subr.mxu0 0.0
    %4094 = vmatpush1.msra.mxu0 0.0
    %4095 = vmatprep.subr.mxu0 0.0
    %4096 = vmatpush1.msra.mxu0 0.0
    %4097 = vmatprep.subr.mxu0 0.0
    %4098 = vmatpush1.msra.mxu0 0.0
    %4099 = vmatprep.subr.mxu0 0.0
    %4100 = vmatpush1.msra.mxu0 0.0
    %4101 = vmatprep.subr.mxu0 0.0
    %4102 = vmatpush1.msra.mxu0 0.0
    %4103 = vmatprep.subr.mxu0 0.0
    %4104 = vmatpush1.msra.mxu0 0.0
    %4105 = vmatprep.subr.mxu0 0.0
    %4106 = vmatpush1.msra.mxu0 0.0
    %4107 = vmatprep.subr.mxu0 0.0
    %4108 = vmatpush1.msra.mxu0 0.0
    %4109 = vmatprep.subr.mxu0 0.0
    %4110 = vmatpush1.msra.mxu0 0.0
    %4111 = vmatprep.subr.mxu0 0.0
    %4112 = vmatpush1.msra.mxu0 0.0
    %4113 = vmatprep.subr.mxu0 0.0
    %4114 = vmatpush1.msra.mxu0 0.0
    %4115 = vmatprep.subr.mxu0 0.0
    %4116 = vmatpush1.msra.mxu0 0.0
    %4117 = vmatprep.subr.mxu0 0.0
    %4118 = vmatpush1.msra.mxu0 0.0
    %4119 = vmatprep.subr.mxu0 0.0
    %4120 = vmatpush1.msra.mxu0 0.0
    %4121 = vmatprep.subr.mxu0 0.0
    %4122 = vmatpush1.msra.mxu0 0.0
    %4123 = vmatprep.subr.mxu0 0.0
    %4124 = vmatpush1.msra.mxu0 0.0
    %4125 = vmatprep.subr.mxu0 0.0
    %4126 = vmatpush1.msra.mxu0 0.0
    %4127 = vmatprep.mubr.f32.mxu0 0.0
    %4128 = vmatmul.mubr.f32.gmra.mrb[0].mxu0 %v4061
    %v4129 = vpop.f32.mrb[0].mxu0
    %v4130 = vadd.f32 %v508, %v4129
    %v4131 = vpop.f32.mrb[0].mxu0
    %4132 = vdwg.mxu0
    %v4134 = vrot.slane %v4130, 4
    %v4135 = vrot.slane %v4130, 5
    %v4138 = vmul.f32 %v1053, %v4134
    %v4139 = vmul.f32 %v1054, %v4135
    %v4140 = vadd.f32 %v1051, %v4138
    %v4141 = vadd.f32 %v1052, %v4139
    %v4144 = vrot.slane %v4140, 4
    %v4145 = vrot.slane %v4141, 3
    %v4146 = vsel %vm976, %v4145, %v4144
    %v4147 = vsel %vm84, %v4146, 0
    %4149 = vmatprep.subr.mxu0 0.0
    %4150 = vmatpush1.msra.mxu0 %v1070
    %4151 = vmatprep.subr.mxu0 0.0
    %4152 = vmatpush1.msra.mxu0 0.0
    %4153 = vmatprep.subr.mxu0 0.0
    %4154 = vmatpush1.msra.mxu0 0.0
    %4155 = vmatprep.subr.mxu0 0.0
    %4156 = vmatpush1.msra.mxu0 0.0
    %4157 = vmatprep.subr.mxu0 0.0
    %4158 = vmatpush1.msra.mxu0 0.0
    %4159 = vmatprep.subr.mxu0 0.0
    %4160 = vmatpush1.msra.mxu0 0.0
    %4161 = vmatprep.subr.mxu0 0.0
    %4162 = vmatpush1.msra.mxu0 0.0
    %4163 = vmatprep.subr.mxu0 0.0
    %4164 = vmatpush1.msra.mxu0 0.0
    %4165 = vmatprep.subr.mxu0 0.0
    %4166 = vmatpush1.msra.mxu0 0.0
    %4167 = vmatprep.subr.mxu0 0.0
    %4168 = vmatpush1.msra.mxu0 0.0
    %4169 = vmatprep.subr.mxu0 0.0
    %4170 = vmatpush1.msra.mxu0 0.0
    %4171 = vmatprep.subr.mxu0 0.0
    %4172 = vmatpush1.msra.mxu0 0.0
    %4173 = vmatprep.subr.mxu0 0.0
    %4174 = vmatpush1.msra.mxu0 0.0
    %4175 = vmatprep.subr.mxu0 0.0
    %4176 = vmatpush1.msra.mxu0 0.0
    %4177 = vmatprep.subr.mxu0 0.0
    %4178 = vmatpush1.msra.mxu0 0.0
    %4179 = vmatprep.subr.mxu0 0.0
    %4180 = vmatpush1.msra.mxu0 0.0
    %4181 = vmatprep.subr.mxu0 0.0
    %4182 = vmatpush1.msra.mxu0 0.0
    %4183 = vmatprep.subr.mxu0 0.0
    %4184 = vmatpush1.msra.mxu0 0.0
    %4185 = vmatprep.subr.mxu0 0.0
    %4186 = vmatpush1.msra.mxu0 0.0
    %4187 = vmatprep.subr.mxu0 0.0
    %4188 = vmatpush1.msra.mxu0 0.0
    %4189 = vmatprep.subr.mxu0 0.0
    %4190 = vmatpush1.msra.mxu0 0.0
    %4191 = vmatprep.subr.mxu0 0.0
    %4192 = vmatpush1.msra.mxu0 0.0
    %4193 = vmatprep.subr.mxu0 0.0
    %4194 = vmatpush1.msra.mxu0 0.0
    %4195 = vmatprep.subr.mxu0 0.0
    %4196 = vmatpush1.msra.mxu0 0.0
    %4197 = vmatprep.subr.mxu0 0.0
    %4198 = vmatpush1.msra.mxu0 0.0
    %4199 = vmatprep.subr.mxu0 0.0
    %4200 = vmatpush1.msra.mxu0 0.0
    %4201 = vmatprep.subr.mxu0 0.0
    %4202 = vmatpush1.msra.mxu0 0.0
    %4203 = vmatprep.subr.mxu0 0.0
    %4204 = vmatpush1.msra.mxu0 0.0
    %4205 = vmatprep.subr.mxu0 0.0
    %4206 = vmatpush1.msra.mxu0 0.0
    %4207 = vmatprep.subr.mxu0 0.0
    %4208 = vmatpush1.msra.mxu0 0.0
    %4209 = vmatprep.subr.mxu0 0.0
    %4210 = vmatpush1.msra.mxu0 0.0
    %4211 = vmatprep.subr.mxu0 0.0
    %4212 = vmatpush1.msra.mxu0 0.0
    %4213 = vmatprep.mubr.f32.mxu0 0.0
    %4214 = vmatmul.mubr.f32.gmra.mrb[0].mxu0 %v4147
    %v4215 = vpop.f32.mrb[0].mxu0
    %v4216 = vadd.f32 %v515, %v4215
    %v4217 = vpop.f32.mrb[0].mxu0
    %4218 = vdwg.mxu0
    %v4220 = vrot.slane %v4216, 4
    %v4221 = vrot.slane %v4216, 5
    %v4224 = vmul.f32 %v392, %v4220
    %v4225 = vmul.f32 %v394, %v4221
    %v4226 = vmul.f32 %v1148, %v4134
    %v4227 = vmul.f32 %v1149, %v4135
    %v4228 = vadd.f32 %v4224, %v4226
    %v4229 = vadd.f32 %v4225, %v4227
    %v4230 = vmul.f32 %v1053, %v4228
    %v4231 = vmul.f32 %v1054, %v4229
    %v4232 = vadd.f32 %v1051, %v4230
    %v4233 = vadd.f32 %v1052, %v4231
    %v4234 = vrot.slane %v64, 4
    %v4235 = vrot.slane %v65, 3
    %v4236 = vsel %vm976, %v4235, %v4234
    %v4238 = vsub.f32 %v4130, %v4236
    %v4239 = vand.u32 2147483647, %v4238
    %v4240 = vsub.f32 %v4216, %v4236
    %v4241 = vand.u32 2147483647, %v4240
    %v4242 = vadd.f32 %v4239, %v4241
    %v4243 = vsub.f32 %v4228, %v64
    %v4244 = vsub.f32 %v4229, %v65
    %v4245 = vand.u32 2147483647, %v4243
    %v4246 = vand.u32 2147483647, %v4244
    %v4249 = vrot.slane %v4245, 4
    %v4250 = vrot.slane %v4246, 3
    %v4251 = vsel %vm976, %v4250, %v4249
    %v4253 = vadd.f32 %v4242, %v4251
    %v4254 = vrot.slane %v491, 4
    %v4255 = vrot.slane %v492, 3
    %v4256 = vsel %vm976, %v4255, %v4254
    %v4258 = vmul.f32 %v4253, %v4256
    %v4259 = vadd.f32 %v3489, %v4258
    %4260 = vmatprep.subr.mxu0 0.0
    %4261 = vmatpush1.msra.mxu0 %v499
    %4262 = vmatprep.subr.mxu0 0.0
    %4263 = vmatpush1.msra.mxu0 %v500
    %4264 = vmatprep.subr.mxu0 0.0
    %4265 = vmatpush1.msra.mxu0 %v501
    %4266 = vmatprep.subr.mxu0 0.0
    %4267 = vmatpush1.msra.mxu0 %v502
    %4268 = vmatprep.subr.mxu0 0.0
    %4269 = vmatpush1.msra.mxu0 0.0
    %4270 = vmatprep.subr.mxu0 0.0
    %4271 = vmatpush1.msra.mxu0 0.0
    %4272 = vmatprep.subr.mxu0 0.0
    %4273 = vmatpush1.msra.mxu0 0.0
    %4274 = vmatprep.subr.mxu0 0.0
    %4275 = vmatpush1.msra.mxu0 0.0
    %4276 = vmatprep.subr.mxu0 0.0
    %4277 = vmatpush1.msra.mxu0 0.0
    %4278 = vmatprep.subr.mxu0 0.0
    %4279 = vmatpush1.msra.mxu0 0.0
    %4280 = vmatprep.subr.mxu0 0.0
    %4281 = vmatpush1.msra.mxu0 0.0
    %4282 = vmatprep.subr.mxu0 0.0
    %4283 = vmatpush1.msra.mxu0 0.0
    %4284 = vmatprep.subr.mxu0 0.0
    %4285 = vmatpush1.msra.mxu0 0.0
    %4286 = vmatprep.subr.mxu0 0.0
    %4287 = vmatpush1.msra.mxu0 0.0
    %4288 = vmatprep.subr.mxu0 0.0
    %4289 = vmatpush1.msra.mxu0 0.0
    %4290 = vmatprep.subr.mxu0 0.0
    %4291 = vmatpush1.msra.mxu0 0.0
    %4292 = vmatprep.subr.mxu0 0.0
    %4293 = vmatpush1.msra.mxu0 0.0
    %4294 = vmatprep.subr.mxu0 0.0
    %4295 = vmatpush1.msra.mxu0 0.0
    %4296 = vmatprep.subr.mxu0 0.0
    %4297 = vmatpush1.msra.mxu0 0.0
    %4298 = vmatprep.subr.mxu0 0.0
    %4299 = vmatpush1.msra.mxu0 0.0
    %4300 = vmatprep.subr.mxu0 0.0
    %4301 = vmatpush1.msra.mxu0 0.0
    %4302 = vmatprep.subr.mxu0 0.0
    %4303 = vmatpush1.msra.mxu0 0.0
    %4304 = vmatprep.subr.mxu0 0.0
    %4305 = vmatpush1.msra.mxu0 0.0
    %4306 = vmatprep.subr.mxu0 0.0
    %4307 = vmatpush1.msra.mxu0 0.0
    %4308 = vmatprep.subr.mxu0 0.0
    %4309 = vmatpush1.msra.mxu0 0.0
    %4310 = vmatprep.subr.mxu0 0.0
    %4311 = vmatpush1.msra.mxu0 0.0
    %4312 = vmatprep.subr.mxu0 0.0
    %4313 = vmatpush1.msra.mxu0 0.0
    %4314 = vmatprep.subr.mxu0 0.0
    %4315 = vmatpush1.msra.mxu0 0.0
    %4316 = vmatprep.subr.mxu0 0.0
    %4317 = vmatpush1.msra.mxu0 0.0
    %4318 = vmatprep.subr.mxu0 0.0
    %4319 = vmatpush1.msra.mxu0 0.0
    %4320 = vmatprep.subr.mxu0 0.0
    %4321 = vmatpush1.msra.mxu0 0.0
    %4322 = vmatprep.subr.mxu0 0.0
    %4323 = vmatpush1.msra.mxu0 0.0
    %4324 = vmatprep.mubr.f32.mxu0 0.0
    %4325 = vmatmul.mubr.f32.gmra.mrb[0].mxu0 %v4061
    %v4326 = vpop.f32.mrb[0].mxu0
    %v4327 = vadd.f32 0.0, %v4326
    %v4328 = vpop.f32.mrb[0].mxu0
    %4329 = vdwg.mxu0
    %v4332 = vrot.slane %v4232, 4
    %v4333 = vrot.slane %v4233, 3
    %v4334 = vsel %vm976, %v4333, %v4332
    %v4335 = vsel %vm84, %v4334, 0
    %4337 = vmatprep.subr.mxu0 0.0
    %4338 = vmatpush1.msra.mxu0 %v1262
    %4339 = vmatprep.subr.mxu0 0.0
    %4340 = vmatpush1.msra.mxu0 0.0
    %4341 = vmatprep.subr.mxu0 0.0
    %4342 = vmatpush1.msra.mxu0 0.0
    %4343 = vmatprep.subr.mxu0 0.0
    %4344 = vmatpush1.msra.mxu0 0.0
    %4345 = vmatprep.subr.mxu0 0.0
    %4346 = vmatpush1.msra.mxu0 0.0
    %4347 = vmatprep.subr.mxu0 0.0
    %4348 = vmatpush1.msra.mxu0 0.0
    %4349 = vmatprep.subr.mxu0 0.0
    %4350 = vmatpush1.msra.mxu0 0.0
    %4351 = vmatprep.subr.mxu0 0.0
    %4352 = vmatpush1.msra.mxu0 0.0
    %4353 = vmatprep.subr.mxu0 0.0
    %4354 = vmatpush1.msra.mxu0 0.0
    %4355 = vmatprep.subr.mxu0 0.0
    %4356 = vmatpush1.msra.mxu0 0.0
    %4357 = vmatprep.subr.mxu0 0.0
    %4358 = vmatpush1.msra.mxu0 0.0
    %4359 = vmatprep.subr.mxu0 0.0
    %4360 = vmatpush1.msra.mxu0 0.0
    %4361 = vmatprep.subr.mxu0 0.0
    %4362 = vmatpush1.msra.mxu0 0.0
    %4363 = vmatprep.subr.mxu0 0.0
    %4364 = vmatpush1.msra.mxu0 0.0
    %4365 = vmatprep.subr.mxu0 0.0
    %4366 = vmatpush1.msra.mxu0 0.0
    %4367 = vmatprep.subr.mxu0 0.0
    %4368 = vmatpush1.msra.mxu0 0.0
    %4369 = vmatprep.subr.mxu0 0.0
    %4370 = vmatpush1.msra.mxu0 0.0
    %4371 = vmatprep.subr.mxu0 0.0
    %4372 = vmatpush1.msra.mxu0 0.0
    %4373 = vmatprep.subr.mxu0 0.0
    %4374 = vmatpush1.msra.mxu0 0.0
    %4375 = vmatprep.subr.mxu0 0.0
    %4376 = vmatpush1.msra.mxu0 0.0
    %4377 = vmatprep.subr.mxu0 0.0
    %4378 = vmatpush1.msra.mxu0 0.0
    %4379 = vmatprep.subr.mxu0 0.0
    %4380 = vmatpush1.msra.mxu0 0.0
    %4381 = vmatprep.subr.mxu0 0.0
    %4382 = vmatpush1.msra.mxu0 0.0
    %4383 = vmatprep.subr.mxu0 0.0
    %4384 = vmatpush1.msra.mxu0 0.0
    %4385 = vmatprep.subr.mxu0 0.0
    %4386 = vmatpush1.msra.mxu0 0.0
    %4387 = vmatprep.subr.mxu0 0.0
    %4388 = vmatpush1.msra.mxu0 0.0
    %4389 = vmatprep.subr.mxu0 0.0
    %4390 = vmatpush1.msra.mxu0 0.0
    %4391 = vmatprep.subr.mxu0 0.0
    %4392 = vmatpush1.msra.mxu0 0.0
    %4393 = vmatprep.subr.mxu0 0.0
    %4394 = vmatpush1.msra.mxu0 0.0
    %4395 = vmatprep.subr.mxu0 0.0
    %4396 = vmatpush1.msra.mxu0 0.0
    %4397 = vmatprep.subr.mxu0 0.0
    %4398 = vmatpush1.msra.mxu0 0.0
    %4399 = vmatprep.subr.mxu0 0.0
    %4400 = vmatpush1.msra.mxu0 0.0
    %4401 = vmatprep.mubr.f32.mxu0 0.0
    %4402 = vmatmul.mubr.f32.gmra.mrb[0].mxu0 %v4335
    %v4403 = vpop.f32.mrb[0].mxu0
    %v4404 = vadd.f32 %v4327, %v4403
    %v4405 = vpop.f32.mrb[0].mxu0
    %4406 = vdwg.mxu0
    %v4407 = vrot.slane %v473, 4
    %v4408 = vrot.slane %v478, 3
    %v4409 = vsel %vm976, %v4408, %v4407
    %v4411 = vadd.f32 %v4404, %v4409
    %v4412 = vsub.f32 0.0, %v4411
    %v4413 = vmul.f32 %v4412, 1.442695
    %v4414 = vpow.pop %v4413
    %v4415 = vadd.f32 %v4414, 1.0
    %v4416 = vrcp.pop %v4415
    %v4417 = vmul.f32 1.0, %v4416
    %v4418 = vtanh.pop %v4411
    %v4419 = vmul.f32 %v4417, %v3659
    %4421 = vrot.lane.b32.xlu0 %v4418, 64
    %v4422 = vpop.permute.xlu0 %4421
    %v4424 = vmul.f32 %v4417, %v4422
    %4426 = vrot.lane.b32.xlu0 %v4424, 32
    %v4427 = vpop.permute.xlu0 %4426
    %v4429 = vadd.f32 %v4419, %v4427
    %v4430 = vtanh.pop %v4429
    %4432 = vrot.lane.b32.xlu0 %v4430, 64
    %v4433 = vpop.permute.xlu0 %4432
    %v4435 = vmul.f32 %v4417, %v4433
    %v4436 = vrot.slane %v616, 4
    %v4437 = vrot.slane %v618, 3
    %v4438 = vsel %vm976, %v4437, %v4436
    %4439 = vrot.lane.b32.xlu0 %v4438, 96
    %v4440 = vpop.permute.xlu0 %4439
    %v4442 = vmul.f32 %v4050, %v4440
    %4444 = vrot.lane.b32.xlu0 %v4442, 32
    %v4445 = vpop.permute.xlu0 %4444
    %v4446 = vsel %vm978, %v4445, 0
    %4448 = vmatprep.subr.mxu0 0.0
    %4449 = vmatpush1.msra.mxu0 %v942
    %4450 = vmatprep.subr.mxu0 0.0
    %4451 = vmatpush1.msra.mxu0 %v943
    %4452 = vmatprep.subr.mxu0 0.0
    %4453 = vmatpush1.msra.mxu0 %v944
    %4454 = vmatprep.subr.mxu0 0.0
    %4455 = vmatpush1.msra.mxu0 %v945
    %4456 = vmatprep.subr.mxu0 0.0
    %4457 = vmatpush1.msra.mxu0 0.0
    %4458 = vmatprep.subr.mxu0 0.0
    %4459 = vmatpush1.msra.mxu0 0.0
    %4460 = vmatprep.subr.mxu0 0.0
    %4461 = vmatpush1.msra.mxu0 0.0
    %4462 = vmatprep.subr.mxu0 0.0
    %4463 = vmatpush1.msra.mxu0 0.0
    %4464 = vmatprep.subr.mxu0 0.0
    %4465 = vmatpush1.msra.mxu0 0.0
    %4466 = vmatprep.subr.mxu0 0.0
    %4467 = vmatpush1.msra.mxu0 0.0
    %4468 = vmatprep.subr.mxu0 0.0
    %4469 = vmatpush1.msra.mxu0 0.0
    %4470 = vmatprep.subr.mxu0 0.0
    %4471 = vmatpush1.msra.mxu0 0.0
    %4472 = vmatprep.subr.mxu0 0.0
    %4473 = vmatpush1.msra.mxu0 0.0
    %4474 = vmatprep.subr.mxu0 0.0
    %4475 = vmatpush1.msra.mxu0 0.0
    %4476 = vmatprep.subr.mxu0 0.0
    %4477 = vmatpush1.msra.mxu0 0.0
    %4478 = vmatprep.subr.mxu0 0.0
    %4479 = vmatpush1.msra.mxu0 0.0
    %4480 = vmatprep.subr.mxu0 0.0
    %4481 = vmatpush1.msra.mxu0 0.0
    %4482 = vmatprep.subr.mxu0 0.0
    %4483 = vmatpush1.msra.mxu0 0.0
    %4484 = vmatprep.subr.mxu0 0.0
    %4485 = vmatpush1.msra.mxu0 0.0
    %4486 = vmatprep.subr.mxu0 0.0
    %4487 = vmatpush1.msra.mxu0 0.0
    %4488 = vmatprep.subr.mxu0 0.0
    %4489 = vmatpush1.msra.mxu0 0.0
    %4490 = vmatprep.subr.mxu0 0.0
    %4491 = vmatpush1.msra.mxu0 0.0
    %4492 = vmatprep.subr.mxu0 0.0
    %4493 = vmatpush1.msra.mxu0 0.0
    %4494 = vmatprep.subr.mxu0 0.0
    %4495 = vmatpush1.msra.mxu0 0.0
    %4496 = vmatprep.subr.mxu0 0.0
    %4497 = vmatpush1.msra.mxu0 0.0
    %4498 = vmatprep.subr.mxu0 0.0
    %4499 = vmatpush1.msra.mxu0 0.0
    %4500 = vmatprep.subr.mxu0 0.0
    %4501 = vmatpush1.msra.mxu0 0.0
    %4502 = vmatprep.subr.mxu0 0.0
    %4503 = vmatpush1.msra.mxu0 0.0
    %4504 = vmatprep.subr.mxu0 0.0
    %4505 = vmatpush1.msra.mxu0 0.0
    %4506 = vmatprep.subr.mxu0 0.0
    %4507 = vmatpush1.msra.mxu0 0.0
    %4508 = vmatprep.subr.mxu0 0.0
    %4509 = vmatpush1.msra.mxu0 0.0
    %4510 = vmatprep.subr.mxu0 0.0
    %4511 = vmatpush1.msra.mxu0 0.0
    %4512 = vmatprep.mubr.f32.mxu0 0.0
    %4513 = vmatmul.mubr.f32.gmra.mrb[0].mxu0 %v4446
    %v4514 = vpop.f32.mrb[0].mxu0
    %v4515 = vadd.f32 %v961, %v4514
    %v4516 = vpop.f32.mrb[0].mxu0
    %4517 = vdwg.mxu0
    %v4519 = vrot.slane %v4515, 4
    %v4520 = vrot.slane %v4515, 5
    %v4523 = vmul.f32 %v1444, %v4519
    %v4524 = vmul.f32 %v1445, %v4520
    %v4525 = vadd.f32 %v1442, %v4523
    %v4526 = vadd.f32 %v1443, %v4524
    %v4529 = vrot.slane %v4525, 4
    %v4530 = vrot.slane %v4526, 3
    %v4531 = vsel %vm976, %v4530, %v4529
    %v4532 = vsel %vm84, %v4531, 0
    %4534 = vmatprep.subr.mxu0 0.0
    %4535 = vmatpush1.msra.mxu0 %v1461
    %4536 = vmatprep.subr.mxu0 0.0
    %4537 = vmatpush1.msra.mxu0 0.0
    %4538 = vmatprep.subr.mxu0 0.0
    %4539 = vmatpush1.msra.mxu0 0.0
    %4540 = vmatprep.subr.mxu0 0.0
    %4541 = vmatpush1.msra.mxu0 0.0
    %4542 = vmatprep.subr.mxu0 0.0
    %4543 = vmatpush1.msra.mxu0 0.0
    %4544 = vmatprep.subr.mxu0 0.0
    %4545 = vmatpush1.msra.mxu0 0.0
    %4546 = vmatprep.subr.mxu0 0.0
    %4547 = vmatpush1.msra.mxu0 0.0
    %4548 = vmatprep.subr.mxu0 0.0
    %4549 = vmatpush1.msra.mxu0 0.0
    %4550 = vmatprep.subr.mxu0 0.0
    %4551 = vmatpush1.msra.mxu0 0.0
    %4552 = vmatprep.subr.mxu0 0.0
    %4553 = vmatpush1.msra.mxu0 0.0
    %4554 = vmatprep.subr.mxu0 0.0
    %4555 = vmatpush1.msra.mxu0 0.0
    %4556 = vmatprep.subr.mxu0 0.0
    %4557 = vmatpush1.msra.mxu0 0.0
    %4558 = vmatprep.subr.mxu0 0.0
    %4559 = vmatpush1.msra.mxu0 0.0
    %4560 = vmatprep.subr.mxu0 0.0
    %4561 = vmatpush1.msra.mxu0 0.0
    %4562 = vmatprep.subr.mxu0 0.0
    %4563 = vmatpush1.msra.mxu0 0.0
    %4564 = vmatprep.subr.mxu0 0.0
    %4565 = vmatpush1.msra.mxu0 0.0
    %4566 = vmatprep.subr.mxu0 0.0
    %4567 = vmatpush1.msra.mxu0 0.0
    %4568 = vmatprep.subr.mxu0 0.0
    %4569 = vmatpush1.msra.mxu0 0.0
    %4570 = vmatprep.subr.mxu0 0.0
    %4571 = vmatpush1.msra.mxu0 0.0
    %4572 = vmatprep.subr.mxu0 0.0
    %4573 = vmatpush1.msra.mxu0 0.0
    %4574 = vmatprep.subr.mxu0 0.0
    %4575 = vmatpush1.msra.mxu0 0.0
    %4576 = vmatprep.subr.mxu0 0.0
    %4577 = vmatpush1.msra.mxu0 0.0
    %4578 = vmatprep.subr.mxu0 0.0
    %4579 = vmatpush1.msra.mxu0 0.0
    %4580 = vmatprep.subr.mxu0 0.0
    %4581 = vmatpush1.msra.mxu0 0.0
    %4582 = vmatprep.subr.mxu0 0.0
    %4583 = vmatpush1.msra.mxu0 0.0
    %4584 = vmatprep.subr.mxu0 0.0
    %4585 = vmatpush1.msra.mxu0 0.0
    %4586 = vmatprep.subr.mxu0 0.0
    %4587 = vmatpush1.msra.mxu0 0.0
    %4588 = vmatprep.subr.mxu0 0.0
    %4589 = vmatpush1.msra.mxu0 0.0
    %4590 = vmatprep.subr.mxu0 0.0
    %4591 = vmatpush1.msra.mxu0 0.0
    %4592 = vmatprep.subr.mxu0 0.0
    %4593 = vmatpush1.msra.mxu0 0.0
    %4594 = vmatprep.subr.mxu0 0.0
    %4595 = vmatpush1.msra.mxu0 0.0
    %4596 = vmatprep.subr.mxu0 0.0
    %4597 = vmatpush1.msra.mxu0 0.0
    %4598 = vmatprep.mubr.f32.mxu0 0.0
    %4599 = vmatmul.mubr.f32.gmra.mrb[0].mxu0 %v4532
    %v4600 = vpop.f32.mrb[0].mxu0
    %v4601 = vadd.f32 %v969, %v4600
    %v4602 = vpop.f32.mrb[0].mxu0
    %4603 = vdwg.mxu0
    %v4605 = vrot.slane %v4601, 4
    %v4606 = vrot.slane %v4601, 5
    %v4609 = vmul.f32 %v838, %v4605
    %v4610 = vmul.f32 %v840, %v4606
    %v4611 = vmul.f32 %v1539, %v4519
    %v4612 = vmul.f32 %v1540, %v4520
    %v4613 = vadd.f32 %v4609, %v4611
    %v4614 = vadd.f32 %v4610, %v4612
    %v4615 = vmul.f32 %v1444, %v4613
    %v4616 = vmul.f32 %v1445, %v4614
    %v4617 = vadd.f32 %v1442, %v4615
    %v4618 = vadd.f32 %v1443, %v4616
    %v4619 = vrot.slane %v66, 4
    %v4620 = vrot.slane %v67, 3
    %v4621 = vsel %vm976, %v4620, %v4619
    %v4623 = vsub.f32 %v4515, %v4621
    %v4624 = vand.u32 2147483647, %v4623
    %v4625 = vsub.f32 %v4601, %v4621
    %v4626 = vand.u32 2147483647, %v4625
    %v4627 = vadd.f32 %v4624, %v4626
    %v4628 = vsub.f32 %v4613, %v66
    %v4629 = vsub.f32 %v4614, %v67
    %v4630 = vand.u32 2147483647, %v4628
    %v4631 = vand.u32 2147483647, %v4629
    %v4634 = vrot.slane %v4630, 4
    %v4635 = vrot.slane %v4631, 3
    %v4636 = vsel %vm976, %v4635, %v4634
    %v4638 = vadd.f32 %v4627, %v4636
    %v4639 = vrot.slane %v939, 4
    %v4640 = vrot.slane %v940, 3
    %v4641 = vsel %vm976, %v4640, %v4639
    %v4643 = vmul.f32 %v4638, %v4641
    %v4644 = vadd.f32 %v3874, %v4643
    %4645 = vmatprep.subr.mxu0 0.0
    %4646 = vmatpush1.msra.mxu0 %v951
    %4647 = vmatprep.subr.mxu0 0.0
    %4648 = vmatpush1.msra.mxu0 %v952
    %4649 = vmatprep.subr.mxu0 0.0
    %4650 = vmatpush1.msra.mxu0 %v953
    %4651 = vmatprep.subr.mxu0 0.0
    %4652 = vmatpush1.msra.mxu0 %v954
    %4653 = vmatprep.subr.mxu0 0.0
    %4654 = vmatpush1.msra.mxu0 0.0
    %4655 = vmatprep.subr.mxu0 0.0
    %4656 = vmatpush1.msra.mxu0 0.0
    %4657 = vmatprep.subr.mxu0 0.0
    %4658 = vmatpush1.msra.mxu0 0.0
    %4659 = vmatprep.subr.mxu0 0.0
    %4660 = vmatpush1.msra.mxu0 0.0
    %4661 = vmatprep.subr.mxu0 0.0
    %4662 = vmatpush1.msra.mxu0 0.0
    %4663 = vmatprep.subr.mxu0 0.0
    %4664 = vmatpush1.msra.mxu0 0.0
    %4665 = vmatprep.subr.mxu0 0.0
    %4666 = vmatpush1.msra.mxu0 0.0
    %4667 = vmatprep.subr.mxu0 0.0
    %4668 = vmatpush1.msra.mxu0 0.0
    %4669 = vmatprep.subr.mxu0 0.0
    %4670 = vmatpush1.msra.mxu0 0.0
    %4671 = vmatprep.subr.mxu0 0.0
    %4672 = vmatpush1.msra.mxu0 0.0
    %4673 = vmatprep.subr.mxu0 0.0
    %4674 = vmatpush1.msra.mxu0 0.0
    %4675 = vmatprep.subr.mxu0 0.0
    %4676 = vmatpush1.msra.mxu0 0.0
    %4677 = vmatprep.subr.mxu0 0.0
    %4678 = vmatpush1.msra.mxu0 0.0
    %4679 = vmatprep.subr.mxu0 0.0
    %4680 = vmatpush1.msra.mxu0 0.0
    %4681 = vmatprep.subr.mxu0 0.0
    %4682 = vmatpush1.msra.mxu0 0.0
    %4683 = vmatprep.subr.mxu0 0.0
    %4684 = vmatpush1.msra.mxu0 0.0
    %4685 = vmatprep.subr.mxu0 0.0
    %4686 = vmatpush1.msra.mxu0 0.0
    %4687 = vmatprep.subr.mxu0 0.0
    %4688 = vmatpush1.msra.mxu0 0.0
    %4689 = vmatprep.subr.mxu0 0.0
    %4690 = vmatpush1.msra.mxu0 0.0
    %4691 = vmatprep.subr.mxu0 0.0
    %4692 = vmatpush1.msra.mxu0 0.0
    %4693 = vmatprep.subr.mxu0 0.0
    %4694 = vmatpush1.msra.mxu0 0.0
    %4695 = vmatprep.subr.mxu0 0.0
    %4696 = vmatpush1.msra.mxu0 0.0
    %4697 = vmatprep.subr.mxu0 0.0
    %4698 = vmatpush1.msra.mxu0 0.0
    %4699 = vmatprep.subr.mxu0 0.0
    %4700 = vmatpush1.msra.mxu0 0.0
    %4701 = vmatprep.subr.mxu0 0.0
    %4702 = vmatpush1.msra.mxu0 0.0
    %4703 = vmatprep.subr.mxu0 0.0
    %4704 = vmatpush1.msra.mxu0 0.0
    %4705 = vmatprep.subr.mxu0 0.0
    %4706 = vmatpush1.msra.mxu0 0.0
    %4707 = vmatprep.subr.mxu0 0.0
    %4708 = vmatpush1.msra.mxu0 0.0
    %4709 = vmatprep.mubr.f32.mxu0 0.0
    %4710 = vmatmul.mubr.f32.gmra.mrb[0].mxu0 %v4446
    %v4711 = vpop.f32.mrb[0].mxu0
    %v4712 = vadd.f32 0.0, %v4711
    %v4713 = vpop.f32.mrb[0].mxu0
    %4714 = vdwg.mxu0
    %v4717 = vrot.slane %v4617, 4
    %v4718 = vrot.slane %v4618, 3
    %v4719 = vsel %vm976, %v4718, %v4717
    %v4720 = vsel %vm84, %v4719, 0
    %4722 = vmatprep.subr.mxu0 0.0
    %4723 = vmatpush1.msra.mxu0 %v1653
    %4724 = vmatprep.subr.mxu0 0.0
    %4725 = vmatpush1.msra.mxu0 0.0
    %4726 = vmatprep.subr.mxu0 0.0
    %4727 = vmatpush1.msra.mxu0 0.0
    %4728 = vmatprep.subr.mxu0 0.0
    %4729 = vmatpush1.msra.mxu0 0.0
    %4730 = vmatprep.subr.mxu0 0.0
    %4731 = vmatpush1.msra.mxu0 0.0
    %4732 = vmatprep.subr.mxu0 0.0
    %4733 = vmatpush1.msra.mxu0 0.0
    %4734 = vmatprep.subr.mxu0 0.0
    %4735 = vmatpush1.msra.mxu0 0.0
    %4736 = vmatprep.subr.mxu0 0.0
    %4737 = vmatpush1.msra.mxu0 0.0
    %4738 = vmatprep.subr.mxu0 0.0
    %4739 = vmatpush1.msra.mxu0 0.0
    %4740 = vmatprep.subr.mxu0 0.0
    %4741 = vmatpush1.msra.mxu0 0.0
    %4742 = vmatprep.subr.mxu0 0.0
    %4743 = vmatpush1.msra.mxu0 0.0
    %4744 = vmatprep.subr.mxu0 0.0
    %4745 = vmatpush1.msra.mxu0 0.0
    %4746 = vmatprep.subr.mxu0 0.0
    %4747 = vmatpush1.msra.mxu0 0.0
    %4748 = vmatprep.subr.mxu0 0.0
    %4749 = vmatpush1.msra.mxu0 0.0
    %4750 = vmatprep.subr.mxu0 0.0
    %4751 = vmatpush1.msra.mxu0 0.0
    %4752 = vmatprep.subr.mxu0 0.0
    %4753 = vmatpush1.msra.mxu0 0.0
    %4754 = vmatprep.subr.mxu0 0.0
    %4755 = vmatpush1.msra.mxu0 0.0
    %4756 = vmatprep.subr.mxu0 0.0
    %4757 = vmatpush1.msra.mxu0 0.0
    %4758 = vmatprep.subr.mxu0 0.0
    %4759 = vmatpush1.msra.mxu0 0.0
    %4760 = vmatprep.subr.mxu0 0.0
    %4761 = vmatpush1.msra.mxu0 0.0
    %4762 = vmatprep.subr.mxu0 0.0
    %4763 = vmatpush1.msra.mxu0 0.0
    %4764 = vmatprep.subr.mxu0 0.0
    %4765 = vmatpush1.msra.mxu0 0.0
    %4766 = vmatprep.subr.mxu0 0.0
    %4767 = vmatpush1.msra.mxu0 0.0
    %4768 = vmatprep.subr.mxu0 0.0
    %4769 = vmatpush1.msra.mxu0 0.0
    %4770 = vmatprep.subr.mxu0 0.0
    %4771 = vmatpush1.msra.mxu0 0.0
    %4772 = vmatprep.subr.mxu0 0.0
    %4773 = vmatpush1.msra.mxu0 0.0
    %4774 = vmatprep.subr.mxu0 0.0
    %4775 = vmatpush1.msra.mxu0 0.0
    %4776 = vmatprep.subr.mxu0 0.0
    %4777 = vmatpush1.msra.mxu0 0.0
    %4778 = vmatprep.subr.mxu0 0.0
    %4779 = vmatpush1.msra.mxu0 0.0
    %4780 = vmatprep.subr.mxu0 0.0
    %4781 = vmatpush1.msra.mxu0 0.0
    %4782 = vmatprep.subr.mxu0 0.0
    %4783 = vmatpush1.msra.mxu0 0.0
    %4784 = vmatprep.subr.mxu0 0.0
    %4785 = vmatpush1.msra.mxu0 0.0
    %4786 = vmatprep.mubr.f32.mxu0 0.0
    %4787 = vmatmul.mubr.f32.gmra.mrb[0].mxu0 %v4720
    %v4788 = vpop.f32.mrb[0].mxu0
    %v4789 = vadd.f32 %v4712, %v4788
    %v4790 = vpop.f32.mrb[0].mxu0
    %4791 = vdwg.mxu0
    %v4792 = vrot.slane %v921, 4
    %v4793 = vrot.slane %v926, 3
    %v4794 = vsel %vm976, %v4793, %v4792
    %v4796 = vadd.f32 %v4789, %v4794
    %v4797 = vsub.f32 0.0, %v4796
    %v4798 = vmul.f32 %v4797, 1.442695
    %v4799 = vpow.pop %v4798
    %v4800 = vadd.f32 %v4799, 1.0
    %v4801 = vrcp.pop %v4800
    %v4802 = vmul.f32 1.0, %v4801
    %v4803 = vtanh.pop %v4796
    %v4804 = vmul.f32 %v4802, %v4044
    %4806 = vrot.lane.b32.xlu0 %v4803, 64
    %v4807 = vpop.permute.xlu0 %4806
    %v4809 = vmul.f32 %v4802, %v4807
    %4811 = vrot.lane.b32.xlu0 %v4809, 32
    %v4812 = vpop.permute.xlu0 %4811
    %v4814 = vadd.f32 %v4804, %v4812
    %v4815 = vtanh.pop %v4814
    %4817 = vrot.lane.b32.xlu0 %v4815, 64
    %v4818 = vpop.permute.xlu0 %4817
    %v4820 = vmul.f32 %v4802, %v4818
    %v4821 = vrot.slane %v175, 5
    %v4822 = vrot.slane %v177, 4
    %v4823 = vsel %vm976, %v4822, %v4821
    %4824 = vrot.lane.b32.xlu0 %v4823, 96
    %v4825 = vpop.permute.xlu0 %4824
    %v4827 = vmul.f32 %v4435, %v4825
    %4829 = vrot.lane.b32.xlu0 %v4827, 32
    %v4830 = vpop.permute.xlu0 %4829
    %v4831 = vsel %vm978, %v4830, 0
    %4833 = vmatprep.subr.mxu0 0.0
    %4834 = vmatpush1.msra.mxu0 %v493
    %4835 = vmatprep.subr.mxu0 0.0
    %4836 = vmatpush1.msra.mxu0 %v494
    %4837 = vmatprep.subr.mxu0 0.0
    %4838 = vmatpush1.msra.mxu0 %v495
    %4839 = vmatprep.subr.mxu0 0.0
    %4840 = vmatpush1.msra.mxu0 %v496
    %4841 = vmatprep.subr.mxu0 0.0
    %4842 = vmatpush1.msra.mxu0 0.0
    %4843 = vmatprep.subr.mxu0 0.0
    %4844 = vmatpush1.msra.mxu0 0.0
    %4845 = vmatprep.subr.mxu0 0.0
    %4846 = vmatpush1.msra.mxu0 0.0
    %4847 = vmatprep.subr.mxu0 0.0
    %4848 = vmatpush1.msra.mxu0 0.0
    %4849 = vmatprep.subr.mxu0 0.0
    %4850 = vmatpush1.msra.mxu0 0.0
    %4851 = vmatprep.subr.mxu0 0.0
    %4852 = vmatpush1.msra.mxu0 0.0
    %4853 = vmatprep.subr.mxu0 0.0
    %4854 = vmatpush1.msra.mxu0 0.0
    %4855 = vmatprep.subr.mxu0 0.0
    %4856 = vmatpush1.msra.mxu0 0.0
    %4857 = vmatprep.subr.mxu0 0.0
    %4858 = vmatpush1.msra.mxu0 0.0
    %4859 = vmatprep.subr.mxu0 0.0
    %4860 = vmatpush1.msra.mxu0 0.0
    %4861 = vmatprep.subr.mxu0 0.0
    %4862 = vmatpush1.msra.mxu0 0.0
    %4863 = vmatprep.subr.mxu0 0.0
    %4864 = vmatpush1.msra.mxu0 0.0
    %4865 = vmatprep.subr.mxu0 0.0
    %4866 = vmatpush1.msra.mxu0 0.0
    %4867 = vmatprep.subr.mxu0 0.0
    %4868 = vmatpush1.msra.mxu0 0.0
    %4869 = vmatprep.subr.mxu0 0.0
    %4870 = vmatpush1.msra.mxu0 0.0
    %4871 = vmatprep.subr.mxu0 0.0
    %4872 = vmatpush1.msra.mxu0 0.0
    %4873 = vmatprep.subr.mxu0 0.0
    %4874 = vmatpush1.msra.mxu0 0.0
    %4875 = vmatprep.subr.mxu0 0.0
    %4876 = vmatpush1.msra.mxu0 0.0
    %4877 = vmatprep.subr.mxu0 0.0
    %4878 = vmatpush1.msra.mxu0 0.0
    %4879 = vmatprep.subr.mxu0 0.0
    %4880 = vmatpush1.msra.mxu0 0.0
    %4881 = vmatprep.subr.mxu0 0.0
    %4882 = vmatpush1.msra.mxu0 0.0
    %4883 = vmatprep.subr.mxu0 0.0
    %4884 = vmatpush1.msra.mxu0 0.0
    %4885 = vmatprep.subr.mxu0 0.0
    %4886 = vmatpush1.msra.mxu0 0.0
    %4887 = vmatprep.subr.mxu0 0.0
    %4888 = vmatpush1.msra.mxu0 0.0
    %4889 = vmatprep.subr.mxu0 0.0
    %4890 = vmatpush1.msra.mxu0 0.0
    %4891 = vmatprep.subr.mxu0 0.0
    %4892 = vmatpush1.msra.mxu0 0.0
    %4893 = vmatprep.subr.mxu0 0.0
    %4894 = vmatpush1.msra.mxu0 0.0
    %4895 = vmatprep.subr.mxu0 0.0
    %4896 = vmatpush1.msra.mxu0 0.0
    %4897 = vmatprep.mubr.f32.mxu0 0.0
    %4898 = vmatmul.mubr.f32.gmra.mrb[0].mxu0 %v4831
    %v4899 = vpop.f32.mrb[0].mxu0
    %v4900 = vadd.f32 %v508, %v4899
    %v4901 = vpop.f32.mrb[0].mxu0
    %4902 = vdwg.mxu0
    %v4904 = vrot.slane %v4900, 3
    %v4905 = vrot.slane %v4900, 4
    %v4908 = vmul.f32 %v1053, %v4904
    %v4909 = vmul.f32 %v1054, %v4905
    %v4910 = vadd.f32 %v1051, %v4908
    %v4911 = vadd.f32 %v1052, %v4909
    %v4914 = vrot.slane %v4910, 5
    %v4915 = vrot.slane %v4911, 4
    %v4916 = vsel %vm976, %v4915, %v4914
    %v4917 = vsel %vm84, %v4916, 0
    %4919 = vmatprep.subr.mxu0 0.0
    %4920 = vmatpush1.msra.mxu0 %v1070
    %4921 = vmatprep.subr.mxu0 0.0
    %4922 = vmatpush1.msra.mxu0 0.0
    %4923 = vmatprep.subr.mxu0 0.0
    %4924 = vmatpush1.msra.mxu0 0.0
    %4925 = vmatprep.subr.mxu0 0.0
    %4926 = vmatpush1.msra.mxu0 0.0
    %4927 = vmatprep.subr.mxu0 0.0
    %4928 = vmatpush1.msra.mxu0 0.0
    %4929 = vmatprep.subr.mxu0 0.0
    %4930 = vmatpush1.msra.mxu0 0.0
    %4931 = vmatprep.subr.mxu0 0.0
    %4932 = vmatpush1.msra.mxu0 0.0
    %4933 = vmatprep.subr.mxu0 0.0
    %4934 = vmatpush1.msra.mxu0 0.0
    %4935 = vmatprep.subr.mxu0 0.0
    %4936 = vmatpush1.msra.mxu0 0.0
    %4937 = vmatprep.subr.mxu0 0.0
    %4938 = vmatpush1.msra.mxu0 0.0
    %4939 = vmatprep.subr.mxu0 0.0
    %4940 = vmatpush1.msra.mxu0 0.0
    %4941 = vmatprep.subr.mxu0 0.0
    %4942 = vmatpush1.msra.mxu0 0.0
    %4943 = vmatprep.subr.mxu0 0.0
    %4944 = vmatpush1.msra.mxu0 0.0
    %4945 = vmatprep.subr.mxu0 0.0
    %4946 = vmatpush1.msra.mxu0 0.0
    %4947 = vmatprep.subr.mxu0 0.0
    %4948 = vmatpush1.msra.mxu0 0.0
    %4949 = vmatprep.subr.mxu0 0.0
    %4950 = vmatpush1.msra.mxu0 0.0
    %4951 = vmatprep.subr.mxu0 0.0
    %4952 = vmatpush1.msra.mxu0 0.0
    %4953 = vmatprep.subr.mxu0 0.0
    %4954 = vmatpush1.msra.mxu0 0.0
    %4955 = vmatprep.subr.mxu0 0.0
    %4956 = vmatpush1.msra.mxu0 0.0
    %4957 = vmatprep.subr.mxu0 0.0
    %4958 = vmatpush1.msra.mxu0 0.0
    %4959 = vmatprep.subr.mxu0 0.0
    %4960 = vmatpush1.msra.mxu0 0.0
    %4961 = vmatprep.subr.mxu0 0.0
    %4962 = vmatpush1.msra.mxu0 0.0
    %4963 = vmatprep.subr.mxu0 0.0
    %4964 = vmatpush1.msra.mxu0 0.0
    %4965 = vmatprep.subr.mxu0 0.0
    %4966 = vmatpush1.msra.mxu0 0.0
    %4967 = vmatprep.subr.mxu0 0.0
    %4968 = vmatpush1.msra.mxu0 0.0
    %4969 = vmatprep.subr.mxu0 0.0
    %4970 = vmatpush1.msra.mxu0 0.0
    %4971 = vmatprep.subr.mxu0 0.0
    %4972 = vmatpush1.msra.mxu0 0.0
    %4973 = vmatprep.subr.mxu0 0.0
    %4974 = vmatpush1.msra.mxu0 0.0
    %4975 = vmatprep.subr.mxu0 0.0
    %4976 = vmatpush1.msra.mxu0 0.0
    %4977 = vmatprep.subr.mxu0 0.0
    %4978 = vmatpush1.msra.mxu0 0.0
    %4979 = vmatprep.subr.mxu0 0.0
    %4980 = vmatpush1.msra.mxu0 0.0
    %4981 = vmatprep.subr.mxu0 0.0
    %4982 = vmatpush1.msra.mxu0 0.0
    %4983 = vmatprep.mubr.f32.mxu0 0.0
    %4984 = vmatmul.mubr.f32.gmra.mrb[0].mxu0 %v4917
    %v4985 = vpop.f32.mrb[0].mxu0
    %v4986 = vadd.f32 %v515, %v4985
    %v4987 = vpop.f32.mrb[0].mxu0
    %4988 = vdwg.mxu0
    %v4990 = vrot.slane %v4986, 3
    %v4991 = vrot.slane %v4986, 4
    %v4994 = vmul.f32 %v392, %v4990
    %v4995 = vmul.f32 %v394, %v4991
    %v4996 = vmul.f32 %v1148, %v4904
    %v4997 = vmul.f32 %v1149, %v4905
    %v4998 = vadd.f32 %v4994, %v4996
    %v4999 = vadd.f32 %v4995, %v4997
    %v5000 = vmul.f32 %v1053, %v4998
    %v5001 = vmul.f32 %v1054, %v4999
    %v5002 = vadd.f32 %v1051, %v5000
    %v5003 = vadd.f32 %v1052, %v5001
    %v5004 = vrot.slane %v64, 5
    %v5005 = vrot.slane %v65, 4
    %v5006 = vsel %vm976, %v5005, %v5004
    %v5008 = vsub.f32 %v4900, %v5006
    %v5009 = vand.u32 2147483647, %v5008
    %v5010 = vsub.f32 %v4986, %v5006
    %v5011 = vand.u32 2147483647, %v5010
    %v5012 = vadd.f32 %v5009, %v5011
    %v5013 = vsub.f32 %v4998, %v64
    %v5014 = vsub.f32 %v4999, %v65
    %v5015 = vand.u32 2147483647, %v5013
    %v5016 = vand.u32 2147483647, %v5014
    %v5019 = vrot.slane %v5015, 5
    %v5020 = vrot.slane %v5016, 4
    %v5021 = vsel %vm976, %v5020, %v5019
    %v5023 = vadd.f32 %v5012, %v5021
    %v5024 = vrot.slane %v491, 5
    %v5025 = vrot.slane %v492, 4
    %v5026 = vsel %vm976, %v5025, %v5024
    %v5028 = vmul.f32 %v5023, %v5026
    %v5029 = vadd.f32 %v4259, %v5028
    %5030 = vmatprep.subr.mxu0 0.0
    %5031 = vmatpush1.msra.mxu0 %v499
    %5032 = vmatprep.subr.mxu0 0.0
    %5033 = vmatpush1.msra.mxu0 %v500
    %5034 = vmatprep.subr.mxu0 0.0
    %5035 = vmatpush1.msra.mxu0 %v501
    %5036 = vmatprep.subr.mxu0 0.0
    %5037 = vmatpush1.msra.mxu0 %v502
    %5038 = vmatprep.subr.mxu0 0.0
    %5039 = vmatpush1.msra.mxu0 0.0
    %5040 = vmatprep.subr.mxu0 0.0
    %5041 = vmatpush1.msra.mxu0 0.0
    %5042 = vmatprep.subr.mxu0 0.0
    %5043 = vmatpush1.msra.mxu0 0.0
    %5044 = vmatprep.subr.mxu0 0.0
    %5045 = vmatpush1.msra.mxu0 0.0
    %5046 = vmatprep.subr.mxu0 0.0
    %5047 = vmatpush1.msra.mxu0 0.0
    %5048 = vmatprep.subr.mxu0 0.0
    %5049 = vmatpush1.msra.mxu0 0.0
    %5050 = vmatprep.subr.mxu0 0.0
    %5051 = vmatpush1.msra.mxu0 0.0
    %5052 = vmatprep.subr.mxu0 0.0
    %5053 = vmatpush1.msra.mxu0 0.0
    %5054 = vmatprep.subr.mxu0 0.0
    %5055 = vmatpush1.msra.mxu0 0.0
    %5056 = vmatprep.subr.mxu0 0.0
    %5057 = vmatpush1.msra.mxu0 0.0
    %5058 = vmatprep.subr.mxu0 0.0
    %5059 = vmatpush1.msra.mxu0 0.0
    %5060 = vmatprep.subr.mxu0 0.0
    %5061 = vmatpush1.msra.mxu0 0.0
    %5062 = vmatprep.subr.mxu0 0.0
    %5063 = vmatpush1.msra.mxu0 0.0
    %5064 = vmatprep.subr.mxu0 0.0
    %5065 = vmatpush1.msra.mxu0 0.0
    %5066 = vmatprep.subr.mxu0 0.0
    %5067 = vmatpush1.msra.mxu0 0.0
    %5068 = vmatprep.subr.mxu0 0.0
    %5069 = vmatpush1.msra.mxu0 0.0
    %5070 = vmatprep.subr.mxu0 0.0
    %5071 = vmatpush1.msra.mxu0 0.0
    %5072 = vmatprep.subr.mxu0 0.0
    %5073 = vmatpush1.msra.mxu0 0.0
    %5074 = vmatprep.subr.mxu0 0.0
    %5075 = vmatpush1.msra.mxu0 0.0
    %5076 = vmatprep.subr.mxu0 0.0
    %5077 = vmatpush1.msra.mxu0 0.0
    %5078 = vmatprep.subr.mxu0 0.0
    %5079 = vmatpush1.msra.mxu0 0.0
    %5080 = vmatprep.subr.mxu0 0.0
    %5081 = vmatpush1.msra.mxu0 0.0
    %5082 = vmatprep.subr.mxu0 0.0
    %5083 = vmatpush1.msra.mxu0 0.0
    %5084 = vmatprep.subr.mxu0 0.0
    %5085 = vmatpush1.msra.mxu0 0.0
    %5086 = vmatprep.subr.mxu0 0.0
    %5087 = vmatpush1.msra.mxu0 0.0
    %5088 = vmatprep.subr.mxu0 0.0
    %5089 = vmatpush1.msra.mxu0 0.0
    %5090 = vmatprep.subr.mxu0 0.0
    %5091 = vmatpush1.msra.mxu0 0.0
    %5092 = vmatprep.subr.mxu0 0.0
    %5093 = vmatpush1.msra.mxu0 0.0
    %5094 = vmatprep.mubr.f32.mxu0 0.0
    %5095 = vmatmul.mubr.f32.gmra.mrb[0].mxu0 %v4831
    %v5096 = vpop.f32.mrb[0].mxu0
    %v5097 = vadd.f32 0.0, %v5096
    %v5098 = vpop.f32.mrb[0].mxu0
    %5099 = vdwg.mxu0
    %v5102 = vrot.slane %v5002, 5
    %v5103 = vrot.slane %v5003, 4
    %v5104 = vsel %vm976, %v5103, %v5102
    %v5105 = vsel %vm84, %v5104, 0
    %5107 = vmatprep.subr.mxu0 0.0
    %5108 = vmatpush1.msra.mxu0 %v1262
    %5109 = vmatprep.subr.mxu0 0.0
    %5110 = vmatpush1.msra.mxu0 0.0
    %5111 = vmatprep.subr.mxu0 0.0
    %5112 = vmatpush1.msra.mxu0 0.0
    %5113 = vmatprep.subr.mxu0 0.0
    %5114 = vmatpush1.msra.mxu0 0.0
    %5115 = vmatprep.subr.mxu0 0.0
    %5116 = vmatpush1.msra.mxu0 0.0
    %5117 = vmatprep.subr.mxu0 0.0
    %5118 = vmatpush1.msra.mxu0 0.0
    %5119 = vmatprep.subr.mxu0 0.0
    %5120 = vmatpush1.msra.mxu0 0.0
    %5121 = vmatprep.subr.mxu0 0.0
    %5122 = vmatpush1.msra.mxu0 0.0
    %5123 = vmatprep.subr.mxu0 0.0
    %5124 = vmatpush1.msra.mxu0 0.0
    %5125 = vmatprep.subr.mxu0 0.0
    %5126 = vmatpush1.msra.mxu0 0.0
    %5127 = vmatprep.subr.mxu0 0.0
    %5128 = vmatpush1.msra.mxu0 0.0
    %5129 = vmatprep.subr.mxu0 0.0
    %5130 = vmatpush1.msra.mxu0 0.0
    %5131 = vmatprep.subr.mxu0 0.0
    %5132 = vmatpush1.msra.mxu0 0.0
    %5133 = vmatprep.subr.mxu0 0.0
    %5134 = vmatpush1.msra.mxu0 0.0
    %5135 = vmatprep.subr.mxu0 0.0
    %5136 = vmatpush1.msra.mxu0 0.0
    %5137 = vmatprep.subr.mxu0 0.0
    %5138 = vmatpush1.msra.mxu0 0.0
    %5139 = vmatprep.subr.mxu0 0.0
    %5140 = vmatpush1.msra.mxu0 0.0
    %5141 = vmatprep.subr.mxu0 0.0
    %5142 = vmatpush1.msra.mxu0 0.0
    %5143 = vmatprep.subr.mxu0 0.0
    %5144 = vmatpush1.msra.mxu0 0.0
    %5145 = vmatprep.subr.mxu0 0.0
    %5146 = vmatpush1.msra.mxu0 0.0
    %5147 = vmatprep.subr.mxu0 0.0
    %5148 = vmatpush1.msra.mxu0 0.0
    %5149 = vmatprep.subr.mxu0 0.0
    %5150 = vmatpush1.msra.mxu0 0.0
    %5151 = vmatprep.subr.mxu0 0.0
    %5152 = vmatpush1.msra.mxu0 0.0
    %5153 = vmatprep.subr.mxu0 0.0
    %5154 = vmatpush1.msra.mxu0 0.0
    %5155 = vmatprep.subr.mxu0 0.0
    %5156 = vmatpush1.msra.mxu0 0.0
    %5157 = vmatprep.subr.mxu0 0.0
    %5158 = vmatpush1.msra.mxu0 0.0
    %5159 = vmatprep.subr.mxu0 0.0
    %5160 = vmatpush1.msra.mxu0 0.0
    %5161 = vmatprep.subr.mxu0 0.0
    %5162 = vmatpush1.msra.mxu0 0.0
    %5163 = vmatprep.subr.mxu0 0.0
    %5164 = vmatpush1.msra.mxu0 0.0
    %5165 = vmatprep.subr.mxu0 0.0
    %5166 = vmatpush1.msra.mxu0 0.0
    %5167 = vmatprep.subr.mxu0 0.0
    %5168 = vmatpush1.msra.mxu0 0.0
    %5169 = vmatprep.subr.mxu0 0.0
    %5170 = vmatpush1.msra.mxu0 0.0
    %5171 = vmatprep.mubr.f32.mxu0 0.0
    %5172 = vmatmul.mubr.f32.gmra.mrb[0].mxu0 %v5105
    %v5173 = vpop.f32.mrb[0].mxu0
    %v5174 = vadd.f32 %v5097, %v5173
    %v5175 = vpop.f32.mrb[0].mxu0
    %5176 = vdwg.mxu0
    %v5177 = vrot.slane %v473, 5
    %v5178 = vrot.slane %v478, 4
    %v5179 = vsel %vm976, %v5178, %v5177
    %v5181 = vadd.f32 %v5174, %v5179
    %v5182 = vsub.f32 0.0, %v5181
    %v5183 = vmul.f32 %v5182, 1.442695
    %v5184 = vpow.pop %v5183
    %v5185 = vadd.f32 %v5184, 1.0
    %v5186 = vrcp.pop %v5185
    %v5187 = vmul.f32 1.0, %v5186
    %v5188 = vtanh.pop %v5181
    %v5189 = vmul.f32 %v5187, %v4429
    %5191 = vrot.lane.b32.xlu0 %v5188, 64
    %v5192 = vpop.permute.xlu0 %5191
    %v5194 = vmul.f32 %v5187, %v5192
    %5196 = vrot.lane.b32.xlu0 %v5194, 32
    %v5197 = vpop.permute.xlu0 %5196
    %v5199 = vadd.f32 %v5189, %v5197
    %v5200 = vtanh.pop %v5199
    %5202 = vrot.lane.b32.xlu0 %v5200, 64
    %v5203 = vpop.permute.xlu0 %5202
    %v5205 = vmul.f32 %v5187, %v5203
    %v5206 = vrot.slane %v616, 5
    %v5207 = vrot.slane %v618, 4
    %v5208 = vsel %vm976, %v5207, %v5206
    %5209 = vrot.lane.b32.xlu0 %v5208, 96
    %v5210 = vpop.permute.xlu0 %5209
    %v5212 = vmul.f32 %v4820, %v5210
    %5214 = vrot.lane.b32.xlu0 %v5212, 32
    %v5215 = vpop.permute.xlu0 %5214
    %v5216 = vsel %vm978, %v5215, 0
    %5218 = vmatprep.subr.mxu0 0.0
    %5219 = vmatpush1.msra.mxu0 %v942
    %5220 = vmatprep.subr.mxu0 0.0
    %5221 = vmatpush1.msra.mxu0 %v943
    %5222 = vmatprep.subr.mxu0 0.0
    %5223 = vmatpush1.msra.mxu0 %v944
    %5224 = vmatprep.subr.mxu0 0.0
    %5225 = vmatpush1.msra.mxu0 %v945
    %5226 = vmatprep.subr.mxu0 0.0
    %5227 = vmatpush1.msra.mxu0 0.0
    %5228 = vmatprep.subr.mxu0 0.0
    %5229 = vmatpush1.msra.mxu0 0.0
    %5230 = vmatprep.subr.mxu0 0.0
    %5231 = vmatpush1.msra.mxu0 0.0
    %5232 = vmatprep.subr.mxu0 0.0
    %5233 = vmatpush1.msra.mxu0 0.0
    %5234 = vmatprep.subr.mxu0 0.0
    %5235 = vmatpush1.msra.mxu0 0.0
    %5236 = vmatprep.subr.mxu0 0.0
    %5237 = vmatpush1.msra.mxu0 0.0
    %5238 = vmatprep.subr.mxu0 0.0
    %5239 = vmatpush1.msra.mxu0 0.0
    %5240 = vmatprep.subr.mxu0 0.0
    %5241 = vmatpush1.msra.mxu0 0.0
    %5242 = vmatprep.subr.mxu0 0.0
    %5243 = vmatpush1.msra.mxu0 0.0
    %5244 = vmatprep.subr.mxu0 0.0
    %5245 = vmatpush1.msra.mxu0 0.0
    %5246 = vmatprep.subr.mxu0 0.0
    %5247 = vmatpush1.msra.mxu0 0.0
    %5248 = vmatprep.subr.mxu0 0.0
    %5249 = vmatpush1.msra.mxu0 0.0
    %5250 = vmatprep.subr.mxu0 0.0
    %5251 = vmatpush1.msra.mxu0 0.0
    %5252 = vmatprep.subr.mxu0 0.0
    %5253 = vmatpush1.msra.mxu0 0.0
    %5254 = vmatprep.subr.mxu0 0.0
    %5255 = vmatpush1.msra.mxu0 0.0
    %5256 = vmatprep.subr.mxu0 0.0
    %5257 = vmatpush1.msra.mxu0 0.0
    %5258 = vmatprep.subr.mxu0 0.0
    %5259 = vmatpush1.msra.mxu0 0.0
    %5260 = vmatprep.subr.mxu0 0.0
    %5261 = vmatpush1.msra.mxu0 0.0
    %5262 = vmatprep.subr.mxu0 0.0
    %5263 = vmatpush1.msra.mxu0 0.0
    %5264 = vmatprep.subr.mxu0 0.0
    %5265 = vmatpush1.msra.mxu0 0.0
    %5266 = vmatprep.subr.mxu0 0.0
    %5267 = vmatpush1.msra.mxu0 0.0
    %5268 = vmatprep.subr.mxu0 0.0
    %5269 = vmatpush1.msra.mxu0 0.0
    %5270 = vmatprep.subr.mxu0 0.0
    %5271 = vmatpush1.msra.mxu0 0.0
    %5272 = vmatprep.subr.mxu0 0.0
    %5273 = vmatpush1.msra.mxu0 0.0
    %5274 = vmatprep.subr.mxu0 0.0
    %5275 = vmatpush1.msra.mxu0 0.0
    %5276 = vmatprep.subr.mxu0 0.0
    %5277 = vmatpush1.msra.mxu0 0.0
    %5278 = vmatprep.subr.mxu0 0.0
    %5279 = vmatpush1.msra.mxu0 0.0
    %5280 = vmatprep.subr.mxu0 0.0
    %5281 = vmatpush1.msra.mxu0 0.0
    %5282 = vmatprep.mubr.f32.mxu0 0.0
    %5283 = vmatmul.mubr.f32.gmra.mrb[0].mxu0 %v5216
    %v5284 = vpop.f32.mrb[0].mxu0
    %v5285 = vadd.f32 %v961, %v5284
    %v5286 = vpop.f32.mrb[0].mxu0
    %5287 = vdwg.mxu0
    %v5289 = vrot.slane %v5285, 3
    %v5290 = vrot.slane %v5285, 4
    %v5293 = vmul.f32 %v1444, %v5289
    %v5294 = vmul.f32 %v1445, %v5290
    %v5295 = vadd.f32 %v1442, %v5293
    %v5296 = vadd.f32 %v1443, %v5294
    %v5299 = vrot.slane %v5295, 5
    %v5300 = vrot.slane %v5296, 4
    %v5301 = vsel %vm976, %v5300, %v5299
    %v5302 = vsel %vm84, %v5301, 0
    %5304 = vmatprep.subr.mxu0 0.0
    %5305 = vmatpush1.msra.mxu0 %v1461
    %5306 = vmatprep.subr.mxu0 0.0
    %5307 = vmatpush1.msra.mxu0 0.0
    %5308 = vmatprep.subr.mxu0 0.0
    %5309 = vmatpush1.msra.mxu0 0.0
    %5310 = vmatprep.subr.mxu0 0.0
    %5311 = vmatpush1.msra.mxu0 0.0
    %5312 = vmatprep.subr.mxu0 0.0
    %5313 = vmatpush1.msra.mxu0 0.0
    %5314 = vmatprep.subr.mxu0 0.0
    %5315 = vmatpush1.msra.mxu0 0.0
    %5316 = vmatprep.subr.mxu0 0.0
    %5317 = vmatpush1.msra.mxu0 0.0
    %5318 = vmatprep.subr.mxu0 0.0
    %5319 = vmatpush1.msra.mxu0 0.0
    %5320 = vmatprep.subr.mxu0 0.0
    %5321 = vmatpush1.msra.mxu0 0.0
    %5322 = vmatprep.subr.mxu0 0.0
    %5323 = vmatpush1.msra.mxu0 0.0
    %5324 = vmatprep.subr.mxu0 0.0
    %5325 = vmatpush1.msra.mxu0 0.0
    %5326 = vmatprep.subr.mxu0 0.0
    %5327 = vmatpush1.msra.mxu0 0.0
    %5328 = vmatprep.subr.mxu0 0.0
    %5329 = vmatpush1.msra.mxu0 0.0
    %5330 = vmatprep.subr.mxu0 0.0
    %5331 = vmatpush1.msra.mxu0 0.0
    %5332 = vmatprep.subr.mxu0 0.0
    %5333 = vmatpush1.msra.mxu0 0.0
    %5334 = vmatprep.subr.mxu0 0.0
    %5335 = vmatpush1.msra.mxu0 0.0
    %5336 = vmatprep.subr.mxu0 0.0
    %5337 = vmatpush1.msra.mxu0 0.0
    %5338 = vmatprep.subr.mxu0 0.0
    %5339 = vmatpush1.msra.mxu0 0.0
    %5340 = vmatprep.subr.mxu0 0.0
    %5341 = vmatpush1.msra.mxu0 0.0
    %5342 = vmatprep.subr.mxu0 0.0
    %5343 = vmatpush1.msra.mxu0 0.0
    %5344 = vmatprep.subr.mxu0 0.0
    %5345 = vmatpush1.msra.mxu0 0.0
    %5346 = vmatprep.subr.mxu0 0.0
    %5347 = vmatpush1.msra.mxu0 0.0
    %5348 = vmatprep.subr.mxu0 0.0
    %5349 = vmatpush1.msra.mxu0 0.0
    %5350 = vmatprep.subr.mxu0 0.0
    %5351 = vmatpush1.msra.mxu0 0.0
    %5352 = vmatprep.subr.mxu0 0.0
    %5353 = vmatpush1.msra.mxu0 0.0
    %5354 = vmatprep.subr.mxu0 0.0
    %5355 = vmatpush1.msra.mxu0 0.0
    %5356 = vmatprep.subr.mxu0 0.0
    %5357 = vmatpush1.msra.mxu0 0.0
    %5358 = vmatprep.subr.mxu0 0.0
    %5359 = vmatpush1.msra.mxu0 0.0
    %5360 = vmatprep.subr.mxu0 0.0
    %5361 = vmatpush1.msra.mxu0 0.0
    %5362 = vmatprep.subr.mxu0 0.0
    %5363 = vmatpush1.msra.mxu0 0.0
    %5364 = vmatprep.subr.mxu0 0.0
    %5365 = vmatpush1.msra.mxu0 0.0
    %5366 = vmatprep.subr.mxu0 0.0
    %5367 = vmatpush1.msra.mxu0 0.0
    %5368 = vmatprep.mubr.f32.mxu0 0.0
    %5369 = vmatmul.mubr.f32.gmra.mrb[0].mxu0 %v5302
    %v5370 = vpop.f32.mrb[0].mxu0
    %v5371 = vadd.f32 %v969, %v5370
    %v5372 = vpop.f32.mrb[0].mxu0
    %5373 = vdwg.mxu0
    %v5375 = vrot.slane %v5371, 3
    %v5376 = vrot.slane %v5371, 4
    %v5379 = vmul.f32 %v838, %v5375
    %v5380 = vmul.f32 %v840, %v5376
    %v5381 = vmul.f32 %v1539, %v5289
    %v5382 = vmul.f32 %v1540, %v5290
    %v5383 = vadd.f32 %v5379, %v5381
    %v5384 = vadd.f32 %v5380, %v5382
    %v5385 = vmul.f32 %v1444, %v5383
    %v5386 = vmul.f32 %v1445, %v5384
    %v5387 = vadd.f32 %v1442, %v5385
    %v5388 = vadd.f32 %v1443, %v5386
    %v5389 = vrot.slane %v66, 5
    %v5390 = vrot.slane %v67, 4
    %v5391 = vsel %vm976, %v5390, %v5389
    %v5393 = vsub.f32 %v5285, %v5391
    %v5394 = vand.u32 2147483647, %v5393
    %v5395 = vsub.f32 %v5371, %v5391
    %v5396 = vand.u32 2147483647, %v5395
    %v5397 = vadd.f32 %v5394, %v5396
    %v5398 = vsub.f32 %v5383, %v66
    %v5399 = vsub.f32 %v5384, %v67
    %v5400 = vand.u32 2147483647, %v5398
    %v5401 = vand.u32 2147483647, %v5399
    %v5404 = vrot.slane %v5400, 5
    %v5405 = vrot.slane %v5401, 4
    %v5406 = vsel %vm976, %v5405, %v5404
    %v5408 = vadd.f32 %v5397, %v5406
    %v5409 = vrot.slane %v939, 5
    %v5410 = vrot.slane %v940, 4
    %v5411 = vsel %vm976, %v5410, %v5409
    %v5413 = vmul.f32 %v5408, %v5411
    %v5414 = vadd.f32 %v4644, %v5413
    %5415 = vmatprep.subr.mxu0 0.0
    %5416 = vmatpush1.msra.mxu0 %v951
    %5417 = vmatprep.subr.mxu0 0.0
    %5418 = vmatpush1.msra.mxu0 %v952
    %5419 = vmatprep.subr.mxu0 0.0
    %5420 = vmatpush1.msra.mxu0 %v953
    %5421 = vmatprep.subr.mxu0 0.0
    %5422 = vmatpush1.msra.mxu0 %v954
    %5423 = vmatprep.subr.mxu0 0.0
    %5424 = vmatpush1.msra.mxu0 0.0
    %5425 = vmatprep.subr.mxu0 0.0
    %5426 = vmatpush1.msra.mxu0 0.0
    %5427 = vmatprep.subr.mxu0 0.0
    %5428 = vmatpush1.msra.mxu0 0.0
    %5429 = vmatprep.subr.mxu0 0.0
    %5430 = vmatpush1.msra.mxu0 0.0
    %5431 = vmatprep.subr.mxu0 0.0
    %5432 = vmatpush1.msra.mxu0 0.0
    %5433 = vmatprep.subr.mxu0 0.0
    %5434 = vmatpush1.msra.mxu0 0.0
    %5435 = vmatprep.subr.mxu0 0.0
    %5436 = vmatpush1.msra.mxu0 0.0
    %5437 = vmatprep.subr.mxu0 0.0
    %5438 = vmatpush1.msra.mxu0 0.0
    %5439 = vmatprep.subr.mxu0 0.0
    %5440 = vmatpush1.msra.mxu0 0.0
    %5441 = vmatprep.subr.mxu0 0.0
    %5442 = vmatpush1.msra.mxu0 0.0
    %5443 = vmatprep.subr.mxu0 0.0
    %5444 = vmatpush1.msra.mxu0 0.0
    %5445 = vmatprep.subr.mxu0 0.0
    %5446 = vmatpush1.msra.mxu0 0.0
    %5447 = vmatprep.subr.mxu0 0.0
    %5448 = vmatpush1.msra.mxu0 0.0
    %5449 = vmatprep.subr.mxu0 0.0
    %5450 = vmatpush1.msra.mxu0 0.0
    %5451 = vmatprep.subr.mxu0 0.0
    %5452 = vmatpush1.msra.mxu0 0.0
    %5453 = vmatprep.subr.mxu0 0.0
    %5454 = vmatpush1.msra.mxu0 0.0
    %5455 = vmatprep.subr.mxu0 0.0
    %5456 = vmatpush1.msra.mxu0 0.0
    %5457 = vmatprep.subr.mxu0 0.0
    %5458 = vmatpush1.msra.mxu0 0.0
    %5459 = vmatprep.subr.mxu0 0.0
    %5460 = vmatpush1.msra.mxu0 0.0
    %5461 = vmatprep.subr.mxu0 0.0
    %5462 = vmatpush1.msra.mxu0 0.0
    %5463 = vmatprep.subr.mxu0 0.0
    %5464 = vmatpush1.msra.mxu0 0.0
    %5465 = vmatprep.subr.mxu0 0.0
    %5466 = vmatpush1.msra.mxu0 0.0
    %5467 = vmatprep.subr.mxu0 0.0
    %5468 = vmatpush1.msra.mxu0 0.0
    %5469 = vmatprep.subr.mxu0 0.0
    %5470 = vmatpush1.msra.mxu0 0.0
    %5471 = vmatprep.subr.mxu0 0.0
    %5472 = vmatpush1.msra.mxu0 0.0
    %5473 = vmatprep.subr.mxu0 0.0
    %5474 = vmatpush1.msra.mxu0 0.0
    %5475 = vmatprep.subr.mxu0 0.0
    %5476 = vmatpush1.msra.mxu0 0.0
    %5477 = vmatprep.subr.mxu0 0.0
    %5478 = vmatpush1.msra.mxu0 0.0
    %5479 = vmatprep.mubr.f32.mxu0 0.0
    %5480 = vmatmul.mubr.f32.gmra.mrb[0].mxu0 %v5216
    %v5481 = vpop.f32.mrb[0].mxu0
    %v5482 = vadd.f32 0.0, %v5481
    %v5483 = vpop.f32.mrb[0].mxu0
    %5484 = vdwg.mxu0
    %v5487 = vrot.slane %v5387, 5
    %v5488 = vrot.slane %v5388, 4
    %v5489 = vsel %vm976, %v5488, %v5487
    %v5490 = vsel %vm84, %v5489, 0
    %5492 = vmatprep.subr.mxu0 0.0
    %5493 = vmatpush1.msra.mxu0 %v1653
    %5494 = vmatprep.subr.mxu0 0.0
    %5495 = vmatpush1.msra.mxu0 0.0
    %5496 = vmatprep.subr.mxu0 0.0
    %5497 = vmatpush1.msra.mxu0 0.0
    %5498 = vmatprep.subr.mxu0 0.0
    %5499 = vmatpush1.msra.mxu0 0.0
    %5500 = vmatprep.subr.mxu0 0.0
    %5501 = vmatpush1.msra.mxu0 0.0
    %5502 = vmatprep.subr.mxu0 0.0
    %5503 = vmatpush1.msra.mxu0 0.0
    %5504 = vmatprep.subr.mxu0 0.0
    %5505 = vmatpush1.msra.mxu0 0.0
    %5506 = vmatprep.subr.mxu0 0.0
    %5507 = vmatpush1.msra.mxu0 0.0
    %5508 = vmatprep.subr.mxu0 0.0
    %5509 = vmatpush1.msra.mxu0 0.0
    %5510 = vmatprep.subr.mxu0 0.0
    %5511 = vmatpush1.msra.mxu0 0.0
    %5512 = vmatprep.subr.mxu0 0.0
    %5513 = vmatpush1.msra.mxu0 0.0
    %5514 = vmatprep.subr.mxu0 0.0
    %5515 = vmatpush1.msra.mxu0 0.0
    %5516 = vmatprep.subr.mxu0 0.0
    %5517 = vmatpush1.msra.mxu0 0.0
    %5518 = vmatprep.subr.mxu0 0.0
    %5519 = vmatpush1.msra.mxu0 0.0
    %5520 = vmatprep.subr.mxu0 0.0
    %5521 = vmatpush1.msra.mxu0 0.0
    %5522 = vmatprep.subr.mxu0 0.0
    %5523 = vmatpush1.msra.mxu0 0.0
    %5524 = vmatprep.subr.mxu0 0.0
    %5525 = vmatpush1.msra.mxu0 0.0
    %5526 = vmatprep.subr.mxu0 0.0
    %5527 = vmatpush1.msra.mxu0 0.0
    %5528 = vmatprep.subr.mxu0 0.0
    %5529 = vmatpush1.msra.mxu0 0.0
    %5530 = vmatprep.subr.mxu0 0.0
    %5531 = vmatpush1.msra.mxu0 0.0
    %5532 = vmatprep.subr.mxu0 0.0
    %5533 = vmatpush1.msra.mxu0 0.0
    %5534 = vmatprep.subr.mxu0 0.0
    %5535 = vmatpush1.msra.mxu0 0.0
    %5536 = vmatprep.subr.mxu0 0.0
    %5537 = vmatpush1.msra.mxu0 0.0
    %5538 = vmatprep.subr.mxu0 0.0
    %5539 = vmatpush1.msra.mxu0 0.0
    %5540 = vmatprep.subr.mxu0 0.0
    %5541 = vmatpush1.msra.mxu0 0.0
    %5542 = vmatprep.subr.mxu0 0.0
    %5543 = vmatpush1.msra.mxu0 0.0
    %5544 = vmatprep.subr.mxu0 0.0
    %5545 = vmatpush1.msra.mxu0 0.0
    %5546 = vmatprep.subr.mxu0 0.0
    %5547 = vmatpush1.msra.mxu0 0.0
    %5548 = vmatprep.subr.mxu0 0.0
    %5549 = vmatpush1.msra.mxu0 0.0
    %5550 = vmatprep.subr.mxu0 0.0
    %5551 = vmatpush1.msra.mxu0 0.0
    %5552 = vmatprep.subr.mxu0 0.0
    %5553 = vmatpush1.msra.mxu0 0.0
    %5554 = vmatprep.subr.mxu0 0.0
    %5555 = vmatpush1.msra.mxu0 0.0
    %5556 = vmatprep.mubr.f32.mxu0 0.0
    %5557 = vmatmul.mubr.f32.gmra.mrb[0].mxu0 %v5490
    %v5558 = vpop.f32.mrb[0].mxu0
    %v5559 = vadd.f32 %v5482, %v5558
    %v5560 = vpop.f32.mrb[0].mxu0
    %5561 = vdwg.mxu0
    %v5562 = vrot.slane %v921, 5
    %v5563 = vrot.slane %v926, 4
    %v5564 = vsel %vm976, %v5563, %v5562
    %v5566 = vadd.f32 %v5559, %v5564
    %v5567 = vsub.f32 0.0, %v5566
    %v5568 = vmul.f32 %v5567, 1.442695
    %v5569 = vpow.pop %v5568
    %v5570 = vadd.f32 %v5569, 1.0
    %v5571 = vrcp.pop %v5570
    %v5572 = vmul.f32 1.0, %v5571
    %v5573 = vtanh.pop %v5566
    %v5574 = vmul.f32 %v5572, %v4814
    %5576 = vrot.lane.b32.xlu0 %v5573, 64
    %v5577 = vpop.permute.xlu0 %5576
    %v5579 = vmul.f32 %v5572, %v5577
    %5581 = vrot.lane.b32.xlu0 %v5579, 32
    %v5582 = vpop.permute.xlu0 %5581
    %v5584 = vadd.f32 %v5574, %v5582
    %v5585 = vtanh.pop %v5584
    %5587 = vrot.lane.b32.xlu0 %v5585, 64
    %v5588 = vpop.permute.xlu0 %5587
    %v5590 = vmul.f32 %v5572, %v5588
    %v5591 = vrot.slane %v175, 6
    %v5592 = vrot.slane %v177, 5
    %v5593 = vsel %vm976, %v5592, %v5591
    %5594 = vrot.lane.b32.xlu0 %v5593, 96
    %v5595 = vpop.permute.xlu0 %5594
    %v5597 = vmul.f32 %v5205, %v5595
    %5599 = vrot.lane.b32.xlu0 %v5597, 32
    %v5600 = vpop.permute.xlu0 %5599
    %v5601 = vsel %vm978, %v5600, 0
    %5603 = vmatprep.subr.mxu0 0.0
    %5604 = vmatpush1.msra.mxu0 %v493
    %5605 = vmatprep.subr.mxu0 0.0
    %5606 = vmatpush1.msra.mxu0 %v494
    %5607 = vmatprep.subr.mxu0 0.0
    %5608 = vmatpush1.msra.mxu0 %v495
    %5609 = vmatprep.subr.mxu0 0.0
    %5610 = vmatpush1.msra.mxu0 %v496
    %5611 = vmatprep.subr.mxu0 0.0
    %5612 = vmatpush1.msra.mxu0 0.0
    %5613 = vmatprep.subr.mxu0 0.0
    %5614 = vmatpush1.msra.mxu0 0.0
    %5615 = vmatprep.subr.mxu0 0.0
    %5616 = vmatpush1.msra.mxu0 0.0
    %5617 = vmatprep.subr.mxu0 0.0
    %5618 = vmatpush1.msra.mxu0 0.0
    %5619 = vmatprep.subr.mxu0 0.0
    %5620 = vmatpush1.msra.mxu0 0.0
    %5621 = vmatprep.subr.mxu0 0.0
    %5622 = vmatpush1.msra.mxu0 0.0
    %5623 = vmatprep.subr.mxu0 0.0
    %5624 = vmatpush1.msra.mxu0 0.0
    %5625 = vmatprep.subr.mxu0 0.0
    %5626 = vmatpush1.msra.mxu0 0.0
    %5627 = vmatprep.subr.mxu0 0.0
    %5628 = vmatpush1.msra.mxu0 0.0
    %5629 = vmatprep.subr.mxu0 0.0
    %5630 = vmatpush1.msra.mxu0 0.0
    %5631 = vmatprep.subr.mxu0 0.0
    %5632 = vmatpush1.msra.mxu0 0.0
    %5633 = vmatprep.subr.mxu0 0.0
    %5634 = vmatpush1.msra.mxu0 0.0
    %5635 = vmatprep.subr.mxu0 0.0
    %5636 = vmatpush1.msra.mxu0 0.0
    %5637 = vmatprep.subr.mxu0 0.0
    %5638 = vmatpush1.msra.mxu0 0.0
    %5639 = vmatprep.subr.mxu0 0.0
    %5640 = vmatpush1.msra.mxu0 0.0
    %5641 = vmatprep.subr.mxu0 0.0
    %5642 = vmatpush1.msra.mxu0 0.0
    %5643 = vmatprep.subr.mxu0 0.0
    %5644 = vmatpush1.msra.mxu0 0.0
    %5645 = vmatprep.subr.mxu0 0.0
    %5646 = vmatpush1.msra.mxu0 0.0
    %5647 = vmatprep.subr.mxu0 0.0
    %5648 = vmatpush1.msra.mxu0 0.0
    %5649 = vmatprep.subr.mxu0 0.0
    %5650 = vmatpush1.msra.mxu0 0.0
    %5651 = vmatprep.subr.mxu0 0.0
    %5652 = vmatpush1.msra.mxu0 0.0
    %5653 = vmatprep.subr.mxu0 0.0
    %5654 = vmatpush1.msra.mxu0 0.0
    %5655 = vmatprep.subr.mxu0 0.0
    %5656 = vmatpush1.msra.mxu0 0.0
    %5657 = vmatprep.subr.mxu0 0.0
    %5658 = vmatpush1.msra.mxu0 0.0
    %5659 = vmatprep.subr.mxu0 0.0
    %5660 = vmatpush1.msra.mxu0 0.0
    %5661 = vmatprep.subr.mxu0 0.0
    %5662 = vmatpush1.msra.mxu0 0.0
    %5663 = vmatprep.subr.mxu0 0.0
    %5664 = vmatpush1.msra.mxu0 0.0
    %5665 = vmatprep.subr.mxu0 0.0
    %5666 = vmatpush1.msra.mxu0 0.0
    %5667 = vmatprep.mubr.f32.mxu0 0.0
    %5668 = vmatmul.mubr.f32.gmra.mrb[0].mxu0 %v5601
    %v5669 = vpop.f32.mrb[0].mxu0
    %v5670 = vadd.f32 %v508, %v5669
    %v5671 = vpop.f32.mrb[0].mxu0
    %5672 = vdwg.mxu0
    %v5674 = vrot.slane %v5670, 2
    %v5675 = vrot.slane %v5670, 3
    %v5678 = vmul.f32 %v1053, %v5674
    %v5679 = vmul.f32 %v1054, %v5675
    %v5680 = vadd.f32 %v1051, %v5678
    %v5681 = vadd.f32 %v1052, %v5679
    %v5684 = vrot.slane %v5680, 6
    %v5685 = vrot.slane %v5681, 5
    %v5686 = vsel %vm976, %v5685, %v5684
    %v5687 = vsel %vm84, %v5686, 0
    %5689 = vmatprep.subr.mxu0 0.0
    %5690 = vmatpush1.msra.mxu0 %v1070
    %5691 = vmatprep.subr.mxu0 0.0
    %5692 = vmatpush1.msra.mxu0 0.0
    %5693 = vmatprep.subr.mxu0 0.0
    %5694 = vmatpush1.msra.mxu0 0.0
    %5695 = vmatprep.subr.mxu0 0.0
    %5696 = vmatpush1.msra.mxu0 0.0
    %5697 = vmatprep.subr.mxu0 0.0
    %5698 = vmatpush1.msra.mxu0 0.0
    %5699 = vmatprep.subr.mxu0 0.0
    %5700 = vmatpush1.msra.mxu0 0.0
    %5701 = vmatprep.subr.mxu0 0.0
    %5702 = vmatpush1.msra.mxu0 0.0
    %5703 = vmatprep.subr.mxu0 0.0
    %5704 = vmatpush1.msra.mxu0 0.0
    %5705 = vmatprep.subr.mxu0 0.0
    %5706 = vmatpush1.msra.mxu0 0.0
    %5707 = vmatprep.subr.mxu0 0.0
    %5708 = vmatpush1.msra.mxu0 0.0
    %5709 = vmatprep.subr.mxu0 0.0
    %5710 = vmatpush1.msra.mxu0 0.0
    %5711 = vmatprep.subr.mxu0 0.0
    %5712 = vmatpush1.msra.mxu0 0.0
    %5713 = vmatprep.subr.mxu0 0.0
    %5714 = vmatpush1.msra.mxu0 0.0
    %5715 = vmatprep.subr.mxu0 0.0
    %5716 = vmatpush1.msra.mxu0 0.0
    %5717 = vmatprep.subr.mxu0 0.0
    %5718 = vmatpush1.msra.mxu0 0.0
    %5719 = vmatprep.subr.mxu0 0.0
    %5720 = vmatpush1.msra.mxu0 0.0
    %5721 = vmatprep.subr.mxu0 0.0
    %5722 = vmatpush1.msra.mxu0 0.0
    %5723 = vmatprep.subr.mxu0 0.0
    %5724 = vmatpush1.msra.mxu0 0.0
    %5725 = vmatprep.subr.mxu0 0.0
    %5726 = vmatpush1.msra.mxu0 0.0
    %5727 = vmatprep.subr.mxu0 0.0
    %5728 = vmatpush1.msra.mxu0 0.0
    %5729 = vmatprep.subr.mxu0 0.0
    %5730 = vmatpush1.msra.mxu0 0.0
    %5731 = vmatprep.subr.mxu0 0.0
    %5732 = vmatpush1.msra.mxu0 0.0
    %5733 = vmatprep.subr.mxu0 0.0
    %5734 = vmatpush1.msra.mxu0 0.0
    %5735 = vmatprep.subr.mxu0 0.0
    %5736 = vmatpush1.msra.mxu0 0.0
    %5737 = vmatprep.subr.mxu0 0.0
    %5738 = vmatpush1.msra.mxu0 0.0
    %5739 = vmatprep.subr.mxu0 0.0
    %5740 = vmatpush1.msra.mxu0 0.0
    %5741 = vmatprep.subr.mxu0 0.0
    %5742 = vmatpush1.msra.mxu0 0.0
    %5743 = vmatprep.subr.mxu0 0.0
    %5744 = vmatpush1.msra.mxu0 0.0
    %5745 = vmatprep.subr.mxu0 0.0
    %5746 = vmatpush1.msra.mxu0 0.0
    %5747 = vmatprep.subr.mxu0 0.0
    %5748 = vmatpush1.msra.mxu0 0.0
    %5749 = vmatprep.subr.mxu0 0.0
    %5750 = vmatpush1.msra.mxu0 0.0
    %5751 = vmatprep.subr.mxu0 0.0
    %5752 = vmatpush1.msra.mxu0 0.0
    %5753 = vmatprep.mubr.f32.mxu0 0.0
    %5754 = vmatmul.mubr.f32.gmra.mrb[0].mxu0 %v5687
    %v5755 = vpop.f32.mrb[0].mxu0
    %v5756 = vadd.f32 %v515, %v5755
    %v5757 = vpop.f32.mrb[0].mxu0
    %5758 = vdwg.mxu0
    %v5760 = vrot.slane %v5756, 2
    %v5761 = vrot.slane %v5756, 3
    %v5764 = vmul.f32 %v392, %v5760
    %v5765 = vmul.f32 %v394, %v5761
    %v5766 = vmul.f32 %v1148, %v5674
    %v5767 = vmul.f32 %v1149, %v5675
    %v5768 = vadd.f32 %v5764, %v5766
    %v5769 = vadd.f32 %v5765, %v5767
    %v5770 = vmul.f32 %v1053, %v5768
    %v5771 = vmul.f32 %v1054, %v5769
    %v5772 = vadd.f32 %v1051, %v5770
    %v5773 = vadd.f32 %v1052, %v5771
    %v5774 = vrot.slane %v64, 6
    %v5775 = vrot.slane %v65, 5
    %v5776 = vsel %vm976, %v5775, %v5774
    %v5778 = vsub.f32 %v5670, %v5776
    %v5779 = vand.u32 2147483647, %v5778
    %v5780 = vsub.f32 %v5756, %v5776
    %v5781 = vand.u32 2147483647, %v5780
    %v5782 = vadd.f32 %v5779, %v5781
    %v5783 = vsub.f32 %v5768, %v64
    %v5784 = vsub.f32 %v5769, %v65
    %v5785 = vand.u32 2147483647, %v5783
    %v5786 = vand.u32 2147483647, %v5784
    %v5789 = vrot.slane %v5785, 6
    %v5790 = vrot.slane %v5786, 5
    %v5791 = vsel %vm976, %v5790, %v5789
    %v5793 = vadd.f32 %v5782, %v5791
    %v5794 = vrot.slane %v491, 6
    %v5795 = vrot.slane %v492, 5
    %v5796 = vsel %vm976, %v5795, %v5794
    %v5798 = vmul.f32 %v5793, %v5796
    %v5799 = vadd.f32 %v5029, %v5798
    %5800 = vmatprep.subr.mxu0 0.0
    %5801 = vmatpush1.msra.mxu0 %v499
    %5802 = vmatprep.subr.mxu0 0.0
    %5803 = vmatpush1.msra.mxu0 %v500
    %5804 = vmatprep.subr.mxu0 0.0
    %5805 = vmatpush1.msra.mxu0 %v501
    %5806 = vmatprep.subr.mxu0 0.0
    %5807 = vmatpush1.msra.mxu0 %v502
    %5808 = vmatprep.subr.mxu0 0.0
    %5809 = vmatpush1.msra.mxu0 0.0
    %5810 = vmatprep.subr.mxu0 0.0
    %5811 = vmatpush1.msra.mxu0 0.0
    %5812 = vmatprep.subr.mxu0 0.0
    %5813 = vmatpush1.msra.mxu0 0.0
    %5814 = vmatprep.subr.mxu0 0.0
    %5815 = vmatpush1.msra.mxu0 0.0
    %5816 = vmatprep.subr.mxu0 0.0
    %5817 = vmatpush1.msra.mxu0 0.0
    %5818 = vmatprep.subr.mxu0 0.0
    %5819 = vmatpush1.msra.mxu0 0.0
    %5820 = vmatprep.subr.mxu0 0.0
    %5821 = vmatpush1.msra.mxu0 0.0
    %5822 = vmatprep.subr.mxu0 0.0
    %5823 = vmatpush1.msra.mxu0 0.0
    %5824 = vmatprep.subr.mxu0 0.0
    %5825 = vmatpush1.msra.mxu0 0.0
    %5826 = vmatprep.subr.mxu0 0.0
    %5827 = vmatpush1.msra.mxu0 0.0
    %5828 = vmatprep.subr.mxu0 0.0
    %5829 = vmatpush1.msra.mxu0 0.0
    %5830 = vmatprep.subr.mxu0 0.0
    %5831 = vmatpush1.msra.mxu0 0.0
    %5832 = vmatprep.subr.mxu0 0.0
    %5833 = vmatpush1.msra.mxu0 0.0
    %5834 = vmatprep.subr.mxu0 0.0
    %5835 = vmatpush1.msra.mxu0 0.0
    %5836 = vmatprep.subr.mxu0 0.0
    %5837 = vmatpush1.msra.mxu0 0.0
    %5838 = vmatprep.subr.mxu0 0.0
    %5839 = vmatpush1.msra.mxu0 0.0
    %5840 = vmatprep.subr.mxu0 0.0
    %5841 = vmatpush1.msra.mxu0 0.0
    %5842 = vmatprep.subr.mxu0 0.0
    %5843 = vmatpush1.msra.mxu0 0.0
    %5844 = vmatprep.subr.mxu0 0.0
    %5845 = vmatpush1.msra.mxu0 0.0
    %5846 = vmatprep.subr.mxu0 0.0
    %5847 = vmatpush1.msra.mxu0 0.0
    %5848 = vmatprep.subr.mxu0 0.0
    %5849 = vmatpush1.msra.mxu0 0.0
    %5850 = vmatprep.subr.mxu0 0.0
    %5851 = vmatpush1.msra.mxu0 0.0
    %5852 = vmatprep.subr.mxu0 0.0
    %5853 = vmatpush1.msra.mxu0 0.0
    %5854 = vmatprep.subr.mxu0 0.0
    %5855 = vmatpush1.msra.mxu0 0.0
    %5856 = vmatprep.subr.mxu0 0.0
    %5857 = vmatpush1.msra.mxu0 0.0
    %5858 = vmatprep.subr.mxu0 0.0
    %5859 = vmatpush1.msra.mxu0 0.0
    %5860 = vmatprep.subr.mxu0 0.0
    %5861 = vmatpush1.msra.mxu0 0.0
    %5862 = vmatprep.subr.mxu0 0.0
    %5863 = vmatpush1.msra.mxu0 0.0
    %5864 = vmatprep.mubr.f32.mxu0 0.0
    %5865 = vmatmul.mubr.f32.gmra.mrb[0].mxu0 %v5601
    %v5866 = vpop.f32.mrb[0].mxu0
    %v5867 = vadd.f32 0.0, %v5866
    %v5868 = vpop.f32.mrb[0].mxu0
    %5869 = vdwg.mxu0
    %v5872 = vrot.slane %v5772, 6
    %v5873 = vrot.slane %v5773, 5
    %v5874 = vsel %vm976, %v5873, %v5872
    %v5875 = vsel %vm84, %v5874, 0
    %5877 = vmatprep.subr.mxu0 0.0
    %5878 = vmatpush1.msra.mxu0 %v1262
    %5879 = vmatprep.subr.mxu0 0.0
    %5880 = vmatpush1.msra.mxu0 0.0
    %5881 = vmatprep.subr.mxu0 0.0
    %5882 = vmatpush1.msra.mxu0 0.0
    %5883 = vmatprep.subr.mxu0 0.0
    %5884 = vmatpush1.msra.mxu0 0.0
    %5885 = vmatprep.subr.mxu0 0.0
    %5886 = vmatpush1.msra.mxu0 0.0
    %5887 = vmatprep.subr.mxu0 0.0
    %5888 = vmatpush1.msra.mxu0 0.0
    %5889 = vmatprep.subr.mxu0 0.0
    %5890 = vmatpush1.msra.mxu0 0.0
    %5891 = vmatprep.subr.mxu0 0.0
    %5892 = vmatpush1.msra.mxu0 0.0
    %5893 = vmatprep.subr.mxu0 0.0
    %5894 = vmatpush1.msra.mxu0 0.0
    %5895 = vmatprep.subr.mxu0 0.0
    %5896 = vmatpush1.msra.mxu0 0.0
    %5897 = vmatprep.subr.mxu0 0.0
    %5898 = vmatpush1.msra.mxu0 0.0
    %5899 = vmatprep.subr.mxu0 0.0
    %5900 = vmatpush1.msra.mxu0 0.0
    %5901 = vmatprep.subr.mxu0 0.0
    %5902 = vmatpush1.msra.mxu0 0.0
    %5903 = vmatprep.subr.mxu0 0.0
    %5904 = vmatpush1.msra.mxu0 0.0
    %5905 = vmatprep.subr.mxu0 0.0
    %5906 = vmatpush1.msra.mxu0 0.0
    %5907 = vmatprep.subr.mxu0 0.0
    %5908 = vmatpush1.msra.mxu0 0.0
    %5909 = vmatprep.subr.mxu0 0.0
    %5910 = vmatpush1.msra.mxu0 0.0
    %5911 = vmatprep.subr.mxu0 0.0
    %5912 = vmatpush1.msra.mxu0 0.0
    %5913 = vmatprep.subr.mxu0 0.0
    %5914 = vmatpush1.msra.mxu0 0.0
    %5915 = vmatprep.subr.mxu0 0.0
    %5916 = vmatpush1.msra.mxu0 0.0
    %5917 = vmatprep.subr.mxu0 0.0
    %5918 = vmatpush1.msra.mxu0 0.0
    %5919 = vmatprep.subr.mxu0 0.0
    %5920 = vmatpush1.msra.mxu0 0.0
    %5921 = vmatprep.subr.mxu0 0.0
    %5922 = vmatpush1.msra.mxu0 0.0
    %5923 = vmatprep.subr.mxu0 0.0
    %5924 = vmatpush1.msra.mxu0 0.0
    %5925 = vmatprep.subr.mxu0 0.0
    %5926 = vmatpush1.msra.mxu0 0.0
    %5927 = vmatprep.subr.mxu0 0.0
    %5928 = vmatpush1.msra.mxu0 0.0
    %5929 = vmatprep.subr.mxu0 0.0
    %5930 = vmatpush1.msra.mxu0 0.0
    %5931 = vmatprep.subr.mxu0 0.0
    %5932 = vmatpush1.msra.mxu0 0.0
    %5933 = vmatprep.subr.mxu0 0.0
    %5934 = vmatpush1.msra.mxu0 0.0
    %5935 = vmatprep.subr.mxu0 0.0
    %5936 = vmatpush1.msra.mxu0 0.0
    %5937 = vmatprep.subr.mxu0 0.0
    %5938 = vmatpush1.msra.mxu0 0.0
    %5939 = vmatprep.subr.mxu0 0.0
    %5940 = vmatpush1.msra.mxu0 0.0
    %5941 = vmatprep.mubr.f32.mxu0 0.0
    %5942 = vmatmul.mubr.f32.gmra.mrb[0].mxu0 %v5875
    %v5943 = vpop.f32.mrb[0].mxu0
    %v5944 = vadd.f32 %v5867, %v5943
    %v5945 = vpop.f32.mrb[0].mxu0
    %5946 = vdwg.mxu0
    %v5947 = vrot.slane %v473, 6
    %v5948 = vrot.slane %v478, 5
    %v5949 = vsel %vm976, %v5948, %v5947
    %v5951 = vadd.f32 %v5944, %v5949
    %v5952 = vsub.f32 0.0, %v5951
    %v5953 = vmul.f32 %v5952, 1.442695
    %v5954 = vpow.pop %v5953
    %v5955 = vadd.f32 %v5954, 1.0
    %v5956 = vrcp.pop %v5955
    %v5957 = vmul.f32 1.0, %v5956
    %v5958 = vtanh.pop %v5951
    %v5959 = vmul.f32 %v5957, %v5199
    %5961 = vrot.lane.b32.xlu0 %v5958, 64
    %v5962 = vpop.permute.xlu0 %5961
    %v5964 = vmul.f32 %v5957, %v5962
    %5966 = vrot.lane.b32.xlu0 %v5964, 32
    %v5967 = vpop.permute.xlu0 %5966
    %v5969 = vadd.f32 %v5959, %v5967
    %v5970 = vtanh.pop %v5969
    %5972 = vrot.lane.b32.xlu0 %v5970, 64
    %v5973 = vpop.permute.xlu0 %5972
    %v5975 = vmul.f32 %v5957, %v5973
    %v5976 = vrot.slane %v616, 6
    %v5977 = vrot.slane %v618, 5
    %v5978 = vsel %vm976, %v5977, %v5976
    %5979 = vrot.lane.b32.xlu0 %v5978, 96
    %v5980 = vpop.permute.xlu0 %5979
    %v5982 = vmul.f32 %v5590, %v5980
    %5984 = vrot.lane.b32.xlu0 %v5982, 32
    %v5985 = vpop.permute.xlu0 %5984
    %v5986 = vsel %vm978, %v5985, 0
    %5988 = vmatprep.subr.mxu0 0.0
    %5989 = vmatpush1.msra.mxu0 %v942
    %5990 = vmatprep.subr.mxu0 0.0
    %5991 = vmatpush1.msra.mxu0 %v943
    %5992 = vmatprep.subr.mxu0 0.0
    %5993 = vmatpush1.msra.mxu0 %v944
    %5994 = vmatprep.subr.mxu0 0.0
    %5995 = vmatpush1.msra.mxu0 %v945
    %5996 = vmatprep.subr.mxu0 0.0
    %5997 = vmatpush1.msra.mxu0 0.0
    %5998 = vmatprep.subr.mxu0 0.0
    %5999 = vmatpush1.msra.mxu0 0.0
    %6000 = vmatprep.subr.mxu0 0.0
    %6001 = vmatpush1.msra.mxu0 0.0
    %6002 = vmatprep.subr.mxu0 0.0
    %6003 = vmatpush1.msra.mxu0 0.0
    %6004 = vmatprep.subr.mxu0 0.0
    %6005 = vmatpush1.msra.mxu0 0.0
    %6006 = vmatprep.subr.mxu0 0.0
    %6007 = vmatpush1.msra.mxu0 0.0
    %6008 = vmatprep.subr.mxu0 0.0
    %6009 = vmatpush1.msra.mxu0 0.0
    %6010 = vmatprep.subr.mxu0 0.0
    %6011 = vmatpush1.msra.mxu0 0.0
    %6012 = vmatprep.subr.mxu0 0.0
    %6013 = vmatpush1.msra.mxu0 0.0
    %6014 = vmatprep.subr.mxu0 0.0
    %6015 = vmatpush1.msra.mxu0 0.0
    %6016 = vmatprep.subr.mxu0 0.0
    %6017 = vmatpush1.msra.mxu0 0.0
    %6018 = vmatprep.subr.mxu0 0.0
    %6019 = vmatpush1.msra.mxu0 0.0
    %6020 = vmatprep.subr.mxu0 0.0
    %6021 = vmatpush1.msra.mxu0 0.0
    %6022 = vmatprep.subr.mxu0 0.0
    %6023 = vmatpush1.msra.mxu0 0.0
    %6024 = vmatprep.subr.mxu0 0.0
    %6025 = vmatpush1.msra.mxu0 0.0
    %6026 = vmatprep.subr.mxu0 0.0
    %6027 = vmatpush1.msra.mxu0 0.0
    %6028 = vmatprep.subr.mxu0 0.0
    %6029 = vmatpush1.msra.mxu0 0.0
    %6030 = vmatprep.subr.mxu0 0.0
    %6031 = vmatpush1.msra.mxu0 0.0
    %6032 = vmatprep.subr.mxu0 0.0
    %6033 = vmatpush1.msra.mxu0 0.0
    %6034 = vmatprep.subr.mxu0 0.0
    %6035 = vmatpush1.msra.mxu0 0.0
    %6036 = vmatprep.subr.mxu0 0.0
    %6037 = vmatpush1.msra.mxu0 0.0
    %6038 = vmatprep.subr.mxu0 0.0
    %6039 = vmatpush1.msra.mxu0 0.0
    %6040 = vmatprep.subr.mxu0 0.0
    %6041 = vmatpush1.msra.mxu0 0.0
    %6042 = vmatprep.subr.mxu0 0.0
    %6043 = vmatpush1.msra.mxu0 0.0
    %6044 = vmatprep.subr.mxu0 0.0
    %6045 = vmatpush1.msra.mxu0 0.0
    %6046 = vmatprep.subr.mxu0 0.0
    %6047 = vmatpush1.msra.mxu0 0.0
    %6048 = vmatprep.subr.mxu0 0.0
    %6049 = vmatpush1.msra.mxu0 0.0
    %6050 = vmatprep.subr.mxu0 0.0
    %6051 = vmatpush1.msra.mxu0 0.0
    %6052 = vmatprep.mubr.f32.mxu0 0.0
    %6053 = vmatmul.mubr.f32.gmra.mrb[0].mxu0 %v5986
    %v6054 = vpop.f32.mrb[0].mxu0
    %v6055 = vadd.f32 %v961, %v6054
    %v6056 = vpop.f32.mrb[0].mxu0
    %6057 = vdwg.mxu0
    %v6059 = vrot.slane %v6055, 2
    %v6060 = vrot.slane %v6055, 3
    %v6063 = vmul.f32 %v1444, %v6059
    %v6064 = vmul.f32 %v1445, %v6060
    %v6065 = vadd.f32 %v1442, %v6063
    %v6066 = vadd.f32 %v1443, %v6064
    %v6069 = vrot.slane %v6065, 6
    %v6070 = vrot.slane %v6066, 5
    %v6071 = vsel %vm976, %v6070, %v6069
    %v6072 = vsel %vm84, %v6071, 0
    %6074 = vmatprep.subr.mxu0 0.0
    %6075 = vmatpush1.msra.mxu0 %v1461
    %6076 = vmatprep.subr.mxu0 0.0
    %6077 = vmatpush1.msra.mxu0 0.0
    %6078 = vmatprep.subr.mxu0 0.0
    %6079 = vmatpush1.msra.mxu0 0.0
    %6080 = vmatprep.subr.mxu0 0.0
    %6081 = vmatpush1.msra.mxu0 0.0
    %6082 = vmatprep.subr.mxu0 0.0
    %6083 = vmatpush1.msra.mxu0 0.0
    %6084 = vmatprep.subr.mxu0 0.0
    %6085 = vmatpush1.msra.mxu0 0.0
    %6086 = vmatprep.subr.mxu0 0.0
    %6087 = vmatpush1.msra.mxu0 0.0
    %6088 = vmatprep.subr.mxu0 0.0
    %6089 = vmatpush1.msra.mxu0 0.0
    %6090 = vmatprep.subr.mxu0 0.0
    %6091 = vmatpush1.msra.mxu0 0.0
    %6092 = vmatprep.subr.mxu0 0.0
    %6093 = vmatpush1.msra.mxu0 0.0
    %6094 = vmatprep.subr.mxu0 0.0
    %6095 = vmatpush1.msra.mxu0 0.0
    %6096 = vmatprep.subr.mxu0 0.0
    %6097 = vmatpush1.msra.mxu0 0.0
    %6098 = vmatprep.subr.mxu0 0.0
    %6099 = vmatpush1.msra.mxu0 0.0
    %6100 = vmatprep.subr.mxu0 0.0
    %6101 = vmatpush1.msra.mxu0 0.0
    %6102 = vmatprep.subr.mxu0 0.0
    %6103 = vmatpush1.msra.mxu0 0.0
    %6104 = vmatprep.subr.mxu0 0.0
    %6105 = vmatpush1.msra.mxu0 0.0
    %6106 = vmatprep.subr.mxu0 0.0
    %6107 = vmatpush1.msra.mxu0 0.0
    %6108 = vmatprep.subr.mxu0 0.0
    %6109 = vmatpush1.msra.mxu0 0.0
    %6110 = vmatprep.subr.mxu0 0.0
    %6111 = vmatpush1.msra.mxu0 0.0
    %6112 = vmatprep.subr.mxu0 0.0
    %6113 = vmatpush1.msra.mxu0 0.0
    %6114 = vmatprep.subr.mxu0 0.0
    %6115 = vmatpush1.msra.mxu0 0.0
    %6116 = vmatprep.subr.mxu0 0.0
    %6117 = vmatpush1.msra.mxu0 0.0
    %6118 = vmatprep.subr.mxu0 0.0
    %6119 = vmatpush1.msra.mxu0 0.0
    %6120 = vmatprep.subr.mxu0 0.0
    %6121 = vmatpush1.msra.mxu0 0.0
    %6122 = vmatprep.subr.mxu0 0.0
    %6123 = vmatpush1.msra.mxu0 0.0
    %6124 = vmatprep.subr.mxu0 0.0
    %6125 = vmatpush1.msra.mxu0 0.0
    %6126 = vmatprep.subr.mxu0 0.0
    %6127 = vmatpush1.msra.mxu0 0.0
    %6128 = vmatprep.subr.mxu0 0.0
    %6129 = vmatpush1.msra.mxu0 0.0
    %6130 = vmatprep.subr.mxu0 0.0
    %6131 = vmatpush1.msra.mxu0 0.0
    %6132 = vmatprep.subr.mxu0 0.0
    %6133 = vmatpush1.msra.mxu0 0.0
    %6134 = vmatprep.subr.mxu0 0.0
    %6135 = vmatpush1.msra.mxu0 0.0
    %6136 = vmatprep.subr.mxu0 0.0
    %6137 = vmatpush1.msra.mxu0 0.0
    %6138 = vmatprep.mubr.f32.mxu0 0.0
    %6139 = vmatmul.mubr.f32.gmra.mrb[0].mxu0 %v6072
    %v6140 = vpop.f32.mrb[0].mxu0
    %v6141 = vadd.f32 %v969, %v6140
    %v6142 = vpop.f32.mrb[0].mxu0
    %6143 = vdwg.mxu0
    %v6145 = vrot.slane %v6141, 2
    %v6146 = vrot.slane %v6141, 3
    %v6149 = vmul.f32 %v838, %v6145
    %v6150 = vmul.f32 %v840, %v6146
    %v6151 = vmul.f32 %v1539, %v6059
    %v6152 = vmul.f32 %v1540, %v6060
    %v6153 = vadd.f32 %v6149, %v6151
    %v6154 = vadd.f32 %v6150, %v6152
    %v6155 = vmul.f32 %v1444, %v6153
    %v6156 = vmul.f32 %v1445, %v6154
    %v6157 = vadd.f32 %v1442, %v6155
    %v6158 = vadd.f32 %v1443, %v6156
    %v6159 = vrot.slane %v66, 6
    %v6160 = vrot.slane %v67, 5
    %v6161 = vsel %vm976, %v6160, %v6159
    %v6163 = vsub.f32 %v6055, %v6161
    %v6164 = vand.u32 2147483647, %v6163
    %v6165 = vsub.f32 %v6141, %v6161
    %v6166 = vand.u32 2147483647, %v6165
    %v6167 = vadd.f32 %v6164, %v6166
    %v6168 = vsub.f32 %v6153, %v66
    %v6169 = vsub.f32 %v6154, %v67
    %v6170 = vand.u32 2147483647, %v6168
    %v6171 = vand.u32 2147483647, %v6169
    %v6174 = vrot.slane %v6170, 6
    %v6175 = vrot.slane %v6171, 5
    %v6176 = vsel %vm976, %v6175, %v6174
    %v6178 = vadd.f32 %v6167, %v6176
    %v6179 = vrot.slane %v939, 6
    %v6180 = vrot.slane %v940, 5
    %v6181 = vsel %vm976, %v6180, %v6179
    %v6183 = vmul.f32 %v6178, %v6181
    %v6184 = vadd.f32 %v5414, %v6183
    %6185 = vmatprep.subr.mxu0 0.0
    %6186 = vmatpush1.msra.mxu0 %v951
    %6187 = vmatprep.subr.mxu0 0.0
    %6188 = vmatpush1.msra.mxu0 %v952
    %6189 = vmatprep.subr.mxu0 0.0
    %6190 = vmatpush1.msra.mxu0 %v953
    %6191 = vmatprep.subr.mxu0 0.0
    %6192 = vmatpush1.msra.mxu0 %v954
    %6193 = vmatprep.subr.mxu0 0.0
    %6194 = vmatpush1.msra.mxu0 0.0
    %6195 = vmatprep.subr.mxu0 0.0
    %6196 = vmatpush1.msra.mxu0 0.0
    %6197 = vmatprep.subr.mxu0 0.0
    %6198 = vmatpush1.msra.mxu0 0.0
    %6199 = vmatprep.subr.mxu0 0.0
    %6200 = vmatpush1.msra.mxu0 0.0
    %6201 = vmatprep.subr.mxu0 0.0
    %6202 = vmatpush1.msra.mxu0 0.0
    %6203 = vmatprep.subr.mxu0 0.0
    %6204 = vmatpush1.msra.mxu0 0.0
    %6205 = vmatprep.subr.mxu0 0.0
    %6206 = vmatpush1.msra.mxu0 0.0
    %6207 = vmatprep.subr.mxu0 0.0
    %6208 = vmatpush1.msra.mxu0 0.0
    %6209 = vmatprep.subr.mxu0 0.0
    %6210 = vmatpush1.msra.mxu0 0.0
    %6211 = vmatprep.subr.mxu0 0.0
    %6212 = vmatpush1.msra.mxu0 0.0
    %6213 = vmatprep.subr.mxu0 0.0
    %6214 = vmatpush1.msra.mxu0 0.0
    %6215 = vmatprep.subr.mxu0 0.0
    %6216 = vmatpush1.msra.mxu0 0.0
    %6217 = vmatprep.subr.mxu0 0.0
    %6218 = vmatpush1.msra.mxu0 0.0
    %6219 = vmatprep.subr.mxu0 0.0
    %6220 = vmatpush1.msra.mxu0 0.0
    %6221 = vmatprep.subr.mxu0 0.0
    %6222 = vmatpush1.msra.mxu0 0.0
    %6223 = vmatprep.subr.mxu0 0.0
    %6224 = vmatpush1.msra.mxu0 0.0
    %6225 = vmatprep.subr.mxu0 0.0
    %6226 = vmatpush1.msra.mxu0 0.0
    %6227 = vmatprep.subr.mxu0 0.0
    %6228 = vmatpush1.msra.mxu0 0.0
    %6229 = vmatprep.subr.mxu0 0.0
    %6230 = vmatpush1.msra.mxu0 0.0
    %6231 = vmatprep.subr.mxu0 0.0
    %6232 = vmatpush1.msra.mxu0 0.0
    %6233 = vmatprep.subr.mxu0 0.0
    %6234 = vmatpush1.msra.mxu0 0.0
    %6235 = vmatprep.subr.mxu0 0.0
    %6236 = vmatpush1.msra.mxu0 0.0
    %6237 = vmatprep.subr.mxu0 0.0
    %6238 = vmatpush1.msra.mxu0 0.0
    %6239 = vmatprep.subr.mxu0 0.0
    %6240 = vmatpush1.msra.mxu0 0.0
    %6241 = vmatprep.subr.mxu0 0.0
    %6242 = vmatpush1.msra.mxu0 0.0
    %6243 = vmatprep.subr.mxu0 0.0
    %6244 = vmatpush1.msra.mxu0 0.0
    %6245 = vmatprep.subr.mxu0 0.0
    %6246 = vmatpush1.msra.mxu0 0.0
    %6247 = vmatprep.subr.mxu0 0.0
    %6248 = vmatpush1.msra.mxu0 0.0
    %6249 = vmatprep.mubr.f32.mxu0 0.0
    %6250 = vmatmul.mubr.f32.gmra.mrb[0].mxu0 %v5986
    %v6251 = vpop.f32.mrb[0].mxu0
    %v6252 = vadd.f32 0.0, %v6251
    %v6253 = vpop.f32.mrb[0].mxu0
    %6254 = vdwg.mxu0
    %v6257 = vrot.slane %v6157, 6
    %v6258 = vrot.slane %v6158, 5
    %v6259 = vsel %vm976, %v6258, %v6257
    %v6260 = vsel %vm84, %v6259, 0
    %6262 = vmatprep.subr.mxu0 0.0
    %6263 = vmatpush1.msra.mxu0 %v1653
    %6264 = vmatprep.subr.mxu0 0.0
    %6265 = vmatpush1.msra.mxu0 0.0
    %6266 = vmatprep.subr.mxu0 0.0
    %6267 = vmatpush1.msra.mxu0 0.0
    %6268 = vmatprep.subr.mxu0 0.0
    %6269 = vmatpush1.msra.mxu0 0.0
    %6270 = vmatprep.subr.mxu0 0.0
    %6271 = vmatpush1.msra.mxu0 0.0
    %6272 = vmatprep.subr.mxu0 0.0
    %6273 = vmatpush1.msra.mxu0 0.0
    %6274 = vmatprep.subr.mxu0 0.0
    %6275 = vmatpush1.msra.mxu0 0.0
    %6276 = vmatprep.subr.mxu0 0.0
    %6277 = vmatpush1.msra.mxu0 0.0
    %6278 = vmatprep.subr.mxu0 0.0
    %6279 = vmatpush1.msra.mxu0 0.0
    %6280 = vmatprep.subr.mxu0 0.0
    %6281 = vmatpush1.msra.mxu0 0.0
    %6282 = vmatprep.subr.mxu0 0.0
    %6283 = vmatpush1.msra.mxu0 0.0
    %6284 = vmatprep.subr.mxu0 0.0
    %6285 = vmatpush1.msra.mxu0 0.0
    %6286 = vmatprep.subr.mxu0 0.0
    %6287 = vmatpush1.msra.mxu0 0.0
    %6288 = vmatprep.subr.mxu0 0.0
    %6289 = vmatpush1.msra.mxu0 0.0
    %6290 = vmatprep.subr.mxu0 0.0
    %6291 = vmatpush1.msra.mxu0 0.0
    %6292 = vmatprep.subr.mxu0 0.0
    %6293 = vmatpush1.msra.mxu0 0.0
    %6294 = vmatprep.subr.mxu0 0.0
    %6295 = vmatpush1.msra.mxu0 0.0
    %6296 = vmatprep.subr.mxu0 0.0
    %6297 = vmatpush1.msra.mxu0 0.0
    %6298 = vmatprep.subr.mxu0 0.0
    %6299 = vmatpush1.msra.mxu0 0.0
    %6300 = vmatprep.subr.mxu0 0.0
    %6301 = vmatpush1.msra.mxu0 0.0
    %6302 = vmatprep.subr.mxu0 0.0
    %6303 = vmatpush1.msra.mxu0 0.0
    %6304 = vmatprep.subr.mxu0 0.0
    %6305 = vmatpush1.msra.mxu0 0.0
    %6306 = vmatprep.subr.mxu0 0.0
    %6307 = vmatpush1.msra.mxu0 0.0
    %6308 = vmatprep.subr.mxu0 0.0
    %6309 = vmatpush1.msra.mxu0 0.0
    %6310 = vmatprep.subr.mxu0 0.0
    %6311 = vmatpush1.msra.mxu0 0.0
    %6312 = vmatprep.subr.mxu0 0.0
    %6313 = vmatpush1.msra.mxu0 0.0
    %6314 = vmatprep.subr.mxu0 0.0
    %6315 = vmatpush1.msra.mxu0 0.0
    %6316 = vmatprep.subr.mxu0 0.0
    %6317 = vmatpush1.msra.mxu0 0.0
    %6318 = vmatprep.subr.mxu0 0.0
    %6319 = vmatpush1.msra.mxu0 0.0
    %6320 = vmatprep.subr.mxu0 0.0
    %6321 = vmatpush1.msra.mxu0 0.0
    %6322 = vmatprep.subr.mxu0 0.0
    %6323 = vmatpush1.msra.mxu0 0.0
    %6324 = vmatprep.subr.mxu0 0.0
    %6325 = vmatpush1.msra.mxu0 0.0
    %6326 = vmatprep.mubr.f32.mxu0 0.0
    %6327 = vmatmul.mubr.f32.gmra.mrb[0].mxu0 %v6260
    %v6328 = vpop.f32.mrb[0].mxu0
    %v6329 = vadd.f32 %v6252, %v6328
    %v6330 = vpop.f32.mrb[0].mxu0
    %6331 = vdwg.mxu0
    %v6332 = vrot.slane %v921, 6
    %v6333 = vrot.slane %v926, 5
    %v6334 = vsel %vm976, %v6333, %v6332
    %v6336 = vadd.f32 %v6329, %v6334
    %v6337 = vsub.f32 0.0, %v6336
    %v6338 = vmul.f32 %v6337, 1.442695
    %v6339 = vpow.pop %v6338
    %v6340 = vadd.f32 %v6339, 1.0
    %v6341 = vrcp.pop %v6340
    %v6342 = vmul.f32 1.0, %v6341
    %v6343 = vtanh.pop %v6336
    %v6344 = vmul.f32 %v6342, %v5584
    %6346 = vrot.lane.b32.xlu0 %v6343, 64
    %v6347 = vpop.permute.xlu0 %6346
    %v6349 = vmul.f32 %v6342, %v6347
    %6351 = vrot.lane.b32.xlu0 %v6349, 32
    %v6352 = vpop.permute.xlu0 %6351
    %v6354 = vadd.f32 %v6344, %v6352
    %v6355 = vtanh.pop %v6354
    %6357 = vrot.lane.b32.xlu0 %v6355, 64
    %v6358 = vpop.permute.xlu0 %6357
    %v6360 = vmul.f32 %v6342, %v6358
    %v6361 = vrot.slane %v175, 7
    %v6362 = vrot.slane %v177, 6
    %v6363 = vsel %vm976, %v6362, %v6361
    %6364 = vrot.lane.b32.xlu0 %v6363, 96
    %v6365 = vpop.permute.xlu0 %6364
    %v6367 = vmul.f32 %v5975, %v6365
    %6369 = vrot.lane.b32.xlu0 %v6367, 32
    %v6370 = vpop.permute.xlu0 %6369
    %v6371 = vsel %vm978, %v6370, 0
    %6373 = vmatprep.subr.mxu0 0.0
    %6374 = vmatpush1.msra.mxu0 %v493
    %6375 = vmatprep.subr.mxu0 0.0
    %6376 = vmatpush1.msra.mxu0 %v494
    %6377 = vmatprep.subr.mxu0 0.0
    %6378 = vmatpush1.msra.mxu0 %v495
    %6379 = vmatprep.subr.mxu0 0.0
    %6380 = vmatpush1.msra.mxu0 %v496
    %6381 = vmatprep.subr.mxu0 0.0
    %6382 = vmatpush1.msra.mxu0 0.0
    %6383 = vmatprep.subr.mxu0 0.0
    %6384 = vmatpush1.msra.mxu0 0.0
    %6385 = vmatprep.subr.mxu0 0.0
    %6386 = vmatpush1.msra.mxu0 0.0
    %6387 = vmatprep.subr.mxu0 0.0
    %6388 = vmatpush1.msra.mxu0 0.0
    %6389 = vmatprep.subr.mxu0 0.0
    %6390 = vmatpush1.msra.mxu0 0.0
    %6391 = vmatprep.subr.mxu0 0.0
    %6392 = vmatpush1.msra.mxu0 0.0
    %6393 = vmatprep.subr.mxu0 0.0
    %6394 = vmatpush1.msra.mxu0 0.0
    %6395 = vmatprep.subr.mxu0 0.0
    %6396 = vmatpush1.msra.mxu0 0.0
    %6397 = vmatprep.subr.mxu0 0.0
    %6398 = vmatpush1.msra.mxu0 0.0
    %6399 = vmatprep.subr.mxu0 0.0
    %6400 = vmatpush1.msra.mxu0 0.0
    %6401 = vmatprep.subr.mxu0 0.0
    %6402 = vmatpush1.msra.mxu0 0.0
    %6403 = vmatprep.subr.mxu0 0.0
    %6404 = vmatpush1.msra.mxu0 0.0
    %6405 = vmatprep.subr.mxu0 0.0
    %6406 = vmatpush1.msra.mxu0 0.0
    %6407 = vmatprep.subr.mxu0 0.0
    %6408 = vmatpush1.msra.mxu0 0.0
    %6409 = vmatprep.subr.mxu0 0.0
    %6410 = vmatpush1.msra.mxu0 0.0
    %6411 = vmatprep.subr.mxu0 0.0
    %6412 = vmatpush1.msra.mxu0 0.0
    %6413 = vmatprep.subr.mxu0 0.0
    %6414 = vmatpush1.msra.mxu0 0.0
    %6415 = vmatprep.subr.mxu0 0.0
    %6416 = vmatpush1.msra.mxu0 0.0
    %6417 = vmatprep.subr.mxu0 0.0
    %6418 = vmatpush1.msra.mxu0 0.0
    %6419 = vmatprep.subr.mxu0 0.0
    %6420 = vmatpush1.msra.mxu0 0.0
    %6421 = vmatprep.subr.mxu0 0.0
    %6422 = vmatpush1.msra.mxu0 0.0
    %6423 = vmatprep.subr.mxu0 0.0
    %6424 = vmatpush1.msra.mxu0 0.0
    %6425 = vmatprep.subr.mxu0 0.0
    %6426 = vmatpush1.msra.mxu0 0.0
    %6427 = vmatprep.subr.mxu0 0.0
    %6428 = vmatpush1.msra.mxu0 0.0
    %6429 = vmatprep.subr.mxu0 0.0
    %6430 = vmatpush1.msra.mxu0 0.0
    %6431 = vmatprep.subr.mxu0 0.0
    %6432 = vmatpush1.msra.mxu0 0.0
    %6433 = vmatprep.subr.mxu0 0.0
    %6434 = vmatpush1.msra.mxu0 0.0
    %6435 = vmatprep.subr.mxu0 0.0
    %6436 = vmatpush1.msra.mxu0 0.0
    %6437 = vmatprep.mubr.f32.mxu0 0.0
    %6438 = vmatmul.mubr.f32.gmra.mrb[0].mxu0 %v6371
    %v6439 = vpop.f32.mrb[0].mxu0
    %v6440 = vadd.f32 %v508, %v6439
    %v6441 = vpop.f32.mrb[0].mxu0
    %6442 = vdwg.mxu0
    %v6444 = vrot.slane %v6440, 1
    %v6445 = vrot.slane %v6440, 2
    %v6448 = vmul.f32 %v1053, %v6444
    %v6449 = vmul.f32 %v1054, %v6445
    %v6450 = vadd.f32 %v1051, %v6448
    %v6451 = vadd.f32 %v1052, %v6449
    %v6454 = vrot.slane %v6450, 7
    %v6455 = vrot.slane %v6451, 6
    %v6456 = vsel %vm976, %v6455, %v6454
    %v6457 = vsel %vm84, %v6456, 0
    %6459 = vmatprep.subr.mxu0 0.0
    %6460 = vmatpush1.msra.mxu0 %v1070
    %6461 = vmatprep.subr.mxu0 0.0
    %6462 = vmatpush1.msra.mxu0 0.0
    %6463 = vmatprep.subr.mxu0 0.0
    %6464 = vmatpush1.msra.mxu0 0.0
    %6465 = vmatprep.subr.mxu0 0.0
    %6466 = vmatpush1.msra.mxu0 0.0
    %6467 = vmatprep.subr.mxu0 0.0
    %6468 = vmatpush1.msra.mxu0 0.0
    %6469 = vmatprep.subr.mxu0 0.0
    %6470 = vmatpush1.msra.mxu0 0.0
    %6471 = vmatprep.subr.mxu0 0.0
    %6472 = vmatpush1.msra.mxu0 0.0
    %6473 = vmatprep.subr.mxu0 0.0
    %6474 = vmatpush1.msra.mxu0 0.0
    %6475 = vmatprep.subr.mxu0 0.0
    %6476 = vmatpush1.msra.mxu0 0.0
    %6477 = vmatprep.subr.mxu0 0.0
    %6478 = vmatpush1.msra.mxu0 0.0
    %6479 = vmatprep.subr.mxu0 0.0
    %6480 = vmatpush1.msra.mxu0 0.0
    %6481 = vmatprep.subr.mxu0 0.0
    %6482 = vmatpush1.msra.mxu0 0.0
    %6483 = vmatprep.subr.mxu0 0.0
    %6484 = vmatpush1.msra.mxu0 0.0
    %6485 = vmatprep.subr.mxu0 0.0
    %6486 = vmatpush1.msra.mxu0 0.0
    %6487 = vmatprep.subr.mxu0 0.0
    %6488 = vmatpush1.msra.mxu0 0.0
    %6489 = vmatprep.subr.mxu0 0.0
    %6490 = vmatpush1.msra.mxu0 0.0
    %6491 = vmatprep.subr.mxu0 0.0
    %6492 = vmatpush1.msra.mxu0 0.0
    %6493 = vmatprep.subr.mxu0 0.0
    %6494 = vmatpush1.msra.mxu0 0.0
    %6495 = vmatprep.subr.mxu0 0.0
    %6496 = vmatpush1.msra.mxu0 0.0
    %6497 = vmatprep.subr.mxu0 0.0
    %6498 = vmatpush1.msra.mxu0 0.0
    %6499 = vmatprep.subr.mxu0 0.0
    %6500 = vmatpush1.msra.mxu0 0.0
    %6501 = vmatprep.subr.mxu0 0.0
    %6502 = vmatpush1.msra.mxu0 0.0
    %6503 = vmatprep.subr.mxu0 0.0
    %6504 = vmatpush1.msra.mxu0 0.0
    %6505 = vmatprep.subr.mxu0 0.0
    %6506 = vmatpush1.msra.mxu0 0.0
    %6507 = vmatprep.subr.mxu0 0.0
    %6508 = vmatpush1.msra.mxu0 0.0
    %6509 = vmatprep.subr.mxu0 0.0
    %6510 = vmatpush1.msra.mxu0 0.0
    %6511 = vmatprep.subr.mxu0 0.0
    %6512 = vmatpush1.msra.mxu0 0.0
    %6513 = vmatprep.subr.mxu0 0.0
    %6514 = vmatpush1.msra.mxu0 0.0
    %6515 = vmatprep.subr.mxu0 0.0
    %6516 = vmatpush1.msra.mxu0 0.0
    %6517 = vmatprep.subr.mxu0 0.0
    %6518 = vmatpush1.msra.mxu0 0.0
    %6519 = vmatprep.subr.mxu0 0.0
    %6520 = vmatpush1.msra.mxu0 0.0
    %6521 = vmatprep.subr.mxu0 0.0
    %6522 = vmatpush1.msra.mxu0 0.0
    %6523 = vmatprep.mubr.f32.mxu0 0.0
    %6524 = vmatmul.mubr.f32.gmra.mrb[0].mxu0 %v6457
    %v6525 = vpop.f32.mrb[0].mxu0
    %v6526 = vadd.f32 %v515, %v6525
    %v6527 = vpop.f32.mrb[0].mxu0
    %6528 = vdwg.mxu0
    %v6530 = vrot.slane %v6526, 1
    %v6531 = vrot.slane %v6526, 2
    %v6534 = vmul.f32 %v392, %v6530
    %v6535 = vmul.f32 %v394, %v6531
    %v6536 = vmul.f32 %v1148, %v6444
    %v6537 = vmul.f32 %v1149, %v6445
    %v6538 = vadd.f32 %v6534, %v6536
    %v6539 = vadd.f32 %v6535, %v6537
    %v6540 = vmul.f32 %v1053, %v6538
    %v6541 = vmul.f32 %v1054, %v6539
    %v6542 = vadd.f32 %v1051, %v6540
    %v6543 = vadd.f32 %v1052, %v6541
    %v6544 = vrot.slane %v64, 7
    %v6545 = vrot.slane %v65, 6
    %v6546 = vsel %vm976, %v6545, %v6544
    %v6548 = vsub.f32 %v6440, %v6546
    %v6549 = vand.u32 2147483647, %v6548
    %v6550 = vsub.f32 %v6526, %v6546
    %v6551 = vand.u32 2147483647, %v6550
    %v6552 = vadd.f32 %v6549, %v6551
    %v6553 = vsub.f32 %v6538, %v64
    %v6554 = vsub.f32 %v6539, %v65
    %v6555 = vand.u32 2147483647, %v6553
    %v6556 = vand.u32 2147483647, %v6554
    %v6559 = vrot.slane %v6555, 7
    %v6560 = vrot.slane %v6556, 6
    %v6561 = vsel %vm976, %v6560, %v6559
    %v6563 = vadd.f32 %v6552, %v6561
    %v6564 = vrot.slane %v491, 7
    %v6565 = vrot.slane %v492, 6
    %v6566 = vsel %vm976, %v6565, %v6564
    %v6568 = vmul.f32 %v6563, %v6566
    %v6569 = vadd.f32 %v5799, %v6568
    %6570 = vmatprep.subr.mxu0 0.0
    %6571 = vmatpush1.msra.mxu0 %v499
    %6572 = vmatprep.subr.mxu0 0.0
    %6573 = vmatpush1.msra.mxu0 %v500
    %6574 = vmatprep.subr.mxu0 0.0
    %6575 = vmatpush1.msra.mxu0 %v501
    %6576 = vmatprep.subr.mxu0 0.0
    %6577 = vmatpush1.msra.mxu0 %v502
    %6578 = vmatprep.subr.mxu0 0.0
    %6579 = vmatpush1.msra.mxu0 0.0
    %6580 = vmatprep.subr.mxu0 0.0
    %6581 = vmatpush1.msra.mxu0 0.0
    %6582 = vmatprep.subr.mxu0 0.0
    %6583 = vmatpush1.msra.mxu0 0.0
    %6584 = vmatprep.subr.mxu0 0.0
    %6585 = vmatpush1.msra.mxu0 0.0
    %6586 = vmatprep.subr.mxu0 0.0
    %6587 = vmatpush1.msra.mxu0 0.0
    %6588 = vmatprep.subr.mxu0 0.0
    %6589 = vmatpush1.msra.mxu0 0.0
    %6590 = vmatprep.subr.mxu0 0.0
    %6591 = vmatpush1.msra.mxu0 0.0
    %6592 = vmatprep.subr.mxu0 0.0
    %6593 = vmatpush1.msra.mxu0 0.0
    %6594 = vmatprep.subr.mxu0 0.0
    %6595 = vmatpush1.msra.mxu0 0.0
    %6596 = vmatprep.subr.mxu0 0.0
    %6597 = vmatpush1.msra.mxu0 0.0
    %6598 = vmatprep.subr.mxu0 0.0
    %6599 = vmatpush1.msra.mxu0 0.0
    %6600 = vmatprep.subr.mxu0 0.0
    %6601 = vmatpush1.msra.mxu0 0.0
    %6602 = vmatprep.subr.mxu0 0.0
    %6603 = vmatpush1.msra.mxu0 0.0
    %6604 = vmatprep.subr.mxu0 0.0
    %6605 = vmatpush1.msra.mxu0 0.0
    %6606 = vmatprep.subr.mxu0 0.0
    %6607 = vmatpush1.msra.mxu0 0.0
    %6608 = vmatprep.subr.mxu0 0.0
    %6609 = vmatpush1.msra.mxu0 0.0
    %6610 = vmatprep.subr.mxu0 0.0
    %6611 = vmatpush1.msra.mxu0 0.0
    %6612 = vmatprep.subr.mxu0 0.0
    %6613 = vmatpush1.msra.mxu0 0.0
    %6614 = vmatprep.subr.mxu0 0.0
    %6615 = vmatpush1.msra.mxu0 0.0
    %6616 = vmatprep.subr.mxu0 0.0
    %6617 = vmatpush1.msra.mxu0 0.0
    %6618 = vmatprep.subr.mxu0 0.0
    %6619 = vmatpush1.msra.mxu0 0.0
    %6620 = vmatprep.subr.mxu0 0.0
    %6621 = vmatpush1.msra.mxu0 0.0
    %6622 = vmatprep.subr.mxu0 0.0
    %6623 = vmatpush1.msra.mxu0 0.0
    %6624 = vmatprep.subr.mxu0 0.0
    %6625 = vmatpush1.msra.mxu0 0.0
    %6626 = vmatprep.subr.mxu0 0.0
    %6627 = vmatpush1.msra.mxu0 0.0
    %6628 = vmatprep.subr.mxu0 0.0
    %6629 = vmatpush1.msra.mxu0 0.0
    %6630 = vmatprep.subr.mxu0 0.0
    %6631 = vmatpush1.msra.mxu0 0.0
    %6632 = vmatprep.subr.mxu0 0.0
    %6633 = vmatpush1.msra.mxu0 0.0
    %6634 = vmatprep.mubr.f32.mxu0 0.0
    %6635 = vmatmul.mubr.f32.gmra.mrb[0].mxu0 %v6371
    %v6636 = vpop.f32.mrb[0].mxu0
    %v6637 = vadd.f32 0.0, %v6636
    %v6638 = vpop.f32.mrb[0].mxu0
    %6639 = vdwg.mxu0
    %v6642 = vrot.slane %v6542, 7
    %v6643 = vrot.slane %v6543, 6
    %v6644 = vsel %vm976, %v6643, %v6642
    %v6645 = vsel %vm84, %v6644, 0
    %6647 = vmatprep.subr.mxu0 0.0
    %6648 = vmatpush1.msra.mxu0 %v1262
    %6649 = vmatprep.subr.mxu0 0.0
    %6650 = vmatpush1.msra.mxu0 0.0
    %6651 = vmatprep.subr.mxu0 0.0
    %6652 = vmatpush1.msra.mxu0 0.0
    %6653 = vmatprep.subr.mxu0 0.0
    %6654 = vmatpush1.msra.mxu0 0.0
    %6655 = vmatprep.subr.mxu0 0.0
    %6656 = vmatpush1.msra.mxu0 0.0
    %6657 = vmatprep.subr.mxu0 0.0
    %6658 = vmatpush1.msra.mxu0 0.0
    %6659 = vmatprep.subr.mxu0 0.0
    %6660 = vmatpush1.msra.mxu0 0.0
    %6661 = vmatprep.subr.mxu0 0.0
    %6662 = vmatpush1.msra.mxu0 0.0
    %6663 = vmatprep.subr.mxu0 0.0
    %6664 = vmatpush1.msra.mxu0 0.0
    %6665 = vmatprep.subr.mxu0 0.0
    %6666 = vmatpush1.msra.mxu0 0.0
    %6667 = vmatprep.subr.mxu0 0.0
    %6668 = vmatpush1.msra.mxu0 0.0
    %6669 = vmatprep.subr.mxu0 0.0
    %6670 = vmatpush1.msra.mxu0 0.0
    %6671 = vmatprep.subr.mxu0 0.0
    %6672 = vmatpush1.msra.mxu0 0.0
    %6673 = vmatprep.subr.mxu0 0.0
    %6674 = vmatpush1.msra.mxu0 0.0
    %6675 = vmatprep.subr.mxu0 0.0
    %6676 = vmatpush1.msra.mxu0 0.0
    %6677 = vmatprep.subr.mxu0 0.0
    %6678 = vmatpush1.msra.mxu0 0.0
    %6679 = vmatprep.subr.mxu0 0.0
    %6680 = vmatpush1.msra.mxu0 0.0
    %6681 = vmatprep.subr.mxu0 0.0
    %6682 = vmatpush1.msra.mxu0 0.0
    %6683 = vmatprep.subr.mxu0 0.0
    %6684 = vmatpush1.msra.mxu0 0.0
    %6685 = vmatprep.subr.mxu0 0.0
    %6686 = vmatpush1.msra.mxu0 0.0
    %6687 = vmatprep.subr.mxu0 0.0
    %6688 = vmatpush1.msra.mxu0 0.0
    %6689 = vmatprep.subr.mxu0 0.0
    %6690 = vmatpush1.msra.mxu0 0.0
    %6691 = vmatprep.subr.mxu0 0.0
    %6692 = vmatpush1.msra.mxu0 0.0
    %6693 = vmatprep.subr.mxu0 0.0
    %6694 = vmatpush1.msra.mxu0 0.0
    %6695 = vmatprep.subr.mxu0 0.0
    %6696 = vmatpush1.msra.mxu0 0.0
    %6697 = vmatprep.subr.mxu0 0.0
    %6698 = vmatpush1.msra.mxu0 0.0
    %6699 = vmatprep.subr.mxu0 0.0
    %6700 = vmatpush1.msra.mxu0 0.0
    %6701 = vmatprep.subr.mxu0 0.0
    %6702 = vmatpush1.msra.mxu0 0.0
    %6703 = vmatprep.subr.mxu0 0.0
    %6704 = vmatpush1.msra.mxu0 0.0
    %6705 = vmatprep.subr.mxu0 0.0
    %6706 = vmatpush1.msra.mxu0 0.0
    %6707 = vmatprep.subr.mxu0 0.0
    %6708 = vmatpush1.msra.mxu0 0.0
    %6709 = vmatprep.subr.mxu0 0.0
    %6710 = vmatpush1.msra.mxu0 0.0
    %6711 = vmatprep.mubr.f32.mxu0 0.0
    %6712 = vmatmul.mubr.f32.gmra.mrb[0].mxu0 %v6645
    %v6713 = vpop.f32.mrb[0].mxu0
    %v6714 = vadd.f32 %v6637, %v6713
    %v6715 = vpop.f32.mrb[0].mxu0
    %6716 = vdwg.mxu0
    %v6717 = vrot.slane %v473, 7
    %v6718 = vrot.slane %v478, 6
    %v6719 = vsel %vm976, %v6718, %v6717
    %v6721 = vadd.f32 %v6714, %v6719
    %v6722 = vsub.f32 0.0, %v6721
    %v6723 = vmul.f32 %v6722, 1.442695
    %v6724 = vpow.pop %v6723
    %v6725 = vadd.f32 %v6724, 1.0
    %v6726 = vrcp.pop %v6725
    %v6727 = vmul.f32 1.0, %v6726
    %v6728 = vtanh.pop %v6721
    %v6729 = vmul.f32 %v6727, %v5969
    %6731 = vrot.lane.b32.xlu0 %v6728, 64
    %v6732 = vpop.permute.xlu0 %6731
    %v6734 = vmul.f32 %v6727, %v6732
    %6736 = vrot.lane.b32.xlu0 %v6734, 32
    %v6737 = vpop.permute.xlu0 %6736
    %v6739 = vadd.f32 %v6729, %v6737
    %v6740 = vtanh.pop %v6739
    %6742 = vrot.lane.b32.xlu0 %v6740, 64
    %v6743 = vpop.permute.xlu0 %6742
    %v6745 = vmul.f32 %v6727, %v6743
    %v6746 = vrot.slane %v616, 7
    %v6747 = vrot.slane %v618, 6
    %v6748 = vsel %vm976, %v6747, %v6746
    %6749 = vrot.lane.b32.xlu0 %v6748, 96
    %v6750 = vpop.permute.xlu0 %6749
    %v6752 = vmul.f32 %v6360, %v6750
    %6754 = vrot.lane.b32.xlu0 %v6752, 32
    %v6755 = vpop.permute.xlu0 %6754
    %v6756 = vsel %vm978, %v6755, 0
    %6758 = vmatprep.subr.mxu0 0.0
    %6759 = vmatpush1.msra.mxu0 %v942
    %6760 = vmatprep.subr.mxu0 0.0
    %6761 = vmatpush1.msra.mxu0 %v943
    %6762 = vmatprep.subr.mxu0 0.0
    %6763 = vmatpush1.msra.mxu0 %v944
    %6764 = vmatprep.subr.mxu0 0.0
    %6765 = vmatpush1.msra.mxu0 %v945
    %6766 = vmatprep.subr.mxu0 0.0
    %6767 = vmatpush1.msra.mxu0 0.0
    %6768 = vmatprep.subr.mxu0 0.0
    %6769 = vmatpush1.msra.mxu0 0.0
    %6770 = vmatprep.subr.mxu0 0.0
    %6771 = vmatpush1.msra.mxu0 0.0
    %6772 = vmatprep.subr.mxu0 0.0
    %6773 = vmatpush1.msra.mxu0 0.0
    %6774 = vmatprep.subr.mxu0 0.0
    %6775 = vmatpush1.msra.mxu0 0.0
    %6776 = vmatprep.subr.mxu0 0.0
    %6777 = vmatpush1.msra.mxu0 0.0
    %6778 = vmatprep.subr.mxu0 0.0
    %6779 = vmatpush1.msra.mxu0 0.0
    %6780 = vmatprep.subr.mxu0 0.0
    %6781 = vmatpush1.msra.mxu0 0.0
    %6782 = vmatprep.subr.mxu0 0.0
    %6783 = vmatpush1.msra.mxu0 0.0
    %6784 = vmatprep.subr.mxu0 0.0
    %6785 = vmatpush1.msra.mxu0 0.0
    %6786 = vmatprep.subr.mxu0 0.0
    %6787 = vmatpush1.msra.mxu0 0.0
    %6788 = vmatprep.subr.mxu0 0.0
    %6789 = vmatpush1.msra.mxu0 0.0
    %6790 = vmatprep.subr.mxu0 0.0
    %6791 = vmatpush1.msra.mxu0 0.0
    %6792 = vmatprep.subr.mxu0 0.0
    %6793 = vmatpush1.msra.mxu0 0.0
    %6794 = vmatprep.subr.mxu0 0.0
    %6795 = vmatpush1.msra.mxu0 0.0
    %6796 = vmatprep.subr.mxu0 0.0
    %6797 = vmatpush1.msra.mxu0 0.0
    %6798 = vmatprep.subr.mxu0 0.0
    %6799 = vmatpush1.msra.mxu0 0.0
    %6800 = vmatprep.subr.mxu0 0.0
    %6801 = vmatpush1.msra.mxu0 0.0
    %6802 = vmatprep.subr.mxu0 0.0
    %6803 = vmatpush1.msra.mxu0 0.0
    %6804 = vmatprep.subr.mxu0 0.0
    %6805 = vmatpush1.msra.mxu0 0.0
    %6806 = vmatprep.subr.mxu0 0.0
    %6807 = vmatpush1.msra.mxu0 0.0
    %6808 = vmatprep.subr.mxu0 0.0
    %6809 = vmatpush1.msra.mxu0 0.0
    %6810 = vmatprep.subr.mxu0 0.0
    %6811 = vmatpush1.msra.mxu0 0.0
    %6812 = vmatprep.subr.mxu0 0.0
    %6813 = vmatpush1.msra.mxu0 0.0
    %6814 = vmatprep.subr.mxu0 0.0
    %6815 = vmatpush1.msra.mxu0 0.0
    %6816 = vmatprep.subr.mxu0 0.0
    %6817 = vmatpush1.msra.mxu0 0.0
    %6818 = vmatprep.subr.mxu0 0.0
    %6819 = vmatpush1.msra.mxu0 0.0
    %6820 = vmatprep.subr.mxu0 0.0
    %6821 = vmatpush1.msra.mxu0 0.0
    %6822 = vmatprep.mubr.f32.mxu0 0.0
    %6823 = vmatmul.mubr.f32.gmra.mrb[0].mxu0 %v6756
    %v6824 = vpop.f32.mrb[0].mxu0
    %v6825 = vadd.f32 %v961, %v6824
    %v6826 = vpop.f32.mrb[0].mxu0
    %6827 = vdwg.mxu0
    %v6829 = vrot.slane %v6825, 1
    %v6830 = vrot.slane %v6825, 2
    %v6833 = vmul.f32 %v1444, %v6829
    %v6834 = vmul.f32 %v1445, %v6830
    %v6835 = vadd.f32 %v1442, %v6833
    %v6836 = vadd.f32 %v1443, %v6834
    %v6839 = vrot.slane %v6835, 7
    %v6840 = vrot.slane %v6836, 6
    %v6841 = vsel %vm976, %v6840, %v6839
    %v6842 = vsel %vm84, %v6841, 0
    %6844 = vmatprep.subr.mxu0 0.0
    %6845 = vmatpush1.msra.mxu0 %v1461
    %6846 = vmatprep.subr.mxu0 0.0
    %6847 = vmatpush1.msra.mxu0 0.0
    %6848 = vmatprep.subr.mxu0 0.0
    %6849 = vmatpush1.msra.mxu0 0.0
    %6850 = vmatprep.subr.mxu0 0.0
    %6851 = vmatpush1.msra.mxu0 0.0
    %6852 = vmatprep.subr.mxu0 0.0
    %6853 = vmatpush1.msra.mxu0 0.0
    %6854 = vmatprep.subr.mxu0 0.0
    %6855 = vmatpush1.msra.mxu0 0.0
    %6856 = vmatprep.subr.mxu0 0.0
    %6857 = vmatpush1.msra.mxu0 0.0
    %6858 = vmatprep.subr.mxu0 0.0
    %6859 = vmatpush1.msra.mxu0 0.0
    %6860 = vmatprep.subr.mxu0 0.0
    %6861 = vmatpush1.msra.mxu0 0.0
    %6862 = vmatprep.subr.mxu0 0.0
    %6863 = vmatpush1.msra.mxu0 0.0
    %6864 = vmatprep.subr.mxu0 0.0
    %6865 = vmatpush1.msra.mxu0 0.0
    %6866 = vmatprep.subr.mxu0 0.0
    %6867 = vmatpush1.msra.mxu0 0.0
    %6868 = vmatprep.subr.mxu0 0.0
    %6869 = vmatpush1.msra.mxu0 0.0
    %6870 = vmatprep.subr.mxu0 0.0
    %6871 = vmatpush1.msra.mxu0 0.0
    %6872 = vmatprep.subr.mxu0 0.0
    %6873 = vmatpush1.msra.mxu0 0.0
    %6874 = vmatprep.subr.mxu0 0.0
    %6875 = vmatpush1.msra.mxu0 0.0
    %6876 = vmatprep.subr.mxu0 0.0
    %6877 = vmatpush1.msra.mxu0 0.0
    %6878 = vmatprep.subr.mxu0 0.0
    %6879 = vmatpush1.msra.mxu0 0.0
    %6880 = vmatprep.subr.mxu0 0.0
    %6881 = vmatpush1.msra.mxu0 0.0
    %6882 = vmatprep.subr.mxu0 0.0
    %6883 = vmatpush1.msra.mxu0 0.0
    %6884 = vmatprep.subr.mxu0 0.0
    %6885 = vmatpush1.msra.mxu0 0.0
    %6886 = vmatprep.subr.mxu0 0.0
    %6887 = vmatpush1.msra.mxu0 0.0
    %6888 = vmatprep.subr.mxu0 0.0
    %6889 = vmatpush1.msra.mxu0 0.0
    %6890 = vmatprep.subr.mxu0 0.0
    %6891 = vmatpush1.msra.mxu0 0.0
    %6892 = vmatprep.subr.mxu0 0.0
    %6893 = vmatpush1.msra.mxu0 0.0
    %6894 = vmatprep.subr.mxu0 0.0
    %6895 = vmatpush1.msra.mxu0 0.0
    %6896 = vmatprep.subr.mxu0 0.0
    %6897 = vmatpush1.msra.mxu0 0.0
    %6898 = vmatprep.subr.mxu0 0.0
    %6899 = vmatpush1.msra.mxu0 0.0
    %6900 = vmatprep.subr.mxu0 0.0
    %6901 = vmatpush1.msra.mxu0 0.0
    %6902 = vmatprep.subr.mxu0 0.0
    %6903 = vmatpush1.msra.mxu0 0.0
    %6904 = vmatprep.subr.mxu0 0.0
    %6905 = vmatpush1.msra.mxu0 0.0
    %6906 = vmatprep.subr.mxu0 0.0
    %6907 = vmatpush1.msra.mxu0 0.0
    %6908 = vmatprep.mubr.f32.mxu0 0.0
    %6909 = vmatmul.mubr.f32.gmra.mrb[0].mxu0 %v6842
    %v6910 = vpop.f32.mrb[0].mxu0
    %v6911 = vadd.f32 %v969, %v6910
    %v6912 = vpop.f32.mrb[0].mxu0
    %6913 = vdwg.mxu0
    %v6915 = vrot.slane %v6911, 1
    %v6916 = vrot.slane %v6911, 2
    %v6919 = vmul.f32 %v838, %v6915
    %v6920 = vmul.f32 %v840, %v6916
    %v6921 = vmul.f32 %v1539, %v6829
    %v6922 = vmul.f32 %v1540, %v6830
    %v6923 = vadd.f32 %v6919, %v6921
    %v6924 = vadd.f32 %v6920, %v6922
    %v6925 = vmul.f32 %v1444, %v6923
    %v6926 = vmul.f32 %v1445, %v6924
    %v6927 = vadd.f32 %v1442, %v6925
    %v6928 = vadd.f32 %v1443, %v6926
    %v6929 = vrot.slane %v66, 7
    %v6930 = vrot.slane %v67, 6
    %v6931 = vsel %vm976, %v6930, %v6929
    %v6933 = vsub.f32 %v6825, %v6931
    %v6934 = vand.u32 2147483647, %v6933
    %v6935 = vsub.f32 %v6911, %v6931
    %v6936 = vand.u32 2147483647, %v6935
    %v6937 = vadd.f32 %v6934, %v6936
    %v6938 = vsub.f32 %v6923, %v66
    %v6939 = vsub.f32 %v6924, %v67
    %v6940 = vand.u32 2147483647, %v6938
    %v6941 = vand.u32 2147483647, %v6939
    %v6944 = vrot.slane %v6940, 7
    %v6945 = vrot.slane %v6941, 6
    %v6946 = vsel %vm976, %v6945, %v6944
    %v6948 = vadd.f32 %v6937, %v6946
    %v6949 = vrot.slane %v939, 7
    %v6950 = vrot.slane %v940, 6
    %v6951 = vsel %vm976, %v6950, %v6949
    %v6953 = vmul.f32 %v6948, %v6951
    %v6954 = vadd.f32 %v6184, %v6953
    %6955 = vmatprep.subr.mxu0 0.0
    %6956 = vmatpush1.msra.mxu0 %v951
    %6957 = vmatprep.subr.mxu0 0.0
    %6958 = vmatpush1.msra.mxu0 %v952
    %6959 = vmatprep.subr.mxu0 0.0
    %6960 = vmatpush1.msra.mxu0 %v953
    %6961 = vmatprep.subr.mxu0 0.0
    %6962 = vmatpush1.msra.mxu0 %v954
    %6963 = vmatprep.subr.mxu0 0.0
    %6964 = vmatpush1.msra.mxu0 0.0
    %6965 = vmatprep.subr.mxu0 0.0
    %6966 = vmatpush1.msra.mxu0 0.0
    %6967 = vmatprep.subr.mxu0 0.0
    %6968 = vmatpush1.msra.mxu0 0.0
    %6969 = vmatprep.subr.mxu0 0.0
    %6970 = vmatpush1.msra.mxu0 0.0
    %6971 = vmatprep.subr.mxu0 0.0
    %6972 = vmatpush1.msra.mxu0 0.0
    %6973 = vmatprep.subr.mxu0 0.0
    %6974 = vmatpush1.msra.mxu0 0.0
    %6975 = vmatprep.subr.mxu0 0.0
    %6976 = vmatpush1.msra.mxu0 0.0
    %6977 = vmatprep.subr.mxu0 0.0
    %6978 = vmatpush1.msra.mxu0 0.0
    %6979 = vmatprep.subr.mxu0 0.0
    %6980 = vmatpush1.msra.mxu0 0.0
    %6981 = vmatprep.subr.mxu0 0.0
    %6982 = vmatpush1.msra.mxu0 0.0
    %6983 = vmatprep.subr.mxu0 0.0
    %6984 = vmatpush1.msra.mxu0 0.0
    %6985 = vmatprep.subr.mxu0 0.0
    %6986 = vmatpush1.msra.mxu0 0.0
    %6987 = vmatprep.subr.mxu0 0.0
    %6988 = vmatpush1.msra.mxu0 0.0
    %6989 = vmatprep.subr.mxu0 0.0
    %6990 = vmatpush1.msra.mxu0 0.0
    %6991 = vmatprep.subr.mxu0 0.0
    %6992 = vmatpush1.msra.mxu0 0.0
    %6993 = vmatprep.subr.mxu0 0.0
    %6994 = vmatpush1.msra.mxu0 0.0
    %6995 = vmatprep.subr.mxu0 0.0
    %6996 = vmatpush1.msra.mxu0 0.0
    %6997 = vmatprep.subr.mxu0 0.0
    %6998 = vmatpush1.msra.mxu0 0.0
    %6999 = vmatprep.subr.mxu0 0.0
    %7000 = vmatpush1.msra.mxu0 0.0
    %7001 = vmatprep.subr.mxu0 0.0
    %7002 = vmatpush1.msra.mxu0 0.0
    %7003 = vmatprep.subr.mxu0 0.0
    %7004 = vmatpush1.msra.mxu0 0.0
    %7005 = vmatprep.subr.mxu0 0.0
    %7006 = vmatpush1.msra.mxu0 0.0
    %7007 = vmatprep.subr.mxu0 0.0
    %7008 = vmatpush1.msra.mxu0 0.0
    %7009 = vmatprep.subr.mxu0 0.0
    %7010 = vmatpush1.msra.mxu0 0.0
    %7011 = vmatprep.subr.mxu0 0.0
    %7012 = vmatpush1.msra.mxu0 0.0
    %7013 = vmatprep.subr.mxu0 0.0
    %7014 = vmatpush1.msra.mxu0 0.0
    %7015 = vmatprep.subr.mxu0 0.0
    %7016 = vmatpush1.msra.mxu0 0.0
    %7017 = vmatprep.subr.mxu0 0.0
    %7018 = vmatpush1.msra.mxu0 0.0
    %7019 = vmatprep.mubr.f32.mxu0 0.0
    %7020 = vmatmul.mubr.f32.gmra.mrb[0].mxu0 %v6756
    %v7021 = vpop.f32.mrb[0].mxu0
    %v7022 = vadd.f32 0.0, %v7021
    %v7023 = vpop.f32.mrb[0].mxu0
    %7024 = vdwg.mxu0
    %v7027 = vrot.slane %v6927, 7
    %v7028 = vrot.slane %v6928, 6
    %v7029 = vsel %vm976, %v7028, %v7027
    %v7030 = vsel %vm84, %v7029, 0
    %7032 = vmatprep.subr.mxu0 0.0
    %7033 = vmatpush1.msra.mxu0 %v1653
    %7034 = vmatprep.subr.mxu0 0.0
    %7035 = vmatpush1.msra.mxu0 0.0
    %7036 = vmatprep.subr.mxu0 0.0
    %7037 = vmatpush1.msra.mxu0 0.0
    %7038 = vmatprep.subr.mxu0 0.0
    %7039 = vmatpush1.msra.mxu0 0.0
    %7040 = vmatprep.subr.mxu0 0.0
    %7041 = vmatpush1.msra.mxu0 0.0
    %7042 = vmatprep.subr.mxu0 0.0
    %7043 = vmatpush1.msra.mxu0 0.0
    %7044 = vmatprep.subr.mxu0 0.0
    %7045 = vmatpush1.msra.mxu0 0.0
    %7046 = vmatprep.subr.mxu0 0.0
    %7047 = vmatpush1.msra.mxu0 0.0
    %7048 = vmatprep.subr.mxu0 0.0
    %7049 = vmatpush1.msra.mxu0 0.0
    %7050 = vmatprep.subr.mxu0 0.0
    %7051 = vmatpush1.msra.mxu0 0.0
    %7052 = vmatprep.subr.mxu0 0.0
    %7053 = vmatpush1.msra.mxu0 0.0
    %7054 = vmatprep.subr.mxu0 0.0
    %7055 = vmatpush1.msra.mxu0 0.0
    %7056 = vmatprep.subr.mxu0 0.0
    %7057 = vmatpush1.msra.mxu0 0.0
    %7058 = vmatprep.subr.mxu0 0.0
    %7059 = vmatpush1.msra.mxu0 0.0
    %7060 = vmatprep.subr.mxu0 0.0
    %7061 = vmatpush1.msra.mxu0 0.0
    %7062 = vmatprep.subr.mxu0 0.0
    %7063 = vmatpush1.msra.mxu0 0.0
    %7064 = vmatprep.subr.mxu0 0.0
    %7065 = vmatpush1.msra.mxu0 0.0
    %7066 = vmatprep.subr.mxu0 0.0
    %7067 = vmatpush1.msra.mxu0 0.0
    %7068 = vmatprep.subr.mxu0 0.0
    %7069 = vmatpush1.msra.mxu0 0.0
    %7070 = vmatprep.subr.mxu0 0.0
    %7071 = vmatpush1.msra.mxu0 0.0
    %7072 = vmatprep.subr.mxu0 0.0
    %7073 = vmatpush1.msra.mxu0 0.0
    %7074 = vmatprep.subr.mxu0 0.0
    %7075 = vmatpush1.msra.mxu0 0.0
    %7076 = vmatprep.subr.mxu0 0.0
    %7077 = vmatpush1.msra.mxu0 0.0
    %7078 = vmatprep.subr.mxu0 0.0
    %7079 = vmatpush1.msra.mxu0 0.0
    %7080 = vmatprep.subr.mxu0 0.0
    %7081 = vmatpush1.msra.mxu0 0.0
    %7082 = vmatprep.subr.mxu0 0.0
    %7083 = vmatpush1.msra.mxu0 0.0
    %7084 = vmatprep.subr.mxu0 0.0
    %7085 = vmatpush1.msra.mxu0 0.0
    %7086 = vmatprep.subr.mxu0 0.0
    %7087 = vmatpush1.msra.mxu0 0.0
    %7088 = vmatprep.subr.mxu0 0.0
    %7089 = vmatpush1.msra.mxu0 0.0
    %7090 = vmatprep.subr.mxu0 0.0
    %7091 = vmatpush1.msra.mxu0 0.0
    %7092 = vmatprep.subr.mxu0 0.0
    %7093 = vmatpush1.msra.mxu0 0.0
    %7094 = vmatprep.subr.mxu0 0.0
    %7095 = vmatpush1.msra.mxu0 0.0
    %7096 = vmatprep.mubr.f32.mxu0 0.0
    %7097 = vmatmul.mubr.f32.gmra.mrb[0].mxu0 %v7030
    %v7098 = vpop.f32.mrb[0].mxu0
    %v7099 = vadd.f32 %v7022, %v7098
    %v7100 = vpop.f32.mrb[0].mxu0
    %7101 = vdwg.mxu0
    %v7102 = vrot.slane %v921, 7
    %v7103 = vrot.slane %v926, 6
    %v7104 = vsel %vm976, %v7103, %v7102
    %v7106 = vadd.f32 %v7099, %v7104
    %v7107 = vsub.f32 0.0, %v7106
    %v7108 = vmul.f32 %v7107, 1.442695
    %v7109 = vpow.pop %v7108
    %v7110 = vadd.f32 %v7109, 1.0
    %v7111 = vrcp.pop %v7110
    %v7112 = vmul.f32 1.0, %v7111
    %v7113 = vtanh.pop %v7106
    %v7114 = vmul.f32 %v7112, %v6354
    %7116 = vrot.lane.b32.xlu0 %v7113, 64
    %v7117 = vpop.permute.xlu0 %7116
    %v7119 = vmul.f32 %v7112, %v7117
    %7121 = vrot.lane.b32.xlu0 %v7119, 32
    %v7122 = vpop.permute.xlu0 %7121
    %v7124 = vadd.f32 %v7114, %v7122
    %v7125 = vtanh.pop %v7124
    %7127 = vrot.lane.b32.xlu0 %v7125, 64
    %v7128 = vpop.permute.xlu0 %7127
    %v7130 = vmul.f32 %v7112, %v7128
    %v7133 = vrot.slane %v1930, 1
    %v7134 = vrot.slane %v1931, 1
    %v7137 = vrot.slane %v2688, 2
    %v7138 = vrot.slane %v2689, 2
    %v7141 = vrot.slane %v3458, 3
    %v7142 = vrot.slane %v3459, 3
    %v7145 = vrot.slane %v4228, 4
    %v7146 = vrot.slane %v4229, 4
    %v7149 = vrot.slane %v4998, 5
    %v7150 = vrot.slane %v4999, 5
    %v7153 = vrot.slane %v5768, 6
    %v7154 = vrot.slane %v5769, 6
    %v7157 = vrot.slane %v6538, 7
    %v7158 = vrot.slane %v6539, 7
    %v7161 = vrot.slane %v1153, 7
    %v7162 = vsel %vm976, %v7161, %v1152
    %v7163 = vrot.slane %v7134, 7
    %v7164 = vsel %vm976, %v7163, %v7133
    %v7165 = vrot.slane %v7138, 7
    %v7166 = vsel %vm976, %v7165, %v7137
    %v7167 = vrot.slane %v7142, 7
    %v7168 = vsel %vm976, %v7167, %v7141
    %v7169 = vrot.slane %v7146, 7
    %v7170 = vsel %vm976, %v7169, %v7145
    %v7171 = vrot.slane %v7150, 7
    %v7172 = vsel %vm976, %v7171, %v7149
    %v7173 = vrot.slane %v7154, 7
    %v7174 = vsel %vm976, %v7173, %v7153
    %v7175 = vrot.slane %v7158, 7
    %v7176 = vsel %vm976, %v7175, %v7157
    %vm7185 = vcmask 25600
    %7186 = vst.msk [vmem:[%s19] sm:$0x3] %vm7185, %v7162
    %7187 = vst.msk [vmem:[%s19 + $0x2] sm:$0x3] %vm7185, %v7164
    %7188 = vst.msk [vmem:[%s19 + $0x4] sm:$0x3] %vm7185, %v7166
    %7189 = vst.msk [vmem:[%s19 + $0x6] sm:$0x3] %vm7185, %v7168
    %7190 = vst.msk [vmem:[%s19 + $0x8] sm:$0x3] %vm7185, %v7170
    %7191 = vst.msk [vmem:[%s19 + $0xa] sm:$0x3] %vm7185, %v7172
    %7192 = vst.msk [vmem:[%s19 + $0xc] sm:$0x3] %vm7185, %v7174
    %7193 = vst.msk [vmem:[%s19 + $0xe] sm:$0x3] %vm7185, %v7176
    %v7194 = vrot.slane %v1935, 1
    %v7195 = vrot.slane %v2693, 2
    %v7196 = vrot.slane %v3463, 3
    %v7197 = vrot.slane %v4233, 4
    %v7198 = vrot.slane %v5003, 5
    %v7199 = vrot.slane %v5773, 6
    %v7200 = vrot.slane %v6543, 7
    %v7201 = vrot.slane %v7194, 7
    %v7202 = vsel %vm976, %v7201, %v2031
    %v7203 = vrot.slane %v7195, 7
    %v7204 = vsel %vm976, %v7203, %v2792
    %v7205 = vrot.slane %v7196, 7
    %v7206 = vsel %vm976, %v7205, %v3562
    %v7207 = vrot.slane %v7197, 7
    %v7208 = vsel %vm976, %v7207, %v4332
    %v7209 = vrot.slane %v7198, 7
    %v7210 = vsel %vm976, %v7209, %v5102
    %v7211 = vrot.slane %v7199, 7
    %v7212 = vsel %vm976, %v7211, %v5872
    %v7213 = vrot.slane %v7200, 7
    %v7214 = vsel %vm976, %v7213, %v6642
    %7223 = vst.msk [vmem:[%s18] sm:$0x3] %vm7185, %v1258
    %7224 = vst.msk [vmem:[%s18 + $0x2] sm:$0x3] %vm7185, %v7202
    %7225 = vst.msk [vmem:[%s18 + $0x4] sm:$0x3] %vm7185, %v7204
    %7226 = vst.msk [vmem:[%s18 + $0x6] sm:$0x3] %vm7185, %v7206
    %7227 = vst.msk [vmem:[%s18 + $0x8] sm:$0x3] %vm7185, %v7208
    %7228 = vst.msk [vmem:[%s18 + $0xa] sm:$0x3] %vm7185, %v7210
    %7229 = vst.msk [vmem:[%s18 + $0xc] sm:$0x3] %vm7185, %v7212
    %7230 = vst.msk [vmem:[%s18 + $0xe] sm:$0x3] %vm7185, %v7214
    %7232 = vrot.lane.b32.xlu0 %v6745, 32
    %v7233 = vpop.permute.xlu0 %7232
    %vm7235 = vcmask 254976
    %7236 = vst.msk [vmem:[%s20] sm:$0x3] %vm7235, %v7233
    %v7237 = vsel %vm7185, %v6569, 0.0
    %7238 = vadd.xlane.f32.xlu0 %v7237
    %v7239 = vpop.xlane.xlu0 %7238
    %v7240 = vrot.slane %v7239, 4
    %v7241 = vadd.f32 %v7239, %v7240
    %v7242 = vrot.slane %v7241, 2
    %v7243 = vadd.f32 %v7241, %v7242
    %v7244 = vrot.slane %v7243, 1
    %v7245 = vadd.f32 %v7243, %v7244
    %s7246 = vtos %v7245
    %v7247 = vrcp.pop 24.0
    %s7248 = vtos %v7247
    %s7249 = smul.f32 %s7246, %s7248
    %s7250 = scalar_lea.smem [#allocation2], 0
    %7251 = sst [smem:[%s7250]] %s7249
    %v7254 = vrot.slane %v2308, 1
    %v7255 = vrot.slane %v2309, 1
    %v7258 = vrot.slane %v3073, 2
    %v7259 = vrot.slane %v3074, 2
    %v7262 = vrot.slane %v3843, 3
    %v7263 = vrot.slane %v3844, 3
    %v7266 = vrot.slane %v4613, 4
    %v7267 = vrot.slane %v4614, 4
    %v7270 = vrot.slane %v5383, 5
    %v7271 = vrot.slane %v5384, 5
    %v7274 = vrot.slane %v6153, 6
    %v7275 = vrot.slane %v6154, 6
    %v7278 = vrot.slane %v6923, 7
    %v7279 = vrot.slane %v6924, 7
    %v7282 = vrot.slane %v1544, 7
    %v7283 = vsel %vm976, %v7282, %v1543
    %v7284 = vrot.slane %v7255, 7
    %v7285 = vsel %vm976, %v7284, %v7254
    %v7286 = vrot.slane %v7259, 7
    %v7287 = vsel %vm976, %v7286, %v7258
    %v7288 = vrot.slane %v7263, 7
    %v7289 = vsel %vm976, %v7288, %v7262
    %v7290 = vrot.slane %v7267, 7
    %v7291 = vsel %vm976, %v7290, %v7266
    %v7292 = vrot.slane %v7271, 7
    %v7293 = vsel %vm976, %v7292, %v7270
    %v7294 = vrot.slane %v7275, 7
    %v7295 = vsel %vm976, %v7294, %v7274
    %v7296 = vrot.slane %v7279, 7
    %v7297 = vsel %vm976, %v7296, %v7278
    %s7306 = scalar_lea.vmem %s19, 16
    %7307 = vst.msk [vmem:[%s7306] sm:$0x3] %vm7185, %v7283
    %7308 = vst.msk [vmem:[%s7306 + $0x2] sm:$0x3] %vm7185, %v7285
    %7309 = vst.msk [vmem:[%s7306 + $0x4] sm:$0x3] %vm7185, %v7287
    %7310 = vst.msk [vmem:[%s7306 + $0x6] sm:$0x3] %vm7185, %v7289
    %7311 = vst.msk [vmem:[%s7306 + $0x8] sm:$0x3] %vm7185, %v7291
    %7312 = vst.msk [vmem:[%s7306 + $0xa] sm:$0x3] %vm7185, %v7293
    %7313 = vst.msk [vmem:[%s7306 + $0xc] sm:$0x3] %vm7185, %v7295
    %7314 = vst.msk [vmem:[%s7306 + $0xe] sm:$0x3] %vm7185, %v7297
    %v7315 = vrot.slane %v2313, 1
    %v7316 = vrot.slane %v3078, 2
    %v7317 = vrot.slane %v3848, 3
    %v7318 = vrot.slane %v4618, 4
    %v7319 = vrot.slane %v5388, 5
    %v7320 = vrot.slane %v6158, 6
    %v7321 = vrot.slane %v6928, 7
    %v7322 = vrot.slane %v7315, 7
    %v7323 = vsel %vm976, %v7322, %v2409
    %v7324 = vrot.slane %v7316, 7
    %v7325 = vsel %vm976, %v7324, %v3177
    %v7326 = vrot.slane %v7317, 7
    %v7327 = vsel %vm976, %v7326, %v3947
    %v7328 = vrot.slane %v7318, 7
    %v7329 = vsel %vm976, %v7328, %v4717
    %v7330 = vrot.slane %v7319, 7
    %v7331 = vsel %vm976, %v7330, %v5487
    %v7332 = vrot.slane %v7320, 7
    %v7333 = vsel %vm976, %v7332, %v6257
    %v7334 = vrot.slane %v7321, 7
    %v7335 = vsel %vm976, %v7334, %v7027
    %s7344 = scalar_lea.vmem %s18, 16
    %7345 = vst.msk [vmem:[%s7344] sm:$0x3] %vm7185, %v1649
    %7346 = vst.msk [vmem:[%s7344 + $0x2] sm:$0x3] %vm7185, %v7323
    %7347 = vst.msk [vmem:[%s7344 + $0x4] sm:$0x3] %vm7185, %v7325
    %7348 = vst.msk [vmem:[%s7344 + $0x6] sm:$0x3] %vm7185, %v7327
    %7349 = vst.msk [vmem:[%s7344 + $0x8] sm:$0x3] %vm7185, %v7329
    %7350 = vst.msk [vmem:[%s7344 + $0xa] sm:$0x3] %vm7185, %v7331
    %7351 = vst.msk [vmem:[%s7344 + $0xc] sm:$0x3] %vm7185, %v7333
    %7352 = vst.msk [vmem:[%s7344 + $0xe] sm:$0x3] %vm7185, %v7335
    %7354 = vrot.lane.b32.xlu0 %v7130, 32
    %v7355 = vpop.permute.xlu0 %7354
    %s7357 = scalar_lea.vmem %s20, 2
    %7358 = vst.msk [vmem:[%s7357] sm:$0x3] %vm7235, %v7355
    %v7359 = vsel %vm7185, %v6954, 0.0
    %7360 = vadd.xlane.f32.xlu0 %v7359
    %v7361 = vpop.xlane.xlu0 %7360
    %v7362 = vrot.slane %v7361, 4
    %v7363 = vadd.f32 %v7361, %v7362
    %v7364 = vrot.slane %v7363, 2
    %v7365 = vadd.f32 %v7363, %v7364
    %v7366 = vrot.slane %v7365, 1
    %v7367 = vadd.f32 %v7365, %v7366
    %s7368 = vtos %v7367
    %v7369 = vrcp.pop 24.0
    %s7370 = vtos %v7369
    %s7371 = smul.f32 %s7368, %s7370
    %s7372 = scalar_lea.smem [#allocation2], 1
    %7373 = sst [smem:[%s7372]] %s7371
    // Predicated region
    $region74: #{backbone_brits_forward.1} parent=1 // pred_check
      _
    $region75: #{backbone_brits_forward.1} parent=1 // pred_check_branch
      %7375 = sbr.rel (0) target = $region77
    $region76: #{backbone_brits_forward.1} parent=1 // pred_region
      _
    $region77: #{backbone_brits_forward.1} parent=1 // pred_fallthru
      _
    // Predicated region
    $region78: #{backbone_brits_forward.1} parent=1 // pred_check
      _
    $region79: #{backbone_brits_forward.1} parent=1 // pred_check_branch
      %7377 = sbr.rel (0) target = $region81
    $region80: #{backbone_brits_forward.1} parent=1 // pred_region
      _
    $region81: #{backbone_brits_forward.1} parent=1 // pred_fallthru
      _
    // Predicated region
    $region82: #{backbone_brits_forward.1} parent=1 // pred_check
      _
    $region83: #{backbone_brits_forward.1} parent=1 // pred_check_branch
      %7379 = sbr.rel (0) target = $region85
    $region84: #{backbone_brits_forward.1} parent=1 // pred_region
      _
    $region85: #{backbone_brits_forward.1} parent=1 // pred_fallthru
      _
    // Predicated region
    $region86: #{backbone_brits_forward.1} parent=1 // pred_check
      _
    $region87: #{backbone_brits_forward.1} parent=1 // pred_check_branch
      %7381 = sbr.rel (0) target = $region89
    $region88: #{backbone_brits_forward.1} parent=1 // pred_region
      %s7383 = ssub.s32 16, 16
      %7384 = vsyncadd [#allocation3], %s7383
      %s7386 = sshll.u32 %s21, 4
      %s7387 = int_to_ptr.vmem [resolvable:$true] %s7386
      %7389 = dma.smem_to_vmem [#allocation2], 16, %s7387, [#allocation3]
    $region89: #{backbone_brits_forward.1} parent=1 // pred_fallthru
      _
    // Predicated region
    $region90: #{backbone_brits_forward.1} parent=1 // pred_check
      _
    $region91: #{backbone_brits_forward.1} parent=1 // pred_check_branch
      %7391 = sbr.rel (0) target = $region93
    $region92: #{backbone_brits_forward.1} parent=1 // pred_region
      _
    $region93: #{backbone_brits_forward.1} parent=1 // pred_fallthru
      _
    // Predicated region
    $region94: #{backbone_brits_forward.1} parent=1 // pred_check
      _
    $region95: #{backbone_brits_forward.1} parent=1 // pred_check_branch
      %7393 = sbr.rel (0) target = $region97
    $region96: #{backbone_brits_forward.1} parent=1 // pred_region
      _
    $region97: #{backbone_brits_forward.1} parent=1 // pred_fallthru
      _
    // Predicated region
    $region98: #{backbone_brits_forward.1} parent=1 // pred_check
      _
    $region99: #{backbone_brits_forward.1} parent=1 // pred_check_branch
      %7395 = sbr.rel (0) target = $region101
    $region100: #{backbone_brits_forward.1} parent=1 // pred_region
      _
    $region101: #{backbone_brits_forward.1} parent=1 // pred_fallthru
      _
    // Predicated region
    $region102: #{backbone_brits_forward.1} parent=1 // pred_check
      _
    $region103: #{backbone_brits_forward.1} parent=1 // pred_check_branch
      %7397 = sbr.rel (0) target = $region105
    $region104: #{backbone_brits_forward.1} parent=1 // pred_region
      %7398 = dma.done [#allocation3], 16
    $region105: #{backbone_brits_forward.1} parent=1 // pred_fallthru
      _
    %7399 = sfence
    %7400 = vsyncpa [#allocation3], 1

</llo_original>
